<compile_context>
chip_gen: v7x
topology: tpu7x:2x2x1
jax: 0.10.0
libtpu: 0.0.40
codegen_flags: <defaults>
</compile_context>

<pallas_src>
import functools
from typing import NamedTuple

import jax
import jax.numpy as jnp
from jax import lax
from jax.experimental import pallas as pl
from jax.experimental.pallas import tpu as pltpu


def _round_up(v, m):
    return ((v + m - 1) // m) * m


class _SlabOffsets(NamedTuple):
    W0IH: int   # (E,   8*HP) layer-0 input weights, both dirs, gate-major cols
    W0HH: int   # (2HP, 8*HP) layer-0 block-diagonal recurrent weights
    B0: int     # row of merged layer-0 bias (b_ih + b_hh)
    W1IH: int   # (2HP, 8*HP) layer-1 input weights (rows: fwd-part / bwd-part)
    W1HH: int   # (2HP, 8*HP) layer-1 block-diagonal recurrent weights
    B1: int
    WFC: int    # (2HP, 8*HP) hidden2tag weights (valid cols [0:T])
    BFC: int
    ROWS: int


def _slab_offsets(emb_dim, hp):
    d = 2 * hp
    w0ih = 0
    w0hh = w0ih + _round_up(emb_dim, 8)
    b0 = w0hh + d
    w1ih = b0 + 8
    w1hh = w1ih + d
    b1 = w1hh + d
    wfc = b1 + 8
    bfc = wfc + d
    rows = bfc + 8
    return _SlabOffsets(w0ih, w0hh, b0, w1ih, w1hh, b1, wfc, bfc, rows)


def _padded_hidden(h):
    # Per-direction padded width.  With both directions merged lane-wise, each
    # merged gate block is 2*HP wide; HP a multiple of 64 => every gate slice,
    # state slice and store sits on a 128-lane boundary.
    return _round_up(h, 64)


# -----------------------------------------------------------------------------
# Fused kernel: embedding gather + 2-layer biLSTM + Linear + log_softmax.
# Gate layout on the lane axis (width 8*HP): [i_f i_b | f_f f_b | g_f g_b | o_f o_b]
# Merged state layout (width 2*HP):          [h_fwd | h_bwd]
# -----------------------------------------------------------------------------
def _make_kernel(S, E, HP, T, offs):
    D = 2 * HP            # merged (fwd|bwd) state width  (128 for H=32)
    G = 8 * HP            # merged gate width              (512 for H=32)

    def kernel(idx_ref, emb_ref, w_ref, out_ref, x_scr, xw_scr, l0_scr, l1_scr):
        # ---- fused embedding gather: indices from SMEM, table rows from VMEM --
        for s in range(S):
            x_scr[s:s + 1, :] = emb_ref[pl.ds(idx_ref[s], 1), :]

        # Lane mask selecting the fwd half of every merged gate block (hoisted).
        lane = lax.broadcasted_iota(jnp.int32, (1, G), 1)
        fwd_lane = (lane % D) < HP

        def run_layer(whh_r0, l_scr):
            whh_view = w_ref.at[whh_r0:whh_r0 + D, :]   # ref view only, no load
            h = jnp.zeros((1, D), jnp.float32)
            c = jnp.zeros((1, D), jnp.float32)
            # Fully unrolled scan (S static, small).  fwd half consumes time
            # step k, bwd half consumes S-1-k; both halves already sit at their
            # final lane offsets, so one VPU select builds the merged row.
            for k in range(S):
                kb = S - 1 - k
                row = jnp.where(fwd_lane, xw_scr[k:k + 1, :], xw_scr[kb:kb + 1, :])
                if k == 0:
                    gates = row                          # h0 == 0: skip recurrent dot
                else:
                    gates = row + jnp.dot(h, whh_view[...],
                                          preferred_element_type=jnp.float32)
                # Slice BEFORE the nonlinearities; every slice is 128-lane aligned.
                i = jax.nn.sigmoid(gates[:, 0 * D:1 * D])
                f = jax.nn.sigmoid(gates[:, 1 * D:2 * D])
                g = jnp.tanh(gates[:, 2 * D:3 * D])
                o = jax.nn.sigmoid(gates[:, 3 * D:4 * D])
                if k == 0:
                    c = i * g                            # c0 == 0
                else:
                    c = f * c + i * g
                h = o * jnp.tanh(c)
                l_scr[k:k + 1, 0:HP] = h[:, 0:HP]        # fwd half -> row k
                l_scr[kb:kb + 1, HP:D] = h[:, HP:D]      # bwd half -> row S-1-k

        # ---- layer 0: one lane-dense bulk input projection for both dirs -----
        xw_scr[...] = (jnp.dot(x_scr[...], w_ref[offs.W0IH:offs.W0IH + E, :],
                               preferred_element_type=jnp.float32)
                       + w_ref[offs.B0:offs.B0 + 1, :])
        run_layer(offs.W0HH, l0_scr)

        # ---- layer 1: input is the merged (fwd|bwd) layer-0 sequence ---------
        xw_scr[...] = (jnp.dot(l0_scr[...], w_ref[offs.W1IH:offs.W1IH + D, :],
                               preferred_element_type=jnp.float32)
                       + w_ref[offs.B1:offs.B1 + 1, :])
        run_layer(offs.W1HH, l1_scr)

        # ---- hidden2tag Linear + log_softmax(dim=1) ---------------------------
        full = (jnp.dot(l1_scr[...], w_ref[offs.WFC:offs.WFC + D, :],
                        preferred_element_type=jnp.float32)
                + w_ref[offs.BFC:offs.BFC + 1, :])
        logits = full[:, 0:T]                            # drop padded columns
        m = jnp.max(logits, axis=1, keepdims=True)
        shifted = logits - m
        lse = jnp.log(jnp.sum(jnp.exp(shifted), axis=1, keepdims=True))
        out_ref[...] = (shifted - lse).astype(out_ref.dtype)

    return kernel


# -----------------------------------------------------------------------------
# Full forward pass: everything (including the embedding gather) in one call.
# -----------------------------------------------------------------------------
@functools.partial(jax.jit, static_argnames=("hidden_dim", "tag_vocab_size"))
def dnn_pos_tagger_forward(word_idx_tensor, embedding, slab, hidden_dim, tag_vocab_size):
    S = word_idx_tensor.shape[-1]
    idx = word_idx_tensor.reshape(S).astype(jnp.int32)
    E = embedding.shape[1]
    HP = _padded_hidden(hidden_dim)
    T = tag_vocab_size
    D, G = 2 * HP, 8 * HP
    offs = _slab_offsets(E, HP)
    assert slab.shape == (offs.ROWS, G), (slab.shape, offs)

    # Advisory cost hint for XLA's scheduler (launch/DMA dominates at S=8).
    flops = (2 * S * E * G            # layer-0 bulk input projection
             + 2 * S * D * G          # layer-1 bulk input projection
             + 2 * 2 * (S - 1) * D * G  # recurrent dots (2 layers, k>0 only)
             + 2 * S * D * G)         # hidden2tag (full padded width)
    transcendentals = 2 * S * 5 * D + S * (T + 1)
    bytes_accessed = 4 * (embedding.size + slab.size + S * T + S)

    kernel = _make_kernel(S, E, HP, T, offs)
    vmem = pl.BlockSpec(memory_space=pltpu.MemorySpace.VMEM)
    smem = pl.BlockSpec(memory_space=pltpu.MemorySpace.SMEM)

    return pl.pallas_call(
        kernel,
        out_shape=jax.ShapeDtypeStruct((S, T), jnp.float32),
        in_specs=[smem, vmem, vmem],            # word_idx, embedding table, weight slab
        out_specs=vmem,
        scratch_shapes=[
            pltpu.VMEM((S, E), jnp.float32),    # gathered embeddings
            pltpu.VMEM((S, G), jnp.float32),    # bulk gate pre-activations
            pltpu.VMEM((S, D), jnp.float32),    # layer-0 merged hidden sequence
            pltpu.VMEM((S, D), jnp.float32),    # layer-1 merged hidden sequence
        ],
        cost_estimate=pl.CostEstimate(flops=flops, transcendentals=transcendentals,
                                      bytes_accessed=bytes_accessed),
    )(idx, embedding.astype(jnp.float32), slab)


# -----------------------------------------------------------------------------
# Deterministic parameter construction: PyTorch-layout weights, then a one-time
# re-layout into the single kernel slab (gate-major / direction-minor columns,
# zero-padded to HP per direction, biases = b_ih + b_hh).
# -----------------------------------------------------------------------------
def make_params(key, vocab_size, emb_dim, hidden_dim, tag_vocab_size):
    H, E, T = hidden_dim, emb_dim, tag_vocab_size
    HP = _padded_hidden(H)
    offs = _slab_offsets(E, HP)
    G = 8 * HP

    k_lstm = 1.0 / (H ** 0.5)
    keys = jax.random.split(key, 24)
    kit = iter(keys)

    def u(shape, scale):
        return jax.random.uniform(next(kit), shape, jnp.float32, -scale, scale)

    def lstm_dir(in_dim):
        # PyTorch layouts: W_ih (4H, in), W_hh (4H, H), b_ih/b_hh (4H,); gates [i,f,g,o]
        w_ih = u((4 * H, in_dim), k_lstm)
        w_hh = u((4 * H, H), k_lstm)
        b = u((4 * H,), k_lstm) + u((4 * H,), k_lstm)
        return w_ih, w_hh, b

    embedding = jax.random.normal(next(kit), (vocab_size, emb_dim), jnp.float32)
    l0 = [lstm_dir(E), lstm_dir(E)]            # [fwd, bwd]
    l1 = [lstm_dir(2 * H), lstm_dir(2 * H)]
    k_fc = 1.0 / ((2 * H) ** 0.5)
    fc_w = u((T, 2 * H), k_fc)                 # PyTorch Linear layout (out, in)
    fc_b = u((T,), k_fc)

    slab = jnp.zeros((offs.ROWS, G), jnp.float32)

    def col(gate, d):                          # gate-major, direction-minor columns
        return (2 * gate + d) * HP

    for d in range(2):
        w_ih, w_hh, b = l0[d]
        for g in range(4):
            c0 = col(g, d)
            slab = slab.at[offs.W0IH:offs.W0IH + E, c0:c0 + H].set(w_ih[g*H:(g+1)*H, :].T)
            r = offs.W0HH + d * HP             # block-diagonal recurrent weights
            slab = slab.at[r:r + H, c0:c0 + H].set(w_hh[g*H:(g+1)*H, :].T)
            slab = slab.at[offs.B0, c0:c0 + H].set(b[g*H:(g+1)*H])
    for d in range(2):
        w_ih, w_hh, b = l1[d]
        for g in range(4):
            c0 = col(g, d)
            blk = w_ih[g*H:(g+1)*H, :]                                      # (H, 2H)
            slab = slab.at[offs.W1IH:offs.W1IH + H, c0:c0 + H].set(blk[:, 0:H].T)
            slab = slab.at[offs.W1IH + HP:offs.W1IH + HP + H, c0:c0 + H].set(blk[:, H:2*H].T)
            r = offs.W1HH + d * HP
            slab = slab.at[r:r + H, c0:c0 + H].set(w_hh[g*H:(g+1)*H, :].T)
            slab = slab.at[offs.B1, c0:c0 + H].set(b[g*H:(g+1)*H])
    slab = slab.at[offs.WFC:offs.WFC + H, 0:T].set(fc_w[:, 0:H].T)
    slab = slab.at[offs.WFC + HP:offs.WFC + HP + H, 0:T].set(fc_w[:, H:2*H].T)
    slab = slab.at[offs.BFC, 0:T].set(fc_b)

    kernel_params = {"embedding": embedding, "slab": slab}
    raw_params = {"embedding": embedding, "l0": l0, "l1": l1, "fc_w": fc_w, "fc_b": fc_b}
    return kernel_params, raw_params


# -----------------------------------------------------------------------------
# Pure-JAX reference (PyTorch semantics) used as a correctness oracle.
# -----------------------------------------------------------------------------
def reference_forward(word_idx_tensor, raw):
    x = raw["embedding"][word_idx_tensor.reshape(-1)]          # (S, E)

    def run_dir(x_seq, w_ih, w_hh, b, reverse):
        S = x_seq.shape[0]
        H = w_hh.shape[1]
        h = jnp.zeros((H,), jnp.float32)
        c = jnp.zeros((H,), jnp.float32)
        out = [None] * S
        order = range(S - 1, -1, -1) if reverse else range(S)
        for t in order:
            gates = x_seq[t] @ w_ih.T + h @ w_hh.T + b
            i = jax.nn.sigmoid(gates[0:H])
            f = jax.nn.sigmoid(gates[H:2*H])
            g = jnp.tanh(gates[2*H:3*H])
            o = jax.nn.sigmoid(gates[3*H:4*H])
            c = f * c + i * g
            h = o * jnp.tanh(c)
            out[t] = h
        return jnp.stack(out, axis=0)

    def run_layer(x_seq, layer):
        of = run_dir(x_seq, *layer[0], reverse=False)
        ob = run_dir(x_seq, *layer[1], reverse=True)
        return jnp.concatenate([of, ob], axis=1)

    h1 = run_layer(run_layer(x, raw["l0"]), raw["l1"])
    logits = h1 @ raw["fc_w"].T + raw["fc_b"]
    return jax.nn.log_softmax(logits, axis=1)


if __name__ == "__main__":
    VOCAB, EMB_DIM, HIDDEN, TAGS, SEQ = 50, 64, 32, 16, 8

    key = jax.random.PRNGKey(0)
    pkey, ikey = jax.random.split(key)
    kernel_params, raw_params = make_params(pkey, VOCAB, EMB_DIM, HIDDEN, TAGS)

    # word_idx_tensor: (1, seq_len), batch of one sentence, as in the module.
    word_idx = jax.random.randint(ikey, (1, SEQ), 0, VOCAB, dtype=jnp.int32)

    tag_scores = dnn_pos_tagger_forward(word_idx, kernel_params["embedding"],
                                        kernel_params["slab"],
                                        hidden_dim=HIDDEN, tag_vocab_size=TAGS)
    tag_scores = jax.block_until_ready(tag_scores)

    assert tag_scores.shape == (SEQ, TAGS), tag_scores.shape
    assert tag_scores.dtype == jnp.float32
    row_sums = jnp.exp(tag_scores).sum(axis=1)
    assert jnp.allclose(row_sums, 1.0, atol=1e-4), row_sums
    assert bool(jnp.all(jnp.isfinite(tag_scores)))

    # Compare with the pure-JAX reference.  Tolerance allows for differing
    # MXU f32-matmul pass counts between Mosaic and XLA; layout/packing bugs
    # would show up as O(0.1+) differences.
    ref = reference_forward(word_idx, raw_params)
    max_err = float(jnp.max(jnp.abs(tag_scores - ref)))
    assert max_err < 5e-2, f"max abs diff vs reference = {max_err}"

    print("KERNEL_OK")
</pallas_src>

<mosaic_0001>
module attributes {stable_mosaic.version = 11 : i64} {
  func.func @kernel(%arg0: memref<8xi32, #tpu.memory_space<smem>>, %arg1: memref<50x64xf32, #tpu.memory_space<vmem>>, %arg2: memref<600x512xf32, #tpu.memory_space<vmem>>, %arg3: memref<8x16xf32, #tpu.memory_space<vmem>>, %arg4: memref<8x64xf32, #tpu.memory_space<vmem>>, %arg5: memref<8x512xf32, #tpu.memory_space<vmem>>, %arg6: memref<8x128xf32, #tpu.memory_space<vmem>>, %arg7: memref<8x128xf32, #tpu.memory_space<vmem>>) attributes {dimension_semantics = [], scalar_prefetch = 0 : i64, scratch_operands = 4 : i64, tpu.core_type = #tpu.core_type<tc>} {
    %c0 = arith.constant 0 : index
    %0 = memref.load %arg0[%c0] : memref<8xi32, #tpu.memory_space<smem>>
    %1 = arith.index_cast %0 : i32 to index
    %c0_0 = arith.constant 0 : index
    %2 = vector.load %arg1[%1, %c0_0] : memref<50x64xf32, #tpu.memory_space<vmem>>, vector<1x64xf32>
    %c0_1 = arith.constant 0 : index
    %c0_2 = arith.constant 0 : index
    %3 = vector.load %arg4[%c0_1, %c0_2] : memref<8x64xf32, #tpu.memory_space<vmem>>, vector<1x64xf32>
    tpu.vector_store %arg4[%c0_1, %c0_2], %2 {strides = array<i32>} : memref<8x64xf32, #tpu.memory_space<vmem>>, vector<1x64xf32>,
    %c1 = arith.constant 1 : index
    %4 = memref.load %arg0[%c1] : memref<8xi32, #tpu.memory_space<smem>>
    %5 = arith.index_cast %4 : i32 to index
    %c0_3 = arith.constant 0 : index
    %6 = vector.load %arg1[%5, %c0_3] : memref<50x64xf32, #tpu.memory_space<vmem>>, vector<1x64xf32>
    %c1_4 = arith.constant 1 : index
    %c0_5 = arith.constant 0 : index
    %7 = vector.load %arg4[%c1_4, %c0_5] : memref<8x64xf32, #tpu.memory_space<vmem>>, vector<1x64xf32>
    tpu.vector_store %arg4[%c1_4, %c0_5], %6 {strides = array<i32>} : memref<8x64xf32, #tpu.memory_space<vmem>>, vector<1x64xf32>,
    %c2 = arith.constant 2 : index
    %8 = memref.load %arg0[%c2] : memref<8xi32, #tpu.memory_space<smem>>
    %9 = arith.index_cast %8 : i32 to index
    %c0_6 = arith.constant 0 : index
    %10 = vector.load %arg1[%9, %c0_6] : memref<50x64xf32, #tpu.memory_space<vmem>>, vector<1x64xf32>
    %c2_7 = arith.constant 2 : index
    %c0_8 = arith.constant 0 : index
    %11 = vector.load %arg4[%c2_7, %c0_8] : memref<8x64xf32, #tpu.memory_space<vmem>>, vector<1x64xf32>
    tpu.vector_store %arg4[%c2_7, %c0_8], %10 {strides = array<i32>} : memref<8x64xf32, #tpu.memory_space<vmem>>, vector<1x64xf32>,
    %c3 = arith.constant 3 : index
    %12 = memref.load %arg0[%c3] : memref<8xi32, #tpu.memory_space<smem>>
    %13 = arith.index_cast %12 : i32 to index
    %c0_9 = arith.constant 0 : index
    %14 = vector.load %arg1[%13, %c0_9] : memref<50x64xf32, #tpu.memory_space<vmem>>, vector<1x64xf32>
    %c3_10 = arith.constant 3 : index
    %c0_11 = arith.constant 0 : index
    %15 = vector.load %arg4[%c3_10, %c0_11] : memref<8x64xf32, #tpu.memory_space<vmem>>, vector<1x64xf32>
    tpu.vector_store %arg4[%c3_10, %c0_11], %14 {strides = array<i32>} : memref<8x64xf32, #tpu.memory_space<vmem>>, vector<1x64xf32>,
    %c4 = arith.constant 4 : index
    %16 = memref.load %arg0[%c4] : memref<8xi32, #tpu.memory_space<smem>>
    %17 = arith.index_cast %16 : i32 to index
    %c0_12 = arith.constant 0 : index
    %18 = vector.load %arg1[%17, %c0_12] : memref<50x64xf32, #tpu.memory_space<vmem>>, vector<1x64xf32>
    %c4_13 = arith.constant 4 : index
    %c0_14 = arith.constant 0 : index
    %19 = vector.load %arg4[%c4_13, %c0_14] : memref<8x64xf32, #tpu.memory_space<vmem>>, vector<1x64xf32>
    tpu.vector_store %arg4[%c4_13, %c0_14], %18 {strides = array<i32>} : memref<8x64xf32, #tpu.memory_space<vmem>>, vector<1x64xf32>,
    %c5 = arith.constant 5 : index
    %20 = memref.load %arg0[%c5] : memref<8xi32, #tpu.memory_space<smem>>
    %21 = arith.index_cast %20 : i32 to index
    %c0_15 = arith.constant 0 : index
    %22 = vector.load %arg1[%21, %c0_15] : memref<50x64xf32, #tpu.memory_space<vmem>>, vector<1x64xf32>
    %c5_16 = arith.constant 5 : index
    %c0_17 = arith.constant 0 : index
    %23 = vector.load %arg4[%c5_16, %c0_17] : memref<8x64xf32, #tpu.memory_space<vmem>>, vector<1x64xf32>
    tpu.vector_store %arg4[%c5_16, %c0_17], %22 {strides = array<i32>} : memref<8x64xf32, #tpu.memory_space<vmem>>, vector<1x64xf32>,
    %c6 = arith.constant 6 : index
    %24 = memref.load %arg0[%c6] : memref<8xi32, #tpu.memory_space<smem>>
    %25 = arith.index_cast %24 : i32 to index
    %c0_18 = arith.constant 0 : index
    %26 = vector.load %arg1[%25, %c0_18] : memref<50x64xf32, #tpu.memory_space<vmem>>, vector<1x64xf32>
    %c6_19 = arith.constant 6 : index
    %c0_20 = arith.constant 0 : index
    %27 = vector.load %arg4[%c6_19, %c0_20] : memref<8x64xf32, #tpu.memory_space<vmem>>, vector<1x64xf32>
    tpu.vector_store %arg4[%c6_19, %c0_20], %26 {strides = array<i32>} : memref<8x64xf32, #tpu.memory_space<vmem>>, vector<1x64xf32>,
    %c7 = arith.constant 7 : index
    %28 = memref.load %arg0[%c7] : memref<8xi32, #tpu.memory_space<smem>>
    %29 = arith.index_cast %28 : i32 to index
    %c0_21 = arith.constant 0 : index
    %30 = vector.load %arg1[%29, %c0_21] : memref<50x64xf32, #tpu.memory_space<vmem>>, vector<1x64xf32>
    %c7_22 = arith.constant 7 : index
    %c0_23 = arith.constant 0 : index
    %31 = vector.load %arg4[%c7_22, %c0_23] : memref<8x64xf32, #tpu.memory_space<vmem>>, vector<1x64xf32>
    tpu.vector_store %arg4[%c7_22, %c0_23], %30 {strides = array<i32>} : memref<8x64xf32, #tpu.memory_space<vmem>>, vector<1x64xf32>,
    %32 = tpu.iota {dimensions = array<i32: 1>} : vector<1x512xi32>
    %c128_i32 = arith.constant 128 : i32
    %c0_i32 = arith.constant 0 : i32
    %33 = arith.cmpi eq, %c128_i32, %c0_i32 : i32
    %c1_i32 = arith.constant 1 : i32
    %34 = arith.select %33, %c1_i32, %c128_i32 : i32
    %35 = vector.broadcast %34 : i32 to vector<1x512xi32>
    %36 = arith.remsi %32, %35 : vector<1x512xi32>
    %c0_i32_24 = arith.constant 0 : i32
    %37 = vector.broadcast %c0_i32_24 : i32 to vector<1x512xi32>
    %38 = arith.cmpi ne, %36, %37 : vector<1x512xi32>
    %c0_i32_25 = arith.constant 0 : i32
    %39 = vector.broadcast %c0_i32_25 : i32 to vector<1x512xi32>
    %40 = arith.cmpi slt, %36, %39 : vector<1x512xi32>
    %c0_i32_26 = arith.constant 0 : i32
    %41 = arith.cmpi slt, %34, %c0_i32_26 : i32
    %42 = vector.broadcast %41 : i1 to vector<1x512xi1>
    %43 = vector.broadcast %42 : vector<1x512xi1> to vector<1x512xi1>
    %44 = arith.xori %40, %43 : vector<1x512xi1>
    %45 = arith.andi %44, %38 : vector<1x512xi1>
    %46 = vector.broadcast %34 : i32 to vector<1x512xi32>
    %47 = arith.addi %36, %46 : vector<1x512xi32>
    %48 = arith.select %45, %47, %36 : vector<1x512xi1>, vector<1x512xi32>
    %c64_i32 = arith.constant 64 : i32
    %49 = vector.broadcast %c64_i32 : i32 to vector<1x512xi32>
    %50 = arith.cmpi slt, %48, %49 : vector<1x512xi32>
    %c0_27 = arith.constant 0 : index
    %c0_28 = arith.constant 0 : index
    %51 = vector.load %arg4[%c0_27, %c0_28] : memref<8x64xf32, #tpu.memory_space<vmem>>, vector<8x64xf32>
    %c0_29 = arith.constant 0 : index
    %c0_30 = arith.constant 0 : index
    %52 = vector.load %arg2[%c0_29, %c0_30] : memref<600x512xf32, #tpu.memory_space<vmem>>, vector<64x512xf32>
    %cst = arith.constant dense<0.000000e+00> : vector<8x512xf32>
    %53 = tpu.matmul %51, %52, %cst {dimension_numbers = #tpu.dot_dimension_numbers<[1], [0], [0], [1], [0, 0, 1, 1], [], []>} : vector<8x64xf32>, vector<64x512xf32>, vector<8x512xf32> -> vector<8x512xf32>
    %c192 = arith.constant 192 : index
    %c0_31 = arith.constant 0 : index
    %54 = vector.load %arg2[%c192, %c0_31] : memref<600x512xf32, #tpu.memory_space<vmem>>, vector<1x512xf32>
    %55 = vector.broadcast %54 : vector<1x512xf32> to vector<8x512xf32>
    %56 = arith.addf %53, %55 : vector<8x512xf32>
    %c0_32 = arith.constant 0 : index
    %c0_33 = arith.constant 0 : index
    %57 = vector.load %arg5[%c0_32, %c0_33] : memref<8x512xf32, #tpu.memory_space<vmem>>, vector<8x512xf32>
    tpu.vector_store %arg5[%c0_32, %c0_33], %56 {strides = array<i32>} : memref<8x512xf32, #tpu.memory_space<vmem>>, vector<8x512xf32>,
    %c0_34 = arith.constant 0 : index
    %c0_35 = arith.constant 0 : index
    %58 = vector.load %arg5[%c0_34, %c0_35] : memref<8x512xf32, #tpu.memory_space<vmem>>, vector<1x512xf32>
    %c7_36 = arith.constant 7 : index
    %c0_37 = arith.constant 0 : index
    %59 = vector.load %arg5[%c7_36, %c0_37] : memref<8x512xf32, #tpu.memory_space<vmem>>, vector<1x512xf32>
    %60 = arith.select %50, %58, %59 : vector<1x512xi1>, vector<1x512xf32>
    %61 = vector.extract_strided_slice %60 {offsets = [0, 0], sizes = [1, 128], strides = [1, 1]} : vector<1x512xf32> to vector<1x128xf32>
    %62 = arith.negf %61 : vector<1x128xf32>
    %63 = math.exp %62 : vector<1x128xf32>
    %cst_38 = arith.constant 1.000000e+00 : f32
    %64 = vector.broadcast %cst_38 : f32 to vector<1x128xf32>
    %65 = arith.addf %64, %63 : vector<1x128xf32>
    %66 = arith.divf %64, %65 : vector<1x128xf32>
    %67 = vector.extract_strided_slice %60 {offsets = [0, 256], sizes = [1, 128], strides = [1, 1]} : vector<1x512xf32> to vector<1x128xf32>
    %68 = math.tanh %67 : vector<1x128xf32>
    %69 = vector.extract_strided_slice %60 {offsets = [0, 384], sizes = [1, 128], strides = [1, 1]} : vector<1x512xf32> to vector<1x128xf32>
    %70 = arith.negf %69 : vector<1x128xf32>
    %71 = math.exp %70 : vector<1x128xf32>
    %cst_39 = arith.constant 1.000000e+00 : f32
    %72 = vector.broadcast %cst_39 : f32 to vector<1x128xf32>
    %73 = arith.addf %72, %71 : vector<1x128xf32>
    %74 = arith.divf %72, %73 : vector<1x128xf32>
    %75 = arith.mulf %66, %68 : vector<1x128xf32>
    %76 = math.tanh %75 : vector<1x128xf32>
    %77 = arith.mulf %74, %76 : vector<1x128xf32>
    %78 = vector.extract_strided_slice %77 {offsets = [0, 0], sizes = [1, 64], strides = [1, 1]} : vector<1x128xf32> to vector<1x64xf32>
    %c0_40 = arith.constant 0 : index
    %c0_41 = arith.constant 0 : index
    %79 = vector.load %arg6[%c0_40, %c0_41] : memref<8x128xf32, #tpu.memory_space<vmem>>, vector<1x64xf32>
    tpu.vector_store %arg6[%c0_40, %c0_41], %78 {strides = array<i32>} : memref<8x128xf32, #tpu.memory_space<vmem>>, vector<1x64xf32>,
    %80 = vector.extract_strided_slice %77 {offsets = [0, 64], sizes = [1, 64], strides = [1, 1]} : vector<1x128xf32> to vector<1x64xf32>
    %c7_42 = arith.constant 7 : index
    %c64 = arith.constant 64 : index
    %81 = vector.load %arg6[%c7_42, %c64] : memref<8x128xf32, #tpu.memory_space<vmem>>, vector<1x64xf32>
    tpu.vector_store %arg6[%c7_42, %c64], %80 {strides = array<i32>} : memref<8x128xf32, #tpu.memory_space<vmem>>, vector<1x64xf32>,
    %c1_43 = arith.constant 1 : index
    %c0_44 = arith.constant 0 : index
    %82 = vector.load %arg5[%c1_43, %c0_44] : memref<8x512xf32, #tpu.memory_space<vmem>>, vector<1x512xf32>
    %c6_45 = arith.constant 6 : index
    %c0_46 = arith.constant 0 : index
    %83 = vector.load %arg5[%c6_45, %c0_46] : memref<8x512xf32, #tpu.memory_space<vmem>>, vector<1x512xf32>
    %84 = arith.select %50, %82, %83 : vector<1x512xi1>, vector<1x512xf32>
    %c64_47 = arith.constant 64 : index
    %c0_48 = arith.constant 0 : index
    %85 = vector.load %arg2[%c64_47, %c0_48] : memref<600x512xf32, #tpu.memory_space<vmem>>, vector<128x512xf32>
    %cst_49 = arith.constant dense<0.000000e+00> : vector<1x512xf32>
    %86 = tpu.matmul %77, %85, %cst_49 {dimension_numbers = #tpu.dot_dimension_numbers<[1], [0], [0], [1], [0, 0, 1, 1], [], []>} : vector<1x128xf32>, vector<128x512xf32>, vector<1x512xf32> -> vector<1x512xf32>
    %87 = arith.addf %84, %86 : vector<1x512xf32>
    %88 = vector.extract_strided_slice %87 {offsets = [0, 0], sizes = [1, 128], strides = [1, 1]} : vector<1x512xf32> to vector<1x128xf32>
    %89 = arith.negf %88 : vector<1x128xf32>
    %90 = math.exp %89 : vector<1x128xf32>
    %cst_50 = arith.constant 1.000000e+00 : f32
    %91 = vector.broadcast %cst_50 : f32 to vector<1x128xf32>
    %92 = arith.addf %91, %90 : vector<1x128xf32>
    %93 = arith.divf %91, %92 : vector<1x128xf32>
    %94 = vector.extract_strided_slice %87 {offsets = [0, 128], sizes = [1, 128], strides = [1, 1]} : vector<1x512xf32> to vector<1x128xf32>
    %95 = arith.negf %94 : vector<1x128xf32>
    %96 = math.exp %95 : vector<1x128xf32>
    %cst_51 = arith.constant 1.000000e+00 : f32
    %97 = vector.broadcast %cst_51 : f32 to vector<1x128xf32>
    %98 = arith.addf %97, %96 : vector<1x128xf32>
    %99 = arith.divf %97, %98 : vector<1x128xf32>
    %100 = vector.extract_strided_slice %87 {offsets = [0, 256], sizes = [1, 128], strides = [1, 1]} : vector<1x512xf32> to vector<1x128xf32>
    %101 = math.tanh %100 : vector<1x128xf32>
    %102 = vector.extract_strided_slice %87 {offsets = [0, 384], sizes = [1, 128], strides = [1, 1]} : vector<1x512xf32> to vector<1x128xf32>
    %103 = arith.negf %102 : vector<1x128xf32>
    %104 = math.exp %103 : vector<1x128xf32>
    %cst_52 = arith.constant 1.000000e+00 : f32
    %105 = vector.broadcast %cst_52 : f32 to vector<1x128xf32>
    %106 = arith.addf %105, %104 : vector<1x128xf32>
    %107 = arith.divf %105, %106 : vector<1x128xf32>
    %108 = arith.mulf %99, %75 : vector<1x128xf32>
    %109 = arith.mulf %93, %101 : vector<1x128xf32>
    %110 = arith.addf %108, %109 : vector<1x128xf32>
    %111 = math.tanh %110 : vector<1x128xf32>
    %112 = arith.mulf %107, %111 : vector<1x128xf32>
    %113 = vector.extract_strided_slice %112 {offsets = [0, 0], sizes = [1, 64], strides = [1, 1]} : vector<1x128xf32> to vector<1x64xf32>
    %c1_53 = arith.constant 1 : index
    %c0_54 = arith.constant 0 : index
    %114 = vector.load %arg6[%c1_53, %c0_54] : memref<8x128xf32, #tpu.memory_space<vmem>>, vector<1x64xf32>
    tpu.vector_store %arg6[%c1_53, %c0_54], %113 {strides = array<i32>} : memref<8x128xf32, #tpu.memory_space<vmem>>, vector<1x64xf32>,
    %115 = vector.extract_strided_slice %112 {offsets = [0, 64], sizes = [1, 64], strides = [1, 1]} : vector<1x128xf32> to vector<1x64xf32>
    %c6_55 = arith.constant 6 : index
    %c64_56 = arith.constant 64 : index
    %116 = vector.load %arg6[%c6_55, %c64_56] : memref<8x128xf32, #tpu.memory_space<vmem>>, vector<1x64xf32>
    tpu.vector_store %arg6[%c6_55, %c64_56], %115 {strides = array<i32>} : memref<8x128xf32, #tpu.memory_space<vmem>>, vector<1x64xf32>,
    %c2_57 = arith.constant 2 : index
    %c0_58 = arith.constant 0 : index
    %117 = vector.load %arg5[%c2_57, %c0_58] : memref<8x512xf32, #tpu.memory_space<vmem>>, vector<1x512xf32>
    %c5_59 = arith.constant 5 : index
    %c0_60 = arith.constant 0 : index
    %118 = vector.load %arg5[%c5_59, %c0_60] : memref<8x512xf32, #tpu.memory_space<vmem>>, vector<1x512xf32>
    %119 = arith.select %50, %117, %118 : vector<1x512xi1>, vector<1x512xf32>
    %c64_61 = arith.constant 64 : index
    %c0_62 = arith.constant 0 : index
    %120 = vector.load %arg2[%c64_61, %c0_62] : memref<600x512xf32, #tpu.memory_space<vmem>>, vector<128x512xf32>
    %cst_63 = arith.constant dense<0.000000e+00> : vector<1x512xf32>
    %121 = tpu.matmul %112, %120, %cst_63 {dimension_numbers = #tpu.dot_dimension_numbers<[1], [0], [0], [1], [0, 0, 1, 1], [], []>} : vector<1x128xf32>, vector<128x512xf32>, vector<1x512xf32> -> vector<1x512xf32>
    %122 = arith.addf %119, %121 : vector<1x512xf32>
    %123 = vector.extract_strided_slice %122 {offsets = [0, 0], sizes = [1, 128], strides = [1, 1]} : vector<1x512xf32> to vector<1x128xf32>
    %124 = arith.negf %123 : vector<1x128xf32>
    %125 = math.exp %124 : vector<1x128xf32>
    %cst_64 = arith.constant 1.000000e+00 : f32
    %126 = vector.broadcast %cst_64 : f32 to vector<1x128xf32>
    %127 = arith.addf %126, %125 : vector<1x128xf32>
    %128 = arith.divf %126, %127 : vector<1x128xf32>
    %129 = vector.extract_strided_slice %122 {offsets = [0, 128], sizes = [1, 128], strides = [1, 1]} : vector<1x512xf32> to vector<1x128xf32>
    %130 = arith.negf %129 : vector<1x128xf32>
    %131 = math.exp %130 : vector<1x128xf32>
    %cst_65 = arith.constant 1.000000e+00 : f32
    %132 = vector.broadcast %cst_65 : f32 to vector<1x128xf32>
    %133 = arith.addf %132, %131 : vector<1x128xf32>
    %134 = arith.divf %132, %133 : vector<1x128xf32>
    %135 = vector.extract_strided_slice %122 {offsets = [0, 256], sizes = [1, 128], strides = [1, 1]} : vector<1x512xf32> to vector<1x128xf32>
    %136 = math.tanh %135 : vector<1x128xf32>
    %137 = vector.extract_strided_slice %122 {offsets = [0, 384], sizes = [1, 128], strides = [1, 1]} : vector<1x512xf32> to vector<1x128xf32>
    %138 = arith.negf %137 : vector<1x128xf32>
    %139 = math.exp %138 : vector<1x128xf32>
    %cst_66 = arith.constant 1.000000e+00 : f32
    %140 = vector.broadcast %cst_66 : f32 to vector<1x128xf32>
    %141 = arith.addf %140, %139 : vector<1x128xf32>
    %142 = arith.divf %140, %141 : vector<1x128xf32>
    %143 = arith.mulf %134, %110 : vector<1x128xf32>
    %144 = arith.mulf %128, %136 : vector<1x128xf32>
    %145 = arith.addf %143, %144 : vector<1x128xf32>
    %146 = math.tanh %145 : vector<1x128xf32>
    %147 = arith.mulf %142, %146 : vector<1x128xf32>
    %148 = vector.extract_strided_slice %147 {offsets = [0, 0], sizes = [1, 64], strides = [1, 1]} : vector<1x128xf32> to vector<1x64xf32>
    %c2_67 = arith.constant 2 : index
    %c0_68 = arith.constant 0 : index
    %149 = vector.load %arg6[%c2_67, %c0_68] : memref<8x128xf32, #tpu.memory_space<vmem>>, vector<1x64xf32>
    tpu.vector_store %arg6[%c2_67, %c0_68], %148 {strides = array<i32>} : memref<8x128xf32, #tpu.memory_space<vmem>>, vector<1x64xf32>,
    %150 = vector.extract_strided_slice %147 {offsets = [0, 64], sizes = [1, 64], strides = [1, 1]} : vector<1x128xf32> to vector<1x64xf32>
    %c5_69 = arith.constant 5 : index
    %c64_70 = arith.constant 64 : index
    %151 = vector.load %arg6[%c5_69, %c64_70] : memref<8x128xf32, #tpu.memory_space<vmem>>, vector<1x64xf32>
    tpu.vector_store %arg6[%c5_69, %c64_70], %150 {strides = array<i32>} : memref<8x128xf32, #tpu.memory_space<vmem>>, vector<1x64xf32>,
    %c3_71 = arith.constant 3 : index
    %c0_72 = arith.constant 0 : index
    %152 = vector.load %arg5[%c3_71, %c0_72] : memref<8x512xf32, #tpu.memory_space<vmem>>, vector<1x512xf32>
    %c4_73 = arith.constant 4 : index
    %c0_74 = arith.constant 0 : index
    %153 = vector.load %arg5[%c4_73, %c0_74] : memref<8x512xf32, #tpu.memory_space<vmem>>, vector<1x512xf32>
    %154 = arith.select %50, %152, %153 : vector<1x512xi1>, vector<1x512xf32>
    %c64_75 = arith.constant 64 : index
    %c0_76 = arith.constant 0 : index
    %155 = vector.load %arg2[%c64_75, %c0_76] : memref<600x512xf32, #tpu.memory_space<vmem>>, vector<128x512xf32>
    %cst_77 = arith.constant dense<0.000000e+00> : vector<1x512xf32>
    %156 = tpu.matmul %147, %155, %cst_77 {dimension_numbers = #tpu.dot_dimension_numbers<[1], [0], [0], [1], [0, 0, 1, 1], [], []>} : vector<1x128xf32>, vector<128x512xf32>, vector<1x512xf32> -> vector<1x512xf32>
    %157 = arith.addf %154, %156 : vector<1x512xf32>
    %158 = vector.extract_strided_slice %157 {offsets = [0, 0], sizes = [1, 128], strides = [1, 1]} : vector<1x512xf32> to vector<1x128xf32>
    %159 = arith.negf %158 : vector<1x128xf32>
    %160 = math.exp %159 : vector<1x128xf32>
    %cst_78 = arith.constant 1.000000e+00 : f32
    %161 = vector.broadcast %cst_78 : f32 to vector<1x128xf32>
    %162 = arith.addf %161, %160 : vector<1x128xf32>
    %163 = arith.divf %161, %162 : vector<1x128xf32>
    %164 = vector.extract_strided_slice %157 {offsets = [0, 128], sizes = [1, 128], strides = [1, 1]} : vector<1x512xf32> to vector<1x128xf32>
    %165 = arith.negf %164 : vector<1x128xf32>
    %166 = math.exp %165 : vector<1x128xf32>
    %cst_79 = arith.constant 1.000000e+00 : f32
    %167 = vector.broadcast %cst_79 : f32 to vector<1x128xf32>
    %168 = arith.addf %167, %166 : vector<1x128xf32>
    %169 = arith.divf %167, %168 : vector<1x128xf32>
    %170 = vector.extract_strided_slice %157 {offsets = [0, 256], sizes = [1, 128], strides = [1, 1]} : vector<1x512xf32> to vector<1x128xf32>
    %171 = math.tanh %170 : vector<1x128xf32>
    %172 = vector.extract_strided_slice %157 {offsets = [0, 384], sizes = [1, 128], strides = [1, 1]} : vector<1x512xf32> to vector<1x128xf32>
    %173 = arith.negf %172 : vector<1x128xf32>
    %174 = math.exp %173 : vector<1x128xf32>
    %cst_80 = arith.constant 1.000000e+00 : f32
    %175 = vector.broadcast %cst_80 : f32 to vector<1x128xf32>
    %176 = arith.addf %175, %174 : vector<1x128xf32>
    %177 = arith.divf %175, %176 : vector<1x128xf32>
    %178 = arith.mulf %169, %145 : vector<1x128xf32>
    %179 = arith.mulf %163, %171 : vector<1x128xf32>
    %180 = arith.addf %178, %179 : vector<1x128xf32>
    %181 = math.tanh %180 : vector<1x128xf32>
    %182 = arith.mulf %177, %181 : vector<1x128xf32>
    %183 = vector.extract_strided_slice %182 {offsets = [0, 0], sizes = [1, 64], strides = [1, 1]} : vector<1x128xf32> to vector<1x64xf32>
    %c3_81 = arith.constant 3 : index
    %c0_82 = arith.constant 0 : index
    %184 = vector.load %arg6[%c3_81, %c0_82] : memref<8x128xf32, #tpu.memory_space<vmem>>, vector<1x64xf32>
    tpu.vector_store %arg6[%c3_81, %c0_82], %183 {strides = array<i32>} : memref<8x128xf32, #tpu.memory_space<vmem>>, vector<1x64xf32>,
    %185 = vector.extract_strided_slice %182 {offsets = [0, 64], sizes = [1, 64], strides = [1, 1]} : vector<1x128xf32> to vector<1x64xf32>
    %c4_83 = arith.constant 4 : index
    %c64_84 = arith.constant 64 : index
    %186 = vector.load %arg6[%c4_83, %c64_84] : memref<8x128xf32, #tpu.memory_space<vmem>>, vector<1x64xf32>
    tpu.vector_store %arg6[%c4_83, %c64_84], %185 {strides = array<i32>} : memref<8x128xf32, #tpu.memory_space<vmem>>, vector<1x64xf32>,
    %c4_85 = arith.constant 4 : index
    %c0_86 = arith.constant 0 : index
    %187 = vector.load %arg5[%c4_85, %c0_86] : memref<8x512xf32, #tpu.memory_space<vmem>>, vector<1x512xf32>
    %c3_87 = arith.constant 3 : index
    %c0_88 = arith.constant 0 : index
    %188 = vector.load %arg5[%c3_87, %c0_88] : memref<8x512xf32, #tpu.memory_space<vmem>>, vector<1x512xf32>
    %189 = arith.select %50, %187, %188 : vector<1x512xi1>, vector<1x512xf32>
    %c64_89 = arith.constant 64 : index
    %c0_90 = arith.constant 0 : index
    %190 = vector.load %arg2[%c64_89, %c0_90] : memref<600x512xf32, #tpu.memory_space<vmem>>, vector<128x512xf32>
    %cst_91 = arith.constant dense<0.000000e+00> : vector<1x512xf32>
    %191 = tpu.matmul %182, %190, %cst_91 {dimension_numbers = #tpu.dot_dimension_numbers<[1], [0], [0], [1], [0, 0, 1, 1], [], []>} : vector<1x128xf32>, vector<128x512xf32>, vector<1x512xf32> -> vector<1x512xf32>
    %192 = arith.addf %189, %191 : vector<1x512xf32>
    %193 = vector.extract_strided_slice %192 {offsets = [0, 0], sizes = [1, 128], strides = [1, 1]} : vector<1x512xf32> to vector<1x128xf32>
    %194 = arith.negf %193 : vector<1x128xf32>
    %195 = math.exp %194 : vector<1x128xf32>
    %cst_92 = arith.constant 1.000000e+00 : f32
    %196 = vector.broadcast %cst_92 : f32 to vector<1x128xf32>
    %197 = arith.addf %196, %195 : vector<1x128xf32>
    %198 = arith.divf %196, %197 : vector<1x128xf32>
    %199 = vector.extract_strided_slice %192 {offsets = [0, 128], sizes = [1, 128], strides = [1, 1]} : vector<1x512xf32> to vector<1x128xf32>
    %200 = arith.negf %199 : vector<1x128xf32>
    %201 = math.exp %200 : vector<1x128xf32>
    %cst_93 = arith.constant 1.000000e+00 : f32
    %202 = vector.broadcast %cst_93 : f32 to vector<1x128xf32>
    %203 = arith.addf %202, %201 : vector<1x128xf32>
    %204 = arith.divf %202, %203 : vector<1x128xf32>
    %205 = vector.extract_strided_slice %192 {offsets = [0, 256], sizes = [1, 128], strides = [1, 1]} : vector<1x512xf32> to vector<1x128xf32>
    %206 = math.tanh %205 : vector<1x128xf32>
    %207 = vector.extract_strided_slice %192 {offsets = [0, 384], sizes = [1, 128], strides = [1, 1]} : vector<1x512xf32> to vector<1x128xf32>
    %208 = arith.negf %207 : vector<1x128xf32>
    %209 = math.exp %208 : vector<1x128xf32>
    %cst_94 = arith.constant 1.000000e+00 : f32
    %210 = vector.broadcast %cst_94 : f32 to vector<1x128xf32>
    %211 = arith.addf %210, %209 : vector<1x128xf32>
    %212 = arith.divf %210, %211 : vector<1x128xf32>
    %213 = arith.mulf %204, %180 : vector<1x128xf32>
    %214 = arith.mulf %198, %206 : vector<1x128xf32>
    %215 = arith.addf %213, %214 : vector<1x128xf32>
    %216 = math.tanh %215 : vector<1x128xf32>
    %217 = arith.mulf %212, %216 : vector<1x128xf32>
    %218 = vector.extract_strided_slice %217 {offsets = [0, 0], sizes = [1, 64], strides = [1, 1]} : vector<1x128xf32> to vector<1x64xf32>
    %c4_95 = arith.constant 4 : index
    %c0_96 = arith.constant 0 : index
    %219 = vector.load %arg6[%c4_95, %c0_96] : memref<8x128xf32, #tpu.memory_space<vmem>>, vector<1x64xf32>
    tpu.vector_store %arg6[%c4_95, %c0_96], %218 {strides = array<i32>} : memref<8x128xf32, #tpu.memory_space<vmem>>, vector<1x64xf32>,
    %220 = vector.extract_strided_slice %217 {offsets = [0, 64], sizes = [1, 64], strides = [1, 1]} : vector<1x128xf32> to vector<1x64xf32>
    %c3_97 = arith.constant 3 : index
    %c64_98 = arith.constant 64 : index
    %221 = vector.load %arg6[%c3_97, %c64_98] : memref<8x128xf32, #tpu.memory_space<vmem>>, vector<1x64xf32>
    tpu.vector_store %arg6[%c3_97, %c64_98], %220 {strides = array<i32>} : memref<8x128xf32, #tpu.memory_space<vmem>>, vector<1x64xf32>,
    %c5_99 = arith.constant 5 : index
    %c0_100 = arith.constant 0 : index
    %222 = vector.load %arg5[%c5_99, %c0_100] : memref<8x512xf32, #tpu.memory_space<vmem>>, vector<1x512xf32>
    %c2_101 = arith.constant 2 : index
    %c0_102 = arith.constant 0 : index
    %223 = vector.load %arg5[%c2_101, %c0_102] : memref<8x512xf32, #tpu.memory_space<vmem>>, vector<1x512xf32>
    %224 = arith.select %50, %222, %223 : vector<1x512xi1>, vector<1x512xf32>
    %c64_103 = arith.constant 64 : index
    %c0_104 = arith.constant 0 : index
    %225 = vector.load %arg2[%c64_103, %c0_104] : memref<600x512xf32, #tpu.memory_space<vmem>>, vector<128x512xf32>
    %cst_105 = arith.constant dense<0.000000e+00> : vector<1x512xf32>
    %226 = tpu.matmul %217, %225, %cst_105 {dimension_numbers = #tpu.dot_dimension_numbers<[1], [0], [0], [1], [0, 0, 1, 1], [], []>} : vector<1x128xf32>, vector<128x512xf32>, vector<1x512xf32> -> vector<1x512xf32>
    %227 = arith.addf %224, %226 : vector<1x512xf32>
    %228 = vector.extract_strided_slice %227 {offsets = [0, 0], sizes = [1, 128], strides = [1, 1]} : vector<1x512xf32> to vector<1x128xf32>
    %229 = arith.negf %228 : vector<1x128xf32>
    %230 = math.exp %229 : vector<1x128xf32>
    %cst_106 = arith.constant 1.000000e+00 : f32
    %231 = vector.broadcast %cst_106 : f32 to vector<1x128xf32>
    %232 = arith.addf %231, %230 : vector<1x128xf32>
    %233 = arith.divf %231, %232 : vector<1x128xf32>
    %234 = vector.extract_strided_slice %227 {offsets = [0, 128], sizes = [1, 128], strides = [1, 1]} : vector<1x512xf32> to vector<1x128xf32>
    %235 = arith.negf %234 : vector<1x128xf32>
    %236 = math.exp %235 : vector<1x128xf32>
    %cst_107 = arith.constant 1.000000e+00 : f32
    %237 = vector.broadcast %cst_107 : f32 to vector<1x128xf32>
    %238 = arith.addf %237, %236 : vector<1x128xf32>
    %239 = arith.divf %237, %238 : vector<1x128xf32>
    %240 = vector.extract_strided_slice %227 {offsets = [0, 256], sizes = [1, 128], strides = [1, 1]} : vector<1x512xf32> to vector<1x128xf32>
    %241 = math.tanh %240 : vector<1x128xf32>
    %242 = vector.extract_strided_slice %227 {offsets = [0, 384], sizes = [1, 128], strides = [1, 1]} : vector<1x512xf32> to vector<1x128xf32>
    %243 = arith.negf %242 : vector<1x128xf32>
    %244 = math.exp %243 : vector<1x128xf32>
    %cst_108 = arith.constant 1.000000e+00 : f32
    %245 = vector.broadcast %cst_108 : f32 to vector<1x128xf32>
    %246 = arith.addf %245, %244 : vector<1x128xf32>
    %247 = arith.divf %245, %246 : vector<1x128xf32>
    %248 = arith.mulf %239, %215 : vector<1x128xf32>
    %249 = arith.mulf %233, %241 : vector<1x128xf32>
    %250 = arith.addf %248, %249 : vector<1x128xf32>
    %251 = math.tanh %250 : vector<1x128xf32>
    %252 = arith.mulf %247, %251 : vector<1x128xf32>
    %253 = vector.extract_strided_slice %252 {offsets = [0, 0], sizes = [1, 64], strides = [1, 1]} : vector<1x128xf32> to vector<1x64xf32>
    %c5_109 = arith.constant 5 : index
    %c0_110 = arith.constant 0 : index
    %254 = vector.load %arg6[%c5_109, %c0_110] : memref<8x128xf32, #tpu.memory_space<vmem>>, vector<1x64xf32>
    tpu.vector_store %arg6[%c5_109, %c0_110], %253 {strides = array<i32>} : memref<8x128xf32, #tpu.memory_space<vmem>>, vector<1x64xf32>,
    %255 = vector.extract_strided_slice %252 {offsets = [0, 64], sizes = [1, 64], strides = [1, 1]} : vector<1x128xf32> to vector<1x64xf32>
    %c2_111 = arith.constant 2 : index
    %c64_112 = arith.constant 64 : index
    %256 = vector.load %arg6[%c2_111, %c64_112] : memref<8x128xf32, #tpu.memory_space<vmem>>, vector<1x64xf32>
    tpu.vector_store %arg6[%c2_111, %c64_112], %255 {strides = array<i32>} : memref<8x128xf32, #tpu.memory_space<vmem>>, vector<1x64xf32>,
    %c6_113 = arith.constant 6 : index
    %c0_114 = arith.constant 0 : index
    %257 = vector.load %arg5[%c6_113, %c0_114] : memref<8x512xf32, #tpu.memory_space<vmem>>, vector<1x512xf32>
    %c1_115 = arith.constant 1 : index
    %c0_116 = arith.constant 0 : index
    %258 = vector.load %arg5[%c1_115, %c0_116] : memref<8x512xf32, #tpu.memory_space<vmem>>, vector<1x512xf32>
    %259 = arith.select %50, %257, %258 : vector<1x512xi1>, vector<1x512xf32>
    %c64_117 = arith.constant 64 : index
    %c0_118 = arith.constant 0 : index
    %260 = vector.load %arg2[%c64_117, %c0_118] : memref<600x512xf32, #tpu.memory_space<vmem>>, vector<128x512xf32>
    %cst_119 = arith.constant dense<0.000000e+00> : vector<1x512xf32>
    %261 = tpu.matmul %252, %260, %cst_119 {dimension_numbers = #tpu.dot_dimension_numbers<[1], [0], [0], [1], [0, 0, 1, 1], [], []>} : vector<1x128xf32>, vector<128x512xf32>, vector<1x512xf32> -> vector<1x512xf32>
    %262 = arith.addf %259, %261 : vector<1x512xf32>
    %263 = vector.extract_strided_slice %262 {offsets = [0, 0], sizes = [1, 128], strides = [1, 1]} : vector<1x512xf32> to vector<1x128xf32>
    %264 = arith.negf %263 : vector<1x128xf32>
    %265 = math.exp %264 : vector<1x128xf32>
    %cst_120 = arith.constant 1.000000e+00 : f32
    %266 = vector.broadcast %cst_120 : f32 to vector<1x128xf32>
    %267 = arith.addf %266, %265 : vector<1x128xf32>
    %268 = arith.divf %266, %267 : vector<1x128xf32>
    %269 = vector.extract_strided_slice %262 {offsets = [0, 128], sizes = [1, 128], strides = [1, 1]} : vector<1x512xf32> to vector<1x128xf32>
    %270 = arith.negf %269 : vector<1x128xf32>
    %271 = math.exp %270 : vector<1x128xf32>
    %cst_121 = arith.constant 1.000000e+00 : f32
    %272 = vector.broadcast %cst_121 : f32 to vector<1x128xf32>
    %273 = arith.addf %272, %271 : vector<1x128xf32>
    %274 = arith.divf %272, %273 : vector<1x128xf32>
    %275 = vector.extract_strided_slice %262 {offsets = [0, 256], sizes = [1, 128], strides = [1, 1]} : vector<1x512xf32> to vector<1x128xf32>
    %276 = math.tanh %275 : vector<1x128xf32>
    %277 = vector.extract_strided_slice %262 {offsets = [0, 384], sizes = [1, 128], strides = [1, 1]} : vector<1x512xf32> to vector<1x128xf32>
    %278 = arith.negf %277 : vector<1x128xf32>
    %279 = math.exp %278 : vector<1x128xf32>
    %cst_122 = arith.constant 1.000000e+00 : f32
    %280 = vector.broadcast %cst_122 : f32 to vector<1x128xf32>
    %281 = arith.addf %280, %279 : vector<1x128xf32>
    %282 = arith.divf %280, %281 : vector<1x128xf32>
    %283 = arith.mulf %274, %250 : vector<1x128xf32>
    %284 = arith.mulf %268, %276 : vector<1x128xf32>
    %285 = arith.addf %283, %284 : vector<1x128xf32>
    %286 = math.tanh %285 : vector<1x128xf32>
    %287 = arith.mulf %282, %286 : vector<1x128xf32>
    %288 = vector.extract_strided_slice %287 {offsets = [0, 0], sizes = [1, 64], strides = [1, 1]} : vector<1x128xf32> to vector<1x64xf32>
    %c6_123 = arith.constant 6 : index
    %c0_124 = arith.constant 0 : index
    %289 = vector.load %arg6[%c6_123, %c0_124] : memref<8x128xf32, #tpu.memory_space<vmem>>, vector<1x64xf32>
    tpu.vector_store %arg6[%c6_123, %c0_124], %288 {strides = array<i32>} : memref<8x128xf32, #tpu.memory_space<vmem>>, vector<1x64xf32>,
    %290 = vector.extract_strided_slice %287 {offsets = [0, 64], sizes = [1, 64], strides = [1, 1]} : vector<1x128xf32> to vector<1x64xf32>
    %c1_125 = arith.constant 1 : index
    %c64_126 = arith.constant 64 : index
    %291 = vector.load %arg6[%c1_125, %c64_126] : memref<8x128xf32, #tpu.memory_space<vmem>>, vector<1x64xf32>
    tpu.vector_store %arg6[%c1_125, %c64_126], %290 {strides = array<i32>} : memref<8x128xf32, #tpu.memory_space<vmem>>, vector<1x64xf32>,
    %c7_127 = arith.constant 7 : index
    %c0_128 = arith.constant 0 : index
    %292 = vector.load %arg5[%c7_127, %c0_128] : memref<8x512xf32, #tpu.memory_space<vmem>>, vector<1x512xf32>
    %c0_129 = arith.constant 0 : index
    %c0_130 = arith.constant 0 : index
    %293 = vector.load %arg5[%c0_129, %c0_130] : memref<8x512xf32, #tpu.memory_space<vmem>>, vector<1x512xf32>
    %294 = arith.select %50, %292, %293 : vector<1x512xi1>, vector<1x512xf32>
    %c64_131 = arith.constant 64 : index
    %c0_132 = arith.constant 0 : index
    %295 = vector.load %arg2[%c64_131, %c0_132] : memref<600x512xf32, #tpu.memory_space<vmem>>, vector<128x512xf32>
    %cst_133 = arith.constant dense<0.000000e+00> : vector<1x512xf32>
    %296 = tpu.matmul %287, %295, %cst_133 {dimension_numbers = #tpu.dot_dimension_numbers<[1], [0], [0], [1], [0, 0, 1, 1], [], []>} : vector<1x128xf32>, vector<128x512xf32>, vector<1x512xf32> -> vector<1x512xf32>
    %297 = arith.addf %294, %296 : vector<1x512xf32>
    %298 = vector.extract_strided_slice %297 {offsets = [0, 0], sizes = [1, 128], strides = [1, 1]} : vector<1x512xf32> to vector<1x128xf32>
    %299 = arith.negf %298 : vector<1x128xf32>
    %300 = math.exp %299 : vector<1x128xf32>
    %cst_134 = arith.constant 1.000000e+00 : f32
    %301 = vector.broadcast %cst_134 : f32 to vector<1x128xf32>
    %302 = arith.addf %301, %300 : vector<1x128xf32>
    %303 = arith.divf %301, %302 : vector<1x128xf32>
    %304 = vector.extract_strided_slice %297 {offsets = [0, 128], sizes = [1, 128], strides = [1, 1]} : vector<1x512xf32> to vector<1x128xf32>
    %305 = arith.negf %304 : vector<1x128xf32>
    %306 = math.exp %305 : vector<1x128xf32>
    %cst_135 = arith.constant 1.000000e+00 : f32
    %307 = vector.broadcast %cst_135 : f32 to vector<1x128xf32>
    %308 = arith.addf %307, %306 : vector<1x128xf32>
    %309 = arith.divf %307, %308 : vector<1x128xf32>
    %310 = vector.extract_strided_slice %297 {offsets = [0, 256], sizes = [1, 128], strides = [1, 1]} : vector<1x512xf32> to vector<1x128xf32>
    %311 = math.tanh %310 : vector<1x128xf32>
    %312 = vector.extract_strided_slice %297 {offsets = [0, 384], sizes = [1, 128], strides = [1, 1]} : vector<1x512xf32> to vector<1x128xf32>
    %313 = arith.negf %312 : vector<1x128xf32>
    %314 = math.exp %313 : vector<1x128xf32>
    %cst_136 = arith.constant 1.000000e+00 : f32
    %315 = vector.broadcast %cst_136 : f32 to vector<1x128xf32>
    %316 = arith.addf %315, %314 : vector<1x128xf32>
    %317 = arith.divf %315, %316 : vector<1x128xf32>
    %318 = arith.mulf %309, %285 : vector<1x128xf32>
    %319 = arith.mulf %303, %311 : vector<1x128xf32>
    %320 = arith.addf %318, %319 : vector<1x128xf32>
    %321 = math.tanh %320 : vector<1x128xf32>
    %322 = arith.mulf %317, %321 : vector<1x128xf32>
    %323 = vector.extract_strided_slice %322 {offsets = [0, 0], sizes = [1, 64], strides = [1, 1]} : vector<1x128xf32> to vector<1x64xf32>
    %c7_137 = arith.constant 7 : index
    %c0_138 = arith.constant 0 : index
    %324 = vector.load %arg6[%c7_137, %c0_138] : memref<8x128xf32, #tpu.memory_space<vmem>>, vector<1x64xf32>
    tpu.vector_store %arg6[%c7_137, %c0_138], %323 {strides = array<i32>} : memref<8x128xf32, #tpu.memory_space<vmem>>, vector<1x64xf32>,
    %325 = vector.extract_strided_slice %322 {offsets = [0, 64], sizes = [1, 64], strides = [1, 1]} : vector<1x128xf32> to vector<1x64xf32>
    %c0_139 = arith.constant 0 : index
    %c64_140 = arith.constant 64 : index
    %326 = vector.load %arg6[%c0_139, %c64_140] : memref<8x128xf32, #tpu.memory_space<vmem>>, vector<1x64xf32>
    tpu.vector_store %arg6[%c0_139, %c64_140], %325 {strides = array<i32>} : memref<8x128xf32, #tpu.memory_space<vmem>>, vector<1x64xf32>,
    %c0_141 = arith.constant 0 : index
    %c0_142 = arith.constant 0 : index
    %327 = vector.load %arg6[%c0_141, %c0_142] : memref<8x128xf32, #tpu.memory_space<vmem>>, vector<8x128xf32>
    %c200 = arith.constant 200 : index
    %c0_143 = arith.constant 0 : index
    %328 = vector.load %arg2[%c200, %c0_143] : memref<600x512xf32, #tpu.memory_space<vmem>>, vector<128x512xf32>
    %cst_144 = arith.constant dense<0.000000e+00> : vector<8x512xf32>
    %329 = tpu.matmul %327, %328, %cst_144 {dimension_numbers = #tpu.dot_dimension_numbers<[1], [0], [0], [1], [0, 0, 1, 1], [], []>} : vector<8x128xf32>, vector<128x512xf32>, vector<8x512xf32> -> vector<8x512xf32>
    %c456 = arith.constant 456 : index
    %c0_145 = arith.constant 0 : index
    %330 = vector.load %arg2[%c456, %c0_145] : memref<600x512xf32, #tpu.memory_space<vmem>>, vector<1x512xf32>
    %331 = vector.broadcast %330 : vector<1x512xf32> to vector<8x512xf32>
    %332 = arith.addf %329, %331 : vector<8x512xf32>
    %c0_146 = arith.constant 0 : index
    %c0_147 = arith.constant 0 : index
    %333 = vector.load %arg5[%c0_146, %c0_147] : memref<8x512xf32, #tpu.memory_space<vmem>>, vector<8x512xf32>
    tpu.vector_store %arg5[%c0_146, %c0_147], %332 {strides = array<i32>} : memref<8x512xf32, #tpu.memory_space<vmem>>, vector<8x512xf32>,
    %c0_148 = arith.constant 0 : index
    %c0_149 = arith.constant 0 : index
    %334 = vector.load %arg5[%c0_148, %c0_149] : memref<8x512xf32, #tpu.memory_space<vmem>>, vector<1x512xf32>
    %c7_150 = arith.constant 7 : index
    %c0_151 = arith.constant 0 : index
    %335 = vector.load %arg5[%c7_150, %c0_151] : memref<8x512xf32, #tpu.memory_space<vmem>>, vector<1x512xf32>
    %336 = arith.select %50, %334, %335 : vector<1x512xi1>, vector<1x512xf32>
    %337 = vector.extract_strided_slice %336 {offsets = [0, 0], sizes = [1, 128], strides = [1, 1]} : vector<1x512xf32> to vector<1x128xf32>
    %338 = arith.negf %337 : vector<1x128xf32>
    %339 = math.exp %338 : vector<1x128xf32>
    %cst_152 = arith.constant 1.000000e+00 : f32
    %340 = vector.broadcast %cst_152 : f32 to vector<1x128xf32>
    %341 = arith.addf %340, %339 : vector<1x128xf32>
    %342 = arith.divf %340, %341 : vector<1x128xf32>
    %343 = vector.extract_strided_slice %336 {offsets = [0, 256], sizes = [1, 128], strides = [1, 1]} : vector<1x512xf32> to vector<1x128xf32>
    %344 = math.tanh %343 : vector<1x128xf32>
    %345 = vector.extract_strided_slice %336 {offsets = [0, 384], sizes = [1, 128], strides = [1, 1]} : vector<1x512xf32> to vector<1x128xf32>
    %346 = arith.negf %345 : vector<1x128xf32>
    %347 = math.exp %346 : vector<1x128xf32>
    %cst_153 = arith.constant 1.000000e+00 : f32
    %348 = vector.broadcast %cst_153 : f32 to vector<1x128xf32>
    %349 = arith.addf %348, %347 : vector<1x128xf32>
    %350 = arith.divf %348, %349 : vector<1x128xf32>
    %351 = arith.mulf %342, %344 : vector<1x128xf32>
    %352 = math.tanh %351 : vector<1x128xf32>
    %353 = arith.mulf %350, %352 : vector<1x128xf32>
    %354 = vector.extract_strided_slice %353 {offsets = [0, 0], sizes = [1, 64], strides = [1, 1]} : vector<1x128xf32> to vector<1x64xf32>
    %c0_154 = arith.constant 0 : index
    %c0_155 = arith.constant 0 : index
    %355 = vector.load %arg7[%c0_154, %c0_155] : memref<8x128xf32, #tpu.memory_space<vmem>>, vector<1x64xf32>
    tpu.vector_store %arg7[%c0_154, %c0_155], %354 {strides = array<i32>} : memref<8x128xf32, #tpu.memory_space<vmem>>, vector<1x64xf32>,
    %356 = vector.extract_strided_slice %353 {offsets = [0, 64], sizes = [1, 64], strides = [1, 1]} : vector<1x128xf32> to vector<1x64xf32>
    %c7_156 = arith.constant 7 : index
    %c64_157 = arith.constant 64 : index
    %357 = vector.load %arg7[%c7_156, %c64_157] : memref<8x128xf32, #tpu.memory_space<vmem>>, vector<1x64xf32>
    tpu.vector_store %arg7[%c7_156, %c64_157], %356 {strides = array<i32>} : memref<8x128xf32, #tpu.memory_space<vmem>>, vector<1x64xf32>,
    %c1_158 = arith.constant 1 : index
    %c0_159 = arith.constant 0 : index
    %358 = vector.load %arg5[%c1_158, %c0_159] : memref<8x512xf32, #tpu.memory_space<vmem>>, vector<1x512xf32>
    %c6_160 = arith.constant 6 : index
    %c0_161 = arith.constant 0 : index
    %359 = vector.load %arg5[%c6_160, %c0_161] : memref<8x512xf32, #tpu.memory_space<vmem>>, vector<1x512xf32>
    %360 = arith.select %50, %358, %359 : vector<1x512xi1>, vector<1x512xf32>
    %c328 = arith.constant 328 : index
    %c0_162 = arith.constant 0 : index
    %361 = vector.load %arg2[%c328, %c0_162] : memref<600x512xf32, #tpu.memory_space<vmem>>, vector<128x512xf32>
    %cst_163 = arith.constant dense<0.000000e+00> : vector<1x512xf32>
    %362 = tpu.matmul %353, %361, %cst_163 {dimension_numbers = #tpu.dot_dimension_numbers<[1], [0], [0], [1], [0, 0, 1, 1], [], []>} : vector<1x128xf32>, vector<128x512xf32>, vector<1x512xf32> -> vector<1x512xf32>
    %363 = arith.addf %360, %362 : vector<1x512xf32>
    %364 = vector.extract_strided_slice %363 {offsets = [0, 0], sizes = [1, 128], strides = [1, 1]} : vector<1x512xf32> to vector<1x128xf32>
    %365 = arith.negf %364 : vector<1x128xf32>
    %366 = math.exp %365 : vector<1x128xf32>
    %cst_164 = arith.constant 1.000000e+00 : f32
    %367 = vector.broadcast %cst_164 : f32 to vector<1x128xf32>
    %368 = arith.addf %367, %366 : vector<1x128xf32>
    %369 = arith.divf %367, %368 : vector<1x128xf32>
    %370 = vector.extract_strided_slice %363 {offsets = [0, 128], sizes = [1, 128], strides = [1, 1]} : vector<1x512xf32> to vector<1x128xf32>
    %371 = arith.negf %370 : vector<1x128xf32>
    %372 = math.exp %371 : vector<1x128xf32>
    %cst_165 = arith.constant 1.000000e+00 : f32
    %373 = vector.broadcast %cst_165 : f32 to vector<1x128xf32>
    %374 = arith.addf %373, %372 : vector<1x128xf32>
    %375 = arith.divf %373, %374 : vector<1x128xf32>
    %376 = vector.extract_strided_slice %363 {offsets = [0, 256], sizes = [1, 128], strides = [1, 1]} : vector<1x512xf32> to vector<1x128xf32>
    %377 = math.tanh %376 : vector<1x128xf32>
    %378 = vector.extract_strided_slice %363 {offsets = [0, 384], sizes = [1, 128], strides = [1, 1]} : vector<1x512xf32> to vector<1x128xf32>
    %379 = arith.negf %378 : vector<1x128xf32>
    %380 = math.exp %379 : vector<1x128xf32>
    %cst_166 = arith.constant 1.000000e+00 : f32
    %381 = vector.broadcast %cst_166 : f32 to vector<1x128xf32>
    %382 = arith.addf %381, %380 : vector<1x128xf32>
    %383 = arith.divf %381, %382 : vector<1x128xf32>
    %384 = arith.mulf %375, %351 : vector<1x128xf32>
    %385 = arith.mulf %369, %377 : vector<1x128xf32>
    %386 = arith.addf %384, %385 : vector<1x128xf32>
    %387 = math.tanh %386 : vector<1x128xf32>
    %388 = arith.mulf %383, %387 : vector<1x128xf32>
    %389 = vector.extract_strided_slice %388 {offsets = [0, 0], sizes = [1, 64], strides = [1, 1]} : vector<1x128xf32> to vector<1x64xf32>
    %c1_167 = arith.constant 1 : index
    %c0_168 = arith.constant 0 : index
    %390 = vector.load %arg7[%c1_167, %c0_168] : memref<8x128xf32, #tpu.memory_space<vmem>>, vector<1x64xf32>
    tpu.vector_store %arg7[%c1_167, %c0_168], %389 {strides = array<i32>} : memref<8x128xf32, #tpu.memory_space<vmem>>, vector<1x64xf32>,
    %391 = vector.extract_strided_slice %388 {offsets = [0, 64], sizes = [1, 64], strides = [1, 1]} : vector<1x128xf32> to vector<1x64xf32>
    %c6_169 = arith.constant 6 : index
    %c64_170 = arith.constant 64 : index
    %392 = vector.load %arg7[%c6_169, %c64_170] : memref<8x128xf32, #tpu.memory_space<vmem>>, vector<1x64xf32>
    tpu.vector_store %arg7[%c6_169, %c64_170], %391 {strides = array<i32>} : memref<8x128xf32, #tpu.memory_space<vmem>>, vector<1x64xf32>,
    %c2_171 = arith.constant 2 : index
    %c0_172 = arith.constant 0 : index
    %393 = vector.load %arg5[%c2_171, %c0_172] : memref<8x512xf32, #tpu.memory_space<vmem>>, vector<1x512xf32>
    %c5_173 = arith.constant 5 : index
    %c0_174 = arith.constant 0 : index
    %394 = vector.load %arg5[%c5_173, %c0_174] : memref<8x512xf32, #tpu.memory_space<vmem>>, vector<1x512xf32>
    %395 = arith.select %50, %393, %394 : vector<1x512xi1>, vector<1x512xf32>
    %c328_175 = arith.constant 328 : index
    %c0_176 = arith.constant 0 : index
    %396 = vector.load %arg2[%c328_175, %c0_176] : memref<600x512xf32, #tpu.memory_space<vmem>>, vector<128x512xf32>
    %cst_177 = arith.constant dense<0.000000e+00> : vector<1x512xf32>
    %397 = tpu.matmul %388, %396, %cst_177 {dimension_numbers = #tpu.dot_dimension_numbers<[1], [0], [0], [1], [0, 0, 1, 1], [], []>} : vector<1x128xf32>, vector<128x512xf32>, vector<1x512xf32> -> vector<1x512xf32>
    %398 = arith.addf %395, %397 : vector<1x512xf32>
    %399 = vector.extract_strided_slice %398 {offsets = [0, 0], sizes = [1, 128], strides = [1, 1]} : vector<1x512xf32> to vector<1x128xf32>
    %400 = arith.negf %399 : vector<1x128xf32>
    %401 = math.exp %400 : vector<1x128xf32>
    %cst_178 = arith.constant 1.000000e+00 : f32
    %402 = vector.broadcast %cst_178 : f32 to vector<1x128xf32>
    %403 = arith.addf %402, %401 : vector<1x128xf32>
    %404 = arith.divf %402, %403 : vector<1x128xf32>
    %405 = vector.extract_strided_slice %398 {offsets = [0, 128], sizes = [1, 128], strides = [1, 1]} : vector<1x512xf32> to vector<1x128xf32>
    %406 = arith.negf %405 : vector<1x128xf32>
    %407 = math.exp %406 : vector<1x128xf32>
    %cst_179 = arith.constant 1.000000e+00 : f32
    %408 = vector.broadcast %cst_179 : f32 to vector<1x128xf32>
    %409 = arith.addf %408, %407 : vector<1x128xf32>
    %410 = arith.divf %408, %409 : vector<1x128xf32>
    %411 = vector.extract_strided_slice %398 {offsets = [0, 256], sizes = [1, 128], strides = [1, 1]} : vector<1x512xf32> to vector<1x128xf32>
    %412 = math.tanh %411 : vector<1x128xf32>
    %413 = vector.extract_strided_slice %398 {offsets = [0, 384], sizes = [1, 128], strides = [1, 1]} : vector<1x512xf32> to vector<1x128xf32>
    %414 = arith.negf %413 : vector<1x128xf32>
    %415 = math.exp %414 : vector<1x128xf32>
    %cst_180 = arith.constant 1.000000e+00 : f32
    %416 = vector.broadcast %cst_180 : f32 to vector<1x128xf32>
    %417 = arith.addf %416, %415 : vector<1x128xf32>
    %418 = arith.divf %416, %417 : vector<1x128xf32>
    %419 = arith.mulf %410, %386 : vector<1x128xf32>
    %420 = arith.mulf %404, %412 : vector<1x128xf32>
    %421 = arith.addf %419, %420 : vector<1x128xf32>
    %422 = math.tanh %421 : vector<1x128xf32>
    %423 = arith.mulf %418, %422 : vector<1x128xf32>
    %424 = vector.extract_strided_slice %423 {offsets = [0, 0], sizes = [1, 64], strides = [1, 1]} : vector<1x128xf32> to vector<1x64xf32>
    %c2_181 = arith.constant 2 : index
    %c0_182 = arith.constant 0 : index
    %425 = vector.load %arg7[%c2_181, %c0_182] : memref<8x128xf32, #tpu.memory_space<vmem>>, vector<1x64xf32>
    tpu.vector_store %arg7[%c2_181, %c0_182], %424 {strides = array<i32>} : memref<8x128xf32, #tpu.memory_space<vmem>>, vector<1x64xf32>,
    %426 = vector.extract_strided_slice %423 {offsets = [0, 64], sizes = [1, 64], strides = [1, 1]} : vector<1x128xf32> to vector<1x64xf32>
    %c5_183 = arith.constant 5 : index
    %c64_184 = arith.constant 64 : index
    %427 = vector.load %arg7[%c5_183, %c64_184] : memref<8x128xf32, #tpu.memory_space<vmem>>, vector<1x64xf32>
    tpu.vector_store %arg7[%c5_183, %c64_184], %426 {strides = array<i32>} : memref<8x128xf32, #tpu.memory_space<vmem>>, vector<1x64xf32>,
    %c3_185 = arith.constant 3 : index
    %c0_186 = arith.constant 0 : index
    %428 = vector.load %arg5[%c3_185, %c0_186] : memref<8x512xf32, #tpu.memory_space<vmem>>, vector<1x512xf32>
    %c4_187 = arith.constant 4 : index
    %c0_188 = arith.constant 0 : index
    %429 = vector.load %arg5[%c4_187, %c0_188] : memref<8x512xf32, #tpu.memory_space<vmem>>, vector<1x512xf32>
    %430 = arith.select %50, %428, %429 : vector<1x512xi1>, vector<1x512xf32>
    %c328_189 = arith.constant 328 : index
    %c0_190 = arith.constant 0 : index
    %431 = vector.load %arg2[%c328_189, %c0_190] : memref<600x512xf32, #tpu.memory_space<vmem>>, vector<128x512xf32>
    %cst_191 = arith.constant dense<0.000000e+00> : vector<1x512xf32>
    %432 = tpu.matmul %423, %431, %cst_191 {dimension_numbers = #tpu.dot_dimension_numbers<[1], [0], [0], [1], [0, 0, 1, 1], [], []>} : vector<1x128xf32>, vector<128x512xf32>, vector<1x512xf32> -> vector<1x512xf32>
    %433 = arith.addf %430, %432 : vector<1x512xf32>
    %434 = vector.extract_strided_slice %433 {offsets = [0, 0], sizes = [1, 128], strides = [1, 1]} : vector<1x512xf32> to vector<1x128xf32>
    %435 = arith.negf %434 : vector<1x128xf32>
    %436 = math.exp %435 : vector<1x128xf32>
    %cst_192 = arith.constant 1.000000e+00 : f32
    %437 = vector.broadcast %cst_192 : f32 to vector<1x128xf32>
    %438 = arith.addf %437, %436 : vector<1x128xf32>
    %439 = arith.divf %437, %438 : vector<1x128xf32>
    %440 = vector.extract_strided_slice %433 {offsets = [0, 128], sizes = [1, 128], strides = [1, 1]} : vector<1x512xf32> to vector<1x128xf32>
    %441 = arith.negf %440 : vector<1x128xf32>
    %442 = math.exp %441 : vector<1x128xf32>
    %cst_193 = arith.constant 1.000000e+00 : f32
    %443 = vector.broadcast %cst_193 : f32 to vector<1x128xf32>
    %444 = arith.addf %443, %442 : vector<1x128xf32>
    %445 = arith.divf %443, %444 : vector<1x128xf32>
    %446 = vector.extract_strided_slice %433 {offsets = [0, 256], sizes = [1, 128], strides = [1, 1]} : vector<1x512xf32> to vector<1x128xf32>
    %447 = math.tanh %446 : vector<1x128xf32>
    %448 = vector.extract_strided_slice %433 {offsets = [0, 384], sizes = [1, 128], strides = [1, 1]} : vector<1x512xf32> to vector<1x128xf32>
    %449 = arith.negf %448 : vector<1x128xf32>
    %450 = math.exp %449 : vector<1x128xf32>
    %cst_194 = arith.constant 1.000000e+00 : f32
    %451 = vector.broadcast %cst_194 : f32 to vector<1x128xf32>
    %452 = arith.addf %451, %450 : vector<1x128xf32>
    %453 = arith.divf %451, %452 : vector<1x128xf32>
    %454 = arith.mulf %445, %421 : vector<1x128xf32>
    %455 = arith.mulf %439, %447 : vector<1x128xf32>
    %456 = arith.addf %454, %455 : vector<1x128xf32>
    %457 = math.tanh %456 : vector<1x128xf32>
    %458 = arith.mulf %453, %457 : vector<1x128xf32>
    %459 = vector.extract_strided_slice %458 {offsets = [0, 0], sizes = [1, 64], strides = [1, 1]} : vector<1x128xf32> to vector<1x64xf32>
    %c3_195 = arith.constant 3 : index
    %c0_196 = arith.constant 0 : index
    %460 = vector.load %arg7[%c3_195, %c0_196] : memref<8x128xf32, #tpu.memory_space<vmem>>, vector<1x64xf32>
    tpu.vector_store %arg7[%c3_195, %c0_196], %459 {strides = array<i32>} : memref<8x128xf32, #tpu.memory_space<vmem>>, vector<1x64xf32>,
    %461 = vector.extract_strided_slice %458 {offsets = [0, 64], sizes = [1, 64], strides = [1, 1]} : vector<1x128xf32> to vector<1x64xf32>
    %c4_197 = arith.constant 4 : index
    %c64_198 = arith.constant 64 : index
    %462 = vector.load %arg7[%c4_197, %c64_198] : memref<8x128xf32, #tpu.memory_space<vmem>>, vector<1x64xf32>
    tpu.vector_store %arg7[%c4_197, %c64_198], %461 {strides = array<i32>} : memref<8x128xf32, #tpu.memory_space<vmem>>, vector<1x64xf32>,
    %c4_199 = arith.constant 4 : index
    %c0_200 = arith.constant 0 : index
    %463 = vector.load %arg5[%c4_199, %c0_200] : memref<8x512xf32, #tpu.memory_space<vmem>>, vector<1x512xf32>
    %c3_201 = arith.constant 3 : index
    %c0_202 = arith.constant 0 : index
    %464 = vector.load %arg5[%c3_201, %c0_202] : memref<8x512xf32, #tpu.memory_space<vmem>>, vector<1x512xf32>
    %465 = arith.select %50, %463, %464 : vector<1x512xi1>, vector<1x512xf32>
    %c328_203 = arith.constant 328 : index
    %c0_204 = arith.constant 0 : index
    %466 = vector.load %arg2[%c328_203, %c0_204] : memref<600x512xf32, #tpu.memory_space<vmem>>, vector<128x512xf32>
    %cst_205 = arith.constant dense<0.000000e+00> : vector<1x512xf32>
    %467 = tpu.matmul %458, %466, %cst_205 {dimension_numbers = #tpu.dot_dimension_numbers<[1], [0], [0], [1], [0, 0, 1, 1], [], []>} : vector<1x128xf32>, vector<128x512xf32>, vector<1x512xf32> -> vector<1x512xf32>
    %468 = arith.addf %465, %467 : vector<1x512xf32>
    %469 = vector.extract_strided_slice %468 {offsets = [0, 0], sizes = [1, 128], strides = [1, 1]} : vector<1x512xf32> to vector<1x128xf32>
    %470 = arith.negf %469 : vector<1x128xf32>
    %471 = math.exp %470 : vector<1x128xf32>
    %cst_206 = arith.constant 1.000000e+00 : f32
    %472 = vector.broadcast %cst_206 : f32 to vector<1x128xf32>
    %473 = arith.addf %472, %471 : vector<1x128xf32>
    %474 = arith.divf %472, %473 : vector<1x128xf32>
    %475 = vector.extract_strided_slice %468 {offsets = [0, 128], sizes = [1, 128], strides = [1, 1]} : vector<1x512xf32> to vector<1x128xf32>
    %476 = arith.negf %475 : vector<1x128xf32>
    %477 = math.exp %476 : vector<1x128xf32>
    %cst_207 = arith.constant 1.000000e+00 : f32
    %478 = vector.broadcast %cst_207 : f32 to vector<1x128xf32>
    %479 = arith.addf %478, %477 : vector<1x128xf32>
    %480 = arith.divf %478, %479 : vector<1x128xf32>
    %481 = vector.extract_strided_slice %468 {offsets = [0, 256], sizes = [1, 128], strides = [1, 1]} : vector<1x512xf32> to vector<1x128xf32>
    %482 = math.tanh %481 : vector<1x128xf32>
    %483 = vector.extract_strided_slice %468 {offsets = [0, 384], sizes = [1, 128], strides = [1, 1]} : vector<1x512xf32> to vector<1x128xf32>
    %484 = arith.negf %483 : vector<1x128xf32>
    %485 = math.exp %484 : vector<1x128xf32>
    %cst_208 = arith.constant 1.000000e+00 : f32
    %486 = vector.broadcast %cst_208 : f32 to vector<1x128xf32>
    %487 = arith.addf %486, %485 : vector<1x128xf32>
    %488 = arith.divf %486, %487 : vector<1x128xf32>
    %489 = arith.mulf %480, %456 : vector<1x128xf32>
    %490 = arith.mulf %474, %482 : vector<1x128xf32>
    %491 = arith.addf %489, %490 : vector<1x128xf32>
    %492 = math.tanh %491 : vector<1x128xf32>
    %493 = arith.mulf %488, %492 : vector<1x128xf32>
    %494 = vector.extract_strided_slice %493 {offsets = [0, 0], sizes = [1, 64], strides = [1, 1]} : vector<1x128xf32> to vector<1x64xf32>
    %c4_209 = arith.constant 4 : index
    %c0_210 = arith.constant 0 : index
    %495 = vector.load %arg7[%c4_209, %c0_210] : memref<8x128xf32, #tpu.memory_space<vmem>>, vector<1x64xf32>
    tpu.vector_store %arg7[%c4_209, %c0_210], %494 {strides = array<i32>} : memref<8x128xf32, #tpu.memory_space<vmem>>, vector<1x64xf32>,
    %496 = vector.extract_strided_slice %493 {offsets = [0, 64], sizes = [1, 64], strides = [1, 1]} : vector<1x128xf32> to vector<1x64xf32>
    %c3_211 = arith.constant 3 : index
    %c64_212 = arith.constant 64 : index
    %497 = vector.load %arg7[%c3_211, %c64_212] : memref<8x128xf32, #tpu.memory_space<vmem>>, vector<1x64xf32>
    tpu.vector_store %arg7[%c3_211, %c64_212], %496 {strides = array<i32>} : memref<8x128xf32, #tpu.memory_space<vmem>>, vector<1x64xf32>,
    %c5_213 = arith.constant 5 : index
    %c0_214 = arith.constant 0 : index
    %498 = vector.load %arg5[%c5_213, %c0_214] : memref<8x512xf32, #tpu.memory_space<vmem>>, vector<1x512xf32>
    %c2_215 = arith.constant 2 : index
    %c0_216 = arith.constant 0 : index
    %499 = vector.load %arg5[%c2_215, %c0_216] : memref<8x512xf32, #tpu.memory_space<vmem>>, vector<1x512xf32>
    %500 = arith.select %50, %498, %499 : vector<1x512xi1>, vector<1x512xf32>
    %c328_217 = arith.constant 328 : index
    %c0_218 = arith.constant 0 : index
    %501 = vector.load %arg2[%c328_217, %c0_218] : memref<600x512xf32, #tpu.memory_space<vmem>>, vector<128x512xf32>
    %cst_219 = arith.constant dense<0.000000e+00> : vector<1x512xf32>
    %502 = tpu.matmul %493, %501, %cst_219 {dimension_numbers = #tpu.dot_dimension_numbers<[1], [0], [0], [1], [0, 0, 1, 1], [], []>} : vector<1x128xf32>, vector<128x512xf32>, vector<1x512xf32> -> vector<1x512xf32>
    %503 = arith.addf %500, %502 : vector<1x512xf32>
    %504 = vector.extract_strided_slice %503 {offsets = [0, 0], sizes = [1, 128], strides = [1, 1]} : vector<1x512xf32> to vector<1x128xf32>
    %505 = arith.negf %504 : vector<1x128xf32>
    %506 = math.exp %505 : vector<1x128xf32>
    %cst_220 = arith.constant 1.000000e+00 : f32
    %507 = vector.broadcast %cst_220 : f32 to vector<1x128xf32>
    %508 = arith.addf %507, %506 : vector<1x128xf32>
    %509 = arith.divf %507, %508 : vector<1x128xf32>
    %510 = vector.extract_strided_slice %503 {offsets = [0, 128], sizes = [1, 128], strides = [1, 1]} : vector<1x512xf32> to vector<1x128xf32>
    %511 = arith.negf %510 : vector<1x128xf32>
    %512 = math.exp %511 : vector<1x128xf32>
    %cst_221 = arith.constant 1.000000e+00 : f32
    %513 = vector.broadcast %cst_221 : f32 to vector<1x128xf32>
    %514 = arith.addf %513, %512 : vector<1x128xf32>
    %515 = arith.divf %513, %514 : vector<1x128xf32>
    %516 = vector.extract_strided_slice %503 {offsets = [0, 256], sizes = [1, 128], strides = [1, 1]} : vector<1x512xf32> to vector<1x128xf32>
    %517 = math.tanh %516 : vector<1x128xf32>
    %518 = vector.extract_strided_slice %503 {offsets = [0, 384], sizes = [1, 128], strides = [1, 1]} : vector<1x512xf32> to vector<1x128xf32>
    %519 = arith.negf %518 : vector<1x128xf32>
    %520 = math.exp %519 : vector<1x128xf32>
    %cst_222 = arith.constant 1.000000e+00 : f32
    %521 = vector.broadcast %cst_222 : f32 to vector<1x128xf32>
    %522 = arith.addf %521, %520 : vector<1x128xf32>
    %523 = arith.divf %521, %522 : vector<1x128xf32>
    %524 = arith.mulf %515, %491 : vector<1x128xf32>
    %525 = arith.mulf %509, %517 : vector<1x128xf32>
    %526 = arith.addf %524, %525 : vector<1x128xf32>
    %527 = math.tanh %526 : vector<1x128xf32>
    %528 = arith.mulf %523, %527 : vector<1x128xf32>
    %529 = vector.extract_strided_slice %528 {offsets = [0, 0], sizes = [1, 64], strides = [1, 1]} : vector<1x128xf32> to vector<1x64xf32>
    %c5_223 = arith.constant 5 : index
    %c0_224 = arith.constant 0 : index
    %530 = vector.load %arg7[%c5_223, %c0_224] : memref<8x128xf32, #tpu.memory_space<vmem>>, vector<1x64xf32>
    tpu.vector_store %arg7[%c5_223, %c0_224], %529 {strides = array<i32>} : memref<8x128xf32, #tpu.memory_space<vmem>>, vector<1x64xf32>,
    %531 = vector.extract_strided_slice %528 {offsets = [0, 64], sizes = [1, 64], strides = [1, 1]} : vector<1x128xf32> to vector<1x64xf32>
    %c2_225 = arith.constant 2 : index
    %c64_226 = arith.constant 64 : index
    %532 = vector.load %arg7[%c2_225, %c64_226] : memref<8x128xf32, #tpu.memory_space<vmem>>, vector<1x64xf32>
    tpu.vector_store %arg7[%c2_225, %c64_226], %531 {strides = array<i32>} : memref<8x128xf32, #tpu.memory_space<vmem>>, vector<1x64xf32>,
    %c6_227 = arith.constant 6 : index
    %c0_228 = arith.constant 0 : index
    %533 = vector.load %arg5[%c6_227, %c0_228] : memref<8x512xf32, #tpu.memory_space<vmem>>, vector<1x512xf32>
    %c1_229 = arith.constant 1 : index
    %c0_230 = arith.constant 0 : index
    %534 = vector.load %arg5[%c1_229, %c0_230] : memref<8x512xf32, #tpu.memory_space<vmem>>, vector<1x512xf32>
    %535 = arith.select %50, %533, %534 : vector<1x512xi1>, vector<1x512xf32>
    %c328_231 = arith.constant 328 : index
    %c0_232 = arith.constant 0 : index
    %536 = vector.load %arg2[%c328_231, %c0_232] : memref<600x512xf32, #tpu.memory_space<vmem>>, vector<128x512xf32>
    %cst_233 = arith.constant dense<0.000000e+00> : vector<1x512xf32>
    %537 = tpu.matmul %528, %536, %cst_233 {dimension_numbers = #tpu.dot_dimension_numbers<[1], [0], [0], [1], [0, 0, 1, 1], [], []>} : vector<1x128xf32>, vector<128x512xf32>, vector<1x512xf32> -> vector<1x512xf32>
    %538 = arith.addf %535, %537 : vector<1x512xf32>
    %539 = vector.extract_strided_slice %538 {offsets = [0, 0], sizes = [1, 128], strides = [1, 1]} : vector<1x512xf32> to vector<1x128xf32>
    %540 = arith.negf %539 : vector<1x128xf32>
    %541 = math.exp %540 : vector<1x128xf32>
    %cst_234 = arith.constant 1.000000e+00 : f32
    %542 = vector.broadcast %cst_234 : f32 to vector<1x128xf32>
    %543 = arith.addf %542, %541 : vector<1x128xf32>
    %544 = arith.divf %542, %543 : vector<1x128xf32>
    %545 = vector.extract_strided_slice %538 {offsets = [0, 128], sizes = [1, 128], strides = [1, 1]} : vector<1x512xf32> to vector<1x128xf32>
    %546 = arith.negf %545 : vector<1x128xf32>
    %547 = math.exp %546 : vector<1x128xf32>
    %cst_235 = arith.constant 1.000000e+00 : f32
    %548 = vector.broadcast %cst_235 : f32 to vector<1x128xf32>
    %549 = arith.addf %548, %547 : vector<1x128xf32>
    %550 = arith.divf %548, %549 : vector<1x128xf32>
    %551 = vector.extract_strided_slice %538 {offsets = [0, 256], sizes = [1, 128], strides = [1, 1]} : vector<1x512xf32> to vector<1x128xf32>
    %552 = math.tanh %551 : vector<1x128xf32>
    %553 = vector.extract_strided_slice %538 {offsets = [0, 384], sizes = [1, 128], strides = [1, 1]} : vector<1x512xf32> to vector<1x128xf32>
    %554 = arith.negf %553 : vector<1x128xf32>
    %555 = math.exp %554 : vector<1x128xf32>
    %cst_236 = arith.constant 1.000000e+00 : f32
    %556 = vector.broadcast %cst_236 : f32 to vector<1x128xf32>
    %557 = arith.addf %556, %555 : vector<1x128xf32>
    %558 = arith.divf %556, %557 : vector<1x128xf32>
    %559 = arith.mulf %550, %526 : vector<1x128xf32>
    %560 = arith.mulf %544, %552 : vector<1x128xf32>
    %561 = arith.addf %559, %560 : vector<1x128xf32>
    %562 = math.tanh %561 : vector<1x128xf32>
    %563 = arith.mulf %558, %562 : vector<1x128xf32>
    %564 = vector.extract_strided_slice %563 {offsets = [0, 0], sizes = [1, 64], strides = [1, 1]} : vector<1x128xf32> to vector<1x64xf32>
    %c6_237 = arith.constant 6 : index
    %c0_238 = arith.constant 0 : index
    %565 = vector.load %arg7[%c6_237, %c0_238] : memref<8x128xf32, #tpu.memory_space<vmem>>, vector<1x64xf32>
    tpu.vector_store %arg7[%c6_237, %c0_238], %564 {strides = array<i32>} : memref<8x128xf32, #tpu.memory_space<vmem>>, vector<1x64xf32>,
    %566 = vector.extract_strided_slice %563 {offsets = [0, 64], sizes = [1, 64], strides = [1, 1]} : vector<1x128xf32> to vector<1x64xf32>
    %c1_239 = arith.constant 1 : index
    %c64_240 = arith.constant 64 : index
    %567 = vector.load %arg7[%c1_239, %c64_240] : memref<8x128xf32, #tpu.memory_space<vmem>>, vector<1x64xf32>
    tpu.vector_store %arg7[%c1_239, %c64_240], %566 {strides = array<i32>} : memref<8x128xf32, #tpu.memory_space<vmem>>, vector<1x64xf32>,
    %c7_241 = arith.constant 7 : index
    %c0_242 = arith.constant 0 : index
    %568 = vector.load %arg5[%c7_241, %c0_242] : memref<8x512xf32, #tpu.memory_space<vmem>>, vector<1x512xf32>
    %c0_243 = arith.constant 0 : index
    %c0_244 = arith.constant 0 : index
    %569 = vector.load %arg5[%c0_243, %c0_244] : memref<8x512xf32, #tpu.memory_space<vmem>>, vector<1x512xf32>
    %570 = arith.select %50, %568, %569 : vector<1x512xi1>, vector<1x512xf32>
    %c328_245 = arith.constant 328 : index
    %c0_246 = arith.constant 0 : index
    %571 = vector.load %arg2[%c328_245, %c0_246] : memref<600x512xf32, #tpu.memory_space<vmem>>, vector<128x512xf32>
    %cst_247 = arith.constant dense<0.000000e+00> : vector<1x512xf32>
    %572 = tpu.matmul %563, %571, %cst_247 {dimension_numbers = #tpu.dot_dimension_numbers<[1], [0], [0], [1], [0, 0, 1, 1], [], []>} : vector<1x128xf32>, vector<128x512xf32>, vector<1x512xf32> -> vector<1x512xf32>
    %573 = arith.addf %570, %572 : vector<1x512xf32>
    %574 = vector.extract_strided_slice %573 {offsets = [0, 0], sizes = [1, 128], strides = [1, 1]} : vector<1x512xf32> to vector<1x128xf32>
    %575 = arith.negf %574 : vector<1x128xf32>
    %576 = math.exp %575 : vector<1x128xf32>
    %cst_248 = arith.constant 1.000000e+00 : f32
    %577 = vector.broadcast %cst_248 : f32 to vector<1x128xf32>
    %578 = arith.addf %577, %576 : vector<1x128xf32>
    %579 = arith.divf %577, %578 : vector<1x128xf32>
    %580 = vector.extract_strided_slice %573 {offsets = [0, 128], sizes = [1, 128], strides = [1, 1]} : vector<1x512xf32> to vector<1x128xf32>
    %581 = arith.negf %580 : vector<1x128xf32>
    %582 = math.exp %581 : vector<1x128xf32>
    %cst_249 = arith.constant 1.000000e+00 : f32
    %583 = vector.broadcast %cst_249 : f32 to vector<1x128xf32>
    %584 = arith.addf %583, %582 : vector<1x128xf32>
    %585 = arith.divf %583, %584 : vector<1x128xf32>
    %586 = vector.extract_strided_slice %573 {offsets = [0, 256], sizes = [1, 128], strides = [1, 1]} : vector<1x512xf32> to vector<1x128xf32>
    %587 = math.tanh %586 : vector<1x128xf32>
    %588 = vector.extract_strided_slice %573 {offsets = [0, 384], sizes = [1, 128], strides = [1, 1]} : vector<1x512xf32> to vector<1x128xf32>
    %589 = arith.negf %588 : vector<1x128xf32>
    %590 = math.exp %589 : vector<1x128xf32>
    %cst_250 = arith.constant 1.000000e+00 : f32
    %591 = vector.broadcast %cst_250 : f32 to vector<1x128xf32>
    %592 = arith.addf %591, %590 : vector<1x128xf32>
    %593 = arith.divf %591, %592 : vector<1x128xf32>
    %594 = arith.mulf %585, %561 : vector<1x128xf32>
    %595 = arith.mulf %579, %587 : vector<1x128xf32>
    %596 = arith.addf %594, %595 : vector<1x128xf32>
    %597 = math.tanh %596 : vector<1x128xf32>
    %598 = arith.mulf %593, %597 : vector<1x128xf32>
    %599 = vector.extract_strided_slice %598 {offsets = [0, 0], sizes = [1, 64], strides = [1, 1]} : vector<1x128xf32> to vector<1x64xf32>
    %c7_251 = arith.constant 7 : index
    %c0_252 = arith.constant 0 : index
    %600 = vector.load %arg7[%c7_251, %c0_252] : memref<8x128xf32, #tpu.memory_space<vmem>>, vector<1x64xf32>
    tpu.vector_store %arg7[%c7_251, %c0_252], %599 {strides = array<i32>} : memref<8x128xf32, #tpu.memory_space<vmem>>, vector<1x64xf32>,
    %601 = vector.extract_strided_slice %598 {offsets = [0, 64], sizes = [1, 64], strides = [1, 1]} : vector<1x128xf32> to vector<1x64xf32>
    %c0_253 = arith.constant 0 : index
    %c64_254 = arith.constant 64 : index
    %602 = vector.load %arg7[%c0_253, %c64_254] : memref<8x128xf32, #tpu.memory_space<vmem>>, vector<1x64xf32>
    tpu.vector_store %arg7[%c0_253, %c64_254], %601 {strides = array<i32>} : memref<8x128xf32, #tpu.memory_space<vmem>>, vector<1x64xf32>,
    %c0_255 = arith.constant 0 : index
    %c0_256 = arith.constant 0 : index
    %603 = vector.load %arg7[%c0_255, %c0_256] : memref<8x128xf32, #tpu.memory_space<vmem>>, vector<8x128xf32>
    %c464 = arith.constant 464 : index
    %c0_257 = arith.constant 0 : index
    %604 = vector.load %arg2[%c464, %c0_257] : memref<600x512xf32, #tpu.memory_space<vmem>>, vector<128x512xf32>
    %cst_258 = arith.constant dense<0.000000e+00> : vector<8x512xf32>
    %605 = tpu.matmul %603, %604, %cst_258 {dimension_numbers = #tpu.dot_dimension_numbers<[1], [0], [0], [1], [0, 0, 1, 1], [], []>} : vector<8x128xf32>, vector<128x512xf32>, vector<8x512xf32> -> vector<8x512xf32>
    %c592 = arith.constant 592 : index
    %c0_259 = arith.constant 0 : index
    %606 = vector.load %arg2[%c592, %c0_259] : memref<600x512xf32, #tpu.memory_space<vmem>>, vector<1x512xf32>
    %607 = vector.broadcast %606 : vector<1x512xf32> to vector<8x512xf32>
    %608 = arith.addf %605, %607 : vector<8x512xf32>
    %609 = vector.extract_strided_slice %608 {offsets = [0, 0], sizes = [8, 16], strides = [1, 1]} : vector<8x512xf32> to vector<8x16xf32>
    %cst_260 = arith.constant dense<0xFF800000> : vector<8xf32>
    %610 = vector.multi_reduction <maximumf>, %609, %cst_260 [1] : vector<8x16xf32> to vector<8xf32>
    %611 = vector.shape_cast %610 : vector<8xf32> to vector<8x1xf32>
    %612 = vector.broadcast %611 : vector<8x1xf32> to vector<8x16xf32>
    %613 = arith.subf %609, %612 : vector<8x16xf32>
    %614 = math.exp %613 : vector<8x16xf32>
    %cst_261 = arith.constant dense<0.000000e+00> : vector<8xf32>
    %615 = vector.multi_reduction <add>, %614, %cst_261 [1] : vector<8x16xf32> to vector<8xf32>
    %616 = vector.shape_cast %615 : vector<8xf32> to vector<8x1xf32>
    %617 = math.log %616 : vector<8x1xf32>
    %618 = vector.broadcast %617 : vector<8x1xf32> to vector<8x16xf32>
    %619 = arith.subf %613, %618 : vector<8x16xf32>
    %c0_262 = arith.constant 0 : index
    %c0_263 = arith.constant 0 : index
    %620 = vector.load %arg3[%c0_262, %c0_263] : memref<8x16xf32, #tpu.memory_space<vmem>>, vector<8x16xf32>
    tpu.vector_store %arg3[%c0_262, %c0_263], %619 {strides = array<i32>} : memref<8x16xf32, #tpu.memory_space<vmem>>, vector<8x16xf32>,
    return
  }
}

</mosaic_0001>

<llo_original>
// kernel: dnn_pos_tagger_forward.1
$region0: #{dnn_pos_tagger_forward.1}
  #allocation0 [shape = 'u32[]', space=smem, size = 0x4, offset = 0x4, fixed_abs, tag = 'smem constant byte address 0x4 - core index']
  #allocation1 [shape = 'u32[144,128]{1,0:T(1,128)}', space=vmem, size = 0x12000, scoped, tag = 'internal scratch']
  #allocation2 [shape = 'f32[8,64]{1,0:T(8,128)}', space=vmem, size = 0x1000, scoped, tag = 'scratch operand']
  #allocation3 [shape = 'f32[8,512]{1,0:T(8,128)}', space=vmem, size = 0x4000, scoped, tag = 'scratch operand']
  #allocation4 [shape = 'f32[8,128]{1,0:T(8,128)}', space=vmem, size = 0x1000, scoped, tag = 'scratch operand']
  #allocation5 [shape = 'f32[8,128]{1,0:T(8,128)}', space=vmem, size = 0x1000, scoped, tag = 'scratch operand']
  %s0 = inlined_call_operand.hbm [shape: s32[8], index: 0, kind: input, shape index: {}]
  %s1 = inlined_call_operand.hbm [shape: f32[50,64], index: 1, kind: input, shape index: {}]
  %s2 = inlined_call_operand.hbm [shape: f32[600,512], index: 2, kind: input, shape index: {}]
  %s3 = inlined_call_operand.hbm [shape: f32[8,16], index: 3, kind: output, shape index: {}]
  %s4 = sld [smem:[#allocation0]]
  $region34: #{dnn_pos_tagger_forward.1} parent=0
    _
  %s6 = ssub.s32 1, %s4
  %s7 = scalar_select 0, %s6, %s4
  $region1: #{dnn_pos_tagger_forward.1} parent=0
    #allocation6 [shape = 'u8[512]{0}', space=smem, size = 0x200, scoped, tag = 'input window, operand 0, single buffered']
    #allocation7 [shape = 's32[1]{0}', space=sflag, size = 0x4, scoped, tag = 'scoped memory for dnn_pos_tagger_forward.1']
    #allocation8 [shape = 's32[1]{0}', space=sflag, size = 0x4, scoped, tag = 'scoped memory for dnn_pos_tagger_forward.1']
    #allocation9 [shape = 's32[1]{0}', space=sflag, size = 0x4, scoped, tag = 'scoped memory for dnn_pos_tagger_forward.1']
    #allocation10 [shape = 'u8[28672]{0}', space=vmem, size = 0x7000, scoped, tag = 'input window, operand 1, single buffered']
    #allocation11 [shape = 'u8[1228800]{0}', space=vmem, size = 0x12c000, scoped, tag = 'input window, operand 2, single buffered']
    #allocation12 [shape = 's32[1]{0}', space=sflag, size = 0x4, scoped, tag = 'scoped memory for dnn_pos_tagger_forward.1']
    #allocation13 [shape = 'u8[4096]{0}', space=vmem, size = 0x1000, scoped, tag = 'output window, operand 0, single buffered']
    %8 = vsyncpa [#allocation9], 0
    %9 = vsyncpa [#allocation7], 0
    %10 = vsyncpa [#allocation12], 0
    %11 = vsyncpa [#allocation8], 0
    // Predicated region
    $region2: #{dnn_pos_tagger_forward.1} parent=1 // pred_check
      _
    $region3: #{dnn_pos_tagger_forward.1} parent=1 // pred_check_branch
      %13 = sbr.rel (0) target = $region5
    $region4: #{dnn_pos_tagger_forward.1} parent=1 // pred_region
      %s15 = ssub.s32 16, 16
      %16 = vsyncadd [#allocation9], %s15
      %19 = dma.hbm_to_smem %s0, 16, [#allocation6], [#allocation9]
    $region5: #{dnn_pos_tagger_forward.1} parent=1 // pred_fallthru
      _
    // Predicated region
    $region6: #{dnn_pos_tagger_forward.1} parent=1 // pred_check
      _
    $region7: #{dnn_pos_tagger_forward.1} parent=1 // pred_check_branch
      %21 = sbr.rel (0) target = $region9
    $region8: #{dnn_pos_tagger_forward.1} parent=1 // pred_region
      %s23 = ssub.s32 896, 896
      %24 = vsyncadd [#allocation7], %s23
      %s25 = sshll.u32 [#allocation10], 4
      %s26 = int_to_ptr.vmem [resolvable:$true] %s25
      %31 = dma.hbm_to_vmem [thread:$0]  %s1, 896, %s26, [#allocation7], 128, 128, 8
    $region9: #{dnn_pos_tagger_forward.1} parent=1 // pred_fallthru
      _
    // Predicated region
    $region10: #{dnn_pos_tagger_forward.1} parent=1 // pred_check
      _
    $region11: #{dnn_pos_tagger_forward.1} parent=1 // pred_check_branch
      %33 = sbr.rel (0) target = $region13
    $region12: #{dnn_pos_tagger_forward.1} parent=1 // pred_region
      %s35 = ssub.s32 38400, 38400
      %36 = vsyncadd [#allocation12], %s35
      %s37 = sshll.u32 [#allocation11], 4
      %s38 = int_to_ptr.vmem [resolvable:$true] %s37
      %43 = dma.hbm_to_vmem [thread:$0]  %s2, 38400, %s38, [#allocation12], 512, 512, 32
    $region13: #{dnn_pos_tagger_forward.1} parent=1 // pred_fallthru
      _
    // Predicated region
    $region14: #{dnn_pos_tagger_forward.1} parent=1 // pred_check
      _
    $region15: #{dnn_pos_tagger_forward.1} parent=1 // pred_check_branch
      %45 = sbr.rel (0) target = $region17
    $region16: #{dnn_pos_tagger_forward.1} parent=1 // pred_region
      %46 = dma.done [#allocation9], 16
    $region17: #{dnn_pos_tagger_forward.1} parent=1 // pred_fallthru
      _
    // Predicated region
    $region18: #{dnn_pos_tagger_forward.1} parent=1 // pred_check
      _
    $region19: #{dnn_pos_tagger_forward.1} parent=1 // pred_check_branch
      %48 = sbr.rel (0) target = $region21
    $region20: #{dnn_pos_tagger_forward.1} parent=1 // pred_region
      %49 = dma.done [#allocation7], 896
    $region21: #{dnn_pos_tagger_forward.1} parent=1 // pred_fallthru
      _
    // Predicated region
    $region22: #{dnn_pos_tagger_forward.1} parent=1 // pred_check
      _
    $region23: #{dnn_pos_tagger_forward.1} parent=1 // pred_check_branch
      %51 = sbr.rel (0) target = $region25
    $region24: #{dnn_pos_tagger_forward.1} parent=1 // pred_region
      %52 = dma.done [#allocation12], 38400
    $region25: #{dnn_pos_tagger_forward.1} parent=1 // pred_fallthru
      _
    %53 = sfence
    %s54 = sld [smem:[#allocation6]]
    %s55 = scalar_lea.vmem [#allocation10], %s54
    %v56 = vld [vmem:[%s55] sm:$0x1]
    %vm57 = vcmask 516096
    %58 = vst.msk [vmem:[#allocation2] sm:$0x1] %vm57, %v56
    %s59 = sld [smem:[#allocation6 + $0x1]]
    %s60 = scalar_lea.vmem [#allocation10], %s59
    %v61 = vld [vmem:[%s60] sm:$0x1]
    %62 = vst.msk [vmem:[#allocation2 + $0x1] sm:$0x1] %vm57, %v61
    %s63 = sld [smem:[#allocation6 + $0x2]]
    %s64 = scalar_lea.vmem [#allocation10], %s63
    %v65 = vld [vmem:[%s64] sm:$0x1]
    %66 = vst.msk [vmem:[#allocation2 + $0x2] sm:$0x1] %vm57, %v65
    %s67 = sld [smem:[#allocation6 + $0x3]]
    %s68 = scalar_lea.vmem [#allocation10], %s67
    %v69 = vld [vmem:[%s68] sm:$0x1]
    %70 = vst.msk [vmem:[#allocation2 + $0x3] sm:$0x1] %vm57, %v69
    %s71 = sld [smem:[#allocation6 + $0x4]]
    %s72 = scalar_lea.vmem [#allocation10], %s71
    %v73 = vld [vmem:[%s72] sm:$0x1]
    %74 = vst.msk [vmem:[#allocation2 + $0x4] sm:$0x1] %vm57, %v73
    %s75 = sld [smem:[#allocation6 + $0x5]]
    %s76 = scalar_lea.vmem [#allocation10], %s75
    %v77 = vld [vmem:[%s76] sm:$0x1]
    %78 = vst.msk [vmem:[#allocation2 + $0x5] sm:$0x1] %vm57, %v77
    %s79 = sld [smem:[#allocation6 + $0x6]]
    %s80 = scalar_lea.vmem [#allocation10], %s79
    %v81 = vld [vmem:[%s80] sm:$0x1]
    %82 = vst.msk [vmem:[#allocation2 + $0x6] sm:$0x1] %vm57, %v81
    %s83 = sld [smem:[#allocation6 + $0x7]]
    %s84 = scalar_lea.vmem [#allocation10], %s83
    %v85 = vld [vmem:[%s84] sm:$0x1]
    %86 = vst.msk [vmem:[#allocation2 + $0x7] sm:$0x1] %vm57, %v85
    %v87 = vlaneseq
    %v88 = vand.u32 %v87, 127
    %v89 = vadd.s32 %v88, 128
    %v90 = vadd.s32 %v88, 256
    %v91 = vadd.s32 %v88, 384
    %vm92 = vcmp.lt.s32.totalorder %v88, 0
    %v93 = vsub.s32 0, %v88
    %v94 = vsel %vm92, %v93, %v88
    %v95 = vshrl.u32 %v94, 7
    %v96 = vand.u32 %v94, 127
    %v97 = vsub.s32 0, %v96
    %v98 = vsel %vm92, %v97, %v96
    %vm99 = vcmp.lt.s32.totalorder %v89, 0
    %v100 = vsub.s32 0, %v89
    %v101 = vsel %vm99, %v100, %v89
    %v102 = vshrl.u32 %v101, 7
    %v103 = vand.u32 %v101, 127
    %v104 = vsub.s32 0, %v103
    %v105 = vsel %vm99, %v104, %v103
    %vm106 = vcmp.lt.s32.totalorder %v90, 0
    %v107 = vsub.s32 0, %v90
    %v108 = vsel %vm106, %v107, %v90
    %v109 = vshrl.u32 %v108, 7
    %v110 = vand.u32 %v108, 127
    %v111 = vsub.s32 0, %v110
    %v112 = vsel %vm106, %v111, %v110
    %vm113 = vcmp.lt.s32.totalorder %v91, 0
    %v114 = vsub.s32 0, %v91
    %v115 = vsel %vm113, %v114, %v91
    %v116 = vshrl.u32 %v115, 7
    %v117 = vand.u32 %v115, 127
    %v118 = vsub.s32 0, %v117
    %v119 = vsel %vm113, %v118, %v117
    %vm120 = vcmp.ne.s32.totalorder %v98, 0
    %vm121 = vcmp.ne.s32.totalorder %v105, 0
    %vm122 = vcmp.ne.s32.totalorder %v112, 0
    %vm123 = vcmp.ne.s32.totalorder %v119, 0
    %vm124 = vcmp.lt.s32.totalorder %v98, 0
    %vm125 = vcmp.lt.s32.totalorder %v105, 0
    %vm126 = vcmp.lt.s32.totalorder %v112, 0
    %vm127 = vcmp.lt.s32.totalorder %v119, 0
    %vm128 = vmand %vm124, %vm120
    %vm129 = vmand %vm125, %vm121
    %vm130 = vmand %vm126, %vm122
    %vm131 = vmand %vm127, %vm123
    %v132 = vadd.s32 %v98, 128
    %v133 = vadd.s32 %v105, 128
    %v134 = vadd.s32 %v112, 128
    %v135 = vadd.s32 %v119, 128
    %v136 = vsel %vm128, %v132, %v98
    %v137 = vsel %vm129, %v133, %v105
    %v138 = vsel %vm130, %v134, %v112
    %v139 = vsel %vm131, %v135, %v119
    %vm140 = vcmp.lt.s32.totalorder %v136, 64
    %vm141 = vcmp.lt.s32.totalorder %v137, 64
    %vm142 = vcmp.lt.s32.totalorder %v138, 64
    %vm143 = vcmp.lt.s32.totalorder %v139, 64
    %v144 = vld [vmem:[#allocation2] sm:$0xff]
    %v145 = vld [vmem:[#allocation11] sm:$0xff]
    %v146 = vld [vmem:[#allocation11 + $0x8] sm:$0xff]
    %v147 = vld [vmem:[#allocation11 + $0x10] sm:$0xff]
    %v148 = vld [vmem:[#allocation11 + $0x18] sm:$0xff]
    %v149 = vld [vmem:[#allocation11 + $0x20] sm:$0xff]
    %v150 = vld [vmem:[#allocation11 + $0x28] sm:$0xff]
    %v151 = vld [vmem:[#allocation11 + $0x30] sm:$0xff]
    %v152 = vld [vmem:[#allocation11 + $0x38] sm:$0xff]
    %v153 = vld [vmem:[#allocation11 + $0x40] sm:$0xff]
    %v154 = vld [vmem:[#allocation11 + $0x48] sm:$0xff]
    %v155 = vld [vmem:[#allocation11 + $0x50] sm:$0xff]
    %v156 = vld [vmem:[#allocation11 + $0x58] sm:$0xff]
    %v157 = vld [vmem:[#allocation11 + $0x60] sm:$0xff]
    %v158 = vld [vmem:[#allocation11 + $0x68] sm:$0xff]
    %v159 = vld [vmem:[#allocation11 + $0x70] sm:$0xff]
    %v160 = vld [vmem:[#allocation11 + $0x78] sm:$0xff]
    %v161 = vld [vmem:[#allocation11 + $0x80] sm:$0xff]
    %v162 = vld [vmem:[#allocation11 + $0x88] sm:$0xff]
    %v163 = vld [vmem:[#allocation11 + $0x90] sm:$0xff]
    %v164 = vld [vmem:[#allocation11 + $0x98] sm:$0xff]
    %v165 = vld [vmem:[#allocation11 + $0xa0] sm:$0xff]
    %v166 = vld [vmem:[#allocation11 + $0xa8] sm:$0xff]
    %v167 = vld [vmem:[#allocation11 + $0xb0] sm:$0xff]
    %v168 = vld [vmem:[#allocation11 + $0xb8] sm:$0xff]
    %v169 = vld [vmem:[#allocation11 + $0xc0] sm:$0xff]
    %v170 = vld [vmem:[#allocation11 + $0xc8] sm:$0xff]
    %v171 = vld [vmem:[#allocation11 + $0xd0] sm:$0xff]
    %v172 = vld [vmem:[#allocation11 + $0xd8] sm:$0xff]
    %v173 = vld [vmem:[#allocation11 + $0xe0] sm:$0xff]
    %v174 = vld [vmem:[#allocation11 + $0xe8] sm:$0xff]
    %v175 = vld [vmem:[#allocation11 + $0xf0] sm:$0xff]
    %v176 = vld [vmem:[#allocation11 + $0xf8] sm:$0xff]
    %s177 = scalar_lea.vmem [#allocation11], 768
    %v178 = vld [vmem:[%s177] ss:$8 sm:$0xf]
    %v180 = vlaneseq
    %v181 = vshrl.u32 %v180, 7
    %v182 = vsub.s32 0, %v181
    %v183 = vrot.slane %v178, %v182
    %v184 = vlaneseq
    %v185 = vshrl.u32 %v184, 7
    %v186 = vsub.s32 1, %v185
    %v187 = vrot.slane %v178, %v186
    %v188 = vlaneseq
    %v189 = vshrl.u32 %v188, 7
    %v190 = vsub.s32 2, %v189
    %v191 = vrot.slane %v178, %v190
    %v192 = vlaneseq
    %v193 = vshrl.u32 %v192, 7
    %v194 = vsub.s32 3, %v193
    %v195 = vrot.slane %v178, %v194
    %vm200 = vcmask 523264
    %v202 = vsel %vm200, %v144, 0
    %204 = vmatprep.subr.mxu0 %v146
    %205 = vmatpush1.msra.mxu0 %v145
    %206 = vmatprep.subr.mxu0 %v150
    %207 = vmatpush1.msra.mxu0 %v149
    %208 = vmatprep.subr.mxu0 %v154
    %209 = vmatpush1.msra.mxu0 %v153
    %210 = vmatprep.subr.mxu0 %v158
    %211 = vmatpush1.msra.mxu0 %v157
    %212 = vmatprep.subr.mxu0 %v162
    %213 = vmatpush1.msra.mxu0 %v161
    %214 = vmatprep.subr.mxu0 %v166
    %215 = vmatpush1.msra.mxu0 %v165
    %216 = vmatprep.subr.mxu0 %v170
    %217 = vmatpush1.msra.mxu0 %v169
    %218 = vmatprep.subr.mxu0 %v174
    %219 = vmatpush1.msra.mxu0 %v173
    %220 = vmatprep.subr.mxu0 0.0
    %221 = vmatpush1.msra.mxu0 0.0
    %222 = vmatprep.subr.mxu0 0.0
    %223 = vmatpush1.msra.mxu0 0.0
    %224 = vmatprep.subr.mxu0 0.0
    %225 = vmatpush1.msra.mxu0 0.0
    %226 = vmatprep.subr.mxu0 0.0
    %227 = vmatpush1.msra.mxu0 0.0
    %228 = vmatprep.subr.mxu0 0.0
    %229 = vmatpush1.msra.mxu0 0.0
    %230 = vmatprep.subr.mxu0 0.0
    %231 = vmatpush1.msra.mxu0 0.0
    %232 = vmatprep.subr.mxu0 0.0
    %233 = vmatpush1.msra.mxu0 0.0
    %234 = vmatprep.subr.mxu0 0.0
    %235 = vmatpush1.msra.mxu0 0.0
    %236 = vmatprep.subr.mxu0 0.0
    %237 = vmatpush1.msra.mxu0 0.0
    %238 = vmatprep.subr.mxu0 0.0
    %239 = vmatpush1.msra.mxu0 0.0
    %240 = vmatprep.subr.mxu0 0.0
    %241 = vmatpush1.msra.mxu0 0.0
    %242 = vmatprep.subr.mxu0 0.0
    %243 = vmatpush1.msra.mxu0 0.0
    %244 = vmatprep.subr.mxu0 0.0
    %245 = vmatpush1.msra.mxu0 0.0
    %246 = vmatprep.subr.mxu0 0.0
    %247 = vmatpush1.msra.mxu0 0.0
    %248 = vmatprep.subr.mxu0 0.0
    %249 = vmatpush1.msra.mxu0 0.0
    %250 = vmatprep.subr.mxu0 0.0
    %251 = vmatpush1.msra.mxu0 0.0
    %252 = vmatprep.subr.mxu0 0.0
    %253 = vmatpush1.msra.mxu0 0.0
    %254 = vmatprep.subr.mxu0 0.0
    %255 = vmatpush1.msra.mxu0 0.0
    %256 = vmatprep.subr.mxu0 0.0
    %257 = vmatpush1.msra.mxu0 0.0
    %258 = vmatprep.subr.mxu0 0.0
    %259 = vmatpush1.msra.mxu0 0.0
    %260 = vmatprep.subr.mxu0 0.0
    %261 = vmatpush1.msra.mxu0 0.0
    %262 = vmatprep.subr.mxu0 0.0
    %263 = vmatpush1.msra.mxu0 0.0
    %264 = vmatprep.subr.mxu0 0.0
    %265 = vmatpush1.msra.mxu0 0.0
    %266 = vmatprep.subr.mxu0 0.0
    %267 = vmatpush1.msra.mxu0 0.0
    %268 = vmatprep.mubr.f32.mxu0 0.0
    %269 = vmatmul.mubr.f32.gmra.mrb[0].mxu0 %v202
    %v270 = vpop.f32.mrb[0].mxu0
    %v271 = vadd.f32 %v183, %v270
    %v272 = vpop.f32.mrb[0].mxu0
    %v273 = vadd.f32 %v187, %v272
    %274 = vdwg.mxu0
    %275 = vmatprep.subr.mxu0 %v148
    %276 = vmatpush1.msra.mxu0 %v147
    %277 = vmatprep.subr.mxu0 %v152
    %278 = vmatpush1.msra.mxu0 %v151
    %279 = vmatprep.subr.mxu0 %v156
    %280 = vmatpush1.msra.mxu0 %v155
    %281 = vmatprep.subr.mxu0 %v160
    %282 = vmatpush1.msra.mxu0 %v159
    %283 = vmatprep.subr.mxu0 %v164
    %284 = vmatpush1.msra.mxu0 %v163
    %285 = vmatprep.subr.mxu0 %v168
    %286 = vmatpush1.msra.mxu0 %v167
    %287 = vmatprep.subr.mxu0 %v172
    %288 = vmatpush1.msra.mxu0 %v171
    %289 = vmatprep.subr.mxu0 %v176
    %290 = vmatpush1.msra.mxu0 %v175
    %291 = vmatprep.subr.mxu0 0.0
    %292 = vmatpush1.msra.mxu0 0.0
    %293 = vmatprep.subr.mxu0 0.0
    %294 = vmatpush1.msra.mxu0 0.0
    %295 = vmatprep.subr.mxu0 0.0
    %296 = vmatpush1.msra.mxu0 0.0
    %297 = vmatprep.subr.mxu0 0.0
    %298 = vmatpush1.msra.mxu0 0.0
    %299 = vmatprep.subr.mxu0 0.0
    %300 = vmatpush1.msra.mxu0 0.0
    %301 = vmatprep.subr.mxu0 0.0
    %302 = vmatpush1.msra.mxu0 0.0
    %303 = vmatprep.subr.mxu0 0.0
    %304 = vmatpush1.msra.mxu0 0.0
    %305 = vmatprep.subr.mxu0 0.0
    %306 = vmatpush1.msra.mxu0 0.0
    %307 = vmatprep.subr.mxu0 0.0
    %308 = vmatpush1.msra.mxu0 0.0
    %309 = vmatprep.subr.mxu0 0.0
    %310 = vmatpush1.msra.mxu0 0.0
    %311 = vmatprep.subr.mxu0 0.0
    %312 = vmatpush1.msra.mxu0 0.0
    %313 = vmatprep.subr.mxu0 0.0
    %314 = vmatpush1.msra.mxu0 0.0
    %315 = vmatprep.subr.mxu0 0.0
    %316 = vmatpush1.msra.mxu0 0.0
    %317 = vmatprep.subr.mxu0 0.0
    %318 = vmatpush1.msra.mxu0 0.0
    %319 = vmatprep.subr.mxu0 0.0
    %320 = vmatpush1.msra.mxu0 0.0
    %321 = vmatprep.subr.mxu0 0.0
    %322 = vmatpush1.msra.mxu0 0.0
    %323 = vmatprep.subr.mxu0 0.0
    %324 = vmatpush1.msra.mxu0 0.0
    %325 = vmatprep.subr.mxu0 0.0
    %326 = vmatpush1.msra.mxu0 0.0
    %327 = vmatprep.subr.mxu0 0.0
    %328 = vmatpush1.msra.mxu0 0.0
    %329 = vmatprep.subr.mxu0 0.0
    %330 = vmatpush1.msra.mxu0 0.0
    %331 = vmatprep.subr.mxu0 0.0
    %332 = vmatpush1.msra.mxu0 0.0
    %333 = vmatprep.subr.mxu0 0.0
    %334 = vmatpush1.msra.mxu0 0.0
    %335 = vmatprep.subr.mxu0 0.0
    %336 = vmatpush1.msra.mxu0 0.0
    %337 = vmatprep.subr.mxu0 0.0
    %338 = vmatpush1.msra.mxu0 0.0
    %339 = vmatprep.mubr.f32.mxu0 0.0
    %340 = vmatmul.mubr.f32.gmra.mrb[0].mxu0 %v202
    %v341 = vpop.f32.mrb[0].mxu0
    %v342 = vadd.f32 %v191, %v341
    %v343 = vpop.f32.mrb[0].mxu0
    %v344 = vadd.f32 %v195, %v343
    %345 = vdwg.mxu0
    %346 = vst [vmem:[#allocation3] sm:$0xff] %v271
    %347 = vst [vmem:[#allocation3 + $0x8] sm:$0xff] %v273
    %348 = vst [vmem:[#allocation3 + $0x10] sm:$0xff] %v342
    %349 = vst [vmem:[#allocation3 + $0x18] sm:$0xff] %v344
    %v350 = vld [vmem:[#allocation3] ss:$8 sm:$0xf]
    %s351 = scalar_lea.vmem [#allocation3], 7
    %v352 = vld [vmem:[%s351] ss:$8 sm:$0xf]
    %v354 = vlaneseq
    %v355 = vshrl.u32 %v354, 7
    %v356 = vsub.s32 0, %v355
    %v357 = vrot.slane %v350, %v356
    %v358 = vlaneseq
    %v359 = vshrl.u32 %v358, 7
    %v360 = vsub.s32 2, %v359
    %v361 = vrot.slane %v350, %v360
    %v362 = vlaneseq
    %v363 = vshrl.u32 %v362, 7
    %v364 = vsub.s32 3, %v363
    %v365 = vrot.slane %v350, %v364
    %v370 = vlaneseq
    %v371 = vshrl.u32 %v370, 7
    %v372 = vsub.s32 0, %v371
    %v373 = vrot.slane %v352, %v372
    %v374 = vlaneseq
    %v375 = vshrl.u32 %v374, 7
    %v376 = vsub.s32 2, %v375
    %v377 = vrot.slane %v352, %v376
    %v378 = vlaneseq
    %v379 = vshrl.u32 %v378, 7
    %v380 = vsub.s32 3, %v379
    %v381 = vrot.slane %v352, %v380
    %v385 = vsel %vm140, %v357, %v373
    %v386 = vsel %vm142, %v361, %v377
    %v387 = vsel %vm143, %v365, %v381
    %v388 = vxor.u32 %v385, 2147483648
    %v389 = vmul.f32 %v388, 1.442695
    %v390 = vpow.pop %v389
    %v391 = vadd.f32 %v390, 1.0
    %v392 = vrcp.pop %v391
    %v393 = vmul.f32 1.0, %v392
    %v394 = vtanh.pop %v386
    %v395 = vxor.u32 %v387, 2147483648
    %v396 = vmul.f32 %v395, 1.442695
    %v397 = vpow.pop %v396
    %v398 = vadd.f32 %v397, 1.0
    %v399 = vrcp.pop %v398
    %v400 = vmul.f32 1.0, %v399
    %v401 = vmul.f32 %v393, %v394
    %v402 = vtanh.pop %v401
    %v403 = vmul.f32 %v400, %v402
    %404 = vst.msk [vmem:[#allocation4] sm:$0x1] %vm57, %v403
    %vm405 = vcmask 1040896
    %406 = vst.msk [vmem:[#allocation4 + $0x7] sm:$0x1] %vm405, %v403
    %s407 = scalar_lea.vmem [#allocation3], 1
    %v408 = vld [vmem:[%s407] ss:$8 sm:$0xf]
    %s409 = scalar_lea.vmem [#allocation3], 6
    %v410 = vld [vmem:[%s409] ss:$8 sm:$0xf]
    %v412 = vlaneseq
    %v413 = vshrl.u32 %v412, 7
    %v414 = vsub.s32 0, %v413
    %v415 = vrot.slane %v408, %v414
    %v416 = vlaneseq
    %v417 = vshrl.u32 %v416, 7
    %v418 = vsub.s32 1, %v417
    %v419 = vrot.slane %v408, %v418
    %v420 = vlaneseq
    %v421 = vshrl.u32 %v420, 7
    %v422 = vsub.s32 2, %v421
    %v423 = vrot.slane %v408, %v422
    %v424 = vlaneseq
    %v425 = vshrl.u32 %v424, 7
    %v426 = vsub.s32 3, %v425
    %v427 = vrot.slane %v408, %v426
    %v433 = vlaneseq
    %v434 = vshrl.u32 %v433, 7
    %v435 = vsub.s32 0, %v434
    %v436 = vrot.slane %v410, %v435
    %v437 = vlaneseq
    %v438 = vshrl.u32 %v437, 7
    %v439 = vsub.s32 1, %v438
    %v440 = vrot.slane %v410, %v439
    %v441 = vlaneseq
    %v442 = vshrl.u32 %v441, 7
    %v443 = vsub.s32 2, %v442
    %v444 = vrot.slane %v410, %v443
    %v445 = vlaneseq
    %v446 = vshrl.u32 %v445, 7
    %v447 = vsub.s32 3, %v446
    %v448 = vrot.slane %v410, %v447
    %v453 = vsel %vm140, %v415, %v436
    %v454 = vsel %vm141, %v419, %v440
    %v455 = vsel %vm142, %v423, %v444
    %v456 = vsel %vm143, %v427, %v448
    %v457 = vld [vmem:[#allocation11 + $0x100] sm:$0xff]
    %v458 = vld [vmem:[#allocation11 + $0x108] sm:$0xff]
    %v459 = vld [vmem:[#allocation11 + $0x110] sm:$0xff]
    %v460 = vld [vmem:[#allocation11 + $0x118] sm:$0xff]
    %v461 = vld [vmem:[#allocation11 + $0x120] sm:$0xff]
    %v462 = vld [vmem:[#allocation11 + $0x128] sm:$0xff]
    %v463 = vld [vmem:[#allocation11 + $0x130] sm:$0xff]
    %v464 = vld [vmem:[#allocation11 + $0x138] sm:$0xff]
    %v465 = vld [vmem:[#allocation11 + $0x140] sm:$0xff]
    %v466 = vld [vmem:[#allocation11 + $0x148] sm:$0xff]
    %v467 = vld [vmem:[#allocation11 + $0x150] sm:$0xff]
    %v468 = vld [vmem:[#allocation11 + $0x158] sm:$0xff]
    %v469 = vld [vmem:[#allocation11 + $0x160] sm:$0xff]
    %v470 = vld [vmem:[#allocation11 + $0x168] sm:$0xff]
    %v471 = vld [vmem:[#allocation11 + $0x170] sm:$0xff]
    %v472 = vld [vmem:[#allocation11 + $0x178] sm:$0xff]
    %v473 = vld [vmem:[#allocation11 + $0x180] sm:$0xff]
    %v474 = vld [vmem:[#allocation11 + $0x188] sm:$0xff]
    %v475 = vld [vmem:[#allocation11 + $0x190] sm:$0xff]
    %v476 = vld [vmem:[#allocation11 + $0x198] sm:$0xff]
    %v477 = vld [vmem:[#allocation11 + $0x1a0] sm:$0xff]
    %v478 = vld [vmem:[#allocation11 + $0x1a8] sm:$0xff]
    %v479 = vld [vmem:[#allocation11 + $0x1b0] sm:$0xff]
    %v480 = vld [vmem:[#allocation11 + $0x1b8] sm:$0xff]
    %v481 = vld [vmem:[#allocation11 + $0x1c0] sm:$0xff]
    %v482 = vld [vmem:[#allocation11 + $0x1c8] sm:$0xff]
    %v483 = vld [vmem:[#allocation11 + $0x1d0] sm:$0xff]
    %v484 = vld [vmem:[#allocation11 + $0x1d8] sm:$0xff]
    %v485 = vld [vmem:[#allocation11 + $0x1e0] sm:$0xff]
    %v486 = vld [vmem:[#allocation11 + $0x1e8] sm:$0xff]
    %v487 = vld [vmem:[#allocation11 + $0x1f0] sm:$0xff]
    %v488 = vld [vmem:[#allocation11 + $0x1f8] sm:$0xff]
    %v489 = vld [vmem:[#allocation11 + $0x200] sm:$0xff]
    %v490 = vld [vmem:[#allocation11 + $0x208] sm:$0xff]
    %v491 = vld [vmem:[#allocation11 + $0x210] sm:$0xff]
    %v492 = vld [vmem:[#allocation11 + $0x218] sm:$0xff]
    %v493 = vld [vmem:[#allocation11 + $0x220] sm:$0xff]
    %v494 = vld [vmem:[#allocation11 + $0x228] sm:$0xff]
    %v495 = vld [vmem:[#allocation11 + $0x230] sm:$0xff]
    %v496 = vld [vmem:[#allocation11 + $0x238] sm:$0xff]
    %v497 = vld [vmem:[#allocation11 + $0x240] sm:$0xff]
    %v498 = vld [vmem:[#allocation11 + $0x248] sm:$0xff]
    %v499 = vld [vmem:[#allocation11 + $0x250] sm:$0xff]
    %v500 = vld [vmem:[#allocation11 + $0x258] sm:$0xff]
    %v501 = vld [vmem:[#allocation11 + $0x260] sm:$0xff]
    %v502 = vld [vmem:[#allocation11 + $0x268] sm:$0xff]
    %v503 = vld [vmem:[#allocation11 + $0x270] sm:$0xff]
    %v504 = vld [vmem:[#allocation11 + $0x278] sm:$0xff]
    %v505 = vld [vmem:[#allocation11 + $0x280] sm:$0xff]
    %v506 = vld [vmem:[#allocation11 + $0x288] sm:$0xff]
    %v507 = vld [vmem:[#allocation11 + $0x290] sm:$0xff]
    %v508 = vld [vmem:[#allocation11 + $0x298] sm:$0xff]
    %v509 = vld [vmem:[#allocation11 + $0x2a0] sm:$0xff]
    %v510 = vld [vmem:[#allocation11 + $0x2a8] sm:$0xff]
    %v511 = vld [vmem:[#allocation11 + $0x2b0] sm:$0xff]
    %v512 = vld [vmem:[#allocation11 + $0x2b8] sm:$0xff]
    %v513 = vld [vmem:[#allocation11 + $0x2c0] sm:$0xff]
    %v514 = vld [vmem:[#allocation11 + $0x2c8] sm:$0xff]
    %v515 = vld [vmem:[#allocation11 + $0x2d0] sm:$0xff]
    %v516 = vld [vmem:[#allocation11 + $0x2d8] sm:$0xff]
    %v517 = vld [vmem:[#allocation11 + $0x2e0] sm:$0xff]
    %v518 = vld [vmem:[#allocation11 + $0x2e8] sm:$0xff]
    %v519 = vld [vmem:[#allocation11 + $0x2f0] sm:$0xff]
    %v520 = vld [vmem:[#allocation11 + $0x2f8] sm:$0xff]
    %521 = vmatprep.subr.mxu0 %v458
    %522 = vmatpush1.msra.mxu0 %v457
    %523 = vmatprep.subr.mxu0 %v462
    %524 = vmatpush1.msra.mxu0 %v461
    %525 = vmatprep.subr.mxu0 %v466
    %526 = vmatpush1.msra.mxu0 %v465
    %527 = vmatprep.subr.mxu0 %v470
    %528 = vmatpush1.msra.mxu0 %v469
    %529 = vmatprep.subr.mxu0 %v474
    %530 = vmatpush1.msra.mxu0 %v473
    %531 = vmatprep.subr.mxu0 %v478
    %532 = vmatpush1.msra.mxu0 %v477
    %533 = vmatprep.subr.mxu0 %v482
    %534 = vmatpush1.msra.mxu0 %v481
    %535 = vmatprep.subr.mxu0 %v486
    %536 = vmatpush1.msra.mxu0 %v485
    %537 = vmatprep.subr.mxu0 %v490
    %538 = vmatpush1.msra.mxu0 %v489
    %539 = vmatprep.subr.mxu0 %v494
    %540 = vmatpush1.msra.mxu0 %v493
    %541 = vmatprep.subr.mxu0 %v498
    %542 = vmatpush1.msra.mxu0 %v497
    %543 = vmatprep.subr.mxu0 %v502
    %544 = vmatpush1.msra.mxu0 %v501
    %545 = vmatprep.subr.mxu0 %v506
    %546 = vmatpush1.msra.mxu0 %v505
    %547 = vmatprep.subr.mxu0 %v510
    %548 = vmatpush1.msra.mxu0 %v509
    %549 = vmatprep.subr.mxu0 %v514
    %550 = vmatpush1.msra.mxu0 %v513
    %551 = vmatprep.subr.mxu0 %v518
    %552 = vmatpush1.msra.mxu0 %v517
    %553 = vmatprep.subr.mxu0 0.0
    %554 = vmatpush1.msra.mxu0 0.0
    %555 = vmatprep.subr.mxu0 0.0
    %556 = vmatpush1.msra.mxu0 0.0
    %557 = vmatprep.subr.mxu0 0.0
    %558 = vmatpush1.msra.mxu0 0.0
    %559 = vmatprep.subr.mxu0 0.0
    %560 = vmatpush1.msra.mxu0 0.0
    %561 = vmatprep.subr.mxu0 0.0
    %562 = vmatpush1.msra.mxu0 0.0
    %563 = vmatprep.subr.mxu0 0.0
    %564 = vmatpush1.msra.mxu0 0.0
    %565 = vmatprep.subr.mxu0 0.0
    %566 = vmatpush1.msra.mxu0 0.0
    %567 = vmatprep.subr.mxu0 0.0
    %568 = vmatpush1.msra.mxu0 0.0
    %569 = vmatprep.subr.mxu0 0.0
    %570 = vmatpush1.msra.mxu0 0.0
    %571 = vmatprep.subr.mxu0 0.0
    %572 = vmatpush1.msra.mxu0 0.0
    %573 = vmatprep.subr.mxu0 0.0
    %574 = vmatpush1.msra.mxu0 0.0
    %575 = vmatprep.subr.mxu0 0.0
    %576 = vmatpush1.msra.mxu0 0.0
    %577 = vmatprep.subr.mxu0 0.0
    %578 = vmatpush1.msra.mxu0 0.0
    %579 = vmatprep.subr.mxu0 0.0
    %580 = vmatpush1.msra.mxu0 0.0
    %581 = vmatprep.subr.mxu0 0.0
    %582 = vmatpush1.msra.mxu0 0.0
    %583 = vmatprep.subr.mxu0 0.0
    %584 = vmatpush1.msra.mxu0 0.0
    %585 = vmatprep.mubr.f32.mxu0 0.0
    %586 = vmatmul.mubr.f32.gmra.mrb[0].mxu0 %v403
    %v587 = vpop.f32.mrb[0].mxu0
    %v588 = vadd.f32 0.0, %v587
    %v589 = vpop.f32.mrb[0].mxu0
    %v590 = vadd.f32 0.0, %v589
    %591 = vdwg.mxu0
    %592 = vmatprep.subr.mxu0 %v460
    %593 = vmatpush1.msra.mxu0 %v459
    %594 = vmatprep.subr.mxu0 %v464
    %595 = vmatpush1.msra.mxu0 %v463
    %596 = vmatprep.subr.mxu0 %v468
    %597 = vmatpush1.msra.mxu0 %v467
    %598 = vmatprep.subr.mxu0 %v472
    %599 = vmatpush1.msra.mxu0 %v471
    %600 = vmatprep.subr.mxu0 %v476
    %601 = vmatpush1.msra.mxu0 %v475
    %602 = vmatprep.subr.mxu0 %v480
    %603 = vmatpush1.msra.mxu0 %v479
    %604 = vmatprep.subr.mxu0 %v484
    %605 = vmatpush1.msra.mxu0 %v483
    %606 = vmatprep.subr.mxu0 %v488
    %607 = vmatpush1.msra.mxu0 %v487
    %608 = vmatprep.subr.mxu0 %v492
    %609 = vmatpush1.msra.mxu0 %v491
    %610 = vmatprep.subr.mxu0 %v496
    %611 = vmatpush1.msra.mxu0 %v495
    %612 = vmatprep.subr.mxu0 %v500
    %613 = vmatpush1.msra.mxu0 %v499
    %614 = vmatprep.subr.mxu0 %v504
    %615 = vmatpush1.msra.mxu0 %v503
    %616 = vmatprep.subr.mxu0 %v508
    %617 = vmatpush1.msra.mxu0 %v507
    %618 = vmatprep.subr.mxu0 %v512
    %619 = vmatpush1.msra.mxu0 %v511
    %620 = vmatprep.subr.mxu0 %v516
    %621 = vmatpush1.msra.mxu0 %v515
    %622 = vmatprep.subr.mxu0 %v520
    %623 = vmatpush1.msra.mxu0 %v519
    %624 = vmatprep.subr.mxu0 0.0
    %625 = vmatpush1.msra.mxu0 0.0
    %626 = vmatprep.subr.mxu0 0.0
    %627 = vmatpush1.msra.mxu0 0.0
    %628 = vmatprep.subr.mxu0 0.0
    %629 = vmatpush1.msra.mxu0 0.0
    %630 = vmatprep.subr.mxu0 0.0
    %631 = vmatpush1.msra.mxu0 0.0
    %632 = vmatprep.subr.mxu0 0.0
    %633 = vmatpush1.msra.mxu0 0.0
    %634 = vmatprep.subr.mxu0 0.0
    %635 = vmatpush1.msra.mxu0 0.0
    %636 = vmatprep.subr.mxu0 0.0
    %637 = vmatpush1.msra.mxu0 0.0
    %638 = vmatprep.subr.mxu0 0.0
    %639 = vmatpush1.msra.mxu0 0.0
    %640 = vmatprep.subr.mxu0 0.0
    %641 = vmatpush1.msra.mxu0 0.0
    %642 = vmatprep.subr.mxu0 0.0
    %643 = vmatpush1.msra.mxu0 0.0
    %644 = vmatprep.subr.mxu0 0.0
    %645 = vmatpush1.msra.mxu0 0.0
    %646 = vmatprep.subr.mxu0 0.0
    %647 = vmatpush1.msra.mxu0 0.0
    %648 = vmatprep.subr.mxu0 0.0
    %649 = vmatpush1.msra.mxu0 0.0
    %650 = vmatprep.subr.mxu0 0.0
    %651 = vmatpush1.msra.mxu0 0.0
    %652 = vmatprep.subr.mxu0 0.0
    %653 = vmatpush1.msra.mxu0 0.0
    %654 = vmatprep.subr.mxu0 0.0
    %655 = vmatpush1.msra.mxu0 0.0
    %656 = vmatprep.mubr.f32.mxu0 0.0
    %657 = vmatmul.mubr.f32.gmra.mrb[0].mxu0 %v403
    %v658 = vpop.f32.mrb[0].mxu0
    %v659 = vadd.f32 0.0, %v658
    %v660 = vpop.f32.mrb[0].mxu0
    %v661 = vadd.f32 0.0, %v660
    %662 = vdwg.mxu0
    %v663 = vadd.f32 %v453, %v588
    %v664 = vadd.f32 %v454, %v590
    %v665 = vadd.f32 %v455, %v659
    %v666 = vadd.f32 %v456, %v661
    %v667 = vxor.u32 %v663, 2147483648
    %v668 = vmul.f32 %v667, 1.442695
    %v669 = vpow.pop %v668
    %v670 = vadd.f32 %v669, 1.0
    %v671 = vrcp.pop %v670
    %v672 = vmul.f32 1.0, %v671
    %v673 = vxor.u32 %v664, 2147483648
    %v674 = vmul.f32 %v673, 1.442695
    %v675 = vpow.pop %v674
    %v676 = vadd.f32 %v675, 1.0
    %v677 = vrcp.pop %v676
    %v678 = vmul.f32 1.0, %v677
    %v679 = vtanh.pop %v665
    %v680 = vxor.u32 %v666, 2147483648
    %v681 = vmul.f32 %v680, 1.442695
    %v682 = vpow.pop %v681
    %v683 = vadd.f32 %v682, 1.0
    %v684 = vrcp.pop %v683
    %v685 = vmul.f32 1.0, %v684
    %v686 = vmul.f32 %v678, %v401
    %v687 = vmul.f32 %v672, %v679
    %v688 = vadd.f32 %v686, %v687
    %v689 = vtanh.pop %v688
    %v690 = vmul.f32 %v685, %v689
    %691 = vst.msk [vmem:[#allocation4 + $0x1] sm:$0x1] %vm57, %v690
    %692 = vst.msk [vmem:[#allocation4 + $0x6] sm:$0x1] %vm405, %v690
    %s693 = scalar_lea.vmem [#allocation3], 2
    %v694 = vld [vmem:[%s693] ss:$8 sm:$0xf]
    %s695 = scalar_lea.vmem [#allocation3], 5
    %v696 = vld [vmem:[%s695] ss:$8 sm:$0xf]
    %v698 = vlaneseq
    %v699 = vshrl.u32 %v698, 7
    %v700 = vsub.s32 0, %v699
    %v701 = vrot.slane %v694, %v700
    %v702 = vlaneseq
    %v703 = vshrl.u32 %v702, 7
    %v704 = vsub.s32 1, %v703
    %v705 = vrot.slane %v694, %v704
    %v706 = vlaneseq
    %v707 = vshrl.u32 %v706, 7
    %v708 = vsub.s32 2, %v707
    %v709 = vrot.slane %v694, %v708
    %v710 = vlaneseq
    %v711 = vshrl.u32 %v710, 7
    %v712 = vsub.s32 3, %v711
    %v713 = vrot.slane %v694, %v712
    %v719 = vlaneseq
    %v720 = vshrl.u32 %v719, 7
    %v721 = vsub.s32 0, %v720
    %v722 = vrot.slane %v696, %v721
    %v723 = vlaneseq
    %v724 = vshrl.u32 %v723, 7
    %v725 = vsub.s32 1, %v724
    %v726 = vrot.slane %v696, %v725
    %v727 = vlaneseq
    %v728 = vshrl.u32 %v727, 7
    %v729 = vsub.s32 2, %v728
    %v730 = vrot.slane %v696, %v729
    %v731 = vlaneseq
    %v732 = vshrl.u32 %v731, 7
    %v733 = vsub.s32 3, %v732
    %v734 = vrot.slane %v696, %v733
    %v739 = vsel %vm140, %v701, %v722
    %v740 = vsel %vm141, %v705, %v726
    %v741 = vsel %vm142, %v709, %v730
    %v742 = vsel %vm143, %v713, %v734
    %v743 = vld [vmem:[#allocation11 + $0x100] sm:$0xff]
    %v744 = vld [vmem:[#allocation11 + $0x108] sm:$0xff]
    %v745 = vld [vmem:[#allocation11 + $0x110] sm:$0xff]
    %v746 = vld [vmem:[#allocation11 + $0x118] sm:$0xff]
    %v747 = vld [vmem:[#allocation11 + $0x120] sm:$0xff]
    %v748 = vld [vmem:[#allocation11 + $0x128] sm:$0xff]
    %v749 = vld [vmem:[#allocation11 + $0x130] sm:$0xff]
    %v750 = vld [vmem:[#allocation11 + $0x138] sm:$0xff]
    %v751 = vld [vmem:[#allocation11 + $0x140] sm:$0xff]
    %v752 = vld [vmem:[#allocation11 + $0x148] sm:$0xff]
    %v753 = vld [vmem:[#allocation11 + $0x150] sm:$0xff]
    %v754 = vld [vmem:[#allocation11 + $0x158] sm:$0xff]
    %v755 = vld [vmem:[#allocation11 + $0x160] sm:$0xff]
    %v756 = vld [vmem:[#allocation11 + $0x168] sm:$0xff]
    %v757 = vld [vmem:[#allocation11 + $0x170] sm:$0xff]
    %v758 = vld [vmem:[#allocation11 + $0x178] sm:$0xff]
    %v759 = vld [vmem:[#allocation11 + $0x180] sm:$0xff]
    %v760 = vld [vmem:[#allocation11 + $0x188] sm:$0xff]
    %v761 = vld [vmem:[#allocation11 + $0x190] sm:$0xff]
    %v762 = vld [vmem:[#allocation11 + $0x198] sm:$0xff]
    %v763 = vld [vmem:[#allocation11 + $0x1a0] sm:$0xff]
    %v764 = vld [vmem:[#allocation11 + $0x1a8] sm:$0xff]
    %v765 = vld [vmem:[#allocation11 + $0x1b0] sm:$0xff]
    %v766 = vld [vmem:[#allocation11 + $0x1b8] sm:$0xff]
    %v767 = vld [vmem:[#allocation11 + $0x1c0] sm:$0xff]
    %v768 = vld [vmem:[#allocation11 + $0x1c8] sm:$0xff]
    %v769 = vld [vmem:[#allocation11 + $0x1d0] sm:$0xff]
    %v770 = vld [vmem:[#allocation11 + $0x1d8] sm:$0xff]
    %v771 = vld [vmem:[#allocation11 + $0x1e0] sm:$0xff]
    %v772 = vld [vmem:[#allocation11 + $0x1e8] sm:$0xff]
    %v773 = vld [vmem:[#allocation11 + $0x1f0] sm:$0xff]
    %v774 = vld [vmem:[#allocation11 + $0x1f8] sm:$0xff]
    %v775 = vld [vmem:[#allocation11 + $0x200] sm:$0xff]
    %v776 = vld [vmem:[#allocation11 + $0x208] sm:$0xff]
    %v777 = vld [vmem:[#allocation11 + $0x210] sm:$0xff]
    %v778 = vld [vmem:[#allocation11 + $0x218] sm:$0xff]
    %v779 = vld [vmem:[#allocation11 + $0x220] sm:$0xff]
    %v780 = vld [vmem:[#allocation11 + $0x228] sm:$0xff]
    %v781 = vld [vmem:[#allocation11 + $0x230] sm:$0xff]
    %v782 = vld [vmem:[#allocation11 + $0x238] sm:$0xff]
    %v783 = vld [vmem:[#allocation11 + $0x240] sm:$0xff]
    %v784 = vld [vmem:[#allocation11 + $0x248] sm:$0xff]
    %v785 = vld [vmem:[#allocation11 + $0x250] sm:$0xff]
    %v786 = vld [vmem:[#allocation11 + $0x258] sm:$0xff]
    %v787 = vld [vmem:[#allocation11 + $0x260] sm:$0xff]
    %v788 = vld [vmem:[#allocation11 + $0x268] sm:$0xff]
    %v789 = vld [vmem:[#allocation11 + $0x270] sm:$0xff]
    %v790 = vld [vmem:[#allocation11 + $0x278] sm:$0xff]
    %v791 = vld [vmem:[#allocation11 + $0x280] sm:$0xff]
    %v792 = vld [vmem:[#allocation11 + $0x288] sm:$0xff]
    %v793 = vld [vmem:[#allocation11 + $0x290] sm:$0xff]
    %v794 = vld [vmem:[#allocation11 + $0x298] sm:$0xff]
    %v795 = vld [vmem:[#allocation11 + $0x2a0] sm:$0xff]
    %v796 = vld [vmem:[#allocation11 + $0x2a8] sm:$0xff]
    %v797 = vld [vmem:[#allocation11 + $0x2b0] sm:$0xff]
    %v798 = vld [vmem:[#allocation11 + $0x2b8] sm:$0xff]
    %v799 = vld [vmem:[#allocation11 + $0x2c0] sm:$0xff]
    %v800 = vld [vmem:[#allocation11 + $0x2c8] sm:$0xff]
    %v801 = vld [vmem:[#allocation11 + $0x2d0] sm:$0xff]
    %v802 = vld [vmem:[#allocation11 + $0x2d8] sm:$0xff]
    %v803 = vld [vmem:[#allocation11 + $0x2e0] sm:$0xff]
    %v804 = vld [vmem:[#allocation11 + $0x2e8] sm:$0xff]
    %v805 = vld [vmem:[#allocation11 + $0x2f0] sm:$0xff]
    %v806 = vld [vmem:[#allocation11 + $0x2f8] sm:$0xff]
    %807 = vmatprep.subr.mxu0 %v744
    %808 = vmatpush1.msra.mxu0 %v743
    %809 = vmatprep.subr.mxu0 %v748
    %810 = vmatpush1.msra.mxu0 %v747
    %811 = vmatprep.subr.mxu0 %v752
    %812 = vmatpush1.msra.mxu0 %v751
    %813 = vmatprep.subr.mxu0 %v756
    %814 = vmatpush1.msra.mxu0 %v755
    %815 = vmatprep.subr.mxu0 %v760
    %816 = vmatpush1.msra.mxu0 %v759
    %817 = vmatprep.subr.mxu0 %v764
    %818 = vmatpush1.msra.mxu0 %v763
    %819 = vmatprep.subr.mxu0 %v768
    %820 = vmatpush1.msra.mxu0 %v767
    %821 = vmatprep.subr.mxu0 %v772
    %822 = vmatpush1.msra.mxu0 %v771
    %823 = vmatprep.subr.mxu0 %v776
    %824 = vmatpush1.msra.mxu0 %v775
    %825 = vmatprep.subr.mxu0 %v780
    %826 = vmatpush1.msra.mxu0 %v779
    %827 = vmatprep.subr.mxu0 %v784
    %828 = vmatpush1.msra.mxu0 %v783
    %829 = vmatprep.subr.mxu0 %v788
    %830 = vmatpush1.msra.mxu0 %v787
    %831 = vmatprep.subr.mxu0 %v792
    %832 = vmatpush1.msra.mxu0 %v791
    %833 = vmatprep.subr.mxu0 %v796
    %834 = vmatpush1.msra.mxu0 %v795
    %835 = vmatprep.subr.mxu0 %v800
    %836 = vmatpush1.msra.mxu0 %v799
    %837 = vmatprep.subr.mxu0 %v804
    %838 = vmatpush1.msra.mxu0 %v803
    %839 = vmatprep.subr.mxu0 0.0
    %840 = vmatpush1.msra.mxu0 0.0
    %841 = vmatprep.subr.mxu0 0.0
    %842 = vmatpush1.msra.mxu0 0.0
    %843 = vmatprep.subr.mxu0 0.0
    %844 = vmatpush1.msra.mxu0 0.0
    %845 = vmatprep.subr.mxu0 0.0
    %846 = vmatpush1.msra.mxu0 0.0
    %847 = vmatprep.subr.mxu0 0.0
    %848 = vmatpush1.msra.mxu0 0.0
    %849 = vmatprep.subr.mxu0 0.0
    %850 = vmatpush1.msra.mxu0 0.0
    %851 = vmatprep.subr.mxu0 0.0
    %852 = vmatpush1.msra.mxu0 0.0
    %853 = vmatprep.subr.mxu0 0.0
    %854 = vmatpush1.msra.mxu0 0.0
    %855 = vmatprep.subr.mxu0 0.0
    %856 = vmatpush1.msra.mxu0 0.0
    %857 = vmatprep.subr.mxu0 0.0
    %858 = vmatpush1.msra.mxu0 0.0
    %859 = vmatprep.subr.mxu0 0.0
    %860 = vmatpush1.msra.mxu0 0.0
    %861 = vmatprep.subr.mxu0 0.0
    %862 = vmatpush1.msra.mxu0 0.0
    %863 = vmatprep.subr.mxu0 0.0
    %864 = vmatpush1.msra.mxu0 0.0
    %865 = vmatprep.subr.mxu0 0.0
    %866 = vmatpush1.msra.mxu0 0.0
    %867 = vmatprep.subr.mxu0 0.0
    %868 = vmatpush1.msra.mxu0 0.0
    %869 = vmatprep.subr.mxu0 0.0
    %870 = vmatpush1.msra.mxu0 0.0
    %871 = vmatprep.mubr.f32.mxu0 0.0
    %872 = vmatmul.mubr.f32.gmra.mrb[0].mxu0 %v690
    %v873 = vpop.f32.mrb[0].mxu0
    %v874 = vadd.f32 0.0, %v873
    %v875 = vpop.f32.mrb[0].mxu0
    %v876 = vadd.f32 0.0, %v875
    %877 = vdwg.mxu0
    %878 = vmatprep.subr.mxu0 %v746
    %879 = vmatpush1.msra.mxu0 %v745
    %880 = vmatprep.subr.mxu0 %v750
    %881 = vmatpush1.msra.mxu0 %v749
    %882 = vmatprep.subr.mxu0 %v754
    %883 = vmatpush1.msra.mxu0 %v753
    %884 = vmatprep.subr.mxu0 %v758
    %885 = vmatpush1.msra.mxu0 %v757
    %886 = vmatprep.subr.mxu0 %v762
    %887 = vmatpush1.msra.mxu0 %v761
    %888 = vmatprep.subr.mxu0 %v766
    %889 = vmatpush1.msra.mxu0 %v765
    %890 = vmatprep.subr.mxu0 %v770
    %891 = vmatpush1.msra.mxu0 %v769
    %892 = vmatprep.subr.mxu0 %v774
    %893 = vmatpush1.msra.mxu0 %v773
    %894 = vmatprep.subr.mxu0 %v778
    %895 = vmatpush1.msra.mxu0 %v777
    %896 = vmatprep.subr.mxu0 %v782
    %897 = vmatpush1.msra.mxu0 %v781
    %898 = vmatprep.subr.mxu0 %v786
    %899 = vmatpush1.msra.mxu0 %v785
    %900 = vmatprep.subr.mxu0 %v790
    %901 = vmatpush1.msra.mxu0 %v789
    %902 = vmatprep.subr.mxu0 %v794
    %903 = vmatpush1.msra.mxu0 %v793
    %904 = vmatprep.subr.mxu0 %v798
    %905 = vmatpush1.msra.mxu0 %v797
    %906 = vmatprep.subr.mxu0 %v802
    %907 = vmatpush1.msra.mxu0 %v801
    %908 = vmatprep.subr.mxu0 %v806
    %909 = vmatpush1.msra.mxu0 %v805
    %910 = vmatprep.subr.mxu0 0.0
    %911 = vmatpush1.msra.mxu0 0.0
    %912 = vmatprep.subr.mxu0 0.0
    %913 = vmatpush1.msra.mxu0 0.0
    %914 = vmatprep.subr.mxu0 0.0
    %915 = vmatpush1.msra.mxu0 0.0
    %916 = vmatprep.subr.mxu0 0.0
    %917 = vmatpush1.msra.mxu0 0.0
    %918 = vmatprep.subr.mxu0 0.0
    %919 = vmatpush1.msra.mxu0 0.0
    %920 = vmatprep.subr.mxu0 0.0
    %921 = vmatpush1.msra.mxu0 0.0
    %922 = vmatprep.subr.mxu0 0.0
    %923 = vmatpush1.msra.mxu0 0.0
    %924 = vmatprep.subr.mxu0 0.0
    %925 = vmatpush1.msra.mxu0 0.0
    %926 = vmatprep.subr.mxu0 0.0
    %927 = vmatpush1.msra.mxu0 0.0
    %928 = vmatprep.subr.mxu0 0.0
    %929 = vmatpush1.msra.mxu0 0.0
    %930 = vmatprep.subr.mxu0 0.0
    %931 = vmatpush1.msra.mxu0 0.0
    %932 = vmatprep.subr.mxu0 0.0
    %933 = vmatpush1.msra.mxu0 0.0
    %934 = vmatprep.subr.mxu0 0.0
    %935 = vmatpush1.msra.mxu0 0.0
    %936 = vmatprep.subr.mxu0 0.0
    %937 = vmatpush1.msra.mxu0 0.0
    %938 = vmatprep.subr.mxu0 0.0
    %939 = vmatpush1.msra.mxu0 0.0
    %940 = vmatprep.subr.mxu0 0.0
    %941 = vmatpush1.msra.mxu0 0.0
    %942 = vmatprep.mubr.f32.mxu0 0.0
    %943 = vmatmul.mubr.f32.gmra.mrb[0].mxu0 %v690
    %v944 = vpop.f32.mrb[0].mxu0
    %v945 = vadd.f32 0.0, %v944
    %v946 = vpop.f32.mrb[0].mxu0
    %v947 = vadd.f32 0.0, %v946
    %948 = vdwg.mxu0
    %v949 = vadd.f32 %v739, %v874
    %v950 = vadd.f32 %v740, %v876
    %v951 = vadd.f32 %v741, %v945
    %v952 = vadd.f32 %v742, %v947
    %v953 = vxor.u32 %v949, 2147483648
    %v954 = vmul.f32 %v953, 1.442695
    %v955 = vpow.pop %v954
    %v956 = vadd.f32 %v955, 1.0
    %v957 = vrcp.pop %v956
    %v958 = vmul.f32 1.0, %v957
    %v959 = vxor.u32 %v950, 2147483648
    %v960 = vmul.f32 %v959, 1.442695
    %v961 = vpow.pop %v960
    %v962 = vadd.f32 %v961, 1.0
    %v963 = vrcp.pop %v962
    %v964 = vmul.f32 1.0, %v963
    %v965 = vtanh.pop %v951
    %v966 = vxor.u32 %v952, 2147483648
    %v967 = vmul.f32 %v966, 1.442695
    %v968 = vpow.pop %v967
    %v969 = vadd.f32 %v968, 1.0
    %v970 = vrcp.pop %v969
    %v971 = vmul.f32 1.0, %v970
    %v972 = vmul.f32 %v964, %v688
    %v973 = vmul.f32 %v958, %v965
    %v974 = vadd.f32 %v972, %v973
    %v975 = vtanh.pop %v974
    %v976 = vmul.f32 %v971, %v975
    %977 = vst.msk [vmem:[#allocation4 + $0x2] sm:$0x1] %vm57, %v976
    %978 = vst.msk [vmem:[#allocation4 + $0x5] sm:$0x1] %vm405, %v976
    %s979 = scalar_lea.vmem [#allocation3], 3
    %v980 = vld [vmem:[%s979] ss:$8 sm:$0xf]
    %s981 = scalar_lea.vmem [#allocation3], 4
    %v982 = vld [vmem:[%s981] ss:$8 sm:$0xf]
    %v984 = vlaneseq
    %v985 = vshrl.u32 %v984, 7
    %v986 = vsub.s32 0, %v985
    %v987 = vrot.slane %v980, %v986
    %v988 = vlaneseq
    %v989 = vshrl.u32 %v988, 7
    %v990 = vsub.s32 1, %v989
    %v991 = vrot.slane %v980, %v990
    %v992 = vlaneseq
    %v993 = vshrl.u32 %v992, 7
    %v994 = vsub.s32 2, %v993
    %v995 = vrot.slane %v980, %v994
    %v996 = vlaneseq
    %v997 = vshrl.u32 %v996, 7
    %v998 = vsub.s32 3, %v997
    %v999 = vrot.slane %v980, %v998
    %v1005 = vlaneseq
    %v1006 = vshrl.u32 %v1005, 7
    %v1007 = vsub.s32 0, %v1006
    %v1008 = vrot.slane %v982, %v1007
    %v1009 = vlaneseq
    %v1010 = vshrl.u32 %v1009, 7
    %v1011 = vsub.s32 1, %v1010
    %v1012 = vrot.slane %v982, %v1011
    %v1013 = vlaneseq
    %v1014 = vshrl.u32 %v1013, 7
    %v1015 = vsub.s32 2, %v1014
    %v1016 = vrot.slane %v982, %v1015
    %v1017 = vlaneseq
    %v1018 = vshrl.u32 %v1017, 7
    %v1019 = vsub.s32 3, %v1018
    %v1020 = vrot.slane %v982, %v1019
    %v1025 = vsel %vm140, %v987, %v1008
    %v1026 = vsel %vm141, %v991, %v1012
    %v1027 = vsel %vm142, %v995, %v1016
    %v1028 = vsel %vm143, %v999, %v1020
    %v1029 = vld [vmem:[#allocation11 + $0x100] sm:$0xff]
    %v1030 = vld [vmem:[#allocation11 + $0x108] sm:$0xff]
    %v1031 = vld [vmem:[#allocation11 + $0x110] sm:$0xff]
    %v1032 = vld [vmem:[#allocation11 + $0x118] sm:$0xff]
    %v1033 = vld [vmem:[#allocation11 + $0x120] sm:$0xff]
    %v1034 = vld [vmem:[#allocation11 + $0x128] sm:$0xff]
    %v1035 = vld [vmem:[#allocation11 + $0x130] sm:$0xff]
    %v1036 = vld [vmem:[#allocation11 + $0x138] sm:$0xff]
    %v1037 = vld [vmem:[#allocation11 + $0x140] sm:$0xff]
    %v1038 = vld [vmem:[#allocation11 + $0x148] sm:$0xff]
    %v1039 = vld [vmem:[#allocation11 + $0x150] sm:$0xff]
    %v1040 = vld [vmem:[#allocation11 + $0x158] sm:$0xff]
    %v1041 = vld [vmem:[#allocation11 + $0x160] sm:$0xff]
    %v1042 = vld [vmem:[#allocation11 + $0x168] sm:$0xff]
    %v1043 = vld [vmem:[#allocation11 + $0x170] sm:$0xff]
    %v1044 = vld [vmem:[#allocation11 + $0x178] sm:$0xff]
    %v1045 = vld [vmem:[#allocation11 + $0x180] sm:$0xff]
    %v1046 = vld [vmem:[#allocation11 + $0x188] sm:$0xff]
    %v1047 = vld [vmem:[#allocation11 + $0x190] sm:$0xff]
    %v1048 = vld [vmem:[#allocation11 + $0x198] sm:$0xff]
    %v1049 = vld [vmem:[#allocation11 + $0x1a0] sm:$0xff]
    %v1050 = vld [vmem:[#allocation11 + $0x1a8] sm:$0xff]
    %v1051 = vld [vmem:[#allocation11 + $0x1b0] sm:$0xff]
    %v1052 = vld [vmem:[#allocation11 + $0x1b8] sm:$0xff]
    %v1053 = vld [vmem:[#allocation11 + $0x1c0] sm:$0xff]
    %v1054 = vld [vmem:[#allocation11 + $0x1c8] sm:$0xff]
    %v1055 = vld [vmem:[#allocation11 + $0x1d0] sm:$0xff]
    %v1056 = vld [vmem:[#allocation11 + $0x1d8] sm:$0xff]
    %v1057 = vld [vmem:[#allocation11 + $0x1e0] sm:$0xff]
    %v1058 = vld [vmem:[#allocation11 + $0x1e8] sm:$0xff]
    %v1059 = vld [vmem:[#allocation11 + $0x1f0] sm:$0xff]
    %v1060 = vld [vmem:[#allocation11 + $0x1f8] sm:$0xff]
    %v1061 = vld [vmem:[#allocation11 + $0x200] sm:$0xff]
    %v1062 = vld [vmem:[#allocation11 + $0x208] sm:$0xff]
    %v1063 = vld [vmem:[#allocation11 + $0x210] sm:$0xff]
    %v1064 = vld [vmem:[#allocation11 + $0x218] sm:$0xff]
    %v1065 = vld [vmem:[#allocation11 + $0x220] sm:$0xff]
    %v1066 = vld [vmem:[#allocation11 + $0x228] sm:$0xff]
    %v1067 = vld [vmem:[#allocation11 + $0x230] sm:$0xff]
    %v1068 = vld [vmem:[#allocation11 + $0x238] sm:$0xff]
    %v1069 = vld [vmem:[#allocation11 + $0x240] sm:$0xff]
    %v1070 = vld [vmem:[#allocation11 + $0x248] sm:$0xff]
    %v1071 = vld [vmem:[#allocation11 + $0x250] sm:$0xff]
    %v1072 = vld [vmem:[#allocation11 + $0x258] sm:$0xff]
    %v1073 = vld [vmem:[#allocation11 + $0x260] sm:$0xff]
    %v1074 = vld [vmem:[#allocation11 + $0x268] sm:$0xff]
    %v1075 = vld [vmem:[#allocation11 + $0x270] sm:$0xff]
    %v1076 = vld [vmem:[#allocation11 + $0x278] sm:$0xff]
    %v1077 = vld [vmem:[#allocation11 + $0x280] sm:$0xff]
    %v1078 = vld [vmem:[#allocation11 + $0x288] sm:$0xff]
    %v1079 = vld [vmem:[#allocation11 + $0x290] sm:$0xff]
    %v1080 = vld [vmem:[#allocation11 + $0x298] sm:$0xff]
    %v1081 = vld [vmem:[#allocation11 + $0x2a0] sm:$0xff]
    %v1082 = vld [vmem:[#allocation11 + $0x2a8] sm:$0xff]
    %v1083 = vld [vmem:[#allocation11 + $0x2b0] sm:$0xff]
    %v1084 = vld [vmem:[#allocation11 + $0x2b8] sm:$0xff]
    %v1085 = vld [vmem:[#allocation11 + $0x2c0] sm:$0xff]
    %v1086 = vld [vmem:[#allocation11 + $0x2c8] sm:$0xff]
    %v1087 = vld [vmem:[#allocation11 + $0x2d0] sm:$0xff]
    %v1088 = vld [vmem:[#allocation11 + $0x2d8] sm:$0xff]
    %v1089 = vld [vmem:[#allocation11 + $0x2e0] sm:$0xff]
    %v1090 = vld [vmem:[#allocation11 + $0x2e8] sm:$0xff]
    %v1091 = vld [vmem:[#allocation11 + $0x2f0] sm:$0xff]
    %v1092 = vld [vmem:[#allocation11 + $0x2f8] sm:$0xff]
    %1093 = vmatprep.subr.mxu0 %v1030
    %1094 = vmatpush1.msra.mxu0 %v1029
    %1095 = vmatprep.subr.mxu0 %v1034
    %1096 = vmatpush1.msra.mxu0 %v1033
    %1097 = vmatprep.subr.mxu0 %v1038
    %1098 = vmatpush1.msra.mxu0 %v1037
    %1099 = vmatprep.subr.mxu0 %v1042
    %1100 = vmatpush1.msra.mxu0 %v1041
    %1101 = vmatprep.subr.mxu0 %v1046
    %1102 = vmatpush1.msra.mxu0 %v1045
    %1103 = vmatprep.subr.mxu0 %v1050
    %1104 = vmatpush1.msra.mxu0 %v1049
    %1105 = vmatprep.subr.mxu0 %v1054
    %1106 = vmatpush1.msra.mxu0 %v1053
    %1107 = vmatprep.subr.mxu0 %v1058
    %1108 = vmatpush1.msra.mxu0 %v1057
    %1109 = vmatprep.subr.mxu0 %v1062
    %1110 = vmatpush1.msra.mxu0 %v1061
    %1111 = vmatprep.subr.mxu0 %v1066
    %1112 = vmatpush1.msra.mxu0 %v1065
    %1113 = vmatprep.subr.mxu0 %v1070
    %1114 = vmatpush1.msra.mxu0 %v1069
    %1115 = vmatprep.subr.mxu0 %v1074
    %1116 = vmatpush1.msra.mxu0 %v1073
    %1117 = vmatprep.subr.mxu0 %v1078
    %1118 = vmatpush1.msra.mxu0 %v1077
    %1119 = vmatprep.subr.mxu0 %v1082
    %1120 = vmatpush1.msra.mxu0 %v1081
    %1121 = vmatprep.subr.mxu0 %v1086
    %1122 = vmatpush1.msra.mxu0 %v1085
    %1123 = vmatprep.subr.mxu0 %v1090
    %1124 = vmatpush1.msra.mxu0 %v1089
    %1125 = vmatprep.subr.mxu0 0.0
    %1126 = vmatpush1.msra.mxu0 0.0
    %1127 = vmatprep.subr.mxu0 0.0
    %1128 = vmatpush1.msra.mxu0 0.0
    %1129 = vmatprep.subr.mxu0 0.0
    %1130 = vmatpush1.msra.mxu0 0.0
    %1131 = vmatprep.subr.mxu0 0.0
    %1132 = vmatpush1.msra.mxu0 0.0
    %1133 = vmatprep.subr.mxu0 0.0
    %1134 = vmatpush1.msra.mxu0 0.0
    %1135 = vmatprep.subr.mxu0 0.0
    %1136 = vmatpush1.msra.mxu0 0.0
    %1137 = vmatprep.subr.mxu0 0.0
    %1138 = vmatpush1.msra.mxu0 0.0
    %1139 = vmatprep.subr.mxu0 0.0
    %1140 = vmatpush1.msra.mxu0 0.0
    %1141 = vmatprep.subr.mxu0 0.0
    %1142 = vmatpush1.msra.mxu0 0.0
    %1143 = vmatprep.subr.mxu0 0.0
    %1144 = vmatpush1.msra.mxu0 0.0
    %1145 = vmatprep.subr.mxu0 0.0
    %1146 = vmatpush1.msra.mxu0 0.0
    %1147 = vmatprep.subr.mxu0 0.0
    %1148 = vmatpush1.msra.mxu0 0.0
    %1149 = vmatprep.subr.mxu0 0.0
    %1150 = vmatpush1.msra.mxu0 0.0
    %1151 = vmatprep.subr.mxu0 0.0
    %1152 = vmatpush1.msra.mxu0 0.0
    %1153 = vmatprep.subr.mxu0 0.0
    %1154 = vmatpush1.msra.mxu0 0.0
    %1155 = vmatprep.subr.mxu0 0.0
    %1156 = vmatpush1.msra.mxu0 0.0
    %1157 = vmatprep.mubr.f32.mxu0 0.0
    %1158 = vmatmul.mubr.f32.gmra.mrb[0].mxu0 %v976
    %v1159 = vpop.f32.mrb[0].mxu0
    %v1160 = vadd.f32 0.0, %v1159
    %v1161 = vpop.f32.mrb[0].mxu0
    %v1162 = vadd.f32 0.0, %v1161
    %1163 = vdwg.mxu0
    %1164 = vmatprep.subr.mxu0 %v1032
    %1165 = vmatpush1.msra.mxu0 %v1031
    %1166 = vmatprep.subr.mxu0 %v1036
    %1167 = vmatpush1.msra.mxu0 %v1035
    %1168 = vmatprep.subr.mxu0 %v1040
    %1169 = vmatpush1.msra.mxu0 %v1039
    %1170 = vmatprep.subr.mxu0 %v1044
    %1171 = vmatpush1.msra.mxu0 %v1043
    %1172 = vmatprep.subr.mxu0 %v1048
    %1173 = vmatpush1.msra.mxu0 %v1047
    %1174 = vmatprep.subr.mxu0 %v1052
    %1175 = vmatpush1.msra.mxu0 %v1051
    %1176 = vmatprep.subr.mxu0 %v1056
    %1177 = vmatpush1.msra.mxu0 %v1055
    %1178 = vmatprep.subr.mxu0 %v1060
    %1179 = vmatpush1.msra.mxu0 %v1059
    %1180 = vmatprep.subr.mxu0 %v1064
    %1181 = vmatpush1.msra.mxu0 %v1063
    %1182 = vmatprep.subr.mxu0 %v1068
    %1183 = vmatpush1.msra.mxu0 %v1067
    %1184 = vmatprep.subr.mxu0 %v1072
    %1185 = vmatpush1.msra.mxu0 %v1071
    %1186 = vmatprep.subr.mxu0 %v1076
    %1187 = vmatpush1.msra.mxu0 %v1075
    %1188 = vmatprep.subr.mxu0 %v1080
    %1189 = vmatpush1.msra.mxu0 %v1079
    %1190 = vmatprep.subr.mxu0 %v1084
    %1191 = vmatpush1.msra.mxu0 %v1083
    %1192 = vmatprep.subr.mxu0 %v1088
    %1193 = vmatpush1.msra.mxu0 %v1087
    %1194 = vmatprep.subr.mxu0 %v1092
    %1195 = vmatpush1.msra.mxu0 %v1091
    %1196 = vmatprep.subr.mxu0 0.0
    %1197 = vmatpush1.msra.mxu0 0.0
    %1198 = vmatprep.subr.mxu0 0.0
    %1199 = vmatpush1.msra.mxu0 0.0
    %1200 = vmatprep.subr.mxu0 0.0
    %1201 = vmatpush1.msra.mxu0 0.0
    %1202 = vmatprep.subr.mxu0 0.0
    %1203 = vmatpush1.msra.mxu0 0.0
    %1204 = vmatprep.subr.mxu0 0.0
    %1205 = vmatpush1.msra.mxu0 0.0
    %1206 = vmatprep.subr.mxu0 0.0
    %1207 = vmatpush1.msra.mxu0 0.0
    %1208 = vmatprep.subr.mxu0 0.0
    %1209 = vmatpush1.msra.mxu0 0.0
    %1210 = vmatprep.subr.mxu0 0.0
    %1211 = vmatpush1.msra.mxu0 0.0
    %1212 = vmatprep.subr.mxu0 0.0
    %1213 = vmatpush1.msra.mxu0 0.0
    %1214 = vmatprep.subr.mxu0 0.0
    %1215 = vmatpush1.msra.mxu0 0.0
    %1216 = vmatprep.subr.mxu0 0.0
    %1217 = vmatpush1.msra.mxu0 0.0
    %1218 = vmatprep.subr.mxu0 0.0
    %1219 = vmatpush1.msra.mxu0 0.0
    %1220 = vmatprep.subr.mxu0 0.0
    %1221 = vmatpush1.msra.mxu0 0.0
    %1222 = vmatprep.subr.mxu0 0.0
    %1223 = vmatpush1.msra.mxu0 0.0
    %1224 = vmatprep.subr.mxu0 0.0
    %1225 = vmatpush1.msra.mxu0 0.0
    %1226 = vmatprep.subr.mxu0 0.0
    %1227 = vmatpush1.msra.mxu0 0.0
    %1228 = vmatprep.mubr.f32.mxu0 0.0
    %1229 = vmatmul.mubr.f32.gmra.mrb[0].mxu0 %v976
    %v1230 = vpop.f32.mrb[0].mxu0
    %v1231 = vadd.f32 0.0, %v1230
    %v1232 = vpop.f32.mrb[0].mxu0
    %v1233 = vadd.f32 0.0, %v1232
    %1234 = vdwg.mxu0
    %v1235 = vadd.f32 %v1025, %v1160
    %v1236 = vadd.f32 %v1026, %v1162
    %v1237 = vadd.f32 %v1027, %v1231
    %v1238 = vadd.f32 %v1028, %v1233
    %v1239 = vxor.u32 %v1235, 2147483648
    %v1240 = vmul.f32 %v1239, 1.442695
    %v1241 = vpow.pop %v1240
    %v1242 = vadd.f32 %v1241, 1.0
    %v1243 = vrcp.pop %v1242
    %v1244 = vmul.f32 1.0, %v1243
    %v1245 = vxor.u32 %v1236, 2147483648
    %v1246 = vmul.f32 %v1245, 1.442695
    %v1247 = vpow.pop %v1246
    %v1248 = vadd.f32 %v1247, 1.0
    %v1249 = vrcp.pop %v1248
    %v1250 = vmul.f32 1.0, %v1249
    %v1251 = vtanh.pop %v1237
    %v1252 = vxor.u32 %v1238, 2147483648
    %v1253 = vmul.f32 %v1252, 1.442695
    %v1254 = vpow.pop %v1253
    %v1255 = vadd.f32 %v1254, 1.0
    %v1256 = vrcp.pop %v1255
    %v1257 = vmul.f32 1.0, %v1256
    %v1258 = vmul.f32 %v1250, %v974
    %v1259 = vmul.f32 %v1244, %v1251
    %v1260 = vadd.f32 %v1258, %v1259
    %v1261 = vtanh.pop %v1260
    %v1262 = vmul.f32 %v1257, %v1261
    %1263 = vst.msk [vmem:[#allocation4 + $0x3] sm:$0x1] %vm57, %v1262
    %1264 = vst.msk [vmem:[#allocation4 + $0x4] sm:$0x1] %vm405, %v1262
    %v1265 = vld [vmem:[%s981] ss:$8 sm:$0xf]
    %v1266 = vld [vmem:[%s979] ss:$8 sm:$0xf]
    %v1268 = vlaneseq
    %v1269 = vshrl.u32 %v1268, 7
    %v1270 = vsub.s32 0, %v1269
    %v1271 = vrot.slane %v1265, %v1270
    %v1272 = vlaneseq
    %v1273 = vshrl.u32 %v1272, 7
    %v1274 = vsub.s32 1, %v1273
    %v1275 = vrot.slane %v1265, %v1274
    %v1276 = vlaneseq
    %v1277 = vshrl.u32 %v1276, 7
    %v1278 = vsub.s32 2, %v1277
    %v1279 = vrot.slane %v1265, %v1278
    %v1280 = vlaneseq
    %v1281 = vshrl.u32 %v1280, 7
    %v1282 = vsub.s32 3, %v1281
    %v1283 = vrot.slane %v1265, %v1282
    %v1289 = vlaneseq
    %v1290 = vshrl.u32 %v1289, 7
    %v1291 = vsub.s32 0, %v1290
    %v1292 = vrot.slane %v1266, %v1291
    %v1293 = vlaneseq
    %v1294 = vshrl.u32 %v1293, 7
    %v1295 = vsub.s32 1, %v1294
    %v1296 = vrot.slane %v1266, %v1295
    %v1297 = vlaneseq
    %v1298 = vshrl.u32 %v1297, 7
    %v1299 = vsub.s32 2, %v1298
    %v1300 = vrot.slane %v1266, %v1299
    %v1301 = vlaneseq
    %v1302 = vshrl.u32 %v1301, 7
    %v1303 = vsub.s32 3, %v1302
    %v1304 = vrot.slane %v1266, %v1303
    %v1309 = vsel %vm140, %v1271, %v1292
    %v1310 = vsel %vm141, %v1275, %v1296
    %v1311 = vsel %vm142, %v1279, %v1300
    %v1312 = vsel %vm143, %v1283, %v1304
    %v1313 = vld [vmem:[#allocation11 + $0x100] sm:$0xff]
    %v1314 = vld [vmem:[#allocation11 + $0x108] sm:$0xff]
    %v1315 = vld [vmem:[#allocation11 + $0x110] sm:$0xff]
    %v1316 = vld [vmem:[#allocation11 + $0x118] sm:$0xff]
    %v1317 = vld [vmem:[#allocation11 + $0x120] sm:$0xff]
    %v1318 = vld [vmem:[#allocation11 + $0x128] sm:$0xff]
    %v1319 = vld [vmem:[#allocation11 + $0x130] sm:$0xff]
    %v1320 = vld [vmem:[#allocation11 + $0x138] sm:$0xff]
    %v1321 = vld [vmem:[#allocation11 + $0x140] sm:$0xff]
    %v1322 = vld [vmem:[#allocation11 + $0x148] sm:$0xff]
    %v1323 = vld [vmem:[#allocation11 + $0x150] sm:$0xff]
    %v1324 = vld [vmem:[#allocation11 + $0x158] sm:$0xff]
    %v1325 = vld [vmem:[#allocation11 + $0x160] sm:$0xff]
    %v1326 = vld [vmem:[#allocation11 + $0x168] sm:$0xff]
    %v1327 = vld [vmem:[#allocation11 + $0x170] sm:$0xff]
    %v1328 = vld [vmem:[#allocation11 + $0x178] sm:$0xff]
    %v1329 = vld [vmem:[#allocation11 + $0x180] sm:$0xff]
    %v1330 = vld [vmem:[#allocation11 + $0x188] sm:$0xff]
    %v1331 = vld [vmem:[#allocation11 + $0x190] sm:$0xff]
    %v1332 = vld [vmem:[#allocation11 + $0x198] sm:$0xff]
    %v1333 = vld [vmem:[#allocation11 + $0x1a0] sm:$0xff]
    %v1334 = vld [vmem:[#allocation11 + $0x1a8] sm:$0xff]
    %v1335 = vld [vmem:[#allocation11 + $0x1b0] sm:$0xff]
    %v1336 = vld [vmem:[#allocation11 + $0x1b8] sm:$0xff]
    %v1337 = vld [vmem:[#allocation11 + $0x1c0] sm:$0xff]
    %v1338 = vld [vmem:[#allocation11 + $0x1c8] sm:$0xff]
    %v1339 = vld [vmem:[#allocation11 + $0x1d0] sm:$0xff]
    %v1340 = vld [vmem:[#allocation11 + $0x1d8] sm:$0xff]
    %v1341 = vld [vmem:[#allocation11 + $0x1e0] sm:$0xff]
    %v1342 = vld [vmem:[#allocation11 + $0x1e8] sm:$0xff]
    %v1343 = vld [vmem:[#allocation11 + $0x1f0] sm:$0xff]
    %v1344 = vld [vmem:[#allocation11 + $0x1f8] sm:$0xff]
    %v1345 = vld [vmem:[#allocation11 + $0x200] sm:$0xff]
    %v1346 = vld [vmem:[#allocation11 + $0x208] sm:$0xff]
    %v1347 = vld [vmem:[#allocation11 + $0x210] sm:$0xff]
    %v1348 = vld [vmem:[#allocation11 + $0x218] sm:$0xff]
    %v1349 = vld [vmem:[#allocation11 + $0x220] sm:$0xff]
    %v1350 = vld [vmem:[#allocation11 + $0x228] sm:$0xff]
    %v1351 = vld [vmem:[#allocation11 + $0x230] sm:$0xff]
    %v1352 = vld [vmem:[#allocation11 + $0x238] sm:$0xff]
    %v1353 = vld [vmem:[#allocation11 + $0x240] sm:$0xff]
    %v1354 = vld [vmem:[#allocation11 + $0x248] sm:$0xff]
    %v1355 = vld [vmem:[#allocation11 + $0x250] sm:$0xff]
    %v1356 = vld [vmem:[#allocation11 + $0x258] sm:$0xff]
    %v1357 = vld [vmem:[#allocation11 + $0x260] sm:$0xff]
    %v1358 = vld [vmem:[#allocation11 + $0x268] sm:$0xff]
    %v1359 = vld [vmem:[#allocation11 + $0x270] sm:$0xff]
    %v1360 = vld [vmem:[#allocation11 + $0x278] sm:$0xff]
    %v1361 = vld [vmem:[#allocation11 + $0x280] sm:$0xff]
    %v1362 = vld [vmem:[#allocation11 + $0x288] sm:$0xff]
    %v1363 = vld [vmem:[#allocation11 + $0x290] sm:$0xff]
    %v1364 = vld [vmem:[#allocation11 + $0x298] sm:$0xff]
    %v1365 = vld [vmem:[#allocation11 + $0x2a0] sm:$0xff]
    %v1366 = vld [vmem:[#allocation11 + $0x2a8] sm:$0xff]
    %v1367 = vld [vmem:[#allocation11 + $0x2b0] sm:$0xff]
    %v1368 = vld [vmem:[#allocation11 + $0x2b8] sm:$0xff]
    %v1369 = vld [vmem:[#allocation11 + $0x2c0] sm:$0xff]
    %v1370 = vld [vmem:[#allocation11 + $0x2c8] sm:$0xff]
    %v1371 = vld [vmem:[#allocation11 + $0x2d0] sm:$0xff]
    %v1372 = vld [vmem:[#allocation11 + $0x2d8] sm:$0xff]
    %v1373 = vld [vmem:[#allocation11 + $0x2e0] sm:$0xff]
    %v1374 = vld [vmem:[#allocation11 + $0x2e8] sm:$0xff]
    %v1375 = vld [vmem:[#allocation11 + $0x2f0] sm:$0xff]
    %v1376 = vld [vmem:[#allocation11 + $0x2f8] sm:$0xff]
    %1377 = vmatprep.subr.mxu0 %v1314
    %1378 = vmatpush1.msra.mxu0 %v1313
    %1379 = vmatprep.subr.mxu0 %v1318
    %1380 = vmatpush1.msra.mxu0 %v1317
    %1381 = vmatprep.subr.mxu0 %v1322
    %1382 = vmatpush1.msra.mxu0 %v1321
    %1383 = vmatprep.subr.mxu0 %v1326
    %1384 = vmatpush1.msra.mxu0 %v1325
    %1385 = vmatprep.subr.mxu0 %v1330
    %1386 = vmatpush1.msra.mxu0 %v1329
    %1387 = vmatprep.subr.mxu0 %v1334
    %1388 = vmatpush1.msra.mxu0 %v1333
    %1389 = vmatprep.subr.mxu0 %v1338
    %1390 = vmatpush1.msra.mxu0 %v1337
    %1391 = vmatprep.subr.mxu0 %v1342
    %1392 = vmatpush1.msra.mxu0 %v1341
    %1393 = vmatprep.subr.mxu0 %v1346
    %1394 = vmatpush1.msra.mxu0 %v1345
    %1395 = vmatprep.subr.mxu0 %v1350
    %1396 = vmatpush1.msra.mxu0 %v1349
    %1397 = vmatprep.subr.mxu0 %v1354
    %1398 = vmatpush1.msra.mxu0 %v1353
    %1399 = vmatprep.subr.mxu0 %v1358
    %1400 = vmatpush1.msra.mxu0 %v1357
    %1401 = vmatprep.subr.mxu0 %v1362
    %1402 = vmatpush1.msra.mxu0 %v1361
    %1403 = vmatprep.subr.mxu0 %v1366
    %1404 = vmatpush1.msra.mxu0 %v1365
    %1405 = vmatprep.subr.mxu0 %v1370
    %1406 = vmatpush1.msra.mxu0 %v1369
    %1407 = vmatprep.subr.mxu0 %v1374
    %1408 = vmatpush1.msra.mxu0 %v1373
    %1409 = vmatprep.subr.mxu0 0.0
    %1410 = vmatpush1.msra.mxu0 0.0
    %1411 = vmatprep.subr.mxu0 0.0
    %1412 = vmatpush1.msra.mxu0 0.0
    %1413 = vmatprep.subr.mxu0 0.0
    %1414 = vmatpush1.msra.mxu0 0.0
    %1415 = vmatprep.subr.mxu0 0.0
    %1416 = vmatpush1.msra.mxu0 0.0
    %1417 = vmatprep.subr.mxu0 0.0
    %1418 = vmatpush1.msra.mxu0 0.0
    %1419 = vmatprep.subr.mxu0 0.0
    %1420 = vmatpush1.msra.mxu0 0.0
    %1421 = vmatprep.subr.mxu0 0.0
    %1422 = vmatpush1.msra.mxu0 0.0
    %1423 = vmatprep.subr.mxu0 0.0
    %1424 = vmatpush1.msra.mxu0 0.0
    %1425 = vmatprep.subr.mxu0 0.0
    %1426 = vmatpush1.msra.mxu0 0.0
    %1427 = vmatprep.subr.mxu0 0.0
    %1428 = vmatpush1.msra.mxu0 0.0
    %1429 = vmatprep.subr.mxu0 0.0
    %1430 = vmatpush1.msra.mxu0 0.0
    %1431 = vmatprep.subr.mxu0 0.0
    %1432 = vmatpush1.msra.mxu0 0.0
    %1433 = vmatprep.subr.mxu0 0.0
    %1434 = vmatpush1.msra.mxu0 0.0
    %1435 = vmatprep.subr.mxu0 0.0
    %1436 = vmatpush1.msra.mxu0 0.0
    %1437 = vmatprep.subr.mxu0 0.0
    %1438 = vmatpush1.msra.mxu0 0.0
    %1439 = vmatprep.subr.mxu0 0.0
    %1440 = vmatpush1.msra.mxu0 0.0
    %1441 = vmatprep.mubr.f32.mxu0 0.0
    %1442 = vmatmul.mubr.f32.gmra.mrb[0].mxu0 %v1262
    %v1443 = vpop.f32.mrb[0].mxu0
    %v1444 = vadd.f32 0.0, %v1443
    %v1445 = vpop.f32.mrb[0].mxu0
    %v1446 = vadd.f32 0.0, %v1445
    %1447 = vdwg.mxu0
    %1448 = vmatprep.subr.mxu0 %v1316
    %1449 = vmatpush1.msra.mxu0 %v1315
    %1450 = vmatprep.subr.mxu0 %v1320
    %1451 = vmatpush1.msra.mxu0 %v1319
    %1452 = vmatprep.subr.mxu0 %v1324
    %1453 = vmatpush1.msra.mxu0 %v1323
    %1454 = vmatprep.subr.mxu0 %v1328
    %1455 = vmatpush1.msra.mxu0 %v1327
    %1456 = vmatprep.subr.mxu0 %v1332
    %1457 = vmatpush1.msra.mxu0 %v1331
    %1458 = vmatprep.subr.mxu0 %v1336
    %1459 = vmatpush1.msra.mxu0 %v1335
    %1460 = vmatprep.subr.mxu0 %v1340
    %1461 = vmatpush1.msra.mxu0 %v1339
    %1462 = vmatprep.subr.mxu0 %v1344
    %1463 = vmatpush1.msra.mxu0 %v1343
    %1464 = vmatprep.subr.mxu0 %v1348
    %1465 = vmatpush1.msra.mxu0 %v1347
    %1466 = vmatprep.subr.mxu0 %v1352
    %1467 = vmatpush1.msra.mxu0 %v1351
    %1468 = vmatprep.subr.mxu0 %v1356
    %1469 = vmatpush1.msra.mxu0 %v1355
    %1470 = vmatprep.subr.mxu0 %v1360
    %1471 = vmatpush1.msra.mxu0 %v1359
    %1472 = vmatprep.subr.mxu0 %v1364
    %1473 = vmatpush1.msra.mxu0 %v1363
    %1474 = vmatprep.subr.mxu0 %v1368
    %1475 = vmatpush1.msra.mxu0 %v1367
    %1476 = vmatprep.subr.mxu0 %v1372
    %1477 = vmatpush1.msra.mxu0 %v1371
    %1478 = vmatprep.subr.mxu0 %v1376
    %1479 = vmatpush1.msra.mxu0 %v1375
    %1480 = vmatprep.subr.mxu0 0.0
    %1481 = vmatpush1.msra.mxu0 0.0
    %1482 = vmatprep.subr.mxu0 0.0
    %1483 = vmatpush1.msra.mxu0 0.0
    %1484 = vmatprep.subr.mxu0 0.0
    %1485 = vmatpush1.msra.mxu0 0.0
    %1486 = vmatprep.subr.mxu0 0.0
    %1487 = vmatpush1.msra.mxu0 0.0
    %1488 = vmatprep.subr.mxu0 0.0
    %1489 = vmatpush1.msra.mxu0 0.0
    %1490 = vmatprep.subr.mxu0 0.0
    %1491 = vmatpush1.msra.mxu0 0.0
    %1492 = vmatprep.subr.mxu0 0.0
    %1493 = vmatpush1.msra.mxu0 0.0
    %1494 = vmatprep.subr.mxu0 0.0
    %1495 = vmatpush1.msra.mxu0 0.0
    %1496 = vmatprep.subr.mxu0 0.0
    %1497 = vmatpush1.msra.mxu0 0.0
    %1498 = vmatprep.subr.mxu0 0.0
    %1499 = vmatpush1.msra.mxu0 0.0
    %1500 = vmatprep.subr.mxu0 0.0
    %1501 = vmatpush1.msra.mxu0 0.0
    %1502 = vmatprep.subr.mxu0 0.0
    %1503 = vmatpush1.msra.mxu0 0.0
    %1504 = vmatprep.subr.mxu0 0.0
    %1505 = vmatpush1.msra.mxu0 0.0
    %1506 = vmatprep.subr.mxu0 0.0
    %1507 = vmatpush1.msra.mxu0 0.0
    %1508 = vmatprep.subr.mxu0 0.0
    %1509 = vmatpush1.msra.mxu0 0.0
    %1510 = vmatprep.subr.mxu0 0.0
    %1511 = vmatpush1.msra.mxu0 0.0
    %1512 = vmatprep.mubr.f32.mxu0 0.0
    %1513 = vmatmul.mubr.f32.gmra.mrb[0].mxu0 %v1262
    %v1514 = vpop.f32.mrb[0].mxu0
    %v1515 = vadd.f32 0.0, %v1514
    %v1516 = vpop.f32.mrb[0].mxu0
    %v1517 = vadd.f32 0.0, %v1516
    %1518 = vdwg.mxu0
    %v1519 = vadd.f32 %v1309, %v1444
    %v1520 = vadd.f32 %v1310, %v1446
    %v1521 = vadd.f32 %v1311, %v1515
    %v1522 = vadd.f32 %v1312, %v1517
    %v1523 = vxor.u32 %v1519, 2147483648
    %v1524 = vmul.f32 %v1523, 1.442695
    %v1525 = vpow.pop %v1524
    %v1526 = vadd.f32 %v1525, 1.0
    %v1527 = vrcp.pop %v1526
    %v1528 = vmul.f32 1.0, %v1527
    %v1529 = vxor.u32 %v1520, 2147483648
    %v1530 = vmul.f32 %v1529, 1.442695
    %v1531 = vpow.pop %v1530
    %v1532 = vadd.f32 %v1531, 1.0
    %v1533 = vrcp.pop %v1532
    %v1534 = vmul.f32 1.0, %v1533
    %v1535 = vtanh.pop %v1521
    %v1536 = vxor.u32 %v1522, 2147483648
    %v1537 = vmul.f32 %v1536, 1.442695
    %v1538 = vpow.pop %v1537
    %v1539 = vadd.f32 %v1538, 1.0
    %v1540 = vrcp.pop %v1539
    %v1541 = vmul.f32 1.0, %v1540
    %v1542 = vmul.f32 %v1534, %v1260
    %v1543 = vmul.f32 %v1528, %v1535
    %v1544 = vadd.f32 %v1542, %v1543
    %v1545 = vtanh.pop %v1544
    %v1546 = vmul.f32 %v1541, %v1545
    %1547 = vst.msk [vmem:[#allocation4 + $0x4] sm:$0x1] %vm57, %v1546
    %1548 = vst.msk [vmem:[#allocation4 + $0x3] sm:$0x1] %vm405, %v1546
    %v1549 = vld [vmem:[%s695] ss:$8 sm:$0xf]
    %v1550 = vld [vmem:[%s693] ss:$8 sm:$0xf]
    %v1552 = vlaneseq
    %v1553 = vshrl.u32 %v1552, 7
    %v1554 = vsub.s32 0, %v1553
    %v1555 = vrot.slane %v1549, %v1554
    %v1556 = vlaneseq
    %v1557 = vshrl.u32 %v1556, 7
    %v1558 = vsub.s32 1, %v1557
    %v1559 = vrot.slane %v1549, %v1558
    %v1560 = vlaneseq
    %v1561 = vshrl.u32 %v1560, 7
    %v1562 = vsub.s32 2, %v1561
    %v1563 = vrot.slane %v1549, %v1562
    %v1564 = vlaneseq
    %v1565 = vshrl.u32 %v1564, 7
    %v1566 = vsub.s32 3, %v1565
    %v1567 = vrot.slane %v1549, %v1566
    %v1573 = vlaneseq
    %v1574 = vshrl.u32 %v1573, 7
    %v1575 = vsub.s32 0, %v1574
    %v1576 = vrot.slane %v1550, %v1575
    %v1577 = vlaneseq
    %v1578 = vshrl.u32 %v1577, 7
    %v1579 = vsub.s32 1, %v1578
    %v1580 = vrot.slane %v1550, %v1579
    %v1581 = vlaneseq
    %v1582 = vshrl.u32 %v1581, 7
    %v1583 = vsub.s32 2, %v1582
    %v1584 = vrot.slane %v1550, %v1583
    %v1585 = vlaneseq
    %v1586 = vshrl.u32 %v1585, 7
    %v1587 = vsub.s32 3, %v1586
    %v1588 = vrot.slane %v1550, %v1587
    %v1593 = vsel %vm140, %v1555, %v1576
    %v1594 = vsel %vm141, %v1559, %v1580
    %v1595 = vsel %vm142, %v1563, %v1584
    %v1596 = vsel %vm143, %v1567, %v1588
    %v1597 = vld [vmem:[#allocation11 + $0x100] sm:$0xff]
    %v1598 = vld [vmem:[#allocation11 + $0x108] sm:$0xff]
    %v1599 = vld [vmem:[#allocation11 + $0x110] sm:$0xff]
    %v1600 = vld [vmem:[#allocation11 + $0x118] sm:$0xff]
    %v1601 = vld [vmem:[#allocation11 + $0x120] sm:$0xff]
    %v1602 = vld [vmem:[#allocation11 + $0x128] sm:$0xff]
    %v1603 = vld [vmem:[#allocation11 + $0x130] sm:$0xff]
    %v1604 = vld [vmem:[#allocation11 + $0x138] sm:$0xff]
    %v1605 = vld [vmem:[#allocation11 + $0x140] sm:$0xff]
    %v1606 = vld [vmem:[#allocation11 + $0x148] sm:$0xff]
    %v1607 = vld [vmem:[#allocation11 + $0x150] sm:$0xff]
    %v1608 = vld [vmem:[#allocation11 + $0x158] sm:$0xff]
    %v1609 = vld [vmem:[#allocation11 + $0x160] sm:$0xff]
    %v1610 = vld [vmem:[#allocation11 + $0x168] sm:$0xff]
    %v1611 = vld [vmem:[#allocation11 + $0x170] sm:$0xff]
    %v1612 = vld [vmem:[#allocation11 + $0x178] sm:$0xff]
    %v1613 = vld [vmem:[#allocation11 + $0x180] sm:$0xff]
    %v1614 = vld [vmem:[#allocation11 + $0x188] sm:$0xff]
    %v1615 = vld [vmem:[#allocation11 + $0x190] sm:$0xff]
    %v1616 = vld [vmem:[#allocation11 + $0x198] sm:$0xff]
    %v1617 = vld [vmem:[#allocation11 + $0x1a0] sm:$0xff]
    %v1618 = vld [vmem:[#allocation11 + $0x1a8] sm:$0xff]
    %v1619 = vld [vmem:[#allocation11 + $0x1b0] sm:$0xff]
    %v1620 = vld [vmem:[#allocation11 + $0x1b8] sm:$0xff]
    %v1621 = vld [vmem:[#allocation11 + $0x1c0] sm:$0xff]
    %v1622 = vld [vmem:[#allocation11 + $0x1c8] sm:$0xff]
    %v1623 = vld [vmem:[#allocation11 + $0x1d0] sm:$0xff]
    %v1624 = vld [vmem:[#allocation11 + $0x1d8] sm:$0xff]
    %v1625 = vld [vmem:[#allocation11 + $0x1e0] sm:$0xff]
    %v1626 = vld [vmem:[#allocation11 + $0x1e8] sm:$0xff]
    %v1627 = vld [vmem:[#allocation11 + $0x1f0] sm:$0xff]
    %v1628 = vld [vmem:[#allocation11 + $0x1f8] sm:$0xff]
    %v1629 = vld [vmem:[#allocation11 + $0x200] sm:$0xff]
    %v1630 = vld [vmem:[#allocation11 + $0x208] sm:$0xff]
    %v1631 = vld [vmem:[#allocation11 + $0x210] sm:$0xff]
    %v1632 = vld [vmem:[#allocation11 + $0x218] sm:$0xff]
    %v1633 = vld [vmem:[#allocation11 + $0x220] sm:$0xff]
    %v1634 = vld [vmem:[#allocation11 + $0x228] sm:$0xff]
    %v1635 = vld [vmem:[#allocation11 + $0x230] sm:$0xff]
    %v1636 = vld [vmem:[#allocation11 + $0x238] sm:$0xff]
    %v1637 = vld [vmem:[#allocation11 + $0x240] sm:$0xff]
    %v1638 = vld [vmem:[#allocation11 + $0x248] sm:$0xff]
    %v1639 = vld [vmem:[#allocation11 + $0x250] sm:$0xff]
    %v1640 = vld [vmem:[#allocation11 + $0x258] sm:$0xff]
    %v1641 = vld [vmem:[#allocation11 + $0x260] sm:$0xff]
    %v1642 = vld [vmem:[#allocation11 + $0x268] sm:$0xff]
    %v1643 = vld [vmem:[#allocation11 + $0x270] sm:$0xff]
    %v1644 = vld [vmem:[#allocation11 + $0x278] sm:$0xff]
    %v1645 = vld [vmem:[#allocation11 + $0x280] sm:$0xff]
    %v1646 = vld [vmem:[#allocation11 + $0x288] sm:$0xff]
    %v1647 = vld [vmem:[#allocation11 + $0x290] sm:$0xff]
    %v1648 = vld [vmem:[#allocation11 + $0x298] sm:$0xff]
    %v1649 = vld [vmem:[#allocation11 + $0x2a0] sm:$0xff]
    %v1650 = vld [vmem:[#allocation11 + $0x2a8] sm:$0xff]
    %v1651 = vld [vmem:[#allocation11 + $0x2b0] sm:$0xff]
    %v1652 = vld [vmem:[#allocation11 + $0x2b8] sm:$0xff]
    %v1653 = vld [vmem:[#allocation11 + $0x2c0] sm:$0xff]
    %v1654 = vld [vmem:[#allocation11 + $0x2c8] sm:$0xff]
    %v1655 = vld [vmem:[#allocation11 + $0x2d0] sm:$0xff]
    %v1656 = vld [vmem:[#allocation11 + $0x2d8] sm:$0xff]
    %v1657 = vld [vmem:[#allocation11 + $0x2e0] sm:$0xff]
    %v1658 = vld [vmem:[#allocation11 + $0x2e8] sm:$0xff]
    %v1659 = vld [vmem:[#allocation11 + $0x2f0] sm:$0xff]
    %v1660 = vld [vmem:[#allocation11 + $0x2f8] sm:$0xff]
    %1661 = vmatprep.subr.mxu0 %v1598
    %1662 = vmatpush1.msra.mxu0 %v1597
    %1663 = vmatprep.subr.mxu0 %v1602
    %1664 = vmatpush1.msra.mxu0 %v1601
    %1665 = vmatprep.subr.mxu0 %v1606
    %1666 = vmatpush1.msra.mxu0 %v1605
    %1667 = vmatprep.subr.mxu0 %v1610
    %1668 = vmatpush1.msra.mxu0 %v1609
    %1669 = vmatprep.subr.mxu0 %v1614
    %1670 = vmatpush1.msra.mxu0 %v1613
    %1671 = vmatprep.subr.mxu0 %v1618
    %1672 = vmatpush1.msra.mxu0 %v1617
    %1673 = vmatprep.subr.mxu0 %v1622
    %1674 = vmatpush1.msra.mxu0 %v1621
    %1675 = vmatprep.subr.mxu0 %v1626
    %1676 = vmatpush1.msra.mxu0 %v1625
    %1677 = vmatprep.subr.mxu0 %v1630
    %1678 = vmatpush1.msra.mxu0 %v1629
    %1679 = vmatprep.subr.mxu0 %v1634
    %1680 = vmatpush1.msra.mxu0 %v1633
    %1681 = vmatprep.subr.mxu0 %v1638
    %1682 = vmatpush1.msra.mxu0 %v1637
    %1683 = vmatprep.subr.mxu0 %v1642
    %1684 = vmatpush1.msra.mxu0 %v1641
    %1685 = vmatprep.subr.mxu0 %v1646
    %1686 = vmatpush1.msra.mxu0 %v1645
    %1687 = vmatprep.subr.mxu0 %v1650
    %1688 = vmatpush1.msra.mxu0 %v1649
    %1689 = vmatprep.subr.mxu0 %v1654
    %1690 = vmatpush1.msra.mxu0 %v1653
    %1691 = vmatprep.subr.mxu0 %v1658
    %1692 = vmatpush1.msra.mxu0 %v1657
    %1693 = vmatprep.subr.mxu0 0.0
    %1694 = vmatpush1.msra.mxu0 0.0
    %1695 = vmatprep.subr.mxu0 0.0
    %1696 = vmatpush1.msra.mxu0 0.0
    %1697 = vmatprep.subr.mxu0 0.0
    %1698 = vmatpush1.msra.mxu0 0.0
    %1699 = vmatprep.subr.mxu0 0.0
    %1700 = vmatpush1.msra.mxu0 0.0
    %1701 = vmatprep.subr.mxu0 0.0
    %1702 = vmatpush1.msra.mxu0 0.0
    %1703 = vmatprep.subr.mxu0 0.0
    %1704 = vmatpush1.msra.mxu0 0.0
    %1705 = vmatprep.subr.mxu0 0.0
    %1706 = vmatpush1.msra.mxu0 0.0
    %1707 = vmatprep.subr.mxu0 0.0
    %1708 = vmatpush1.msra.mxu0 0.0
    %1709 = vmatprep.subr.mxu0 0.0
    %1710 = vmatpush1.msra.mxu0 0.0
    %1711 = vmatprep.subr.mxu0 0.0
    %1712 = vmatpush1.msra.mxu0 0.0
    %1713 = vmatprep.subr.mxu0 0.0
    %1714 = vmatpush1.msra.mxu0 0.0
    %1715 = vmatprep.subr.mxu0 0.0
    %1716 = vmatpush1.msra.mxu0 0.0
    %1717 = vmatprep.subr.mxu0 0.0
    %1718 = vmatpush1.msra.mxu0 0.0
    %1719 = vmatprep.subr.mxu0 0.0
    %1720 = vmatpush1.msra.mxu0 0.0
    %1721 = vmatprep.subr.mxu0 0.0
    %1722 = vmatpush1.msra.mxu0 0.0
    %1723 = vmatprep.subr.mxu0 0.0
    %1724 = vmatpush1.msra.mxu0 0.0
    %1725 = vmatprep.mubr.f32.mxu0 0.0
    %1726 = vmatmul.mubr.f32.gmra.mrb[0].mxu0 %v1546
    %v1727 = vpop.f32.mrb[0].mxu0
    %v1728 = vadd.f32 0.0, %v1727
    %v1729 = vpop.f32.mrb[0].mxu0
    %v1730 = vadd.f32 0.0, %v1729
    %1731 = vdwg.mxu0
    %1732 = vmatprep.subr.mxu0 %v1600
    %1733 = vmatpush1.msra.mxu0 %v1599
    %1734 = vmatprep.subr.mxu0 %v1604
    %1735 = vmatpush1.msra.mxu0 %v1603
    %1736 = vmatprep.subr.mxu0 %v1608
    %1737 = vmatpush1.msra.mxu0 %v1607
    %1738 = vmatprep.subr.mxu0 %v1612
    %1739 = vmatpush1.msra.mxu0 %v1611
    %1740 = vmatprep.subr.mxu0 %v1616
    %1741 = vmatpush1.msra.mxu0 %v1615
    %1742 = vmatprep.subr.mxu0 %v1620
    %1743 = vmatpush1.msra.mxu0 %v1619
    %1744 = vmatprep.subr.mxu0 %v1624
    %1745 = vmatpush1.msra.mxu0 %v1623
    %1746 = vmatprep.subr.mxu0 %v1628
    %1747 = vmatpush1.msra.mxu0 %v1627
    %1748 = vmatprep.subr.mxu0 %v1632
    %1749 = vmatpush1.msra.mxu0 %v1631
    %1750 = vmatprep.subr.mxu0 %v1636
    %1751 = vmatpush1.msra.mxu0 %v1635
    %1752 = vmatprep.subr.mxu0 %v1640
    %1753 = vmatpush1.msra.mxu0 %v1639
    %1754 = vmatprep.subr.mxu0 %v1644
    %1755 = vmatpush1.msra.mxu0 %v1643
    %1756 = vmatprep.subr.mxu0 %v1648
    %1757 = vmatpush1.msra.mxu0 %v1647
    %1758 = vmatprep.subr.mxu0 %v1652
    %1759 = vmatpush1.msra.mxu0 %v1651
    %1760 = vmatprep.subr.mxu0 %v1656
    %1761 = vmatpush1.msra.mxu0 %v1655
    %1762 = vmatprep.subr.mxu0 %v1660
    %1763 = vmatpush1.msra.mxu0 %v1659
    %1764 = vmatprep.subr.mxu0 0.0
    %1765 = vmatpush1.msra.mxu0 0.0
    %1766 = vmatprep.subr.mxu0 0.0
    %1767 = vmatpush1.msra.mxu0 0.0
    %1768 = vmatprep.subr.mxu0 0.0
    %1769 = vmatpush1.msra.mxu0 0.0
    %1770 = vmatprep.subr.mxu0 0.0
    %1771 = vmatpush1.msra.mxu0 0.0
    %1772 = vmatprep.subr.mxu0 0.0
    %1773 = vmatpush1.msra.mxu0 0.0
    %1774 = vmatprep.subr.mxu0 0.0
    %1775 = vmatpush1.msra.mxu0 0.0
    %1776 = vmatprep.subr.mxu0 0.0
    %1777 = vmatpush1.msra.mxu0 0.0
    %1778 = vmatprep.subr.mxu0 0.0
    %1779 = vmatpush1.msra.mxu0 0.0
    %1780 = vmatprep.subr.mxu0 0.0
    %1781 = vmatpush1.msra.mxu0 0.0
    %1782 = vmatprep.subr.mxu0 0.0
    %1783 = vmatpush1.msra.mxu0 0.0
    %1784 = vmatprep.subr.mxu0 0.0
    %1785 = vmatpush1.msra.mxu0 0.0
    %1786 = vmatprep.subr.mxu0 0.0
    %1787 = vmatpush1.msra.mxu0 0.0
    %1788 = vmatprep.subr.mxu0 0.0
    %1789 = vmatpush1.msra.mxu0 0.0
    %1790 = vmatprep.subr.mxu0 0.0
    %1791 = vmatpush1.msra.mxu0 0.0
    %1792 = vmatprep.subr.mxu0 0.0
    %1793 = vmatpush1.msra.mxu0 0.0
    %1794 = vmatprep.subr.mxu0 0.0
    %1795 = vmatpush1.msra.mxu0 0.0
    %1796 = vmatprep.mubr.f32.mxu0 0.0
    %1797 = vmatmul.mubr.f32.gmra.mrb[0].mxu0 %v1546
    %v1798 = vpop.f32.mrb[0].mxu0
    %v1799 = vadd.f32 0.0, %v1798
    %v1800 = vpop.f32.mrb[0].mxu0
    %v1801 = vadd.f32 0.0, %v1800
    %1802 = vdwg.mxu0
    %v1803 = vadd.f32 %v1593, %v1728
    %v1804 = vadd.f32 %v1594, %v1730
    %v1805 = vadd.f32 %v1595, %v1799
    %v1806 = vadd.f32 %v1596, %v1801
    %v1807 = vxor.u32 %v1803, 2147483648
    %v1808 = vmul.f32 %v1807, 1.442695
    %v1809 = vpow.pop %v1808
    %v1810 = vadd.f32 %v1809, 1.0
    %v1811 = vrcp.pop %v1810
    %v1812 = vmul.f32 1.0, %v1811
    %v1813 = vxor.u32 %v1804, 2147483648
    %v1814 = vmul.f32 %v1813, 1.442695
    %v1815 = vpow.pop %v1814
    %v1816 = vadd.f32 %v1815, 1.0
    %v1817 = vrcp.pop %v1816
    %v1818 = vmul.f32 1.0, %v1817
    %v1819 = vtanh.pop %v1805
    %v1820 = vxor.u32 %v1806, 2147483648
    %v1821 = vmul.f32 %v1820, 1.442695
    %v1822 = vpow.pop %v1821
    %v1823 = vadd.f32 %v1822, 1.0
    %v1824 = vrcp.pop %v1823
    %v1825 = vmul.f32 1.0, %v1824
    %v1826 = vmul.f32 %v1818, %v1544
    %v1827 = vmul.f32 %v1812, %v1819
    %v1828 = vadd.f32 %v1826, %v1827
    %v1829 = vtanh.pop %v1828
    %v1830 = vmul.f32 %v1825, %v1829
    %1831 = vst.msk [vmem:[#allocation4 + $0x5] sm:$0x1] %vm57, %v1830
    %1832 = vst.msk [vmem:[#allocation4 + $0x2] sm:$0x1] %vm405, %v1830
    %v1833 = vld [vmem:[%s409] ss:$8 sm:$0xf]
    %v1834 = vld [vmem:[%s407] ss:$8 sm:$0xf]
    %v1836 = vlaneseq
    %v1837 = vshrl.u32 %v1836, 7
    %v1838 = vsub.s32 0, %v1837
    %v1839 = vrot.slane %v1833, %v1838
    %v1840 = vlaneseq
    %v1841 = vshrl.u32 %v1840, 7
    %v1842 = vsub.s32 1, %v1841
    %v1843 = vrot.slane %v1833, %v1842
    %v1844 = vlaneseq
    %v1845 = vshrl.u32 %v1844, 7
    %v1846 = vsub.s32 2, %v1845
    %v1847 = vrot.slane %v1833, %v1846
    %v1848 = vlaneseq
    %v1849 = vshrl.u32 %v1848, 7
    %v1850 = vsub.s32 3, %v1849
    %v1851 = vrot.slane %v1833, %v1850
    %v1857 = vlaneseq
    %v1858 = vshrl.u32 %v1857, 7
    %v1859 = vsub.s32 0, %v1858
    %v1860 = vrot.slane %v1834, %v1859
    %v1861 = vlaneseq
    %v1862 = vshrl.u32 %v1861, 7
    %v1863 = vsub.s32 1, %v1862
    %v1864 = vrot.slane %v1834, %v1863
    %v1865 = vlaneseq
    %v1866 = vshrl.u32 %v1865, 7
    %v1867 = vsub.s32 2, %v1866
    %v1868 = vrot.slane %v1834, %v1867
    %v1869 = vlaneseq
    %v1870 = vshrl.u32 %v1869, 7
    %v1871 = vsub.s32 3, %v1870
    %v1872 = vrot.slane %v1834, %v1871
    %v1877 = vsel %vm140, %v1839, %v1860
    %v1878 = vsel %vm141, %v1843, %v1864
    %v1879 = vsel %vm142, %v1847, %v1868
    %v1880 = vsel %vm143, %v1851, %v1872
    %v1881 = vld [vmem:[#allocation11 + $0x100] sm:$0xff]
    %v1882 = vld [vmem:[#allocation11 + $0x108] sm:$0xff]
    %v1883 = vld [vmem:[#allocation11 + $0x110] sm:$0xff]
    %v1884 = vld [vmem:[#allocation11 + $0x118] sm:$0xff]
    %v1885 = vld [vmem:[#allocation11 + $0x120] sm:$0xff]
    %v1886 = vld [vmem:[#allocation11 + $0x128] sm:$0xff]
    %v1887 = vld [vmem:[#allocation11 + $0x130] sm:$0xff]
    %v1888 = vld [vmem:[#allocation11 + $0x138] sm:$0xff]
    %v1889 = vld [vmem:[#allocation11 + $0x140] sm:$0xff]
    %v1890 = vld [vmem:[#allocation11 + $0x148] sm:$0xff]
    %v1891 = vld [vmem:[#allocation11 + $0x150] sm:$0xff]
    %v1892 = vld [vmem:[#allocation11 + $0x158] sm:$0xff]
    %v1893 = vld [vmem:[#allocation11 + $0x160] sm:$0xff]
    %v1894 = vld [vmem:[#allocation11 + $0x168] sm:$0xff]
    %v1895 = vld [vmem:[#allocation11 + $0x170] sm:$0xff]
    %v1896 = vld [vmem:[#allocation11 + $0x178] sm:$0xff]
    %v1897 = vld [vmem:[#allocation11 + $0x180] sm:$0xff]
    %v1898 = vld [vmem:[#allocation11 + $0x188] sm:$0xff]
    %v1899 = vld [vmem:[#allocation11 + $0x190] sm:$0xff]
    %v1900 = vld [vmem:[#allocation11 + $0x198] sm:$0xff]
    %v1901 = vld [vmem:[#allocation11 + $0x1a0] sm:$0xff]
    %v1902 = vld [vmem:[#allocation11 + $0x1a8] sm:$0xff]
    %v1903 = vld [vmem:[#allocation11 + $0x1b0] sm:$0xff]
    %v1904 = vld [vmem:[#allocation11 + $0x1b8] sm:$0xff]
    %v1905 = vld [vmem:[#allocation11 + $0x1c0] sm:$0xff]
    %v1906 = vld [vmem:[#allocation11 + $0x1c8] sm:$0xff]
    %v1907 = vld [vmem:[#allocation11 + $0x1d0] sm:$0xff]
    %v1908 = vld [vmem:[#allocation11 + $0x1d8] sm:$0xff]
    %v1909 = vld [vmem:[#allocation11 + $0x1e0] sm:$0xff]
    %v1910 = vld [vmem:[#allocation11 + $0x1e8] sm:$0xff]
    %v1911 = vld [vmem:[#allocation11 + $0x1f0] sm:$0xff]
    %v1912 = vld [vmem:[#allocation11 + $0x1f8] sm:$0xff]
    %v1913 = vld [vmem:[#allocation11 + $0x200] sm:$0xff]
    %v1914 = vld [vmem:[#allocation11 + $0x208] sm:$0xff]
    %v1915 = vld [vmem:[#allocation11 + $0x210] sm:$0xff]
    %v1916 = vld [vmem:[#allocation11 + $0x218] sm:$0xff]
    %v1917 = vld [vmem:[#allocation11 + $0x220] sm:$0xff]
    %v1918 = vld [vmem:[#allocation11 + $0x228] sm:$0xff]
    %v1919 = vld [vmem:[#allocation11 + $0x230] sm:$0xff]
    %v1920 = vld [vmem:[#allocation11 + $0x238] sm:$0xff]
    %v1921 = vld [vmem:[#allocation11 + $0x240] sm:$0xff]
    %v1922 = vld [vmem:[#allocation11 + $0x248] sm:$0xff]
    %v1923 = vld [vmem:[#allocation11 + $0x250] sm:$0xff]
    %v1924 = vld [vmem:[#allocation11 + $0x258] sm:$0xff]
    %v1925 = vld [vmem:[#allocation11 + $0x260] sm:$0xff]
    %v1926 = vld [vmem:[#allocation11 + $0x268] sm:$0xff]
    %v1927 = vld [vmem:[#allocation11 + $0x270] sm:$0xff]
    %v1928 = vld [vmem:[#allocation11 + $0x278] sm:$0xff]
    %v1929 = vld [vmem:[#allocation11 + $0x280] sm:$0xff]
    %v1930 = vld [vmem:[#allocation11 + $0x288] sm:$0xff]
    %v1931 = vld [vmem:[#allocation11 + $0x290] sm:$0xff]
    %v1932 = vld [vmem:[#allocation11 + $0x298] sm:$0xff]
    %v1933 = vld [vmem:[#allocation11 + $0x2a0] sm:$0xff]
    %v1934 = vld [vmem:[#allocation11 + $0x2a8] sm:$0xff]
    %v1935 = vld [vmem:[#allocation11 + $0x2b0] sm:$0xff]
    %v1936 = vld [vmem:[#allocation11 + $0x2b8] sm:$0xff]
    %v1937 = vld [vmem:[#allocation11 + $0x2c0] sm:$0xff]
    %v1938 = vld [vmem:[#allocation11 + $0x2c8] sm:$0xff]
    %v1939 = vld [vmem:[#allocation11 + $0x2d0] sm:$0xff]
    %v1940 = vld [vmem:[#allocation11 + $0x2d8] sm:$0xff]
    %v1941 = vld [vmem:[#allocation11 + $0x2e0] sm:$0xff]
    %v1942 = vld [vmem:[#allocation11 + $0x2e8] sm:$0xff]
    %v1943 = vld [vmem:[#allocation11 + $0x2f0] sm:$0xff]
    %v1944 = vld [vmem:[#allocation11 + $0x2f8] sm:$0xff]
    %1945 = vmatprep.subr.mxu0 %v1882
    %1946 = vmatpush1.msra.mxu0 %v1881
    %1947 = vmatprep.subr.mxu0 %v1886
    %1948 = vmatpush1.msra.mxu0 %v1885
    %1949 = vmatprep.subr.mxu0 %v1890
    %1950 = vmatpush1.msra.mxu0 %v1889
    %1951 = vmatprep.subr.mxu0 %v1894
    %1952 = vmatpush1.msra.mxu0 %v1893
    %1953 = vmatprep.subr.mxu0 %v1898
    %1954 = vmatpush1.msra.mxu0 %v1897
    %1955 = vmatprep.subr.mxu0 %v1902
    %1956 = vmatpush1.msra.mxu0 %v1901
    %1957 = vmatprep.subr.mxu0 %v1906
    %1958 = vmatpush1.msra.mxu0 %v1905
    %1959 = vmatprep.subr.mxu0 %v1910
    %1960 = vmatpush1.msra.mxu0 %v1909
    %1961 = vmatprep.subr.mxu0 %v1914
    %1962 = vmatpush1.msra.mxu0 %v1913
    %1963 = vmatprep.subr.mxu0 %v1918
    %1964 = vmatpush1.msra.mxu0 %v1917
    %1965 = vmatprep.subr.mxu0 %v1922
    %1966 = vmatpush1.msra.mxu0 %v1921
    %1967 = vmatprep.subr.mxu0 %v1926
    %1968 = vmatpush1.msra.mxu0 %v1925
    %1969 = vmatprep.subr.mxu0 %v1930
    %1970 = vmatpush1.msra.mxu0 %v1929
    %1971 = vmatprep.subr.mxu0 %v1934
    %1972 = vmatpush1.msra.mxu0 %v1933
    %1973 = vmatprep.subr.mxu0 %v1938
    %1974 = vmatpush1.msra.mxu0 %v1937
    %1975 = vmatprep.subr.mxu0 %v1942
    %1976 = vmatpush1.msra.mxu0 %v1941
    %1977 = vmatprep.subr.mxu0 0.0
    %1978 = vmatpush1.msra.mxu0 0.0
    %1979 = vmatprep.subr.mxu0 0.0
    %1980 = vmatpush1.msra.mxu0 0.0
    %1981 = vmatprep.subr.mxu0 0.0
    %1982 = vmatpush1.msra.mxu0 0.0
    %1983 = vmatprep.subr.mxu0 0.0
    %1984 = vmatpush1.msra.mxu0 0.0
    %1985 = vmatprep.subr.mxu0 0.0
    %1986 = vmatpush1.msra.mxu0 0.0
    %1987 = vmatprep.subr.mxu0 0.0
    %1988 = vmatpush1.msra.mxu0 0.0
    %1989 = vmatprep.subr.mxu0 0.0
    %1990 = vmatpush1.msra.mxu0 0.0
    %1991 = vmatprep.subr.mxu0 0.0
    %1992 = vmatpush1.msra.mxu0 0.0
    %1993 = vmatprep.subr.mxu0 0.0
    %1994 = vmatpush1.msra.mxu0 0.0
    %1995 = vmatprep.subr.mxu0 0.0
    %1996 = vmatpush1.msra.mxu0 0.0
    %1997 = vmatprep.subr.mxu0 0.0
    %1998 = vmatpush1.msra.mxu0 0.0
    %1999 = vmatprep.subr.mxu0 0.0
    %2000 = vmatpush1.msra.mxu0 0.0
    %2001 = vmatprep.subr.mxu0 0.0
    %2002 = vmatpush1.msra.mxu0 0.0
    %2003 = vmatprep.subr.mxu0 0.0
    %2004 = vmatpush1.msra.mxu0 0.0
    %2005 = vmatprep.subr.mxu0 0.0
    %2006 = vmatpush1.msra.mxu0 0.0
    %2007 = vmatprep.subr.mxu0 0.0
    %2008 = vmatpush1.msra.mxu0 0.0
    %2009 = vmatprep.mubr.f32.mxu0 0.0
    %2010 = vmatmul.mubr.f32.gmra.mrb[0].mxu0 %v1830
    %v2011 = vpop.f32.mrb[0].mxu0
    %v2012 = vadd.f32 0.0, %v2011
    %v2013 = vpop.f32.mrb[0].mxu0
    %v2014 = vadd.f32 0.0, %v2013
    %2015 = vdwg.mxu0
    %2016 = vmatprep.subr.mxu0 %v1884
    %2017 = vmatpush1.msra.mxu0 %v1883
    %2018 = vmatprep.subr.mxu0 %v1888
    %2019 = vmatpush1.msra.mxu0 %v1887
    %2020 = vmatprep.subr.mxu0 %v1892
    %2021 = vmatpush1.msra.mxu0 %v1891
    %2022 = vmatprep.subr.mxu0 %v1896
    %2023 = vmatpush1.msra.mxu0 %v1895
    %2024 = vmatprep.subr.mxu0 %v1900
    %2025 = vmatpush1.msra.mxu0 %v1899
    %2026 = vmatprep.subr.mxu0 %v1904
    %2027 = vmatpush1.msra.mxu0 %v1903
    %2028 = vmatprep.subr.mxu0 %v1908
    %2029 = vmatpush1.msra.mxu0 %v1907
    %2030 = vmatprep.subr.mxu0 %v1912
    %2031 = vmatpush1.msra.mxu0 %v1911
    %2032 = vmatprep.subr.mxu0 %v1916
    %2033 = vmatpush1.msra.mxu0 %v1915
    %2034 = vmatprep.subr.mxu0 %v1920
    %2035 = vmatpush1.msra.mxu0 %v1919
    %2036 = vmatprep.subr.mxu0 %v1924
    %2037 = vmatpush1.msra.mxu0 %v1923
    %2038 = vmatprep.subr.mxu0 %v1928
    %2039 = vmatpush1.msra.mxu0 %v1927
    %2040 = vmatprep.subr.mxu0 %v1932
    %2041 = vmatpush1.msra.mxu0 %v1931
    %2042 = vmatprep.subr.mxu0 %v1936
    %2043 = vmatpush1.msra.mxu0 %v1935
    %2044 = vmatprep.subr.mxu0 %v1940
    %2045 = vmatpush1.msra.mxu0 %v1939
    %2046 = vmatprep.subr.mxu0 %v1944
    %2047 = vmatpush1.msra.mxu0 %v1943
    %2048 = vmatprep.subr.mxu0 0.0
    %2049 = vmatpush1.msra.mxu0 0.0
    %2050 = vmatprep.subr.mxu0 0.0
    %2051 = vmatpush1.msra.mxu0 0.0
    %2052 = vmatprep.subr.mxu0 0.0
    %2053 = vmatpush1.msra.mxu0 0.0
    %2054 = vmatprep.subr.mxu0 0.0
    %2055 = vmatpush1.msra.mxu0 0.0
    %2056 = vmatprep.subr.mxu0 0.0
    %2057 = vmatpush1.msra.mxu0 0.0
    %2058 = vmatprep.subr.mxu0 0.0
    %2059 = vmatpush1.msra.mxu0 0.0
    %2060 = vmatprep.subr.mxu0 0.0
    %2061 = vmatpush1.msra.mxu0 0.0
    %2062 = vmatprep.subr.mxu0 0.0
    %2063 = vmatpush1.msra.mxu0 0.0
    %2064 = vmatprep.subr.mxu0 0.0
    %2065 = vmatpush1.msra.mxu0 0.0
    %2066 = vmatprep.subr.mxu0 0.0
    %2067 = vmatpush1.msra.mxu0 0.0
    %2068 = vmatprep.subr.mxu0 0.0
    %2069 = vmatpush1.msra.mxu0 0.0
    %2070 = vmatprep.subr.mxu0 0.0
    %2071 = vmatpush1.msra.mxu0 0.0
    %2072 = vmatprep.subr.mxu0 0.0
    %2073 = vmatpush1.msra.mxu0 0.0
    %2074 = vmatprep.subr.mxu0 0.0
    %2075 = vmatpush1.msra.mxu0 0.0
    %2076 = vmatprep.subr.mxu0 0.0
    %2077 = vmatpush1.msra.mxu0 0.0
    %2078 = vmatprep.subr.mxu0 0.0
    %2079 = vmatpush1.msra.mxu0 0.0
    %2080 = vmatprep.mubr.f32.mxu0 0.0
    %2081 = vmatmul.mubr.f32.gmra.mrb[0].mxu0 %v1830
    %v2082 = vpop.f32.mrb[0].mxu0
    %v2083 = vadd.f32 0.0, %v2082
    %v2084 = vpop.f32.mrb[0].mxu0
    %v2085 = vadd.f32 0.0, %v2084
    %2086 = vdwg.mxu0
    %v2087 = vadd.f32 %v1877, %v2012
    %v2088 = vadd.f32 %v1878, %v2014
    %v2089 = vadd.f32 %v1879, %v2083
    %v2090 = vadd.f32 %v1880, %v2085
    %v2091 = vxor.u32 %v2087, 2147483648
    %v2092 = vmul.f32 %v2091, 1.442695
    %v2093 = vpow.pop %v2092
    %v2094 = vadd.f32 %v2093, 1.0
    %v2095 = vrcp.pop %v2094
    %v2096 = vmul.f32 1.0, %v2095
    %v2097 = vxor.u32 %v2088, 2147483648
    %v2098 = vmul.f32 %v2097, 1.442695
    %v2099 = vpow.pop %v2098
    %v2100 = vadd.f32 %v2099, 1.0
    %v2101 = vrcp.pop %v2100
    %v2102 = vmul.f32 1.0, %v2101
    %v2103 = vtanh.pop %v2089
    %v2104 = vxor.u32 %v2090, 2147483648
    %v2105 = vmul.f32 %v2104, 1.442695
    %v2106 = vpow.pop %v2105
    %v2107 = vadd.f32 %v2106, 1.0
    %v2108 = vrcp.pop %v2107
    %v2109 = vmul.f32 1.0, %v2108
    %v2110 = vmul.f32 %v2102, %v1828
    %v2111 = vmul.f32 %v2096, %v2103
    %v2112 = vadd.f32 %v2110, %v2111
    %v2113 = vtanh.pop %v2112
    %v2114 = vmul.f32 %v2109, %v2113
    %2115 = vst.msk [vmem:[#allocation4 + $0x6] sm:$0x1] %vm57, %v2114
    %2116 = vst.msk [vmem:[#allocation4 + $0x1] sm:$0x1] %vm405, %v2114
    %v2117 = vld [vmem:[%s351] ss:$8 sm:$0xf]
    %v2118 = vld [vmem:[#allocation3] ss:$8 sm:$0xf]
    %v2120 = vlaneseq
    %v2121 = vshrl.u32 %v2120, 7
    %v2122 = vsub.s32 0, %v2121
    %v2123 = vrot.slane %v2117, %v2122
    %v2124 = vlaneseq
    %v2125 = vshrl.u32 %v2124, 7
    %v2126 = vsub.s32 1, %v2125
    %v2127 = vrot.slane %v2117, %v2126
    %v2128 = vlaneseq
    %v2129 = vshrl.u32 %v2128, 7
    %v2130 = vsub.s32 2, %v2129
    %v2131 = vrot.slane %v2117, %v2130
    %v2132 = vlaneseq
    %v2133 = vshrl.u32 %v2132, 7
    %v2134 = vsub.s32 3, %v2133
    %v2135 = vrot.slane %v2117, %v2134
    %v2141 = vlaneseq
    %v2142 = vshrl.u32 %v2141, 7
    %v2143 = vsub.s32 0, %v2142
    %v2144 = vrot.slane %v2118, %v2143
    %v2145 = vlaneseq
    %v2146 = vshrl.u32 %v2145, 7
    %v2147 = vsub.s32 1, %v2146
    %v2148 = vrot.slane %v2118, %v2147
    %v2149 = vlaneseq
    %v2150 = vshrl.u32 %v2149, 7
    %v2151 = vsub.s32 2, %v2150
    %v2152 = vrot.slane %v2118, %v2151
    %v2153 = vlaneseq
    %v2154 = vshrl.u32 %v2153, 7
    %v2155 = vsub.s32 3, %v2154
    %v2156 = vrot.slane %v2118, %v2155
    %v2161 = vsel %vm140, %v2123, %v2144
    %v2162 = vsel %vm141, %v2127, %v2148
    %v2163 = vsel %vm142, %v2131, %v2152
    %v2164 = vsel %vm143, %v2135, %v2156
    %v2165 = vld [vmem:[#allocation11 + $0x100] sm:$0xff]
    %v2166 = vld [vmem:[#allocation11 + $0x108] sm:$0xff]
    %v2167 = vld [vmem:[#allocation11 + $0x110] sm:$0xff]
    %v2168 = vld [vmem:[#allocation11 + $0x118] sm:$0xff]
    %v2169 = vld [vmem:[#allocation11 + $0x120] sm:$0xff]
    %v2170 = vld [vmem:[#allocation11 + $0x128] sm:$0xff]
    %v2171 = vld [vmem:[#allocation11 + $0x130] sm:$0xff]
    %v2172 = vld [vmem:[#allocation11 + $0x138] sm:$0xff]
    %v2173 = vld [vmem:[#allocation11 + $0x140] sm:$0xff]
    %v2174 = vld [vmem:[#allocation11 + $0x148] sm:$0xff]
    %v2175 = vld [vmem:[#allocation11 + $0x150] sm:$0xff]
    %v2176 = vld [vmem:[#allocation11 + $0x158] sm:$0xff]
    %v2177 = vld [vmem:[#allocation11 + $0x160] sm:$0xff]
    %v2178 = vld [vmem:[#allocation11 + $0x168] sm:$0xff]
    %v2179 = vld [vmem:[#allocation11 + $0x170] sm:$0xff]
    %v2180 = vld [vmem:[#allocation11 + $0x178] sm:$0xff]
    %v2181 = vld [vmem:[#allocation11 + $0x180] sm:$0xff]
    %v2182 = vld [vmem:[#allocation11 + $0x188] sm:$0xff]
    %v2183 = vld [vmem:[#allocation11 + $0x190] sm:$0xff]
    %v2184 = vld [vmem:[#allocation11 + $0x198] sm:$0xff]
    %v2185 = vld [vmem:[#allocation11 + $0x1a0] sm:$0xff]
    %v2186 = vld [vmem:[#allocation11 + $0x1a8] sm:$0xff]
    %v2187 = vld [vmem:[#allocation11 + $0x1b0] sm:$0xff]
    %v2188 = vld [vmem:[#allocation11 + $0x1b8] sm:$0xff]
    %v2189 = vld [vmem:[#allocation11 + $0x1c0] sm:$0xff]
    %v2190 = vld [vmem:[#allocation11 + $0x1c8] sm:$0xff]
    %v2191 = vld [vmem:[#allocation11 + $0x1d0] sm:$0xff]
    %v2192 = vld [vmem:[#allocation11 + $0x1d8] sm:$0xff]
    %v2193 = vld [vmem:[#allocation11 + $0x1e0] sm:$0xff]
    %v2194 = vld [vmem:[#allocation11 + $0x1e8] sm:$0xff]
    %v2195 = vld [vmem:[#allocation11 + $0x1f0] sm:$0xff]
    %v2196 = vld [vmem:[#allocation11 + $0x1f8] sm:$0xff]
    %v2197 = vld [vmem:[#allocation11 + $0x200] sm:$0xff]
    %v2198 = vld [vmem:[#allocation11 + $0x208] sm:$0xff]
    %v2199 = vld [vmem:[#allocation11 + $0x210] sm:$0xff]
    %v2200 = vld [vmem:[#allocation11 + $0x218] sm:$0xff]
    %v2201 = vld [vmem:[#allocation11 + $0x220] sm:$0xff]
    %v2202 = vld [vmem:[#allocation11 + $0x228] sm:$0xff]
    %v2203 = vld [vmem:[#allocation11 + $0x230] sm:$0xff]
    %v2204 = vld [vmem:[#allocation11 + $0x238] sm:$0xff]
    %v2205 = vld [vmem:[#allocation11 + $0x240] sm:$0xff]
    %v2206 = vld [vmem:[#allocation11 + $0x248] sm:$0xff]
    %v2207 = vld [vmem:[#allocation11 + $0x250] sm:$0xff]
    %v2208 = vld [vmem:[#allocation11 + $0x258] sm:$0xff]
    %v2209 = vld [vmem:[#allocation11 + $0x260] sm:$0xff]
    %v2210 = vld [vmem:[#allocation11 + $0x268] sm:$0xff]
    %v2211 = vld [vmem:[#allocation11 + $0x270] sm:$0xff]
    %v2212 = vld [vmem:[#allocation11 + $0x278] sm:$0xff]
    %v2213 = vld [vmem:[#allocation11 + $0x280] sm:$0xff]
    %v2214 = vld [vmem:[#allocation11 + $0x288] sm:$0xff]
    %v2215 = vld [vmem:[#allocation11 + $0x290] sm:$0xff]
    %v2216 = vld [vmem:[#allocation11 + $0x298] sm:$0xff]
    %v2217 = vld [vmem:[#allocation11 + $0x2a0] sm:$0xff]
    %v2218 = vld [vmem:[#allocation11 + $0x2a8] sm:$0xff]
    %v2219 = vld [vmem:[#allocation11 + $0x2b0] sm:$0xff]
    %v2220 = vld [vmem:[#allocation11 + $0x2b8] sm:$0xff]
    %v2221 = vld [vmem:[#allocation11 + $0x2c0] sm:$0xff]
    %v2222 = vld [vmem:[#allocation11 + $0x2c8] sm:$0xff]
    %v2223 = vld [vmem:[#allocation11 + $0x2d0] sm:$0xff]
    %v2224 = vld [vmem:[#allocation11 + $0x2d8] sm:$0xff]
    %v2225 = vld [vmem:[#allocation11 + $0x2e0] sm:$0xff]
    %v2226 = vld [vmem:[#allocation11 + $0x2e8] sm:$0xff]
    %v2227 = vld [vmem:[#allocation11 + $0x2f0] sm:$0xff]
    %v2228 = vld [vmem:[#allocation11 + $0x2f8] sm:$0xff]
    %2229 = vmatprep.subr.mxu0 %v2166
    %2230 = vmatpush1.msra.mxu0 %v2165
    %2231 = vmatprep.subr.mxu0 %v2170
    %2232 = vmatpush1.msra.mxu0 %v2169
    %2233 = vmatprep.subr.mxu0 %v2174
    %2234 = vmatpush1.msra.mxu0 %v2173
    %2235 = vmatprep.subr.mxu0 %v2178
    %2236 = vmatpush1.msra.mxu0 %v2177
    %2237 = vmatprep.subr.mxu0 %v2182
    %2238 = vmatpush1.msra.mxu0 %v2181
    %2239 = vmatprep.subr.mxu0 %v2186
    %2240 = vmatpush1.msra.mxu0 %v2185
    %2241 = vmatprep.subr.mxu0 %v2190
    %2242 = vmatpush1.msra.mxu0 %v2189
    %2243 = vmatprep.subr.mxu0 %v2194
    %2244 = vmatpush1.msra.mxu0 %v2193
    %2245 = vmatprep.subr.mxu0 %v2198
    %2246 = vmatpush1.msra.mxu0 %v2197
    %2247 = vmatprep.subr.mxu0 %v2202
    %2248 = vmatpush1.msra.mxu0 %v2201
    %2249 = vmatprep.subr.mxu0 %v2206
    %2250 = vmatpush1.msra.mxu0 %v2205
    %2251 = vmatprep.subr.mxu0 %v2210
    %2252 = vmatpush1.msra.mxu0 %v2209
    %2253 = vmatprep.subr.mxu0 %v2214
    %2254 = vmatpush1.msra.mxu0 %v2213
    %2255 = vmatprep.subr.mxu0 %v2218
    %2256 = vmatpush1.msra.mxu0 %v2217
    %2257 = vmatprep.subr.mxu0 %v2222
    %2258 = vmatpush1.msra.mxu0 %v2221
    %2259 = vmatprep.subr.mxu0 %v2226
    %2260 = vmatpush1.msra.mxu0 %v2225
    %2261 = vmatprep.subr.mxu0 0.0
    %2262 = vmatpush1.msra.mxu0 0.0
    %2263 = vmatprep.subr.mxu0 0.0
    %2264 = vmatpush1.msra.mxu0 0.0
    %2265 = vmatprep.subr.mxu0 0.0
    %2266 = vmatpush1.msra.mxu0 0.0
    %2267 = vmatprep.subr.mxu0 0.0
    %2268 = vmatpush1.msra.mxu0 0.0
    %2269 = vmatprep.subr.mxu0 0.0
    %2270 = vmatpush1.msra.mxu0 0.0
    %2271 = vmatprep.subr.mxu0 0.0
    %2272 = vmatpush1.msra.mxu0 0.0
    %2273 = vmatprep.subr.mxu0 0.0
    %2274 = vmatpush1.msra.mxu0 0.0
    %2275 = vmatprep.subr.mxu0 0.0
    %2276 = vmatpush1.msra.mxu0 0.0
    %2277 = vmatprep.subr.mxu0 0.0
    %2278 = vmatpush1.msra.mxu0 0.0
    %2279 = vmatprep.subr.mxu0 0.0
    %2280 = vmatpush1.msra.mxu0 0.0
    %2281 = vmatprep.subr.mxu0 0.0
    %2282 = vmatpush1.msra.mxu0 0.0
    %2283 = vmatprep.subr.mxu0 0.0
    %2284 = vmatpush1.msra.mxu0 0.0
    %2285 = vmatprep.subr.mxu0 0.0
    %2286 = vmatpush1.msra.mxu0 0.0
    %2287 = vmatprep.subr.mxu0 0.0
    %2288 = vmatpush1.msra.mxu0 0.0
    %2289 = vmatprep.subr.mxu0 0.0
    %2290 = vmatpush1.msra.mxu0 0.0
    %2291 = vmatprep.subr.mxu0 0.0
    %2292 = vmatpush1.msra.mxu0 0.0
    %2293 = vmatprep.mubr.f32.mxu0 0.0
    %2294 = vmatmul.mubr.f32.gmra.mrb[0].mxu0 %v2114
    %v2295 = vpop.f32.mrb[0].mxu0
    %v2296 = vadd.f32 0.0, %v2295
    %v2297 = vpop.f32.mrb[0].mxu0
    %v2298 = vadd.f32 0.0, %v2297
    %2299 = vdwg.mxu0
    %2300 = vmatprep.subr.mxu0 %v2168
    %2301 = vmatpush1.msra.mxu0 %v2167
    %2302 = vmatprep.subr.mxu0 %v2172
    %2303 = vmatpush1.msra.mxu0 %v2171
    %2304 = vmatprep.subr.mxu0 %v2176
    %2305 = vmatpush1.msra.mxu0 %v2175
    %2306 = vmatprep.subr.mxu0 %v2180
    %2307 = vmatpush1.msra.mxu0 %v2179
    %2308 = vmatprep.subr.mxu0 %v2184
    %2309 = vmatpush1.msra.mxu0 %v2183
    %2310 = vmatprep.subr.mxu0 %v2188
    %2311 = vmatpush1.msra.mxu0 %v2187
    %2312 = vmatprep.subr.mxu0 %v2192
    %2313 = vmatpush1.msra.mxu0 %v2191
    %2314 = vmatprep.subr.mxu0 %v2196
    %2315 = vmatpush1.msra.mxu0 %v2195
    %2316 = vmatprep.subr.mxu0 %v2200
    %2317 = vmatpush1.msra.mxu0 %v2199
    %2318 = vmatprep.subr.mxu0 %v2204
    %2319 = vmatpush1.msra.mxu0 %v2203
    %2320 = vmatprep.subr.mxu0 %v2208
    %2321 = vmatpush1.msra.mxu0 %v2207
    %2322 = vmatprep.subr.mxu0 %v2212
    %2323 = vmatpush1.msra.mxu0 %v2211
    %2324 = vmatprep.subr.mxu0 %v2216
    %2325 = vmatpush1.msra.mxu0 %v2215
    %2326 = vmatprep.subr.mxu0 %v2220
    %2327 = vmatpush1.msra.mxu0 %v2219
    %2328 = vmatprep.subr.mxu0 %v2224
    %2329 = vmatpush1.msra.mxu0 %v2223
    %2330 = vmatprep.subr.mxu0 %v2228
    %2331 = vmatpush1.msra.mxu0 %v2227
    %2332 = vmatprep.subr.mxu0 0.0
    %2333 = vmatpush1.msra.mxu0 0.0
    %2334 = vmatprep.subr.mxu0 0.0
    %2335 = vmatpush1.msra.mxu0 0.0
    %2336 = vmatprep.subr.mxu0 0.0
    %2337 = vmatpush1.msra.mxu0 0.0
    %2338 = vmatprep.subr.mxu0 0.0
    %2339 = vmatpush1.msra.mxu0 0.0
    %2340 = vmatprep.subr.mxu0 0.0
    %2341 = vmatpush1.msra.mxu0 0.0
    %2342 = vmatprep.subr.mxu0 0.0
    %2343 = vmatpush1.msra.mxu0 0.0
    %2344 = vmatprep.subr.mxu0 0.0
    %2345 = vmatpush1.msra.mxu0 0.0
    %2346 = vmatprep.subr.mxu0 0.0
    %2347 = vmatpush1.msra.mxu0 0.0
    %2348 = vmatprep.subr.mxu0 0.0
    %2349 = vmatpush1.msra.mxu0 0.0
    %2350 = vmatprep.subr.mxu0 0.0
    %2351 = vmatpush1.msra.mxu0 0.0
    %2352 = vmatprep.subr.mxu0 0.0
    %2353 = vmatpush1.msra.mxu0 0.0
    %2354 = vmatprep.subr.mxu0 0.0
    %2355 = vmatpush1.msra.mxu0 0.0
    %2356 = vmatprep.subr.mxu0 0.0
    %2357 = vmatpush1.msra.mxu0 0.0
    %2358 = vmatprep.subr.mxu0 0.0
    %2359 = vmatpush1.msra.mxu0 0.0
    %2360 = vmatprep.subr.mxu0 0.0
    %2361 = vmatpush1.msra.mxu0 0.0
    %2362 = vmatprep.subr.mxu0 0.0
    %2363 = vmatpush1.msra.mxu0 0.0
    %2364 = vmatprep.mubr.f32.mxu0 0.0
    %2365 = vmatmul.mubr.f32.gmra.mrb[0].mxu0 %v2114
    %v2366 = vpop.f32.mrb[0].mxu0
    %v2367 = vadd.f32 0.0, %v2366
    %v2368 = vpop.f32.mrb[0].mxu0
    %v2369 = vadd.f32 0.0, %v2368
    %2370 = vdwg.mxu0
    %v2371 = vadd.f32 %v2161, %v2296
    %v2372 = vadd.f32 %v2162, %v2298
    %v2373 = vadd.f32 %v2163, %v2367
    %v2374 = vadd.f32 %v2164, %v2369
    %v2375 = vxor.u32 %v2371, 2147483648
    %v2376 = vmul.f32 %v2375, 1.442695
    %v2377 = vpow.pop %v2376
    %v2378 = vadd.f32 %v2377, 1.0
    %v2379 = vrcp.pop %v2378
    %v2380 = vmul.f32 1.0, %v2379
    %v2381 = vxor.u32 %v2372, 2147483648
    %v2382 = vmul.f32 %v2381, 1.442695
    %v2383 = vpow.pop %v2382
    %v2384 = vadd.f32 %v2383, 1.0
    %v2385 = vrcp.pop %v2384
    %v2386 = vmul.f32 1.0, %v2385
    %v2387 = vtanh.pop %v2373
    %v2388 = vxor.u32 %v2374, 2147483648
    %v2389 = vmul.f32 %v2388, 1.442695
    %v2390 = vpow.pop %v2389
    %v2391 = vadd.f32 %v2390, 1.0
    %v2392 = vrcp.pop %v2391
    %v2393 = vmul.f32 1.0, %v2392
    %v2394 = vmul.f32 %v2386, %v2112
    %v2395 = vmul.f32 %v2380, %v2387
    %v2396 = vadd.f32 %v2394, %v2395
    %v2397 = vtanh.pop %v2396
    %v2398 = vmul.f32 %v2393, %v2397
    %2399 = vst.msk [vmem:[#allocation4 + $0x7] sm:$0x1] %vm57, %v2398
    %2400 = vst.msk [vmem:[#allocation4] sm:$0x1] %vm405, %v2398
    %v2401 = vld [vmem:[#allocation4] sm:$0xff]
    %v2402 = vld [vmem:[#allocation11 + $0x320] sm:$0xff]
    %v2403 = vld [vmem:[#allocation11 + $0x328] sm:$0xff]
    %v2404 = vld [vmem:[#allocation11 + $0x330] sm:$0xff]
    %v2405 = vld [vmem:[#allocation11 + $0x338] sm:$0xff]
    %v2406 = vld [vmem:[#allocation11 + $0x340] sm:$0xff]
    %v2407 = vld [vmem:[#allocation11 + $0x348] sm:$0xff]
    %v2408 = vld [vmem:[#allocation11 + $0x350] sm:$0xff]
    %v2409 = vld [vmem:[#allocation11 + $0x358] sm:$0xff]
    %v2410 = vld [vmem:[#allocation11 + $0x360] sm:$0xff]
    %v2411 = vld [vmem:[#allocation11 + $0x368] sm:$0xff]
    %v2412 = vld [vmem:[#allocation11 + $0x370] sm:$0xff]
    %v2413 = vld [vmem:[#allocation11 + $0x378] sm:$0xff]
    %v2414 = vld [vmem:[#allocation11 + $0x380] sm:$0xff]
    %v2415 = vld [vmem:[#allocation11 + $0x388] sm:$0xff]
    %v2416 = vld [vmem:[#allocation11 + $0x390] sm:$0xff]
    %v2417 = vld [vmem:[#allocation11 + $0x398] sm:$0xff]
    %v2418 = vld [vmem:[#allocation11 + $0x3a0] sm:$0xff]
    %v2419 = vld [vmem:[#allocation11 + $0x3a8] sm:$0xff]
    %v2420 = vld [vmem:[#allocation11 + $0x3b0] sm:$0xff]
    %v2421 = vld [vmem:[#allocation11 + $0x3b8] sm:$0xff]
    %v2422 = vld [vmem:[#allocation11 + $0x3c0] sm:$0xff]
    %v2423 = vld [vmem:[#allocation11 + $0x3c8] sm:$0xff]
    %v2424 = vld [vmem:[#allocation11 + $0x3d0] sm:$0xff]
    %v2425 = vld [vmem:[#allocation11 + $0x3d8] sm:$0xff]
    %v2426 = vld [vmem:[#allocation11 + $0x3e0] sm:$0xff]
    %v2427 = vld [vmem:[#allocation11 + $0x3e8] sm:$0xff]
    %v2428 = vld [vmem:[#allocation11 + $0x3f0] sm:$0xff]
    %v2429 = vld [vmem:[#allocation11 + $0x3f8] sm:$0xff]
    %v2430 = vld [vmem:[#allocation11 + $0x400] sm:$0xff]
    %v2431 = vld [vmem:[#allocation11 + $0x408] sm:$0xff]
    %v2432 = vld [vmem:[#allocation11 + $0x410] sm:$0xff]
    %v2433 = vld [vmem:[#allocation11 + $0x418] sm:$0xff]
    %v2434 = vld [vmem:[#allocation11 + $0x420] sm:$0xff]
    %v2435 = vld [vmem:[#allocation11 + $0x428] sm:$0xff]
    %v2436 = vld [vmem:[#allocation11 + $0x430] sm:$0xff]
    %v2437 = vld [vmem:[#allocation11 + $0x438] sm:$0xff]
    %v2438 = vld [vmem:[#allocation11 + $0x440] sm:$0xff]
    %v2439 = vld [vmem:[#allocation11 + $0x448] sm:$0xff]
    %v2440 = vld [vmem:[#allocation11 + $0x450] sm:$0xff]
    %v2441 = vld [vmem:[#allocation11 + $0x458] sm:$0xff]
    %v2442 = vld [vmem:[#allocation11 + $0x460] sm:$0xff]
    %v2443 = vld [vmem:[#allocation11 + $0x468] sm:$0xff]
    %v2444 = vld [vmem:[#allocation11 + $0x470] sm:$0xff]
    %v2445 = vld [vmem:[#allocation11 + $0x478] sm:$0xff]
    %v2446 = vld [vmem:[#allocation11 + $0x480] sm:$0xff]
    %v2447 = vld [vmem:[#allocation11 + $0x488] sm:$0xff]
    %v2448 = vld [vmem:[#allocation11 + $0x490] sm:$0xff]
    %v2449 = vld [vmem:[#allocation11 + $0x498] sm:$0xff]
    %v2450 = vld [vmem:[#allocation11 + $0x4a0] sm:$0xff]
    %v2451 = vld [vmem:[#allocation11 + $0x4a8] sm:$0xff]
    %v2452 = vld [vmem:[#allocation11 + $0x4b0] sm:$0xff]
    %v2453 = vld [vmem:[#allocation11 + $0x4b8] sm:$0xff]
    %v2454 = vld [vmem:[#allocation11 + $0x4c0] sm:$0xff]
    %v2455 = vld [vmem:[#allocation11 + $0x4c8] sm:$0xff]
    %v2456 = vld [vmem:[#allocation11 + $0x4d0] sm:$0xff]
    %v2457 = vld [vmem:[#allocation11 + $0x4d8] sm:$0xff]
    %v2458 = vld [vmem:[#allocation11 + $0x4e0] sm:$0xff]
    %v2459 = vld [vmem:[#allocation11 + $0x4e8] sm:$0xff]
    %v2460 = vld [vmem:[#allocation11 + $0x4f0] sm:$0xff]
    %v2461 = vld [vmem:[#allocation11 + $0x4f8] sm:$0xff]
    %v2462 = vld [vmem:[#allocation11 + $0x500] sm:$0xff]
    %v2463 = vld [vmem:[#allocation11 + $0x508] sm:$0xff]
    %v2464 = vld [vmem:[#allocation11 + $0x510] sm:$0xff]
    %v2465 = vld [vmem:[#allocation11 + $0x518] sm:$0xff]
    %s2466 = scalar_lea.vmem [#allocation11], 1824
    %v2467 = vld [vmem:[%s2466] ss:$8 sm:$0xf]
    %v2469 = vlaneseq
    %v2470 = vshrl.u32 %v2469, 7
    %v2471 = vsub.s32 0, %v2470
    %v2472 = vrot.slane %v2467, %v2471
    %v2473 = vlaneseq
    %v2474 = vshrl.u32 %v2473, 7
    %v2475 = vsub.s32 1, %v2474
    %v2476 = vrot.slane %v2467, %v2475
    %v2477 = vlaneseq
    %v2478 = vshrl.u32 %v2477, 7
    %v2479 = vsub.s32 2, %v2478
    %v2480 = vrot.slane %v2467, %v2479
    %v2481 = vlaneseq
    %v2482 = vshrl.u32 %v2481, 7
    %v2483 = vsub.s32 3, %v2482
    %v2484 = vrot.slane %v2467, %v2483
    %2489 = vmatprep.subr.mxu0 %v2403
    %2490 = vmatpush1.msra.mxu0 %v2402
    %2491 = vmatprep.subr.mxu0 %v2407
    %2492 = vmatpush1.msra.mxu0 %v2406
    %2493 = vmatprep.subr.mxu0 %v2411
    %2494 = vmatpush1.msra.mxu0 %v2410
    %2495 = vmatprep.subr.mxu0 %v2415
    %2496 = vmatpush1.msra.mxu0 %v2414
    %2497 = vmatprep.subr.mxu0 %v2419
    %2498 = vmatpush1.msra.mxu0 %v2418
    %2499 = vmatprep.subr.mxu0 %v2423
    %2500 = vmatpush1.msra.mxu0 %v2422
    %2501 = vmatprep.subr.mxu0 %v2427
    %2502 = vmatpush1.msra.mxu0 %v2426
    %2503 = vmatprep.subr.mxu0 %v2431
    %2504 = vmatpush1.msra.mxu0 %v2430
    %2505 = vmatprep.subr.mxu0 %v2435
    %2506 = vmatpush1.msra.mxu0 %v2434
    %2507 = vmatprep.subr.mxu0 %v2439
    %2508 = vmatpush1.msra.mxu0 %v2438
    %2509 = vmatprep.subr.mxu0 %v2443
    %2510 = vmatpush1.msra.mxu0 %v2442
    %2511 = vmatprep.subr.mxu0 %v2447
    %2512 = vmatpush1.msra.mxu0 %v2446
    %2513 = vmatprep.subr.mxu0 %v2451
    %2514 = vmatpush1.msra.mxu0 %v2450
    %2515 = vmatprep.subr.mxu0 %v2455
    %2516 = vmatpush1.msra.mxu0 %v2454
    %2517 = vmatprep.subr.mxu0 %v2459
    %2518 = vmatpush1.msra.mxu0 %v2458
    %2519 = vmatprep.subr.mxu0 %v2463
    %2520 = vmatpush1.msra.mxu0 %v2462
    %2521 = vmatprep.subr.mxu0 0.0
    %2522 = vmatpush1.msra.mxu0 0.0
    %2523 = vmatprep.subr.mxu0 0.0
    %2524 = vmatpush1.msra.mxu0 0.0
    %2525 = vmatprep.subr.mxu0 0.0
    %2526 = vmatpush1.msra.mxu0 0.0
    %2527 = vmatprep.subr.mxu0 0.0
    %2528 = vmatpush1.msra.mxu0 0.0
    %2529 = vmatprep.subr.mxu0 0.0
    %2530 = vmatpush1.msra.mxu0 0.0
    %2531 = vmatprep.subr.mxu0 0.0
    %2532 = vmatpush1.msra.mxu0 0.0
    %2533 = vmatprep.subr.mxu0 0.0
    %2534 = vmatpush1.msra.mxu0 0.0
    %2535 = vmatprep.subr.mxu0 0.0
    %2536 = vmatpush1.msra.mxu0 0.0
    %2537 = vmatprep.subr.mxu0 0.0
    %2538 = vmatpush1.msra.mxu0 0.0
    %2539 = vmatprep.subr.mxu0 0.0
    %2540 = vmatpush1.msra.mxu0 0.0
    %2541 = vmatprep.subr.mxu0 0.0
    %2542 = vmatpush1.msra.mxu0 0.0
    %2543 = vmatprep.subr.mxu0 0.0
    %2544 = vmatpush1.msra.mxu0 0.0
    %2545 = vmatprep.subr.mxu0 0.0
    %2546 = vmatpush1.msra.mxu0 0.0
    %2547 = vmatprep.subr.mxu0 0.0
    %2548 = vmatpush1.msra.mxu0 0.0
    %2549 = vmatprep.subr.mxu0 0.0
    %2550 = vmatpush1.msra.mxu0 0.0
    %2551 = vmatprep.subr.mxu0 0.0
    %2552 = vmatpush1.msra.mxu0 0.0
    %2553 = vmatprep.mubr.f32.mxu0 0.0
    %2554 = vmatmul.mubr.f32.gmra.mrb[0].mxu0 %v2401
    %v2555 = vpop.f32.mrb[0].mxu0
    %v2556 = vadd.f32 %v2472, %v2555
    %v2557 = vpop.f32.mrb[0].mxu0
    %v2558 = vadd.f32 %v2476, %v2557
    %2559 = vdwg.mxu0
    %2560 = vmatprep.subr.mxu0 %v2405
    %2561 = vmatpush1.msra.mxu0 %v2404
    %2562 = vmatprep.subr.mxu0 %v2409
    %2563 = vmatpush1.msra.mxu0 %v2408
    %2564 = vmatprep.subr.mxu0 %v2413
    %2565 = vmatpush1.msra.mxu0 %v2412
    %2566 = vmatprep.subr.mxu0 %v2417
    %2567 = vmatpush1.msra.mxu0 %v2416
    %2568 = vmatprep.subr.mxu0 %v2421
    %2569 = vmatpush1.msra.mxu0 %v2420
    %2570 = vmatprep.subr.mxu0 %v2425
    %2571 = vmatpush1.msra.mxu0 %v2424
    %2572 = vmatprep.subr.mxu0 %v2429
    %2573 = vmatpush1.msra.mxu0 %v2428
    %2574 = vmatprep.subr.mxu0 %v2433
    %2575 = vmatpush1.msra.mxu0 %v2432
    %2576 = vmatprep.subr.mxu0 %v2437
    %2577 = vmatpush1.msra.mxu0 %v2436
    %2578 = vmatprep.subr.mxu0 %v2441
    %2579 = vmatpush1.msra.mxu0 %v2440
    %2580 = vmatprep.subr.mxu0 %v2445
    %2581 = vmatpush1.msra.mxu0 %v2444
    %2582 = vmatprep.subr.mxu0 %v2449
    %2583 = vmatpush1.msra.mxu0 %v2448
    %2584 = vmatprep.subr.mxu0 %v2453
    %2585 = vmatpush1.msra.mxu0 %v2452
    %2586 = vmatprep.subr.mxu0 %v2457
    %2587 = vmatpush1.msra.mxu0 %v2456
    %2588 = vmatprep.subr.mxu0 %v2461
    %2589 = vmatpush1.msra.mxu0 %v2460
    %2590 = vmatprep.subr.mxu0 %v2465
    %2591 = vmatpush1.msra.mxu0 %v2464
    %2592 = vmatprep.subr.mxu0 0.0
    %2593 = vmatpush1.msra.mxu0 0.0
    %2594 = vmatprep.subr.mxu0 0.0
    %2595 = vmatpush1.msra.mxu0 0.0
    %2596 = vmatprep.subr.mxu0 0.0
    %2597 = vmatpush1.msra.mxu0 0.0
    %2598 = vmatprep.subr.mxu0 0.0
    %2599 = vmatpush1.msra.mxu0 0.0
    %2600 = vmatprep.subr.mxu0 0.0
    %2601 = vmatpush1.msra.mxu0 0.0
    %2602 = vmatprep.subr.mxu0 0.0
    %2603 = vmatpush1.msra.mxu0 0.0
    %2604 = vmatprep.subr.mxu0 0.0
    %2605 = vmatpush1.msra.mxu0 0.0
    %2606 = vmatprep.subr.mxu0 0.0
    %2607 = vmatpush1.msra.mxu0 0.0
    %2608 = vmatprep.subr.mxu0 0.0
    %2609 = vmatpush1.msra.mxu0 0.0
    %2610 = vmatprep.subr.mxu0 0.0
    %2611 = vmatpush1.msra.mxu0 0.0
    %2612 = vmatprep.subr.mxu0 0.0
    %2613 = vmatpush1.msra.mxu0 0.0
    %2614 = vmatprep.subr.mxu0 0.0
    %2615 = vmatpush1.msra.mxu0 0.0
    %2616 = vmatprep.subr.mxu0 0.0
    %2617 = vmatpush1.msra.mxu0 0.0
    %2618 = vmatprep.subr.mxu0 0.0
    %2619 = vmatpush1.msra.mxu0 0.0
    %2620 = vmatprep.subr.mxu0 0.0
    %2621 = vmatpush1.msra.mxu0 0.0
    %2622 = vmatprep.subr.mxu0 0.0
    %2623 = vmatpush1.msra.mxu0 0.0
    %2624 = vmatprep.mubr.f32.mxu0 0.0
    %2625 = vmatmul.mubr.f32.gmra.mrb[0].mxu0 %v2401
    %v2626 = vpop.f32.mrb[0].mxu0
    %v2627 = vadd.f32 %v2480, %v2626
    %v2628 = vpop.f32.mrb[0].mxu0
    %v2629 = vadd.f32 %v2484, %v2628
    %2630 = vdwg.mxu0
    %2631 = vst [vmem:[#allocation3] sm:$0xff] %v2556
    %2632 = vst [vmem:[#allocation3 + $0x8] sm:$0xff] %v2558
    %2633 = vst [vmem:[#allocation3 + $0x10] sm:$0xff] %v2627
    %2634 = vst [vmem:[#allocation3 + $0x18] sm:$0xff] %v2629
    %v2635 = vld [vmem:[#allocation3] ss:$8 sm:$0xf]
    %v2636 = vld [vmem:[%s351] ss:$8 sm:$0xf]
    %v2638 = vlaneseq
    %v2639 = vshrl.u32 %v2638, 7
    %v2640 = vsub.s32 0, %v2639
    %v2641 = vrot.slane %v2635, %v2640
    %v2642 = vlaneseq
    %v2643 = vshrl.u32 %v2642, 7
    %v2644 = vsub.s32 2, %v2643
    %v2645 = vrot.slane %v2635, %v2644
    %v2646 = vlaneseq
    %v2647 = vshrl.u32 %v2646, 7
    %v2648 = vsub.s32 3, %v2647
    %v2649 = vrot.slane %v2635, %v2648
    %v2654 = vlaneseq
    %v2655 = vshrl.u32 %v2654, 7
    %v2656 = vsub.s32 0, %v2655
    %v2657 = vrot.slane %v2636, %v2656
    %v2658 = vlaneseq
    %v2659 = vshrl.u32 %v2658, 7
    %v2660 = vsub.s32 2, %v2659
    %v2661 = vrot.slane %v2636, %v2660
    %v2662 = vlaneseq
    %v2663 = vshrl.u32 %v2662, 7
    %v2664 = vsub.s32 3, %v2663
    %v2665 = vrot.slane %v2636, %v2664
    %v2669 = vsel %vm140, %v2641, %v2657
    %v2670 = vsel %vm142, %v2645, %v2661
    %v2671 = vsel %vm143, %v2649, %v2665
    %v2672 = vxor.u32 %v2669, 2147483648
    %v2673 = vmul.f32 %v2672, 1.442695
    %v2674 = vpow.pop %v2673
    %v2675 = vadd.f32 %v2674, 1.0
    %v2676 = vrcp.pop %v2675
    %v2677 = vmul.f32 1.0, %v2676
    %v2678 = vtanh.pop %v2670
    %v2679 = vxor.u32 %v2671, 2147483648
    %v2680 = vmul.f32 %v2679, 1.442695
    %v2681 = vpow.pop %v2680
    %v2682 = vadd.f32 %v2681, 1.0
    %v2683 = vrcp.pop %v2682
    %v2684 = vmul.f32 1.0, %v2683
    %v2685 = vmul.f32 %v2677, %v2678
    %v2686 = vtanh.pop %v2685
    %v2687 = vmul.f32 %v2684, %v2686
    %2688 = vst.msk [vmem:[#allocation5] sm:$0x1] %vm57, %v2687
    %2689 = vst.msk [vmem:[#allocation5 + $0x7] sm:$0x1] %vm405, %v2687
    %v2690 = vld [vmem:[%s407] ss:$8 sm:$0xf]
    %v2691 = vld [vmem:[%s409] ss:$8 sm:$0xf]
    %v2693 = vlaneseq
    %v2694 = vshrl.u32 %v2693, 7
    %v2695 = vsub.s32 0, %v2694
    %v2696 = vrot.slane %v2690, %v2695
    %v2697 = vlaneseq
    %v2698 = vshrl.u32 %v2697, 7
    %v2699 = vsub.s32 1, %v2698
    %v2700 = vrot.slane %v2690, %v2699
    %v2701 = vlaneseq
    %v2702 = vshrl.u32 %v2701, 7
    %v2703 = vsub.s32 2, %v2702
    %v2704 = vrot.slane %v2690, %v2703
    %v2705 = vlaneseq
    %v2706 = vshrl.u32 %v2705, 7
    %v2707 = vsub.s32 3, %v2706
    %v2708 = vrot.slane %v2690, %v2707
    %v2714 = vlaneseq
    %v2715 = vshrl.u32 %v2714, 7
    %v2716 = vsub.s32 0, %v2715
    %v2717 = vrot.slane %v2691, %v2716
    %v2718 = vlaneseq
    %v2719 = vshrl.u32 %v2718, 7
    %v2720 = vsub.s32 1, %v2719
    %v2721 = vrot.slane %v2691, %v2720
    %v2722 = vlaneseq
    %v2723 = vshrl.u32 %v2722, 7
    %v2724 = vsub.s32 2, %v2723
    %v2725 = vrot.slane %v2691, %v2724
    %v2726 = vlaneseq
    %v2727 = vshrl.u32 %v2726, 7
    %v2728 = vsub.s32 3, %v2727
    %v2729 = vrot.slane %v2691, %v2728
    %v2734 = vsel %vm140, %v2696, %v2717
    %v2735 = vsel %vm141, %v2700, %v2721
    %v2736 = vsel %vm142, %v2704, %v2725
    %v2737 = vsel %vm143, %v2708, %v2729
    %v2738 = vld [vmem:[#allocation11 + $0x520] sm:$0xff]
    %v2739 = vld [vmem:[#allocation11 + $0x528] sm:$0xff]
    %v2740 = vld [vmem:[#allocation11 + $0x530] sm:$0xff]
    %v2741 = vld [vmem:[#allocation11 + $0x538] sm:$0xff]
    %v2742 = vld [vmem:[#allocation11 + $0x540] sm:$0xff]
    %v2743 = vld [vmem:[#allocation11 + $0x548] sm:$0xff]
    %v2744 = vld [vmem:[#allocation11 + $0x550] sm:$0xff]
    %v2745 = vld [vmem:[#allocation11 + $0x558] sm:$0xff]
    %v2746 = vld [vmem:[#allocation11 + $0x560] sm:$0xff]
    %v2747 = vld [vmem:[#allocation11 + $0x568] sm:$0xff]
    %v2748 = vld [vmem:[#allocation11 + $0x570] sm:$0xff]
    %v2749 = vld [vmem:[#allocation11 + $0x578] sm:$0xff]
    %v2750 = vld [vmem:[#allocation11 + $0x580] sm:$0xff]
    %v2751 = vld [vmem:[#allocation11 + $0x588] sm:$0xff]
    %v2752 = vld [vmem:[#allocation11 + $0x590] sm:$0xff]
    %v2753 = vld [vmem:[#allocation11 + $0x598] sm:$0xff]
    %v2754 = vld [vmem:[#allocation11 + $0x5a0] sm:$0xff]
    %v2755 = vld [vmem:[#allocation11 + $0x5a8] sm:$0xff]
    %v2756 = vld [vmem:[#allocation11 + $0x5b0] sm:$0xff]
    %v2757 = vld [vmem:[#allocation11 + $0x5b8] sm:$0xff]
    %v2758 = vld [vmem:[#allocation11 + $0x5c0] sm:$0xff]
    %v2759 = vld [vmem:[#allocation11 + $0x5c8] sm:$0xff]
    %v2760 = vld [vmem:[#allocation11 + $0x5d0] sm:$0xff]
    %v2761 = vld [vmem:[#allocation11 + $0x5d8] sm:$0xff]
    %v2762 = vld [vmem:[#allocation11 + $0x5e0] sm:$0xff]
    %v2763 = vld [vmem:[#allocation11 + $0x5e8] sm:$0xff]
    %v2764 = vld [vmem:[#allocation11 + $0x5f0] sm:$0xff]
    %v2765 = vld [vmem:[#allocation11 + $0x5f8] sm:$0xff]
    %v2766 = vld [vmem:[#allocation11 + $0x600] sm:$0xff]
    %v2767 = vld [vmem:[#allocation11 + $0x608] sm:$0xff]
    %v2768 = vld [vmem:[#allocation11 + $0x610] sm:$0xff]
    %v2769 = vld [vmem:[#allocation11 + $0x618] sm:$0xff]
    %v2770 = vld [vmem:[#allocation11 + $0x620] sm:$0xff]
    %v2771 = vld [vmem:[#allocation11 + $0x628] sm:$0xff]
    %v2772 = vld [vmem:[#allocation11 + $0x630] sm:$0xff]
    %v2773 = vld [vmem:[#allocation11 + $0x638] sm:$0xff]
    %v2774 = vld [vmem:[#allocation11 + $0x640] sm:$0xff]
    %v2775 = vld [vmem:[#allocation11 + $0x648] sm:$0xff]
    %v2776 = vld [vmem:[#allocation11 + $0x650] sm:$0xff]
    %v2777 = vld [vmem:[#allocation11 + $0x658] sm:$0xff]
    %v2778 = vld [vmem:[#allocation11 + $0x660] sm:$0xff]
    %v2779 = vld [vmem:[#allocation11 + $0x668] sm:$0xff]
    %v2780 = vld [vmem:[#allocation11 + $0x670] sm:$0xff]
    %v2781 = vld [vmem:[#allocation11 + $0x678] sm:$0xff]
    %v2782 = vld [vmem:[#allocation11 + $0x680] sm:$0xff]
    %v2783 = vld [vmem:[#allocation11 + $0x688] sm:$0xff]
    %v2784 = vld [vmem:[#allocation11 + $0x690] sm:$0xff]
    %v2785 = vld [vmem:[#allocation11 + $0x698] sm:$0xff]
    %v2786 = vld [vmem:[#allocation11 + $0x6a0] sm:$0xff]
    %v2787 = vld [vmem:[#allocation11 + $0x6a8] sm:$0xff]
    %v2788 = vld [vmem:[#allocation11 + $0x6b0] sm:$0xff]
    %v2789 = vld [vmem:[#allocation11 + $0x6b8] sm:$0xff]
    %v2790 = vld [vmem:[#allocation11 + $0x6c0] sm:$0xff]
    %v2791 = vld [vmem:[#allocation11 + $0x6c8] sm:$0xff]
    %v2792 = vld [vmem:[#allocation11 + $0x6d0] sm:$0xff]
    %v2793 = vld [vmem:[#allocation11 + $0x6d8] sm:$0xff]
    %v2794 = vld [vmem:[#allocation11 + $0x6e0] sm:$0xff]
    %v2795 = vld [vmem:[#allocation11 + $0x6e8] sm:$0xff]
    %v2796 = vld [vmem:[#allocation11 + $0x6f0] sm:$0xff]
    %v2797 = vld [vmem:[#allocation11 + $0x6f8] sm:$0xff]
    %v2798 = vld [vmem:[#allocation11 + $0x700] sm:$0xff]
    %v2799 = vld [vmem:[#allocation11 + $0x708] sm:$0xff]
    %v2800 = vld [vmem:[#allocation11 + $0x710] sm:$0xff]
    %v2801 = vld [vmem:[#allocation11 + $0x718] sm:$0xff]
    %2802 = vmatprep.subr.mxu0 %v2739
    %2803 = vmatpush1.msra.mxu0 %v2738
    %2804 = vmatprep.subr.mxu0 %v2743
    %2805 = vmatpush1.msra.mxu0 %v2742
    %2806 = vmatprep.subr.mxu0 %v2747
    %2807 = vmatpush1.msra.mxu0 %v2746
    %2808 = vmatprep.subr.mxu0 %v2751
    %2809 = vmatpush1.msra.mxu0 %v2750
    %2810 = vmatprep.subr.mxu0 %v2755
    %2811 = vmatpush1.msra.mxu0 %v2754
    %2812 = vmatprep.subr.mxu0 %v2759
    %2813 = vmatpush1.msra.mxu0 %v2758
    %2814 = vmatprep.subr.mxu0 %v2763
    %2815 = vmatpush1.msra.mxu0 %v2762
    %2816 = vmatprep.subr.mxu0 %v2767
    %2817 = vmatpush1.msra.mxu0 %v2766
    %2818 = vmatprep.subr.mxu0 %v2771
    %2819 = vmatpush1.msra.mxu0 %v2770
    %2820 = vmatprep.subr.mxu0 %v2775
    %2821 = vmatpush1.msra.mxu0 %v2774
    %2822 = vmatprep.subr.mxu0 %v2779
    %2823 = vmatpush1.msra.mxu0 %v2778
    %2824 = vmatprep.subr.mxu0 %v2783
    %2825 = vmatpush1.msra.mxu0 %v2782
    %2826 = vmatprep.subr.mxu0 %v2787
    %2827 = vmatpush1.msra.mxu0 %v2786
    %2828 = vmatprep.subr.mxu0 %v2791
    %2829 = vmatpush1.msra.mxu0 %v2790
    %2830 = vmatprep.subr.mxu0 %v2795
    %2831 = vmatpush1.msra.mxu0 %v2794
    %2832 = vmatprep.subr.mxu0 %v2799
    %2833 = vmatpush1.msra.mxu0 %v2798
    %2834 = vmatprep.subr.mxu0 0.0
    %2835 = vmatpush1.msra.mxu0 0.0
    %2836 = vmatprep.subr.mxu0 0.0
    %2837 = vmatpush1.msra.mxu0 0.0
    %2838 = vmatprep.subr.mxu0 0.0
    %2839 = vmatpush1.msra.mxu0 0.0
    %2840 = vmatprep.subr.mxu0 0.0
    %2841 = vmatpush1.msra.mxu0 0.0
    %2842 = vmatprep.subr.mxu0 0.0
    %2843 = vmatpush1.msra.mxu0 0.0
    %2844 = vmatprep.subr.mxu0 0.0
    %2845 = vmatpush1.msra.mxu0 0.0
    %2846 = vmatprep.subr.mxu0 0.0
    %2847 = vmatpush1.msra.mxu0 0.0
    %2848 = vmatprep.subr.mxu0 0.0
    %2849 = vmatpush1.msra.mxu0 0.0
    %2850 = vmatprep.subr.mxu0 0.0
    %2851 = vmatpush1.msra.mxu0 0.0
    %2852 = vmatprep.subr.mxu0 0.0
    %2853 = vmatpush1.msra.mxu0 0.0
    %2854 = vmatprep.subr.mxu0 0.0
    %2855 = vmatpush1.msra.mxu0 0.0
    %2856 = vmatprep.subr.mxu0 0.0
    %2857 = vmatpush1.msra.mxu0 0.0
    %2858 = vmatprep.subr.mxu0 0.0
    %2859 = vmatpush1.msra.mxu0 0.0
    %2860 = vmatprep.subr.mxu0 0.0
    %2861 = vmatpush1.msra.mxu0 0.0
    %2862 = vmatprep.subr.mxu0 0.0
    %2863 = vmatpush1.msra.mxu0 0.0
    %2864 = vmatprep.subr.mxu0 0.0
    %2865 = vmatpush1.msra.mxu0 0.0
    %2866 = vmatprep.mubr.f32.mxu0 0.0
    %2867 = vmatmul.mubr.f32.gmra.mrb[0].mxu0 %v2687
    %v2868 = vpop.f32.mrb[0].mxu0
    %v2869 = vadd.f32 0.0, %v2868
    %v2870 = vpop.f32.mrb[0].mxu0
    %v2871 = vadd.f32 0.0, %v2870
    %2872 = vdwg.mxu0
    %2873 = vmatprep.subr.mxu0 %v2741
    %2874 = vmatpush1.msra.mxu0 %v2740
    %2875 = vmatprep.subr.mxu0 %v2745
    %2876 = vmatpush1.msra.mxu0 %v2744
    %2877 = vmatprep.subr.mxu0 %v2749
    %2878 = vmatpush1.msra.mxu0 %v2748
    %2879 = vmatprep.subr.mxu0 %v2753
    %2880 = vmatpush1.msra.mxu0 %v2752
    %2881 = vmatprep.subr.mxu0 %v2757
    %2882 = vmatpush1.msra.mxu0 %v2756
    %2883 = vmatprep.subr.mxu0 %v2761
    %2884 = vmatpush1.msra.mxu0 %v2760
    %2885 = vmatprep.subr.mxu0 %v2765
    %2886 = vmatpush1.msra.mxu0 %v2764
    %2887 = vmatprep.subr.mxu0 %v2769
    %2888 = vmatpush1.msra.mxu0 %v2768
    %2889 = vmatprep.subr.mxu0 %v2773
    %2890 = vmatpush1.msra.mxu0 %v2772
    %2891 = vmatprep.subr.mxu0 %v2777
    %2892 = vmatpush1.msra.mxu0 %v2776
    %2893 = vmatprep.subr.mxu0 %v2781
    %2894 = vmatpush1.msra.mxu0 %v2780
    %2895 = vmatprep.subr.mxu0 %v2785
    %2896 = vmatpush1.msra.mxu0 %v2784
    %2897 = vmatprep.subr.mxu0 %v2789
    %2898 = vmatpush1.msra.mxu0 %v2788
    %2899 = vmatprep.subr.mxu0 %v2793
    %2900 = vmatpush1.msra.mxu0 %v2792
    %2901 = vmatprep.subr.mxu0 %v2797
    %2902 = vmatpush1.msra.mxu0 %v2796
    %2903 = vmatprep.subr.mxu0 %v2801
    %2904 = vmatpush1.msra.mxu0 %v2800
    %2905 = vmatprep.subr.mxu0 0.0
    %2906 = vmatpush1.msra.mxu0 0.0
    %2907 = vmatprep.subr.mxu0 0.0
    %2908 = vmatpush1.msra.mxu0 0.0
    %2909 = vmatprep.subr.mxu0 0.0
    %2910 = vmatpush1.msra.mxu0 0.0
    %2911 = vmatprep.subr.mxu0 0.0
    %2912 = vmatpush1.msra.mxu0 0.0
    %2913 = vmatprep.subr.mxu0 0.0
    %2914 = vmatpush1.msra.mxu0 0.0
    %2915 = vmatprep.subr.mxu0 0.0
    %2916 = vmatpush1.msra.mxu0 0.0
    %2917 = vmatprep.subr.mxu0 0.0
    %2918 = vmatpush1.msra.mxu0 0.0
    %2919 = vmatprep.subr.mxu0 0.0
    %2920 = vmatpush1.msra.mxu0 0.0
    %2921 = vmatprep.subr.mxu0 0.0
    %2922 = vmatpush1.msra.mxu0 0.0
    %2923 = vmatprep.subr.mxu0 0.0
    %2924 = vmatpush1.msra.mxu0 0.0
    %2925 = vmatprep.subr.mxu0 0.0
    %2926 = vmatpush1.msra.mxu0 0.0
    %2927 = vmatprep.subr.mxu0 0.0
    %2928 = vmatpush1.msra.mxu0 0.0
    %2929 = vmatprep.subr.mxu0 0.0
    %2930 = vmatpush1.msra.mxu0 0.0
    %2931 = vmatprep.subr.mxu0 0.0
    %2932 = vmatpush1.msra.mxu0 0.0
    %2933 = vmatprep.subr.mxu0 0.0
    %2934 = vmatpush1.msra.mxu0 0.0
    %2935 = vmatprep.subr.mxu0 0.0
    %2936 = vmatpush1.msra.mxu0 0.0
    %2937 = vmatprep.mubr.f32.mxu0 0.0
    %2938 = vmatmul.mubr.f32.gmra.mrb[0].mxu0 %v2687
    %v2939 = vpop.f32.mrb[0].mxu0
    %v2940 = vadd.f32 0.0, %v2939
    %v2941 = vpop.f32.mrb[0].mxu0
    %v2942 = vadd.f32 0.0, %v2941
    %2943 = vdwg.mxu0
    %v2944 = vadd.f32 %v2734, %v2869
    %v2945 = vadd.f32 %v2735, %v2871
    %v2946 = vadd.f32 %v2736, %v2940
    %v2947 = vadd.f32 %v2737, %v2942
    %v2948 = vxor.u32 %v2944, 2147483648
    %v2949 = vmul.f32 %v2948, 1.442695
    %v2950 = vpow.pop %v2949
    %v2951 = vadd.f32 %v2950, 1.0
    %v2952 = vrcp.pop %v2951
    %v2953 = vmul.f32 1.0, %v2952
    %v2954 = vxor.u32 %v2945, 2147483648
    %v2955 = vmul.f32 %v2954, 1.442695
    %v2956 = vpow.pop %v2955
    %v2957 = vadd.f32 %v2956, 1.0
    %v2958 = vrcp.pop %v2957
    %v2959 = vmul.f32 1.0, %v2958
    %v2960 = vtanh.pop %v2946
    %v2961 = vxor.u32 %v2947, 2147483648
    %v2962 = vmul.f32 %v2961, 1.442695
    %v2963 = vpow.pop %v2962
    %v2964 = vadd.f32 %v2963, 1.0
    %v2965 = vrcp.pop %v2964
    %v2966 = vmul.f32 1.0, %v2965
    %v2967 = vmul.f32 %v2959, %v2685
    %v2968 = vmul.f32 %v2953, %v2960
    %v2969 = vadd.f32 %v2967, %v2968
    %v2970 = vtanh.pop %v2969
    %v2971 = vmul.f32 %v2966, %v2970
    %2972 = vst.msk [vmem:[#allocation5 + $0x1] sm:$0x1] %vm57, %v2971
    %2973 = vst.msk [vmem:[#allocation5 + $0x6] sm:$0x1] %vm405, %v2971
    %v2974 = vld [vmem:[%s693] ss:$8 sm:$0xf]
    %v2975 = vld [vmem:[%s695] ss:$8 sm:$0xf]
    %v2977 = vlaneseq
    %v2978 = vshrl.u32 %v2977, 7
    %v2979 = vsub.s32 0, %v2978
    %v2980 = vrot.slane %v2974, %v2979
    %v2981 = vlaneseq
    %v2982 = vshrl.u32 %v2981, 7
    %v2983 = vsub.s32 1, %v2982
    %v2984 = vrot.slane %v2974, %v2983
    %v2985 = vlaneseq
    %v2986 = vshrl.u32 %v2985, 7
    %v2987 = vsub.s32 2, %v2986
    %v2988 = vrot.slane %v2974, %v2987
    %v2989 = vlaneseq
    %v2990 = vshrl.u32 %v2989, 7
    %v2991 = vsub.s32 3, %v2990
    %v2992 = vrot.slane %v2974, %v2991
    %v2998 = vlaneseq
    %v2999 = vshrl.u32 %v2998, 7
    %v3000 = vsub.s32 0, %v2999
    %v3001 = vrot.slane %v2975, %v3000
    %v3002 = vlaneseq
    %v3003 = vshrl.u32 %v3002, 7
    %v3004 = vsub.s32 1, %v3003
    %v3005 = vrot.slane %v2975, %v3004
    %v3006 = vlaneseq
    %v3007 = vshrl.u32 %v3006, 7
    %v3008 = vsub.s32 2, %v3007
    %v3009 = vrot.slane %v2975, %v3008
    %v3010 = vlaneseq
    %v3011 = vshrl.u32 %v3010, 7
    %v3012 = vsub.s32 3, %v3011
    %v3013 = vrot.slane %v2975, %v3012
    %v3018 = vsel %vm140, %v2980, %v3001
    %v3019 = vsel %vm141, %v2984, %v3005
    %v3020 = vsel %vm142, %v2988, %v3009
    %v3021 = vsel %vm143, %v2992, %v3013
    %v3022 = vld [vmem:[#allocation11 + $0x520] sm:$0xff]
    %v3023 = vld [vmem:[#allocation11 + $0x528] sm:$0xff]
    %v3024 = vld [vmem:[#allocation11 + $0x530] sm:$0xff]
    %v3025 = vld [vmem:[#allocation11 + $0x538] sm:$0xff]
    %v3026 = vld [vmem:[#allocation11 + $0x540] sm:$0xff]
    %v3027 = vld [vmem:[#allocation11 + $0x548] sm:$0xff]
    %v3028 = vld [vmem:[#allocation11 + $0x550] sm:$0xff]
    %v3029 = vld [vmem:[#allocation11 + $0x558] sm:$0xff]
    %v3030 = vld [vmem:[#allocation11 + $0x560] sm:$0xff]
    %v3031 = vld [vmem:[#allocation11 + $0x568] sm:$0xff]
    %v3032 = vld [vmem:[#allocation11 + $0x570] sm:$0xff]
    %v3033 = vld [vmem:[#allocation11 + $0x578] sm:$0xff]
    %v3034 = vld [vmem:[#allocation11 + $0x580] sm:$0xff]
    %v3035 = vld [vmem:[#allocation11 + $0x588] sm:$0xff]
    %v3036 = vld [vmem:[#allocation11 + $0x590] sm:$0xff]
    %v3037 = vld [vmem:[#allocation11 + $0x598] sm:$0xff]
    %v3038 = vld [vmem:[#allocation11 + $0x5a0] sm:$0xff]
    %v3039 = vld [vmem:[#allocation11 + $0x5a8] sm:$0xff]
    %v3040 = vld [vmem:[#allocation11 + $0x5b0] sm:$0xff]
    %v3041 = vld [vmem:[#allocation11 + $0x5b8] sm:$0xff]
    %v3042 = vld [vmem:[#allocation11 + $0x5c0] sm:$0xff]
    %v3043 = vld [vmem:[#allocation11 + $0x5c8] sm:$0xff]
    %v3044 = vld [vmem:[#allocation11 + $0x5d0] sm:$0xff]
    %v3045 = vld [vmem:[#allocation11 + $0x5d8] sm:$0xff]
    %v3046 = vld [vmem:[#allocation11 + $0x5e0] sm:$0xff]
    %v3047 = vld [vmem:[#allocation11 + $0x5e8] sm:$0xff]
    %v3048 = vld [vmem:[#allocation11 + $0x5f0] sm:$0xff]
    %v3049 = vld [vmem:[#allocation11 + $0x5f8] sm:$0xff]
    %v3050 = vld [vmem:[#allocation11 + $0x600] sm:$0xff]
    %v3051 = vld [vmem:[#allocation11 + $0x608] sm:$0xff]
    %v3052 = vld [vmem:[#allocation11 + $0x610] sm:$0xff]
    %v3053 = vld [vmem:[#allocation11 + $0x618] sm:$0xff]
    %v3054 = vld [vmem:[#allocation11 + $0x620] sm:$0xff]
    %v3055 = vld [vmem:[#allocation11 + $0x628] sm:$0xff]
    %v3056 = vld [vmem:[#allocation11 + $0x630] sm:$0xff]
    %v3057 = vld [vmem:[#allocation11 + $0x638] sm:$0xff]
    %v3058 = vld [vmem:[#allocation11 + $0x640] sm:$0xff]
    %v3059 = vld [vmem:[#allocation11 + $0x648] sm:$0xff]
    %v3060 = vld [vmem:[#allocation11 + $0x650] sm:$0xff]
    %v3061 = vld [vmem:[#allocation11 + $0x658] sm:$0xff]
    %v3062 = vld [vmem:[#allocation11 + $0x660] sm:$0xff]
    %v3063 = vld [vmem:[#allocation11 + $0x668] sm:$0xff]
    %v3064 = vld [vmem:[#allocation11 + $0x670] sm:$0xff]
    %v3065 = vld [vmem:[#allocation11 + $0x678] sm:$0xff]
    %v3066 = vld [vmem:[#allocation11 + $0x680] sm:$0xff]
    %v3067 = vld [vmem:[#allocation11 + $0x688] sm:$0xff]
    %v3068 = vld [vmem:[#allocation11 + $0x690] sm:$0xff]
    %v3069 = vld [vmem:[#allocation11 + $0x698] sm:$0xff]
    %v3070 = vld [vmem:[#allocation11 + $0x6a0] sm:$0xff]
    %v3071 = vld [vmem:[#allocation11 + $0x6a8] sm:$0xff]
    %v3072 = vld [vmem:[#allocation11 + $0x6b0] sm:$0xff]
    %v3073 = vld [vmem:[#allocation11 + $0x6b8] sm:$0xff]
    %v3074 = vld [vmem:[#allocation11 + $0x6c0] sm:$0xff]
    %v3075 = vld [vmem:[#allocation11 + $0x6c8] sm:$0xff]
    %v3076 = vld [vmem:[#allocation11 + $0x6d0] sm:$0xff]
    %v3077 = vld [vmem:[#allocation11 + $0x6d8] sm:$0xff]
    %v3078 = vld [vmem:[#allocation11 + $0x6e0] sm:$0xff]
    %v3079 = vld [vmem:[#allocation11 + $0x6e8] sm:$0xff]
    %v3080 = vld [vmem:[#allocation11 + $0x6f0] sm:$0xff]
    %v3081 = vld [vmem:[#allocation11 + $0x6f8] sm:$0xff]
    %v3082 = vld [vmem:[#allocation11 + $0x700] sm:$0xff]
    %v3083 = vld [vmem:[#allocation11 + $0x708] sm:$0xff]
    %v3084 = vld [vmem:[#allocation11 + $0x710] sm:$0xff]
    %v3085 = vld [vmem:[#allocation11 + $0x718] sm:$0xff]
    %3086 = vmatprep.subr.mxu0 %v3023
    %3087 = vmatpush1.msra.mxu0 %v3022
    %3088 = vmatprep.subr.mxu0 %v3027
    %3089 = vmatpush1.msra.mxu0 %v3026
    %3090 = vmatprep.subr.mxu0 %v3031
    %3091 = vmatpush1.msra.mxu0 %v3030
    %3092 = vmatprep.subr.mxu0 %v3035
    %3093 = vmatpush1.msra.mxu0 %v3034
    %3094 = vmatprep.subr.mxu0 %v3039
    %3095 = vmatpush1.msra.mxu0 %v3038
    %3096 = vmatprep.subr.mxu0 %v3043
    %3097 = vmatpush1.msra.mxu0 %v3042
    %3098 = vmatprep.subr.mxu0 %v3047
    %3099 = vmatpush1.msra.mxu0 %v3046
    %3100 = vmatprep.subr.mxu0 %v3051
    %3101 = vmatpush1.msra.mxu0 %v3050
    %3102 = vmatprep.subr.mxu0 %v3055
    %3103 = vmatpush1.msra.mxu0 %v3054
    %3104 = vmatprep.subr.mxu0 %v3059
    %3105 = vmatpush1.msra.mxu0 %v3058
    %3106 = vmatprep.subr.mxu0 %v3063
    %3107 = vmatpush1.msra.mxu0 %v3062
    %3108 = vmatprep.subr.mxu0 %v3067
    %3109 = vmatpush1.msra.mxu0 %v3066
    %3110 = vmatprep.subr.mxu0 %v3071
    %3111 = vmatpush1.msra.mxu0 %v3070
    %3112 = vmatprep.subr.mxu0 %v3075
    %3113 = vmatpush1.msra.mxu0 %v3074
    %3114 = vmatprep.subr.mxu0 %v3079
    %3115 = vmatpush1.msra.mxu0 %v3078
    %3116 = vmatprep.subr.mxu0 %v3083
    %3117 = vmatpush1.msra.mxu0 %v3082
    %3118 = vmatprep.subr.mxu0 0.0
    %3119 = vmatpush1.msra.mxu0 0.0
    %3120 = vmatprep.subr.mxu0 0.0
    %3121 = vmatpush1.msra.mxu0 0.0
    %3122 = vmatprep.subr.mxu0 0.0
    %3123 = vmatpush1.msra.mxu0 0.0
    %3124 = vmatprep.subr.mxu0 0.0
    %3125 = vmatpush1.msra.mxu0 0.0
    %3126 = vmatprep.subr.mxu0 0.0
    %3127 = vmatpush1.msra.mxu0 0.0
    %3128 = vmatprep.subr.mxu0 0.0
    %3129 = vmatpush1.msra.mxu0 0.0
    %3130 = vmatprep.subr.mxu0 0.0
    %3131 = vmatpush1.msra.mxu0 0.0
    %3132 = vmatprep.subr.mxu0 0.0
    %3133 = vmatpush1.msra.mxu0 0.0
    %3134 = vmatprep.subr.mxu0 0.0
    %3135 = vmatpush1.msra.mxu0 0.0
    %3136 = vmatprep.subr.mxu0 0.0
    %3137 = vmatpush1.msra.mxu0 0.0
    %3138 = vmatprep.subr.mxu0 0.0
    %3139 = vmatpush1.msra.mxu0 0.0
    %3140 = vmatprep.subr.mxu0 0.0
    %3141 = vmatpush1.msra.mxu0 0.0
    %3142 = vmatprep.subr.mxu0 0.0
    %3143 = vmatpush1.msra.mxu0 0.0
    %3144 = vmatprep.subr.mxu0 0.0
    %3145 = vmatpush1.msra.mxu0 0.0
    %3146 = vmatprep.subr.mxu0 0.0
    %3147 = vmatpush1.msra.mxu0 0.0
    %3148 = vmatprep.subr.mxu0 0.0
    %3149 = vmatpush1.msra.mxu0 0.0
    %3150 = vmatprep.mubr.f32.mxu0 0.0
    %3151 = vmatmul.mubr.f32.gmra.mrb[0].mxu0 %v2971
    %v3152 = vpop.f32.mrb[0].mxu0
    %v3153 = vadd.f32 0.0, %v3152
    %v3154 = vpop.f32.mrb[0].mxu0
    %v3155 = vadd.f32 0.0, %v3154
    %3156 = vdwg.mxu0
    %3157 = vmatprep.subr.mxu0 %v3025
    %3158 = vmatpush1.msra.mxu0 %v3024
    %3159 = vmatprep.subr.mxu0 %v3029
    %3160 = vmatpush1.msra.mxu0 %v3028
    %3161 = vmatprep.subr.mxu0 %v3033
    %3162 = vmatpush1.msra.mxu0 %v3032
    %3163 = vmatprep.subr.mxu0 %v3037
    %3164 = vmatpush1.msra.mxu0 %v3036
    %3165 = vmatprep.subr.mxu0 %v3041
    %3166 = vmatpush1.msra.mxu0 %v3040
    %3167 = vmatprep.subr.mxu0 %v3045
    %3168 = vmatpush1.msra.mxu0 %v3044
    %3169 = vmatprep.subr.mxu0 %v3049
    %3170 = vmatpush1.msra.mxu0 %v3048
    %3171 = vmatprep.subr.mxu0 %v3053
    %3172 = vmatpush1.msra.mxu0 %v3052
    %3173 = vmatprep.subr.mxu0 %v3057
    %3174 = vmatpush1.msra.mxu0 %v3056
    %3175 = vmatprep.subr.mxu0 %v3061
    %3176 = vmatpush1.msra.mxu0 %v3060
    %3177 = vmatprep.subr.mxu0 %v3065
    %3178 = vmatpush1.msra.mxu0 %v3064
    %3179 = vmatprep.subr.mxu0 %v3069
    %3180 = vmatpush1.msra.mxu0 %v3068
    %3181 = vmatprep.subr.mxu0 %v3073
    %3182 = vmatpush1.msra.mxu0 %v3072
    %3183 = vmatprep.subr.mxu0 %v3077
    %3184 = vmatpush1.msra.mxu0 %v3076
    %3185 = vmatprep.subr.mxu0 %v3081
    %3186 = vmatpush1.msra.mxu0 %v3080
    %3187 = vmatprep.subr.mxu0 %v3085
    %3188 = vmatpush1.msra.mxu0 %v3084
    %3189 = vmatprep.subr.mxu0 0.0
    %3190 = vmatpush1.msra.mxu0 0.0
    %3191 = vmatprep.subr.mxu0 0.0
    %3192 = vmatpush1.msra.mxu0 0.0
    %3193 = vmatprep.subr.mxu0 0.0
    %3194 = vmatpush1.msra.mxu0 0.0
    %3195 = vmatprep.subr.mxu0 0.0
    %3196 = vmatpush1.msra.mxu0 0.0
    %3197 = vmatprep.subr.mxu0 0.0
    %3198 = vmatpush1.msra.mxu0 0.0
    %3199 = vmatprep.subr.mxu0 0.0
    %3200 = vmatpush1.msra.mxu0 0.0
    %3201 = vmatprep.subr.mxu0 0.0
    %3202 = vmatpush1.msra.mxu0 0.0
    %3203 = vmatprep.subr.mxu0 0.0
    %3204 = vmatpush1.msra.mxu0 0.0
    %3205 = vmatprep.subr.mxu0 0.0
    %3206 = vmatpush1.msra.mxu0 0.0
    %3207 = vmatprep.subr.mxu0 0.0
    %3208 = vmatpush1.msra.mxu0 0.0
    %3209 = vmatprep.subr.mxu0 0.0
    %3210 = vmatpush1.msra.mxu0 0.0
    %3211 = vmatprep.subr.mxu0 0.0
    %3212 = vmatpush1.msra.mxu0 0.0
    %3213 = vmatprep.subr.mxu0 0.0
    %3214 = vmatpush1.msra.mxu0 0.0
    %3215 = vmatprep.subr.mxu0 0.0
    %3216 = vmatpush1.msra.mxu0 0.0
    %3217 = vmatprep.subr.mxu0 0.0
    %3218 = vmatpush1.msra.mxu0 0.0
    %3219 = vmatprep.subr.mxu0 0.0
    %3220 = vmatpush1.msra.mxu0 0.0
    %3221 = vmatprep.mubr.f32.mxu0 0.0
    %3222 = vmatmul.mubr.f32.gmra.mrb[0].mxu0 %v2971
    %v3223 = vpop.f32.mrb[0].mxu0
    %v3224 = vadd.f32 0.0, %v3223
    %v3225 = vpop.f32.mrb[0].mxu0
    %v3226 = vadd.f32 0.0, %v3225
    %3227 = vdwg.mxu0
    %v3228 = vadd.f32 %v3018, %v3153
    %v3229 = vadd.f32 %v3019, %v3155
    %v3230 = vadd.f32 %v3020, %v3224
    %v3231 = vadd.f32 %v3021, %v3226
    %v3232 = vxor.u32 %v3228, 2147483648
    %v3233 = vmul.f32 %v3232, 1.442695
    %v3234 = vpow.pop %v3233
    %v3235 = vadd.f32 %v3234, 1.0
    %v3236 = vrcp.pop %v3235
    %v3237 = vmul.f32 1.0, %v3236
    %v3238 = vxor.u32 %v3229, 2147483648
    %v3239 = vmul.f32 %v3238, 1.442695
    %v3240 = vpow.pop %v3239
    %v3241 = vadd.f32 %v3240, 1.0
    %v3242 = vrcp.pop %v3241
    %v3243 = vmul.f32 1.0, %v3242
    %v3244 = vtanh.pop %v3230
    %v3245 = vxor.u32 %v3231, 2147483648
    %v3246 = vmul.f32 %v3245, 1.442695
    %v3247 = vpow.pop %v3246
    %v3248 = vadd.f32 %v3247, 1.0
    %v3249 = vrcp.pop %v3248
    %v3250 = vmul.f32 1.0, %v3249
    %v3251 = vmul.f32 %v3243, %v2969
    %v3252 = vmul.f32 %v3237, %v3244
    %v3253 = vadd.f32 %v3251, %v3252
    %v3254 = vtanh.pop %v3253
    %v3255 = vmul.f32 %v3250, %v3254
    %3256 = vst.msk [vmem:[#allocation5 + $0x2] sm:$0x1] %vm57, %v3255
    %3257 = vst.msk [vmem:[#allocation5 + $0x5] sm:$0x1] %vm405, %v3255
    %v3258 = vld [vmem:[%s979] ss:$8 sm:$0xf]
    %v3259 = vld [vmem:[%s981] ss:$8 sm:$0xf]
    %v3261 = vlaneseq
    %v3262 = vshrl.u32 %v3261, 7
    %v3263 = vsub.s32 0, %v3262
    %v3264 = vrot.slane %v3258, %v3263
    %v3265 = vlaneseq
    %v3266 = vshrl.u32 %v3265, 7
    %v3267 = vsub.s32 1, %v3266
    %v3268 = vrot.slane %v3258, %v3267
    %v3269 = vlaneseq
    %v3270 = vshrl.u32 %v3269, 7
    %v3271 = vsub.s32 2, %v3270
    %v3272 = vrot.slane %v3258, %v3271
    %v3273 = vlaneseq
    %v3274 = vshrl.u32 %v3273, 7
    %v3275 = vsub.s32 3, %v3274
    %v3276 = vrot.slane %v3258, %v3275
    %v3282 = vlaneseq
    %v3283 = vshrl.u32 %v3282, 7
    %v3284 = vsub.s32 0, %v3283
    %v3285 = vrot.slane %v3259, %v3284
    %v3286 = vlaneseq
    %v3287 = vshrl.u32 %v3286, 7
    %v3288 = vsub.s32 1, %v3287
    %v3289 = vrot.slane %v3259, %v3288
    %v3290 = vlaneseq
    %v3291 = vshrl.u32 %v3290, 7
    %v3292 = vsub.s32 2, %v3291
    %v3293 = vrot.slane %v3259, %v3292
    %v3294 = vlaneseq
    %v3295 = vshrl.u32 %v3294, 7
    %v3296 = vsub.s32 3, %v3295
    %v3297 = vrot.slane %v3259, %v3296
    %v3302 = vsel %vm140, %v3264, %v3285
    %v3303 = vsel %vm141, %v3268, %v3289
    %v3304 = vsel %vm142, %v3272, %v3293
    %v3305 = vsel %vm143, %v3276, %v3297
    %v3306 = vld [vmem:[#allocation11 + $0x520] sm:$0xff]
    %v3307 = vld [vmem:[#allocation11 + $0x528] sm:$0xff]
    %v3308 = vld [vmem:[#allocation11 + $0x530] sm:$0xff]
    %v3309 = vld [vmem:[#allocation11 + $0x538] sm:$0xff]
    %v3310 = vld [vmem:[#allocation11 + $0x540] sm:$0xff]
    %v3311 = vld [vmem:[#allocation11 + $0x548] sm:$0xff]
    %v3312 = vld [vmem:[#allocation11 + $0x550] sm:$0xff]
    %v3313 = vld [vmem:[#allocation11 + $0x558] sm:$0xff]
    %v3314 = vld [vmem:[#allocation11 + $0x560] sm:$0xff]
    %v3315 = vld [vmem:[#allocation11 + $0x568] sm:$0xff]
    %v3316 = vld [vmem:[#allocation11 + $0x570] sm:$0xff]
    %v3317 = vld [vmem:[#allocation11 + $0x578] sm:$0xff]
    %v3318 = vld [vmem:[#allocation11 + $0x580] sm:$0xff]
    %v3319 = vld [vmem:[#allocation11 + $0x588] sm:$0xff]
    %v3320 = vld [vmem:[#allocation11 + $0x590] sm:$0xff]
    %v3321 = vld [vmem:[#allocation11 + $0x598] sm:$0xff]
    %v3322 = vld [vmem:[#allocation11 + $0x5a0] sm:$0xff]
    %v3323 = vld [vmem:[#allocation11 + $0x5a8] sm:$0xff]
    %v3324 = vld [vmem:[#allocation11 + $0x5b0] sm:$0xff]
    %v3325 = vld [vmem:[#allocation11 + $0x5b8] sm:$0xff]
    %v3326 = vld [vmem:[#allocation11 + $0x5c0] sm:$0xff]
    %v3327 = vld [vmem:[#allocation11 + $0x5c8] sm:$0xff]
    %v3328 = vld [vmem:[#allocation11 + $0x5d0] sm:$0xff]
    %v3329 = vld [vmem:[#allocation11 + $0x5d8] sm:$0xff]
    %v3330 = vld [vmem:[#allocation11 + $0x5e0] sm:$0xff]
    %v3331 = vld [vmem:[#allocation11 + $0x5e8] sm:$0xff]
    %v3332 = vld [vmem:[#allocation11 + $0x5f0] sm:$0xff]
    %v3333 = vld [vmem:[#allocation11 + $0x5f8] sm:$0xff]
    %v3334 = vld [vmem:[#allocation11 + $0x600] sm:$0xff]
    %v3335 = vld [vmem:[#allocation11 + $0x608] sm:$0xff]
    %v3336 = vld [vmem:[#allocation11 + $0x610] sm:$0xff]
    %v3337 = vld [vmem:[#allocation11 + $0x618] sm:$0xff]
    %v3338 = vld [vmem:[#allocation11 + $0x620] sm:$0xff]
    %v3339 = vld [vmem:[#allocation11 + $0x628] sm:$0xff]
    %v3340 = vld [vmem:[#allocation11 + $0x630] sm:$0xff]
    %v3341 = vld [vmem:[#allocation11 + $0x638] sm:$0xff]
    %v3342 = vld [vmem:[#allocation11 + $0x640] sm:$0xff]
    %v3343 = vld [vmem:[#allocation11 + $0x648] sm:$0xff]
    %v3344 = vld [vmem:[#allocation11 + $0x650] sm:$0xff]
    %v3345 = vld [vmem:[#allocation11 + $0x658] sm:$0xff]
    %v3346 = vld [vmem:[#allocation11 + $0x660] sm:$0xff]
    %v3347 = vld [vmem:[#allocation11 + $0x668] sm:$0xff]
    %v3348 = vld [vmem:[#allocation11 + $0x670] sm:$0xff]
    %v3349 = vld [vmem:[#allocation11 + $0x678] sm:$0xff]
    %v3350 = vld [vmem:[#allocation11 + $0x680] sm:$0xff]
    %v3351 = vld [vmem:[#allocation11 + $0x688] sm:$0xff]
    %v3352 = vld [vmem:[#allocation11 + $0x690] sm:$0xff]
    %v3353 = vld [vmem:[#allocation11 + $0x698] sm:$0xff]
    %v3354 = vld [vmem:[#allocation11 + $0x6a0] sm:$0xff]
    %v3355 = vld [vmem:[#allocation11 + $0x6a8] sm:$0xff]
    %v3356 = vld [vmem:[#allocation11 + $0x6b0] sm:$0xff]
    %v3357 = vld [vmem:[#allocation11 + $0x6b8] sm:$0xff]
    %v3358 = vld [vmem:[#allocation11 + $0x6c0] sm:$0xff]
    %v3359 = vld [vmem:[#allocation11 + $0x6c8] sm:$0xff]
    %v3360 = vld [vmem:[#allocation11 + $0x6d0] sm:$0xff]
    %v3361 = vld [vmem:[#allocation11 + $0x6d8] sm:$0xff]
    %v3362 = vld [vmem:[#allocation11 + $0x6e0] sm:$0xff]
    %v3363 = vld [vmem:[#allocation11 + $0x6e8] sm:$0xff]
    %v3364 = vld [vmem:[#allocation11 + $0x6f0] sm:$0xff]
    %v3365 = vld [vmem:[#allocation11 + $0x6f8] sm:$0xff]
    %v3366 = vld [vmem:[#allocation11 + $0x700] sm:$0xff]
    %v3367 = vld [vmem:[#allocation11 + $0x708] sm:$0xff]
    %v3368 = vld [vmem:[#allocation11 + $0x710] sm:$0xff]
    %v3369 = vld [vmem:[#allocation11 + $0x718] sm:$0xff]
    %3370 = vmatprep.subr.mxu0 %v3307
    %3371 = vmatpush1.msra.mxu0 %v3306
    %3372 = vmatprep.subr.mxu0 %v3311
    %3373 = vmatpush1.msra.mxu0 %v3310
    %3374 = vmatprep.subr.mxu0 %v3315
    %3375 = vmatpush1.msra.mxu0 %v3314
    %3376 = vmatprep.subr.mxu0 %v3319
    %3377 = vmatpush1.msra.mxu0 %v3318
    %3378 = vmatprep.subr.mxu0 %v3323
    %3379 = vmatpush1.msra.mxu0 %v3322
    %3380 = vmatprep.subr.mxu0 %v3327
    %3381 = vmatpush1.msra.mxu0 %v3326
    %3382 = vmatprep.subr.mxu0 %v3331
    %3383 = vmatpush1.msra.mxu0 %v3330
    %3384 = vmatprep.subr.mxu0 %v3335
    %3385 = vmatpush1.msra.mxu0 %v3334
    %3386 = vmatprep.subr.mxu0 %v3339
    %3387 = vmatpush1.msra.mxu0 %v3338
    %3388 = vmatprep.subr.mxu0 %v3343
    %3389 = vmatpush1.msra.mxu0 %v3342
    %3390 = vmatprep.subr.mxu0 %v3347
    %3391 = vmatpush1.msra.mxu0 %v3346
    %3392 = vmatprep.subr.mxu0 %v3351
    %3393 = vmatpush1.msra.mxu0 %v3350
    %3394 = vmatprep.subr.mxu0 %v3355
    %3395 = vmatpush1.msra.mxu0 %v3354
    %3396 = vmatprep.subr.mxu0 %v3359
    %3397 = vmatpush1.msra.mxu0 %v3358
    %3398 = vmatprep.subr.mxu0 %v3363
    %3399 = vmatpush1.msra.mxu0 %v3362
    %3400 = vmatprep.subr.mxu0 %v3367
    %3401 = vmatpush1.msra.mxu0 %v3366
    %3402 = vmatprep.subr.mxu0 0.0
    %3403 = vmatpush1.msra.mxu0 0.0
    %3404 = vmatprep.subr.mxu0 0.0
    %3405 = vmatpush1.msra.mxu0 0.0
    %3406 = vmatprep.subr.mxu0 0.0
    %3407 = vmatpush1.msra.mxu0 0.0
    %3408 = vmatprep.subr.mxu0 0.0
    %3409 = vmatpush1.msra.mxu0 0.0
    %3410 = vmatprep.subr.mxu0 0.0
    %3411 = vmatpush1.msra.mxu0 0.0
    %3412 = vmatprep.subr.mxu0 0.0
    %3413 = vmatpush1.msra.mxu0 0.0
    %3414 = vmatprep.subr.mxu0 0.0
    %3415 = vmatpush1.msra.mxu0 0.0
    %3416 = vmatprep.subr.mxu0 0.0
    %3417 = vmatpush1.msra.mxu0 0.0
    %3418 = vmatprep.subr.mxu0 0.0
    %3419 = vmatpush1.msra.mxu0 0.0
    %3420 = vmatprep.subr.mxu0 0.0
    %3421 = vmatpush1.msra.mxu0 0.0
    %3422 = vmatprep.subr.mxu0 0.0
    %3423 = vmatpush1.msra.mxu0 0.0
    %3424 = vmatprep.subr.mxu0 0.0
    %3425 = vmatpush1.msra.mxu0 0.0
    %3426 = vmatprep.subr.mxu0 0.0
    %3427 = vmatpush1.msra.mxu0 0.0
    %3428 = vmatprep.subr.mxu0 0.0
    %3429 = vmatpush1.msra.mxu0 0.0
    %3430 = vmatprep.subr.mxu0 0.0
    %3431 = vmatpush1.msra.mxu0 0.0
    %3432 = vmatprep.subr.mxu0 0.0
    %3433 = vmatpush1.msra.mxu0 0.0
    %3434 = vmatprep.mubr.f32.mxu0 0.0
    %3435 = vmatmul.mubr.f32.gmra.mrb[0].mxu0 %v3255
    %v3436 = vpop.f32.mrb[0].mxu0
    %v3437 = vadd.f32 0.0, %v3436
    %v3438 = vpop.f32.mrb[0].mxu0
    %v3439 = vadd.f32 0.0, %v3438
    %3440 = vdwg.mxu0
    %3441 = vmatprep.subr.mxu0 %v3309
    %3442 = vmatpush1.msra.mxu0 %v3308
    %3443 = vmatprep.subr.mxu0 %v3313
    %3444 = vmatpush1.msra.mxu0 %v3312
    %3445 = vmatprep.subr.mxu0 %v3317
    %3446 = vmatpush1.msra.mxu0 %v3316
    %3447 = vmatprep.subr.mxu0 %v3321
    %3448 = vmatpush1.msra.mxu0 %v3320
    %3449 = vmatprep.subr.mxu0 %v3325
    %3450 = vmatpush1.msra.mxu0 %v3324
    %3451 = vmatprep.subr.mxu0 %v3329
    %3452 = vmatpush1.msra.mxu0 %v3328
    %3453 = vmatprep.subr.mxu0 %v3333
    %3454 = vmatpush1.msra.mxu0 %v3332
    %3455 = vmatprep.subr.mxu0 %v3337
    %3456 = vmatpush1.msra.mxu0 %v3336
    %3457 = vmatprep.subr.mxu0 %v3341
    %3458 = vmatpush1.msra.mxu0 %v3340
    %3459 = vmatprep.subr.mxu0 %v3345
    %3460 = vmatpush1.msra.mxu0 %v3344
    %3461 = vmatprep.subr.mxu0 %v3349
    %3462 = vmatpush1.msra.mxu0 %v3348
    %3463 = vmatprep.subr.mxu0 %v3353
    %3464 = vmatpush1.msra.mxu0 %v3352
    %3465 = vmatprep.subr.mxu0 %v3357
    %3466 = vmatpush1.msra.mxu0 %v3356
    %3467 = vmatprep.subr.mxu0 %v3361
    %3468 = vmatpush1.msra.mxu0 %v3360
    %3469 = vmatprep.subr.mxu0 %v3365
    %3470 = vmatpush1.msra.mxu0 %v3364
    %3471 = vmatprep.subr.mxu0 %v3369
    %3472 = vmatpush1.msra.mxu0 %v3368
    %3473 = vmatprep.subr.mxu0 0.0
    %3474 = vmatpush1.msra.mxu0 0.0
    %3475 = vmatprep.subr.mxu0 0.0
    %3476 = vmatpush1.msra.mxu0 0.0
    %3477 = vmatprep.subr.mxu0 0.0
    %3478 = vmatpush1.msra.mxu0 0.0
    %3479 = vmatprep.subr.mxu0 0.0
    %3480 = vmatpush1.msra.mxu0 0.0
    %3481 = vmatprep.subr.mxu0 0.0
    %3482 = vmatpush1.msra.mxu0 0.0
    %3483 = vmatprep.subr.mxu0 0.0
    %3484 = vmatpush1.msra.mxu0 0.0
    %3485 = vmatprep.subr.mxu0 0.0
    %3486 = vmatpush1.msra.mxu0 0.0
    %3487 = vmatprep.subr.mxu0 0.0
    %3488 = vmatpush1.msra.mxu0 0.0
    %3489 = vmatprep.subr.mxu0 0.0
    %3490 = vmatpush1.msra.mxu0 0.0
    %3491 = vmatprep.subr.mxu0 0.0
    %3492 = vmatpush1.msra.mxu0 0.0
    %3493 = vmatprep.subr.mxu0 0.0
    %3494 = vmatpush1.msra.mxu0 0.0
    %3495 = vmatprep.subr.mxu0 0.0
    %3496 = vmatpush1.msra.mxu0 0.0
    %3497 = vmatprep.subr.mxu0 0.0
    %3498 = vmatpush1.msra.mxu0 0.0
    %3499 = vmatprep.subr.mxu0 0.0
    %3500 = vmatpush1.msra.mxu0 0.0
    %3501 = vmatprep.subr.mxu0 0.0
    %3502 = vmatpush1.msra.mxu0 0.0
    %3503 = vmatprep.subr.mxu0 0.0
    %3504 = vmatpush1.msra.mxu0 0.0
    %3505 = vmatprep.mubr.f32.mxu0 0.0
    %3506 = vmatmul.mubr.f32.gmra.mrb[0].mxu0 %v3255
    %v3507 = vpop.f32.mrb[0].mxu0
    %v3508 = vadd.f32 0.0, %v3507
    %v3509 = vpop.f32.mrb[0].mxu0
    %v3510 = vadd.f32 0.0, %v3509
    %3511 = vdwg.mxu0
    %v3512 = vadd.f32 %v3302, %v3437
    %v3513 = vadd.f32 %v3303, %v3439
    %v3514 = vadd.f32 %v3304, %v3508
    %v3515 = vadd.f32 %v3305, %v3510
    %v3516 = vxor.u32 %v3512, 2147483648
    %v3517 = vmul.f32 %v3516, 1.442695
    %v3518 = vpow.pop %v3517
    %v3519 = vadd.f32 %v3518, 1.0
    %v3520 = vrcp.pop %v3519
    %v3521 = vmul.f32 1.0, %v3520
    %v3522 = vxor.u32 %v3513, 2147483648
    %v3523 = vmul.f32 %v3522, 1.442695
    %v3524 = vpow.pop %v3523
    %v3525 = vadd.f32 %v3524, 1.0
    %v3526 = vrcp.pop %v3525
    %v3527 = vmul.f32 1.0, %v3526
    %v3528 = vtanh.pop %v3514
    %v3529 = vxor.u32 %v3515, 2147483648
    %v3530 = vmul.f32 %v3529, 1.442695
    %v3531 = vpow.pop %v3530
    %v3532 = vadd.f32 %v3531, 1.0
    %v3533 = vrcp.pop %v3532
    %v3534 = vmul.f32 1.0, %v3533
    %v3535 = vmul.f32 %v3527, %v3253
    %v3536 = vmul.f32 %v3521, %v3528
    %v3537 = vadd.f32 %v3535, %v3536
    %v3538 = vtanh.pop %v3537
    %v3539 = vmul.f32 %v3534, %v3538
    %3540 = vst.msk [vmem:[#allocation5 + $0x3] sm:$0x1] %vm57, %v3539
    %3541 = vst.msk [vmem:[#allocation5 + $0x4] sm:$0x1] %vm405, %v3539
    %v3542 = vld [vmem:[%s981] ss:$8 sm:$0xf]
    %v3543 = vld [vmem:[%s979] ss:$8 sm:$0xf]
    %v3545 = vlaneseq
    %v3546 = vshrl.u32 %v3545, 7
    %v3547 = vsub.s32 0, %v3546
    %v3548 = vrot.slane %v3542, %v3547
    %v3549 = vlaneseq
    %v3550 = vshrl.u32 %v3549, 7
    %v3551 = vsub.s32 1, %v3550
    %v3552 = vrot.slane %v3542, %v3551
    %v3553 = vlaneseq
    %v3554 = vshrl.u32 %v3553, 7
    %v3555 = vsub.s32 2, %v3554
    %v3556 = vrot.slane %v3542, %v3555
    %v3557 = vlaneseq
    %v3558 = vshrl.u32 %v3557, 7
    %v3559 = vsub.s32 3, %v3558
    %v3560 = vrot.slane %v3542, %v3559
    %v3566 = vlaneseq
    %v3567 = vshrl.u32 %v3566, 7
    %v3568 = vsub.s32 0, %v3567
    %v3569 = vrot.slane %v3543, %v3568
    %v3570 = vlaneseq
    %v3571 = vshrl.u32 %v3570, 7
    %v3572 = vsub.s32 1, %v3571
    %v3573 = vrot.slane %v3543, %v3572
    %v3574 = vlaneseq
    %v3575 = vshrl.u32 %v3574, 7
    %v3576 = vsub.s32 2, %v3575
    %v3577 = vrot.slane %v3543, %v3576
    %v3578 = vlaneseq
    %v3579 = vshrl.u32 %v3578, 7
    %v3580 = vsub.s32 3, %v3579
    %v3581 = vrot.slane %v3543, %v3580
    %v3586 = vsel %vm140, %v3548, %v3569
    %v3587 = vsel %vm141, %v3552, %v3573
    %v3588 = vsel %vm142, %v3556, %v3577
    %v3589 = vsel %vm143, %v3560, %v3581
    %v3590 = vld [vmem:[#allocation11 + $0x520] sm:$0xff]
    %v3591 = vld [vmem:[#allocation11 + $0x528] sm:$0xff]
    %v3592 = vld [vmem:[#allocation11 + $0x530] sm:$0xff]
    %v3593 = vld [vmem:[#allocation11 + $0x538] sm:$0xff]
    %v3594 = vld [vmem:[#allocation11 + $0x540] sm:$0xff]
    %v3595 = vld [vmem:[#allocation11 + $0x548] sm:$0xff]
    %v3596 = vld [vmem:[#allocation11 + $0x550] sm:$0xff]
    %v3597 = vld [vmem:[#allocation11 + $0x558] sm:$0xff]
    %v3598 = vld [vmem:[#allocation11 + $0x560] sm:$0xff]
    %v3599 = vld [vmem:[#allocation11 + $0x568] sm:$0xff]
    %v3600 = vld [vmem:[#allocation11 + $0x570] sm:$0xff]
    %v3601 = vld [vmem:[#allocation11 + $0x578] sm:$0xff]
    %v3602 = vld [vmem:[#allocation11 + $0x580] sm:$0xff]
    %v3603 = vld [vmem:[#allocation11 + $0x588] sm:$0xff]
    %v3604 = vld [vmem:[#allocation11 + $0x590] sm:$0xff]
    %v3605 = vld [vmem:[#allocation11 + $0x598] sm:$0xff]
    %v3606 = vld [vmem:[#allocation11 + $0x5a0] sm:$0xff]
    %v3607 = vld [vmem:[#allocation11 + $0x5a8] sm:$0xff]
    %v3608 = vld [vmem:[#allocation11 + $0x5b0] sm:$0xff]
    %v3609 = vld [vmem:[#allocation11 + $0x5b8] sm:$0xff]
    %v3610 = vld [vmem:[#allocation11 + $0x5c0] sm:$0xff]
    %v3611 = vld [vmem:[#allocation11 + $0x5c8] sm:$0xff]
    %v3612 = vld [vmem:[#allocation11 + $0x5d0] sm:$0xff]
    %v3613 = vld [vmem:[#allocation11 + $0x5d8] sm:$0xff]
    %v3614 = vld [vmem:[#allocation11 + $0x5e0] sm:$0xff]
    %v3615 = vld [vmem:[#allocation11 + $0x5e8] sm:$0xff]
    %v3616 = vld [vmem:[#allocation11 + $0x5f0] sm:$0xff]
    %v3617 = vld [vmem:[#allocation11 + $0x5f8] sm:$0xff]
    %v3618 = vld [vmem:[#allocation11 + $0x600] sm:$0xff]
    %v3619 = vld [vmem:[#allocation11 + $0x608] sm:$0xff]
    %v3620 = vld [vmem:[#allocation11 + $0x610] sm:$0xff]
    %v3621 = vld [vmem:[#allocation11 + $0x618] sm:$0xff]
    %v3622 = vld [vmem:[#allocation11 + $0x620] sm:$0xff]
    %v3623 = vld [vmem:[#allocation11 + $0x628] sm:$0xff]
    %v3624 = vld [vmem:[#allocation11 + $0x630] sm:$0xff]
    %v3625 = vld [vmem:[#allocation11 + $0x638] sm:$0xff]
    %v3626 = vld [vmem:[#allocation11 + $0x640] sm:$0xff]
    %v3627 = vld [vmem:[#allocation11 + $0x648] sm:$0xff]
    %v3628 = vld [vmem:[#allocation11 + $0x650] sm:$0xff]
    %v3629 = vld [vmem:[#allocation11 + $0x658] sm:$0xff]
    %v3630 = vld [vmem:[#allocation11 + $0x660] sm:$0xff]
    %v3631 = vld [vmem:[#allocation11 + $0x668] sm:$0xff]
    %v3632 = vld [vmem:[#allocation11 + $0x670] sm:$0xff]
    %v3633 = vld [vmem:[#allocation11 + $0x678] sm:$0xff]
    %v3634 = vld [vmem:[#allocation11 + $0x680] sm:$0xff]
    %v3635 = vld [vmem:[#allocation11 + $0x688] sm:$0xff]
    %v3636 = vld [vmem:[#allocation11 + $0x690] sm:$0xff]
    %v3637 = vld [vmem:[#allocation11 + $0x698] sm:$0xff]
    %v3638 = vld [vmem:[#allocation11 + $0x6a0] sm:$0xff]
    %v3639 = vld [vmem:[#allocation11 + $0x6a8] sm:$0xff]
    %v3640 = vld [vmem:[#allocation11 + $0x6b0] sm:$0xff]
    %v3641 = vld [vmem:[#allocation11 + $0x6b8] sm:$0xff]
    %v3642 = vld [vmem:[#allocation11 + $0x6c0] sm:$0xff]
    %v3643 = vld [vmem:[#allocation11 + $0x6c8] sm:$0xff]
    %v3644 = vld [vmem:[#allocation11 + $0x6d0] sm:$0xff]
    %v3645 = vld [vmem:[#allocation11 + $0x6d8] sm:$0xff]
    %v3646 = vld [vmem:[#allocation11 + $0x6e0] sm:$0xff]
    %v3647 = vld [vmem:[#allocation11 + $0x6e8] sm:$0xff]
    %v3648 = vld [vmem:[#allocation11 + $0x6f0] sm:$0xff]
    %v3649 = vld [vmem:[#allocation11 + $0x6f8] sm:$0xff]
    %v3650 = vld [vmem:[#allocation11 + $0x700] sm:$0xff]
    %v3651 = vld [vmem:[#allocation11 + $0x708] sm:$0xff]
    %v3652 = vld [vmem:[#allocation11 + $0x710] sm:$0xff]
    %v3653 = vld [vmem:[#allocation11 + $0x718] sm:$0xff]
    %3654 = vmatprep.subr.mxu0 %v3591
    %3655 = vmatpush1.msra.mxu0 %v3590
    %3656 = vmatprep.subr.mxu0 %v3595
    %3657 = vmatpush1.msra.mxu0 %v3594
    %3658 = vmatprep.subr.mxu0 %v3599
    %3659 = vmatpush1.msra.mxu0 %v3598
    %3660 = vmatprep.subr.mxu0 %v3603
    %3661 = vmatpush1.msra.mxu0 %v3602
    %3662 = vmatprep.subr.mxu0 %v3607
    %3663 = vmatpush1.msra.mxu0 %v3606
    %3664 = vmatprep.subr.mxu0 %v3611
    %3665 = vmatpush1.msra.mxu0 %v3610
    %3666 = vmatprep.subr.mxu0 %v3615
    %3667 = vmatpush1.msra.mxu0 %v3614
    %3668 = vmatprep.subr.mxu0 %v3619
    %3669 = vmatpush1.msra.mxu0 %v3618
    %3670 = vmatprep.subr.mxu0 %v3623
    %3671 = vmatpush1.msra.mxu0 %v3622
    %3672 = vmatprep.subr.mxu0 %v3627
    %3673 = vmatpush1.msra.mxu0 %v3626
    %3674 = vmatprep.subr.mxu0 %v3631
    %3675 = vmatpush1.msra.mxu0 %v3630
    %3676 = vmatprep.subr.mxu0 %v3635
    %3677 = vmatpush1.msra.mxu0 %v3634
    %3678 = vmatprep.subr.mxu0 %v3639
    %3679 = vmatpush1.msra.mxu0 %v3638
    %3680 = vmatprep.subr.mxu0 %v3643
    %3681 = vmatpush1.msra.mxu0 %v3642
    %3682 = vmatprep.subr.mxu0 %v3647
    %3683 = vmatpush1.msra.mxu0 %v3646
    %3684 = vmatprep.subr.mxu0 %v3651
    %3685 = vmatpush1.msra.mxu0 %v3650
    %3686 = vmatprep.subr.mxu0 0.0
    %3687 = vmatpush1.msra.mxu0 0.0
    %3688 = vmatprep.subr.mxu0 0.0
    %3689 = vmatpush1.msra.mxu0 0.0
    %3690 = vmatprep.subr.mxu0 0.0
    %3691 = vmatpush1.msra.mxu0 0.0
    %3692 = vmatprep.subr.mxu0 0.0
    %3693 = vmatpush1.msra.mxu0 0.0
    %3694 = vmatprep.subr.mxu0 0.0
    %3695 = vmatpush1.msra.mxu0 0.0
    %3696 = vmatprep.subr.mxu0 0.0
    %3697 = vmatpush1.msra.mxu0 0.0
    %3698 = vmatprep.subr.mxu0 0.0
    %3699 = vmatpush1.msra.mxu0 0.0
    %3700 = vmatprep.subr.mxu0 0.0
    %3701 = vmatpush1.msra.mxu0 0.0
    %3702 = vmatprep.subr.mxu0 0.0
    %3703 = vmatpush1.msra.mxu0 0.0
    %3704 = vmatprep.subr.mxu0 0.0
    %3705 = vmatpush1.msra.mxu0 0.0
    %3706 = vmatprep.subr.mxu0 0.0
    %3707 = vmatpush1.msra.mxu0 0.0
    %3708 = vmatprep.subr.mxu0 0.0
    %3709 = vmatpush1.msra.mxu0 0.0
    %3710 = vmatprep.subr.mxu0 0.0
    %3711 = vmatpush1.msra.mxu0 0.0
    %3712 = vmatprep.subr.mxu0 0.0
    %3713 = vmatpush1.msra.mxu0 0.0
    %3714 = vmatprep.subr.mxu0 0.0
    %3715 = vmatpush1.msra.mxu0 0.0
    %3716 = vmatprep.subr.mxu0 0.0
    %3717 = vmatpush1.msra.mxu0 0.0
    %3718 = vmatprep.mubr.f32.mxu0 0.0
    %3719 = vmatmul.mubr.f32.gmra.mrb[0].mxu0 %v3539
    %v3720 = vpop.f32.mrb[0].mxu0
    %v3721 = vadd.f32 0.0, %v3720
    %v3722 = vpop.f32.mrb[0].mxu0
    %v3723 = vadd.f32 0.0, %v3722
    %3724 = vdwg.mxu0
    %3725 = vmatprep.subr.mxu0 %v3593
    %3726 = vmatpush1.msra.mxu0 %v3592
    %3727 = vmatprep.subr.mxu0 %v3597
    %3728 = vmatpush1.msra.mxu0 %v3596
    %3729 = vmatprep.subr.mxu0 %v3601
    %3730 = vmatpush1.msra.mxu0 %v3600
    %3731 = vmatprep.subr.mxu0 %v3605
    %3732 = vmatpush1.msra.mxu0 %v3604
    %3733 = vmatprep.subr.mxu0 %v3609
    %3734 = vmatpush1.msra.mxu0 %v3608
    %3735 = vmatprep.subr.mxu0 %v3613
    %3736 = vmatpush1.msra.mxu0 %v3612
    %3737 = vmatprep.subr.mxu0 %v3617
    %3738 = vmatpush1.msra.mxu0 %v3616
    %3739 = vmatprep.subr.mxu0 %v3621
    %3740 = vmatpush1.msra.mxu0 %v3620
    %3741 = vmatprep.subr.mxu0 %v3625
    %3742 = vmatpush1.msra.mxu0 %v3624
    %3743 = vmatprep.subr.mxu0 %v3629
    %3744 = vmatpush1.msra.mxu0 %v3628
    %3745 = vmatprep.subr.mxu0 %v3633
    %3746 = vmatpush1.msra.mxu0 %v3632
    %3747 = vmatprep.subr.mxu0 %v3637
    %3748 = vmatpush1.msra.mxu0 %v3636
    %3749 = vmatprep.subr.mxu0 %v3641
    %3750 = vmatpush1.msra.mxu0 %v3640
    %3751 = vmatprep.subr.mxu0 %v3645
    %3752 = vmatpush1.msra.mxu0 %v3644
    %3753 = vmatprep.subr.mxu0 %v3649
    %3754 = vmatpush1.msra.mxu0 %v3648
    %3755 = vmatprep.subr.mxu0 %v3653
    %3756 = vmatpush1.msra.mxu0 %v3652
    %3757 = vmatprep.subr.mxu0 0.0
    %3758 = vmatpush1.msra.mxu0 0.0
    %3759 = vmatprep.subr.mxu0 0.0
    %3760 = vmatpush1.msra.mxu0 0.0
    %3761 = vmatprep.subr.mxu0 0.0
    %3762 = vmatpush1.msra.mxu0 0.0
    %3763 = vmatprep.subr.mxu0 0.0
    %3764 = vmatpush1.msra.mxu0 0.0
    %3765 = vmatprep.subr.mxu0 0.0
    %3766 = vmatpush1.msra.mxu0 0.0
    %3767 = vmatprep.subr.mxu0 0.0
    %3768 = vmatpush1.msra.mxu0 0.0
    %3769 = vmatprep.subr.mxu0 0.0
    %3770 = vmatpush1.msra.mxu0 0.0
    %3771 = vmatprep.subr.mxu0 0.0
    %3772 = vmatpush1.msra.mxu0 0.0
    %3773 = vmatprep.subr.mxu0 0.0
    %3774 = vmatpush1.msra.mxu0 0.0
    %3775 = vmatprep.subr.mxu0 0.0
    %3776 = vmatpush1.msra.mxu0 0.0
    %3777 = vmatprep.subr.mxu0 0.0
    %3778 = vmatpush1.msra.mxu0 0.0
    %3779 = vmatprep.subr.mxu0 0.0
    %3780 = vmatpush1.msra.mxu0 0.0
    %3781 = vmatprep.subr.mxu0 0.0
    %3782 = vmatpush1.msra.mxu0 0.0
    %3783 = vmatprep.subr.mxu0 0.0
    %3784 = vmatpush1.msra.mxu0 0.0
    %3785 = vmatprep.subr.mxu0 0.0
    %3786 = vmatpush1.msra.mxu0 0.0
    %3787 = vmatprep.subr.mxu0 0.0
    %3788 = vmatpush1.msra.mxu0 0.0
    %3789 = vmatprep.mubr.f32.mxu0 0.0
    %3790 = vmatmul.mubr.f32.gmra.mrb[0].mxu0 %v3539
    %v3791 = vpop.f32.mrb[0].mxu0
    %v3792 = vadd.f32 0.0, %v3791
    %v3793 = vpop.f32.mrb[0].mxu0
    %v3794 = vadd.f32 0.0, %v3793
    %3795 = vdwg.mxu0
    %v3796 = vadd.f32 %v3586, %v3721
    %v3797 = vadd.f32 %v3587, %v3723
    %v3798 = vadd.f32 %v3588, %v3792
    %v3799 = vadd.f32 %v3589, %v3794
    %v3800 = vxor.u32 %v3796, 2147483648
    %v3801 = vmul.f32 %v3800, 1.442695
    %v3802 = vpow.pop %v3801
    %v3803 = vadd.f32 %v3802, 1.0
    %v3804 = vrcp.pop %v3803
    %v3805 = vmul.f32 1.0, %v3804
    %v3806 = vxor.u32 %v3797, 2147483648
    %v3807 = vmul.f32 %v3806, 1.442695
    %v3808 = vpow.pop %v3807
    %v3809 = vadd.f32 %v3808, 1.0
    %v3810 = vrcp.pop %v3809
    %v3811 = vmul.f32 1.0, %v3810
    %v3812 = vtanh.pop %v3798
    %v3813 = vxor.u32 %v3799, 2147483648
    %v3814 = vmul.f32 %v3813, 1.442695
    %v3815 = vpow.pop %v3814
    %v3816 = vadd.f32 %v3815, 1.0
    %v3817 = vrcp.pop %v3816
    %v3818 = vmul.f32 1.0, %v3817
    %v3819 = vmul.f32 %v3811, %v3537
    %v3820 = vmul.f32 %v3805, %v3812
    %v3821 = vadd.f32 %v3819, %v3820
    %v3822 = vtanh.pop %v3821
    %v3823 = vmul.f32 %v3818, %v3822
    %3824 = vst.msk [vmem:[#allocation5 + $0x4] sm:$0x1] %vm57, %v3823
    %3825 = vst.msk [vmem:[#allocation5 + $0x3] sm:$0x1] %vm405, %v3823
    %v3826 = vld [vmem:[%s695] ss:$8 sm:$0xf]
    %v3827 = vld [vmem:[%s693] ss:$8 sm:$0xf]
    %v3829 = vlaneseq
    %v3830 = vshrl.u32 %v3829, 7
    %v3831 = vsub.s32 0, %v3830
    %v3832 = vrot.slane %v3826, %v3831
    %v3833 = vlaneseq
    %v3834 = vshrl.u32 %v3833, 7
    %v3835 = vsub.s32 1, %v3834
    %v3836 = vrot.slane %v3826, %v3835
    %v3837 = vlaneseq
    %v3838 = vshrl.u32 %v3837, 7
    %v3839 = vsub.s32 2, %v3838
    %v3840 = vrot.slane %v3826, %v3839
    %v3841 = vlaneseq
    %v3842 = vshrl.u32 %v3841, 7
    %v3843 = vsub.s32 3, %v3842
    %v3844 = vrot.slane %v3826, %v3843
    %v3850 = vlaneseq
    %v3851 = vshrl.u32 %v3850, 7
    %v3852 = vsub.s32 0, %v3851
    %v3853 = vrot.slane %v3827, %v3852
    %v3854 = vlaneseq
    %v3855 = vshrl.u32 %v3854, 7
    %v3856 = vsub.s32 1, %v3855
    %v3857 = vrot.slane %v3827, %v3856
    %v3858 = vlaneseq
    %v3859 = vshrl.u32 %v3858, 7
    %v3860 = vsub.s32 2, %v3859
    %v3861 = vrot.slane %v3827, %v3860
    %v3862 = vlaneseq
    %v3863 = vshrl.u32 %v3862, 7
    %v3864 = vsub.s32 3, %v3863
    %v3865 = vrot.slane %v3827, %v3864
    %v3870 = vsel %vm140, %v3832, %v3853
    %v3871 = vsel %vm141, %v3836, %v3857
    %v3872 = vsel %vm142, %v3840, %v3861
    %v3873 = vsel %vm143, %v3844, %v3865
    %v3874 = vld [vmem:[#allocation11 + $0x520] sm:$0xff]
    %v3875 = vld [vmem:[#allocation11 + $0x528] sm:$0xff]
    %v3876 = vld [vmem:[#allocation11 + $0x530] sm:$0xff]
    %v3877 = vld [vmem:[#allocation11 + $0x538] sm:$0xff]
    %v3878 = vld [vmem:[#allocation11 + $0x540] sm:$0xff]
    %v3879 = vld [vmem:[#allocation11 + $0x548] sm:$0xff]
    %v3880 = vld [vmem:[#allocation11 + $0x550] sm:$0xff]
    %v3881 = vld [vmem:[#allocation11 + $0x558] sm:$0xff]
    %v3882 = vld [vmem:[#allocation11 + $0x560] sm:$0xff]
    %v3883 = vld [vmem:[#allocation11 + $0x568] sm:$0xff]
    %v3884 = vld [vmem:[#allocation11 + $0x570] sm:$0xff]
    %v3885 = vld [vmem:[#allocation11 + $0x578] sm:$0xff]
    %v3886 = vld [vmem:[#allocation11 + $0x580] sm:$0xff]
    %v3887 = vld [vmem:[#allocation11 + $0x588] sm:$0xff]
    %v3888 = vld [vmem:[#allocation11 + $0x590] sm:$0xff]
    %v3889 = vld [vmem:[#allocation11 + $0x598] sm:$0xff]
    %v3890 = vld [vmem:[#allocation11 + $0x5a0] sm:$0xff]
    %v3891 = vld [vmem:[#allocation11 + $0x5a8] sm:$0xff]
    %v3892 = vld [vmem:[#allocation11 + $0x5b0] sm:$0xff]
    %v3893 = vld [vmem:[#allocation11 + $0x5b8] sm:$0xff]
    %v3894 = vld [vmem:[#allocation11 + $0x5c0] sm:$0xff]
    %v3895 = vld [vmem:[#allocation11 + $0x5c8] sm:$0xff]
    %v3896 = vld [vmem:[#allocation11 + $0x5d0] sm:$0xff]
    %v3897 = vld [vmem:[#allocation11 + $0x5d8] sm:$0xff]
    %v3898 = vld [vmem:[#allocation11 + $0x5e0] sm:$0xff]
    %v3899 = vld [vmem:[#allocation11 + $0x5e8] sm:$0xff]
    %v3900 = vld [vmem:[#allocation11 + $0x5f0] sm:$0xff]
    %v3901 = vld [vmem:[#allocation11 + $0x5f8] sm:$0xff]
    %v3902 = vld [vmem:[#allocation11 + $0x600] sm:$0xff]
    %v3903 = vld [vmem:[#allocation11 + $0x608] sm:$0xff]
    %v3904 = vld [vmem:[#allocation11 + $0x610] sm:$0xff]
    %v3905 = vld [vmem:[#allocation11 + $0x618] sm:$0xff]
    %v3906 = vld [vmem:[#allocation11 + $0x620] sm:$0xff]
    %v3907 = vld [vmem:[#allocation11 + $0x628] sm:$0xff]
    %v3908 = vld [vmem:[#allocation11 + $0x630] sm:$0xff]
    %v3909 = vld [vmem:[#allocation11 + $0x638] sm:$0xff]
    %v3910 = vld [vmem:[#allocation11 + $0x640] sm:$0xff]
    %v3911 = vld [vmem:[#allocation11 + $0x648] sm:$0xff]
    %v3912 = vld [vmem:[#allocation11 + $0x650] sm:$0xff]
    %v3913 = vld [vmem:[#allocation11 + $0x658] sm:$0xff]
    %v3914 = vld [vmem:[#allocation11 + $0x660] sm:$0xff]
    %v3915 = vld [vmem:[#allocation11 + $0x668] sm:$0xff]
    %v3916 = vld [vmem:[#allocation11 + $0x670] sm:$0xff]
    %v3917 = vld [vmem:[#allocation11 + $0x678] sm:$0xff]
    %v3918 = vld [vmem:[#allocation11 + $0x680] sm:$0xff]
    %v3919 = vld [vmem:[#allocation11 + $0x688] sm:$0xff]
    %v3920 = vld [vmem:[#allocation11 + $0x690] sm:$0xff]
    %v3921 = vld [vmem:[#allocation11 + $0x698] sm:$0xff]
    %v3922 = vld [vmem:[#allocation11 + $0x6a0] sm:$0xff]
    %v3923 = vld [vmem:[#allocation11 + $0x6a8] sm:$0xff]
    %v3924 = vld [vmem:[#allocation11 + $0x6b0] sm:$0xff]
    %v3925 = vld [vmem:[#allocation11 + $0x6b8] sm:$0xff]
    %v3926 = vld [vmem:[#allocation11 + $0x6c0] sm:$0xff]
    %v3927 = vld [vmem:[#allocation11 + $0x6c8] sm:$0xff]
    %v3928 = vld [vmem:[#allocation11 + $0x6d0] sm:$0xff]
    %v3929 = vld [vmem:[#allocation11 + $0x6d8] sm:$0xff]
    %v3930 = vld [vmem:[#allocation11 + $0x6e0] sm:$0xff]
    %v3931 = vld [vmem:[#allocation11 + $0x6e8] sm:$0xff]
    %v3932 = vld [vmem:[#allocation11 + $0x6f0] sm:$0xff]
    %v3933 = vld [vmem:[#allocation11 + $0x6f8] sm:$0xff]
    %v3934 = vld [vmem:[#allocation11 + $0x700] sm:$0xff]
    %v3935 = vld [vmem:[#allocation11 + $0x708] sm:$0xff]
    %v3936 = vld [vmem:[#allocation11 + $0x710] sm:$0xff]
    %v3937 = vld [vmem:[#allocation11 + $0x718] sm:$0xff]
    %3938 = vmatprep.subr.mxu0 %v3875
    %3939 = vmatpush1.msra.mxu0 %v3874
    %3940 = vmatprep.subr.mxu0 %v3879
    %3941 = vmatpush1.msra.mxu0 %v3878
    %3942 = vmatprep.subr.mxu0 %v3883
    %3943 = vmatpush1.msra.mxu0 %v3882
    %3944 = vmatprep.subr.mxu0 %v3887
    %3945 = vmatpush1.msra.mxu0 %v3886
    %3946 = vmatprep.subr.mxu0 %v3891
    %3947 = vmatpush1.msra.mxu0 %v3890
    %3948 = vmatprep.subr.mxu0 %v3895
    %3949 = vmatpush1.msra.mxu0 %v3894
    %3950 = vmatprep.subr.mxu0 %v3899
    %3951 = vmatpush1.msra.mxu0 %v3898
    %3952 = vmatprep.subr.mxu0 %v3903
    %3953 = vmatpush1.msra.mxu0 %v3902
    %3954 = vmatprep.subr.mxu0 %v3907
    %3955 = vmatpush1.msra.mxu0 %v3906
    %3956 = vmatprep.subr.mxu0 %v3911
    %3957 = vmatpush1.msra.mxu0 %v3910
    %3958 = vmatprep.subr.mxu0 %v3915
    %3959 = vmatpush1.msra.mxu0 %v3914
    %3960 = vmatprep.subr.mxu0 %v3919
    %3961 = vmatpush1.msra.mxu0 %v3918
    %3962 = vmatprep.subr.mxu0 %v3923
    %3963 = vmatpush1.msra.mxu0 %v3922
    %3964 = vmatprep.subr.mxu0 %v3927
    %3965 = vmatpush1.msra.mxu0 %v3926
    %3966 = vmatprep.subr.mxu0 %v3931
    %3967 = vmatpush1.msra.mxu0 %v3930
    %3968 = vmatprep.subr.mxu0 %v3935
    %3969 = vmatpush1.msra.mxu0 %v3934
    %3970 = vmatprep.subr.mxu0 0.0
    %3971 = vmatpush1.msra.mxu0 0.0
    %3972 = vmatprep.subr.mxu0 0.0
    %3973 = vmatpush1.msra.mxu0 0.0
    %3974 = vmatprep.subr.mxu0 0.0
    %3975 = vmatpush1.msra.mxu0 0.0
    %3976 = vmatprep.subr.mxu0 0.0
    %3977 = vmatpush1.msra.mxu0 0.0
    %3978 = vmatprep.subr.mxu0 0.0
    %3979 = vmatpush1.msra.mxu0 0.0
    %3980 = vmatprep.subr.mxu0 0.0
    %3981 = vmatpush1.msra.mxu0 0.0
    %3982 = vmatprep.subr.mxu0 0.0
    %3983 = vmatpush1.msra.mxu0 0.0
    %3984 = vmatprep.subr.mxu0 0.0
    %3985 = vmatpush1.msra.mxu0 0.0
    %3986 = vmatprep.subr.mxu0 0.0
    %3987 = vmatpush1.msra.mxu0 0.0
    %3988 = vmatprep.subr.mxu0 0.0
    %3989 = vmatpush1.msra.mxu0 0.0
    %3990 = vmatprep.subr.mxu0 0.0
    %3991 = vmatpush1.msra.mxu0 0.0
    %3992 = vmatprep.subr.mxu0 0.0
    %3993 = vmatpush1.msra.mxu0 0.0
    %3994 = vmatprep.subr.mxu0 0.0
    %3995 = vmatpush1.msra.mxu0 0.0
    %3996 = vmatprep.subr.mxu0 0.0
    %3997 = vmatpush1.msra.mxu0 0.0
    %3998 = vmatprep.subr.mxu0 0.0
    %3999 = vmatpush1.msra.mxu0 0.0
    %4000 = vmatprep.subr.mxu0 0.0
    %4001 = vmatpush1.msra.mxu0 0.0
    %4002 = vmatprep.mubr.f32.mxu0 0.0
    %4003 = vmatmul.mubr.f32.gmra.mrb[0].mxu0 %v3823
    %v4004 = vpop.f32.mrb[0].mxu0
    %v4005 = vadd.f32 0.0, %v4004
    %v4006 = vpop.f32.mrb[0].mxu0
    %v4007 = vadd.f32 0.0, %v4006
    %4008 = vdwg.mxu0
    %4009 = vmatprep.subr.mxu0 %v3877
    %4010 = vmatpush1.msra.mxu0 %v3876
    %4011 = vmatprep.subr.mxu0 %v3881
    %4012 = vmatpush1.msra.mxu0 %v3880
    %4013 = vmatprep.subr.mxu0 %v3885
    %4014 = vmatpush1.msra.mxu0 %v3884
    %4015 = vmatprep.subr.mxu0 %v3889
    %4016 = vmatpush1.msra.mxu0 %v3888
    %4017 = vmatprep.subr.mxu0 %v3893
    %4018 = vmatpush1.msra.mxu0 %v3892
    %4019 = vmatprep.subr.mxu0 %v3897
    %4020 = vmatpush1.msra.mxu0 %v3896
    %4021 = vmatprep.subr.mxu0 %v3901
    %4022 = vmatpush1.msra.mxu0 %v3900
    %4023 = vmatprep.subr.mxu0 %v3905
    %4024 = vmatpush1.msra.mxu0 %v3904
    %4025 = vmatprep.subr.mxu0 %v3909
    %4026 = vmatpush1.msra.mxu0 %v3908
    %4027 = vmatprep.subr.mxu0 %v3913
    %4028 = vmatpush1.msra.mxu0 %v3912
    %4029 = vmatprep.subr.mxu0 %v3917
    %4030 = vmatpush1.msra.mxu0 %v3916
    %4031 = vmatprep.subr.mxu0 %v3921
    %4032 = vmatpush1.msra.mxu0 %v3920
    %4033 = vmatprep.subr.mxu0 %v3925
    %4034 = vmatpush1.msra.mxu0 %v3924
    %4035 = vmatprep.subr.mxu0 %v3929
    %4036 = vmatpush1.msra.mxu0 %v3928
    %4037 = vmatprep.subr.mxu0 %v3933
    %4038 = vmatpush1.msra.mxu0 %v3932
    %4039 = vmatprep.subr.mxu0 %v3937
    %4040 = vmatpush1.msra.mxu0 %v3936
    %4041 = vmatprep.subr.mxu0 0.0
    %4042 = vmatpush1.msra.mxu0 0.0
    %4043 = vmatprep.subr.mxu0 0.0
    %4044 = vmatpush1.msra.mxu0 0.0
    %4045 = vmatprep.subr.mxu0 0.0
    %4046 = vmatpush1.msra.mxu0 0.0
    %4047 = vmatprep.subr.mxu0 0.0
    %4048 = vmatpush1.msra.mxu0 0.0
    %4049 = vmatprep.subr.mxu0 0.0
    %4050 = vmatpush1.msra.mxu0 0.0
    %4051 = vmatprep.subr.mxu0 0.0
    %4052 = vmatpush1.msra.mxu0 0.0
    %4053 = vmatprep.subr.mxu0 0.0
    %4054 = vmatpush1.msra.mxu0 0.0
    %4055 = vmatprep.subr.mxu0 0.0
    %4056 = vmatpush1.msra.mxu0 0.0
    %4057 = vmatprep.subr.mxu0 0.0
    %4058 = vmatpush1.msra.mxu0 0.0
    %4059 = vmatprep.subr.mxu0 0.0
    %4060 = vmatpush1.msra.mxu0 0.0
    %4061 = vmatprep.subr.mxu0 0.0
    %4062 = vmatpush1.msra.mxu0 0.0
    %4063 = vmatprep.subr.mxu0 0.0
    %4064 = vmatpush1.msra.mxu0 0.0
    %4065 = vmatprep.subr.mxu0 0.0
    %4066 = vmatpush1.msra.mxu0 0.0
    %4067 = vmatprep.subr.mxu0 0.0
    %4068 = vmatpush1.msra.mxu0 0.0
    %4069 = vmatprep.subr.mxu0 0.0
    %4070 = vmatpush1.msra.mxu0 0.0
    %4071 = vmatprep.subr.mxu0 0.0
    %4072 = vmatpush1.msra.mxu0 0.0
    %4073 = vmatprep.mubr.f32.mxu0 0.0
    %4074 = vmatmul.mubr.f32.gmra.mrb[0].mxu0 %v3823
    %v4075 = vpop.f32.mrb[0].mxu0
    %v4076 = vadd.f32 0.0, %v4075
    %v4077 = vpop.f32.mrb[0].mxu0
    %v4078 = vadd.f32 0.0, %v4077
    %4079 = vdwg.mxu0
    %v4080 = vadd.f32 %v3870, %v4005
    %v4081 = vadd.f32 %v3871, %v4007
    %v4082 = vadd.f32 %v3872, %v4076
    %v4083 = vadd.f32 %v3873, %v4078
    %v4084 = vxor.u32 %v4080, 2147483648
    %v4085 = vmul.f32 %v4084, 1.442695
    %v4086 = vpow.pop %v4085
    %v4087 = vadd.f32 %v4086, 1.0
    %v4088 = vrcp.pop %v4087
    %v4089 = vmul.f32 1.0, %v4088
    %v4090 = vxor.u32 %v4081, 2147483648
    %v4091 = vmul.f32 %v4090, 1.442695
    %v4092 = vpow.pop %v4091
    %v4093 = vadd.f32 %v4092, 1.0
    %v4094 = vrcp.pop %v4093
    %v4095 = vmul.f32 1.0, %v4094
    %v4096 = vtanh.pop %v4082
    %v4097 = vxor.u32 %v4083, 2147483648
    %v4098 = vmul.f32 %v4097, 1.442695
    %v4099 = vpow.pop %v4098
    %v4100 = vadd.f32 %v4099, 1.0
    %v4101 = vrcp.pop %v4100
    %v4102 = vmul.f32 1.0, %v4101
    %v4103 = vmul.f32 %v4095, %v3821
    %v4104 = vmul.f32 %v4089, %v4096
    %v4105 = vadd.f32 %v4103, %v4104
    %v4106 = vtanh.pop %v4105
    %v4107 = vmul.f32 %v4102, %v4106
    %4108 = vst.msk [vmem:[#allocation5 + $0x5] sm:$0x1] %vm57, %v4107
    %4109 = vst.msk [vmem:[#allocation5 + $0x2] sm:$0x1] %vm405, %v4107
    %v4110 = vld [vmem:[%s409] ss:$8 sm:$0xf]
    %v4111 = vld [vmem:[%s407] ss:$8 sm:$0xf]
    %v4113 = vlaneseq
    %v4114 = vshrl.u32 %v4113, 7
    %v4115 = vsub.s32 0, %v4114
    %v4116 = vrot.slane %v4110, %v4115
    %v4117 = vlaneseq
    %v4118 = vshrl.u32 %v4117, 7
    %v4119 = vsub.s32 1, %v4118
    %v4120 = vrot.slane %v4110, %v4119
    %v4121 = vlaneseq
    %v4122 = vshrl.u32 %v4121, 7
    %v4123 = vsub.s32 2, %v4122
    %v4124 = vrot.slane %v4110, %v4123
    %v4125 = vlaneseq
    %v4126 = vshrl.u32 %v4125, 7
    %v4127 = vsub.s32 3, %v4126
    %v4128 = vrot.slane %v4110, %v4127
    %v4134 = vlaneseq
    %v4135 = vshrl.u32 %v4134, 7
    %v4136 = vsub.s32 0, %v4135
    %v4137 = vrot.slane %v4111, %v4136
    %v4138 = vlaneseq
    %v4139 = vshrl.u32 %v4138, 7
    %v4140 = vsub.s32 1, %v4139
    %v4141 = vrot.slane %v4111, %v4140
    %v4142 = vlaneseq
    %v4143 = vshrl.u32 %v4142, 7
    %v4144 = vsub.s32 2, %v4143
    %v4145 = vrot.slane %v4111, %v4144
    %v4146 = vlaneseq
    %v4147 = vshrl.u32 %v4146, 7
    %v4148 = vsub.s32 3, %v4147
    %v4149 = vrot.slane %v4111, %v4148
    %v4154 = vsel %vm140, %v4116, %v4137
    %v4155 = vsel %vm141, %v4120, %v4141
    %v4156 = vsel %vm142, %v4124, %v4145
    %v4157 = vsel %vm143, %v4128, %v4149
    %v4158 = vld [vmem:[#allocation11 + $0x520] sm:$0xff]
    %v4159 = vld [vmem:[#allocation11 + $0x528] sm:$0xff]
    %v4160 = vld [vmem:[#allocation11 + $0x530] sm:$0xff]
    %v4161 = vld [vmem:[#allocation11 + $0x538] sm:$0xff]
    %v4162 = vld [vmem:[#allocation11 + $0x540] sm:$0xff]
    %v4163 = vld [vmem:[#allocation11 + $0x548] sm:$0xff]
    %v4164 = vld [vmem:[#allocation11 + $0x550] sm:$0xff]
    %v4165 = vld [vmem:[#allocation11 + $0x558] sm:$0xff]
    %v4166 = vld [vmem:[#allocation11 + $0x560] sm:$0xff]
    %v4167 = vld [vmem:[#allocation11 + $0x568] sm:$0xff]
    %v4168 = vld [vmem:[#allocation11 + $0x570] sm:$0xff]
    %v4169 = vld [vmem:[#allocation11 + $0x578] sm:$0xff]
    %v4170 = vld [vmem:[#allocation11 + $0x580] sm:$0xff]
    %v4171 = vld [vmem:[#allocation11 + $0x588] sm:$0xff]
    %v4172 = vld [vmem:[#allocation11 + $0x590] sm:$0xff]
    %v4173 = vld [vmem:[#allocation11 + $0x598] sm:$0xff]
    %v4174 = vld [vmem:[#allocation11 + $0x5a0] sm:$0xff]
    %v4175 = vld [vmem:[#allocation11 + $0x5a8] sm:$0xff]
    %v4176 = vld [vmem:[#allocation11 + $0x5b0] sm:$0xff]
    %v4177 = vld [vmem:[#allocation11 + $0x5b8] sm:$0xff]
    %v4178 = vld [vmem:[#allocation11 + $0x5c0] sm:$0xff]
    %v4179 = vld [vmem:[#allocation11 + $0x5c8] sm:$0xff]
    %v4180 = vld [vmem:[#allocation11 + $0x5d0] sm:$0xff]
    %v4181 = vld [vmem:[#allocation11 + $0x5d8] sm:$0xff]
    %v4182 = vld [vmem:[#allocation11 + $0x5e0] sm:$0xff]
    %v4183 = vld [vmem:[#allocation11 + $0x5e8] sm:$0xff]
    %v4184 = vld [vmem:[#allocation11 + $0x5f0] sm:$0xff]
    %v4185 = vld [vmem:[#allocation11 + $0x5f8] sm:$0xff]
    %v4186 = vld [vmem:[#allocation11 + $0x600] sm:$0xff]
    %v4187 = vld [vmem:[#allocation11 + $0x608] sm:$0xff]
    %v4188 = vld [vmem:[#allocation11 + $0x610] sm:$0xff]
    %v4189 = vld [vmem:[#allocation11 + $0x618] sm:$0xff]
    %v4190 = vld [vmem:[#allocation11 + $0x620] sm:$0xff]
    %v4191 = vld [vmem:[#allocation11 + $0x628] sm:$0xff]
    %v4192 = vld [vmem:[#allocation11 + $0x630] sm:$0xff]
    %v4193 = vld [vmem:[#allocation11 + $0x638] sm:$0xff]
    %v4194 = vld [vmem:[#allocation11 + $0x640] sm:$0xff]
    %v4195 = vld [vmem:[#allocation11 + $0x648] sm:$0xff]
    %v4196 = vld [vmem:[#allocation11 + $0x650] sm:$0xff]
    %v4197 = vld [vmem:[#allocation11 + $0x658] sm:$0xff]
    %v4198 = vld [vmem:[#allocation11 + $0x660] sm:$0xff]
    %v4199 = vld [vmem:[#allocation11 + $0x668] sm:$0xff]
    %v4200 = vld [vmem:[#allocation11 + $0x670] sm:$0xff]
    %v4201 = vld [vmem:[#allocation11 + $0x678] sm:$0xff]
    %v4202 = vld [vmem:[#allocation11 + $0x680] sm:$0xff]
    %v4203 = vld [vmem:[#allocation11 + $0x688] sm:$0xff]
    %v4204 = vld [vmem:[#allocation11 + $0x690] sm:$0xff]
    %v4205 = vld [vmem:[#allocation11 + $0x698] sm:$0xff]
    %v4206 = vld [vmem:[#allocation11 + $0x6a0] sm:$0xff]
    %v4207 = vld [vmem:[#allocation11 + $0x6a8] sm:$0xff]
    %v4208 = vld [vmem:[#allocation11 + $0x6b0] sm:$0xff]
    %v4209 = vld [vmem:[#allocation11 + $0x6b8] sm:$0xff]
    %v4210 = vld [vmem:[#allocation11 + $0x6c0] sm:$0xff]
    %v4211 = vld [vmem:[#allocation11 + $0x6c8] sm:$0xff]
    %v4212 = vld [vmem:[#allocation11 + $0x6d0] sm:$0xff]
    %v4213 = vld [vmem:[#allocation11 + $0x6d8] sm:$0xff]
    %v4214 = vld [vmem:[#allocation11 + $0x6e0] sm:$0xff]
    %v4215 = vld [vmem:[#allocation11 + $0x6e8] sm:$0xff]
    %v4216 = vld [vmem:[#allocation11 + $0x6f0] sm:$0xff]
    %v4217 = vld [vmem:[#allocation11 + $0x6f8] sm:$0xff]
    %v4218 = vld [vmem:[#allocation11 + $0x700] sm:$0xff]
    %v4219 = vld [vmem:[#allocation11 + $0x708] sm:$0xff]
    %v4220 = vld [vmem:[#allocation11 + $0x710] sm:$0xff]
    %v4221 = vld [vmem:[#allocation11 + $0x718] sm:$0xff]
    %4222 = vmatprep.subr.mxu0 %v4159
    %4223 = vmatpush1.msra.mxu0 %v4158
    %4224 = vmatprep.subr.mxu0 %v4163
    %4225 = vmatpush1.msra.mxu0 %v4162
    %4226 = vmatprep.subr.mxu0 %v4167
    %4227 = vmatpush1.msra.mxu0 %v4166
    %4228 = vmatprep.subr.mxu0 %v4171
    %4229 = vmatpush1.msra.mxu0 %v4170
    %4230 = vmatprep.subr.mxu0 %v4175
    %4231 = vmatpush1.msra.mxu0 %v4174
    %4232 = vmatprep.subr.mxu0 %v4179
    %4233 = vmatpush1.msra.mxu0 %v4178
    %4234 = vmatprep.subr.mxu0 %v4183
    %4235 = vmatpush1.msra.mxu0 %v4182
    %4236 = vmatprep.subr.mxu0 %v4187
    %4237 = vmatpush1.msra.mxu0 %v4186
    %4238 = vmatprep.subr.mxu0 %v4191
    %4239 = vmatpush1.msra.mxu0 %v4190
    %4240 = vmatprep.subr.mxu0 %v4195
    %4241 = vmatpush1.msra.mxu0 %v4194
    %4242 = vmatprep.subr.mxu0 %v4199
    %4243 = vmatpush1.msra.mxu0 %v4198
    %4244 = vmatprep.subr.mxu0 %v4203
    %4245 = vmatpush1.msra.mxu0 %v4202
    %4246 = vmatprep.subr.mxu0 %v4207
    %4247 = vmatpush1.msra.mxu0 %v4206
    %4248 = vmatprep.subr.mxu0 %v4211
    %4249 = vmatpush1.msra.mxu0 %v4210
    %4250 = vmatprep.subr.mxu0 %v4215
    %4251 = vmatpush1.msra.mxu0 %v4214
    %4252 = vmatprep.subr.mxu0 %v4219
    %4253 = vmatpush1.msra.mxu0 %v4218
    %4254 = vmatprep.subr.mxu0 0.0
    %4255 = vmatpush1.msra.mxu0 0.0
    %4256 = vmatprep.subr.mxu0 0.0
    %4257 = vmatpush1.msra.mxu0 0.0
    %4258 = vmatprep.subr.mxu0 0.0
    %4259 = vmatpush1.msra.mxu0 0.0
    %4260 = vmatprep.subr.mxu0 0.0
    %4261 = vmatpush1.msra.mxu0 0.0
    %4262 = vmatprep.subr.mxu0 0.0
    %4263 = vmatpush1.msra.mxu0 0.0
    %4264 = vmatprep.subr.mxu0 0.0
    %4265 = vmatpush1.msra.mxu0 0.0
    %4266 = vmatprep.subr.mxu0 0.0
    %4267 = vmatpush1.msra.mxu0 0.0
    %4268 = vmatprep.subr.mxu0 0.0
    %4269 = vmatpush1.msra.mxu0 0.0
    %4270 = vmatprep.subr.mxu0 0.0
    %4271 = vmatpush1.msra.mxu0 0.0
    %4272 = vmatprep.subr.mxu0 0.0
    %4273 = vmatpush1.msra.mxu0 0.0
    %4274 = vmatprep.subr.mxu0 0.0
    %4275 = vmatpush1.msra.mxu0 0.0
    %4276 = vmatprep.subr.mxu0 0.0
    %4277 = vmatpush1.msra.mxu0 0.0
    %4278 = vmatprep.subr.mxu0 0.0
    %4279 = vmatpush1.msra.mxu0 0.0
    %4280 = vmatprep.subr.mxu0 0.0
    %4281 = vmatpush1.msra.mxu0 0.0
    %4282 = vmatprep.subr.mxu0 0.0
    %4283 = vmatpush1.msra.mxu0 0.0
    %4284 = vmatprep.subr.mxu0 0.0
    %4285 = vmatpush1.msra.mxu0 0.0
    %4286 = vmatprep.mubr.f32.mxu0 0.0
    %4287 = vmatmul.mubr.f32.gmra.mrb[0].mxu0 %v4107
    %v4288 = vpop.f32.mrb[0].mxu0
    %v4289 = vadd.f32 0.0, %v4288
    %v4290 = vpop.f32.mrb[0].mxu0
    %v4291 = vadd.f32 0.0, %v4290
    %4292 = vdwg.mxu0
    %4293 = vmatprep.subr.mxu0 %v4161
    %4294 = vmatpush1.msra.mxu0 %v4160
    %4295 = vmatprep.subr.mxu0 %v4165
    %4296 = vmatpush1.msra.mxu0 %v4164
    %4297 = vmatprep.subr.mxu0 %v4169
    %4298 = vmatpush1.msra.mxu0 %v4168
    %4299 = vmatprep.subr.mxu0 %v4173
    %4300 = vmatpush1.msra.mxu0 %v4172
    %4301 = vmatprep.subr.mxu0 %v4177
    %4302 = vmatpush1.msra.mxu0 %v4176
    %4303 = vmatprep.subr.mxu0 %v4181
    %4304 = vmatpush1.msra.mxu0 %v4180
    %4305 = vmatprep.subr.mxu0 %v4185
    %4306 = vmatpush1.msra.mxu0 %v4184
    %4307 = vmatprep.subr.mxu0 %v4189
    %4308 = vmatpush1.msra.mxu0 %v4188
    %4309 = vmatprep.subr.mxu0 %v4193
    %4310 = vmatpush1.msra.mxu0 %v4192
    %4311 = vmatprep.subr.mxu0 %v4197
    %4312 = vmatpush1.msra.mxu0 %v4196
    %4313 = vmatprep.subr.mxu0 %v4201
    %4314 = vmatpush1.msra.mxu0 %v4200
    %4315 = vmatprep.subr.mxu0 %v4205
    %4316 = vmatpush1.msra.mxu0 %v4204
    %4317 = vmatprep.subr.mxu0 %v4209
    %4318 = vmatpush1.msra.mxu0 %v4208
    %4319 = vmatprep.subr.mxu0 %v4213
    %4320 = vmatpush1.msra.mxu0 %v4212
    %4321 = vmatprep.subr.mxu0 %v4217
    %4322 = vmatpush1.msra.mxu0 %v4216
    %4323 = vmatprep.subr.mxu0 %v4221
    %4324 = vmatpush1.msra.mxu0 %v4220
    %4325 = vmatprep.subr.mxu0 0.0
    %4326 = vmatpush1.msra.mxu0 0.0
    %4327 = vmatprep.subr.mxu0 0.0
    %4328 = vmatpush1.msra.mxu0 0.0
    %4329 = vmatprep.subr.mxu0 0.0
    %4330 = vmatpush1.msra.mxu0 0.0
    %4331 = vmatprep.subr.mxu0 0.0
    %4332 = vmatpush1.msra.mxu0 0.0
    %4333 = vmatprep.subr.mxu0 0.0
    %4334 = vmatpush1.msra.mxu0 0.0
    %4335 = vmatprep.subr.mxu0 0.0
    %4336 = vmatpush1.msra.mxu0 0.0
    %4337 = vmatprep.subr.mxu0 0.0
    %4338 = vmatpush1.msra.mxu0 0.0
    %4339 = vmatprep.subr.mxu0 0.0
    %4340 = vmatpush1.msra.mxu0 0.0
    %4341 = vmatprep.subr.mxu0 0.0
    %4342 = vmatpush1.msra.mxu0 0.0
    %4343 = vmatprep.subr.mxu0 0.0
    %4344 = vmatpush1.msra.mxu0 0.0
    %4345 = vmatprep.subr.mxu0 0.0
    %4346 = vmatpush1.msra.mxu0 0.0
    %4347 = vmatprep.subr.mxu0 0.0
    %4348 = vmatpush1.msra.mxu0 0.0
    %4349 = vmatprep.subr.mxu0 0.0
    %4350 = vmatpush1.msra.mxu0 0.0
    %4351 = vmatprep.subr.mxu0 0.0
    %4352 = vmatpush1.msra.mxu0 0.0
    %4353 = vmatprep.subr.mxu0 0.0
    %4354 = vmatpush1.msra.mxu0 0.0
    %4355 = vmatprep.subr.mxu0 0.0
    %4356 = vmatpush1.msra.mxu0 0.0
    %4357 = vmatprep.mubr.f32.mxu0 0.0
    %4358 = vmatmul.mubr.f32.gmra.mrb[0].mxu0 %v4107
    %v4359 = vpop.f32.mrb[0].mxu0
    %v4360 = vadd.f32 0.0, %v4359
    %v4361 = vpop.f32.mrb[0].mxu0
    %v4362 = vadd.f32 0.0, %v4361
    %4363 = vdwg.mxu0
    %v4364 = vadd.f32 %v4154, %v4289
    %v4365 = vadd.f32 %v4155, %v4291
    %v4366 = vadd.f32 %v4156, %v4360
    %v4367 = vadd.f32 %v4157, %v4362
    %v4368 = vxor.u32 %v4364, 2147483648
    %v4369 = vmul.f32 %v4368, 1.442695
    %v4370 = vpow.pop %v4369
    %v4371 = vadd.f32 %v4370, 1.0
    %v4372 = vrcp.pop %v4371
    %v4373 = vmul.f32 1.0, %v4372
    %v4374 = vxor.u32 %v4365, 2147483648
    %v4375 = vmul.f32 %v4374, 1.442695
    %v4376 = vpow.pop %v4375
    %v4377 = vadd.f32 %v4376, 1.0
    %v4378 = vrcp.pop %v4377
    %v4379 = vmul.f32 1.0, %v4378
    %v4380 = vtanh.pop %v4366
    %v4381 = vxor.u32 %v4367, 2147483648
    %v4382 = vmul.f32 %v4381, 1.442695
    %v4383 = vpow.pop %v4382
    %v4384 = vadd.f32 %v4383, 1.0
    %v4385 = vrcp.pop %v4384
    %v4386 = vmul.f32 1.0, %v4385
    %v4387 = vmul.f32 %v4379, %v4105
    %v4388 = vmul.f32 %v4373, %v4380
    %v4389 = vadd.f32 %v4387, %v4388
    %v4390 = vtanh.pop %v4389
    %v4391 = vmul.f32 %v4386, %v4390
    %4392 = vst.msk [vmem:[#allocation5 + $0x6] sm:$0x1] %vm57, %v4391
    %4393 = vst.msk [vmem:[#allocation5 + $0x1] sm:$0x1] %vm405, %v4391
    %v4394 = vld [vmem:[%s351] ss:$8 sm:$0xf]
    %v4395 = vld [vmem:[#allocation3] ss:$8 sm:$0xf]
    %v4397 = vlaneseq
    %v4398 = vshrl.u32 %v4397, 7
    %v4399 = vsub.s32 0, %v4398
    %v4400 = vrot.slane %v4394, %v4399
    %v4401 = vlaneseq
    %v4402 = vshrl.u32 %v4401, 7
    %v4403 = vsub.s32 1, %v4402
    %v4404 = vrot.slane %v4394, %v4403
    %v4405 = vlaneseq
    %v4406 = vshrl.u32 %v4405, 7
    %v4407 = vsub.s32 2, %v4406
    %v4408 = vrot.slane %v4394, %v4407
    %v4409 = vlaneseq
    %v4410 = vshrl.u32 %v4409, 7
    %v4411 = vsub.s32 3, %v4410
    %v4412 = vrot.slane %v4394, %v4411
    %v4418 = vlaneseq
    %v4419 = vshrl.u32 %v4418, 7
    %v4420 = vsub.s32 0, %v4419
    %v4421 = vrot.slane %v4395, %v4420
    %v4422 = vlaneseq
    %v4423 = vshrl.u32 %v4422, 7
    %v4424 = vsub.s32 1, %v4423
    %v4425 = vrot.slane %v4395, %v4424
    %v4426 = vlaneseq
    %v4427 = vshrl.u32 %v4426, 7
    %v4428 = vsub.s32 2, %v4427
    %v4429 = vrot.slane %v4395, %v4428
    %v4430 = vlaneseq
    %v4431 = vshrl.u32 %v4430, 7
    %v4432 = vsub.s32 3, %v4431
    %v4433 = vrot.slane %v4395, %v4432
    %v4438 = vsel %vm140, %v4400, %v4421
    %v4439 = vsel %vm141, %v4404, %v4425
    %v4440 = vsel %vm142, %v4408, %v4429
    %v4441 = vsel %vm143, %v4412, %v4433
    %v4442 = vld [vmem:[#allocation11 + $0x520] sm:$0xff]
    %v4443 = vld [vmem:[#allocation11 + $0x528] sm:$0xff]
    %v4444 = vld [vmem:[#allocation11 + $0x530] sm:$0xff]
    %v4445 = vld [vmem:[#allocation11 + $0x538] sm:$0xff]
    %v4446 = vld [vmem:[#allocation11 + $0x540] sm:$0xff]
    %v4447 = vld [vmem:[#allocation11 + $0x548] sm:$0xff]
    %v4448 = vld [vmem:[#allocation11 + $0x550] sm:$0xff]
    %v4449 = vld [vmem:[#allocation11 + $0x558] sm:$0xff]
    %v4450 = vld [vmem:[#allocation11 + $0x560] sm:$0xff]
    %v4451 = vld [vmem:[#allocation11 + $0x568] sm:$0xff]
    %v4452 = vld [vmem:[#allocation11 + $0x570] sm:$0xff]
    %v4453 = vld [vmem:[#allocation11 + $0x578] sm:$0xff]
    %v4454 = vld [vmem:[#allocation11 + $0x580] sm:$0xff]
    %v4455 = vld [vmem:[#allocation11 + $0x588] sm:$0xff]
    %v4456 = vld [vmem:[#allocation11 + $0x590] sm:$0xff]
    %v4457 = vld [vmem:[#allocation11 + $0x598] sm:$0xff]
    %v4458 = vld [vmem:[#allocation11 + $0x5a0] sm:$0xff]
    %v4459 = vld [vmem:[#allocation11 + $0x5a8] sm:$0xff]
    %v4460 = vld [vmem:[#allocation11 + $0x5b0] sm:$0xff]
    %v4461 = vld [vmem:[#allocation11 + $0x5b8] sm:$0xff]
    %v4462 = vld [vmem:[#allocation11 + $0x5c0] sm:$0xff]
    %v4463 = vld [vmem:[#allocation11 + $0x5c8] sm:$0xff]
    %v4464 = vld [vmem:[#allocation11 + $0x5d0] sm:$0xff]
    %v4465 = vld [vmem:[#allocation11 + $0x5d8] sm:$0xff]
    %v4466 = vld [vmem:[#allocation11 + $0x5e0] sm:$0xff]
    %v4467 = vld [vmem:[#allocation11 + $0x5e8] sm:$0xff]
    %v4468 = vld [vmem:[#allocation11 + $0x5f0] sm:$0xff]
    %v4469 = vld [vmem:[#allocation11 + $0x5f8] sm:$0xff]
    %v4470 = vld [vmem:[#allocation11 + $0x600] sm:$0xff]
    %v4471 = vld [vmem:[#allocation11 + $0x608] sm:$0xff]
    %v4472 = vld [vmem:[#allocation11 + $0x610] sm:$0xff]
    %v4473 = vld [vmem:[#allocation11 + $0x618] sm:$0xff]
    %v4474 = vld [vmem:[#allocation11 + $0x620] sm:$0xff]
    %v4475 = vld [vmem:[#allocation11 + $0x628] sm:$0xff]
    %v4476 = vld [vmem:[#allocation11 + $0x630] sm:$0xff]
    %v4477 = vld [vmem:[#allocation11 + $0x638] sm:$0xff]
    %v4478 = vld [vmem:[#allocation11 + $0x640] sm:$0xff]
    %v4479 = vld [vmem:[#allocation11 + $0x648] sm:$0xff]
    %v4480 = vld [vmem:[#allocation11 + $0x650] sm:$0xff]
    %v4481 = vld [vmem:[#allocation11 + $0x658] sm:$0xff]
    %v4482 = vld [vmem:[#allocation11 + $0x660] sm:$0xff]
    %v4483 = vld [vmem:[#allocation11 + $0x668] sm:$0xff]
    %v4484 = vld [vmem:[#allocation11 + $0x670] sm:$0xff]
    %v4485 = vld [vmem:[#allocation11 + $0x678] sm:$0xff]
    %v4486 = vld [vmem:[#allocation11 + $0x680] sm:$0xff]
    %v4487 = vld [vmem:[#allocation11 + $0x688] sm:$0xff]
    %v4488 = vld [vmem:[#allocation11 + $0x690] sm:$0xff]
    %v4489 = vld [vmem:[#allocation11 + $0x698] sm:$0xff]
    %v4490 = vld [vmem:[#allocation11 + $0x6a0] sm:$0xff]
    %v4491 = vld [vmem:[#allocation11 + $0x6a8] sm:$0xff]
    %v4492 = vld [vmem:[#allocation11 + $0x6b0] sm:$0xff]
    %v4493 = vld [vmem:[#allocation11 + $0x6b8] sm:$0xff]
    %v4494 = vld [vmem:[#allocation11 + $0x6c0] sm:$0xff]
    %v4495 = vld [vmem:[#allocation11 + $0x6c8] sm:$0xff]
    %v4496 = vld [vmem:[#allocation11 + $0x6d0] sm:$0xff]
    %v4497 = vld [vmem:[#allocation11 + $0x6d8] sm:$0xff]
    %v4498 = vld [vmem:[#allocation11 + $0x6e0] sm:$0xff]
    %v4499 = vld [vmem:[#allocation11 + $0x6e8] sm:$0xff]
    %v4500 = vld [vmem:[#allocation11 + $0x6f0] sm:$0xff]
    %v4501 = vld [vmem:[#allocation11 + $0x6f8] sm:$0xff]
    %v4502 = vld [vmem:[#allocation11 + $0x700] sm:$0xff]
    %v4503 = vld [vmem:[#allocation11 + $0x708] sm:$0xff]
    %v4504 = vld [vmem:[#allocation11 + $0x710] sm:$0xff]
    %v4505 = vld [vmem:[#allocation11 + $0x718] sm:$0xff]
    %4506 = vmatprep.subr.mxu0 %v4443
    %4507 = vmatpush1.msra.mxu0 %v4442
    %4508 = vmatprep.subr.mxu0 %v4447
    %4509 = vmatpush1.msra.mxu0 %v4446
    %4510 = vmatprep.subr.mxu0 %v4451
    %4511 = vmatpush1.msra.mxu0 %v4450
    %4512 = vmatprep.subr.mxu0 %v4455
    %4513 = vmatpush1.msra.mxu0 %v4454
    %4514 = vmatprep.subr.mxu0 %v4459
    %4515 = vmatpush1.msra.mxu0 %v4458
    %4516 = vmatprep.subr.mxu0 %v4463
    %4517 = vmatpush1.msra.mxu0 %v4462
    %4518 = vmatprep.subr.mxu0 %v4467
    %4519 = vmatpush1.msra.mxu0 %v4466
    %4520 = vmatprep.subr.mxu0 %v4471
    %4521 = vmatpush1.msra.mxu0 %v4470
    %4522 = vmatprep.subr.mxu0 %v4475
    %4523 = vmatpush1.msra.mxu0 %v4474
    %4524 = vmatprep.subr.mxu0 %v4479
    %4525 = vmatpush1.msra.mxu0 %v4478
    %4526 = vmatprep.subr.mxu0 %v4483
    %4527 = vmatpush1.msra.mxu0 %v4482
    %4528 = vmatprep.subr.mxu0 %v4487
    %4529 = vmatpush1.msra.mxu0 %v4486
    %4530 = vmatprep.subr.mxu0 %v4491
    %4531 = vmatpush1.msra.mxu0 %v4490
    %4532 = vmatprep.subr.mxu0 %v4495
    %4533 = vmatpush1.msra.mxu0 %v4494
    %4534 = vmatprep.subr.mxu0 %v4499
    %4535 = vmatpush1.msra.mxu0 %v4498
    %4536 = vmatprep.subr.mxu0 %v4503
    %4537 = vmatpush1.msra.mxu0 %v4502
    %4538 = vmatprep.subr.mxu0 0.0
    %4539 = vmatpush1.msra.mxu0 0.0
    %4540 = vmatprep.subr.mxu0 0.0
    %4541 = vmatpush1.msra.mxu0 0.0
    %4542 = vmatprep.subr.mxu0 0.0
    %4543 = vmatpush1.msra.mxu0 0.0
    %4544 = vmatprep.subr.mxu0 0.0
    %4545 = vmatpush1.msra.mxu0 0.0
    %4546 = vmatprep.subr.mxu0 0.0
    %4547 = vmatpush1.msra.mxu0 0.0
    %4548 = vmatprep.subr.mxu0 0.0
    %4549 = vmatpush1.msra.mxu0 0.0
    %4550 = vmatprep.subr.mxu0 0.0
    %4551 = vmatpush1.msra.mxu0 0.0
    %4552 = vmatprep.subr.mxu0 0.0
    %4553 = vmatpush1.msra.mxu0 0.0
    %4554 = vmatprep.subr.mxu0 0.0
    %4555 = vmatpush1.msra.mxu0 0.0
    %4556 = vmatprep.subr.mxu0 0.0
    %4557 = vmatpush1.msra.mxu0 0.0
    %4558 = vmatprep.subr.mxu0 0.0
    %4559 = vmatpush1.msra.mxu0 0.0
    %4560 = vmatprep.subr.mxu0 0.0
    %4561 = vmatpush1.msra.mxu0 0.0
    %4562 = vmatprep.subr.mxu0 0.0
    %4563 = vmatpush1.msra.mxu0 0.0
    %4564 = vmatprep.subr.mxu0 0.0
    %4565 = vmatpush1.msra.mxu0 0.0
    %4566 = vmatprep.subr.mxu0 0.0
    %4567 = vmatpush1.msra.mxu0 0.0
    %4568 = vmatprep.subr.mxu0 0.0
    %4569 = vmatpush1.msra.mxu0 0.0
    %4570 = vmatprep.mubr.f32.mxu0 0.0
    %4571 = vmatmul.mubr.f32.gmra.mrb[0].mxu0 %v4391
    %v4572 = vpop.f32.mrb[0].mxu0
    %v4573 = vadd.f32 0.0, %v4572
    %v4574 = vpop.f32.mrb[0].mxu0
    %v4575 = vadd.f32 0.0, %v4574
    %4576 = vdwg.mxu0
    %4577 = vmatprep.subr.mxu0 %v4445
    %4578 = vmatpush1.msra.mxu0 %v4444
    %4579 = vmatprep.subr.mxu0 %v4449
    %4580 = vmatpush1.msra.mxu0 %v4448
    %4581 = vmatprep.subr.mxu0 %v4453
    %4582 = vmatpush1.msra.mxu0 %v4452
    %4583 = vmatprep.subr.mxu0 %v4457
    %4584 = vmatpush1.msra.mxu0 %v4456
    %4585 = vmatprep.subr.mxu0 %v4461
    %4586 = vmatpush1.msra.mxu0 %v4460
    %4587 = vmatprep.subr.mxu0 %v4465
    %4588 = vmatpush1.msra.mxu0 %v4464
    %4589 = vmatprep.subr.mxu0 %v4469
    %4590 = vmatpush1.msra.mxu0 %v4468
    %4591 = vmatprep.subr.mxu0 %v4473
    %4592 = vmatpush1.msra.mxu0 %v4472
    %4593 = vmatprep.subr.mxu0 %v4477
    %4594 = vmatpush1.msra.mxu0 %v4476
    %4595 = vmatprep.subr.mxu0 %v4481
    %4596 = vmatpush1.msra.mxu0 %v4480
    %4597 = vmatprep.subr.mxu0 %v4485
    %4598 = vmatpush1.msra.mxu0 %v4484
    %4599 = vmatprep.subr.mxu0 %v4489
    %4600 = vmatpush1.msra.mxu0 %v4488
    %4601 = vmatprep.subr.mxu0 %v4493
    %4602 = vmatpush1.msra.mxu0 %v4492
    %4603 = vmatprep.subr.mxu0 %v4497
    %4604 = vmatpush1.msra.mxu0 %v4496
    %4605 = vmatprep.subr.mxu0 %v4501
    %4606 = vmatpush1.msra.mxu0 %v4500
    %4607 = vmatprep.subr.mxu0 %v4505
    %4608 = vmatpush1.msra.mxu0 %v4504
    %4609 = vmatprep.subr.mxu0 0.0
    %4610 = vmatpush1.msra.mxu0 0.0
    %4611 = vmatprep.subr.mxu0 0.0
    %4612 = vmatpush1.msra.mxu0 0.0
    %4613 = vmatprep.subr.mxu0 0.0
    %4614 = vmatpush1.msra.mxu0 0.0
    %4615 = vmatprep.subr.mxu0 0.0
    %4616 = vmatpush1.msra.mxu0 0.0
    %4617 = vmatprep.subr.mxu0 0.0
    %4618 = vmatpush1.msra.mxu0 0.0
    %4619 = vmatprep.subr.mxu0 0.0
    %4620 = vmatpush1.msra.mxu0 0.0
    %4621 = vmatprep.subr.mxu0 0.0
    %4622 = vmatpush1.msra.mxu0 0.0
    %4623 = vmatprep.subr.mxu0 0.0
    %4624 = vmatpush1.msra.mxu0 0.0
    %4625 = vmatprep.subr.mxu0 0.0
    %4626 = vmatpush1.msra.mxu0 0.0
    %4627 = vmatprep.subr.mxu0 0.0
    %4628 = vmatpush1.msra.mxu0 0.0
    %4629 = vmatprep.subr.mxu0 0.0
    %4630 = vmatpush1.msra.mxu0 0.0
    %4631 = vmatprep.subr.mxu0 0.0
    %4632 = vmatpush1.msra.mxu0 0.0
    %4633 = vmatprep.subr.mxu0 0.0
    %4634 = vmatpush1.msra.mxu0 0.0
    %4635 = vmatprep.subr.mxu0 0.0
    %4636 = vmatpush1.msra.mxu0 0.0
    %4637 = vmatprep.subr.mxu0 0.0
    %4638 = vmatpush1.msra.mxu0 0.0
    %4639 = vmatprep.subr.mxu0 0.0
    %4640 = vmatpush1.msra.mxu0 0.0
    %4641 = vmatprep.mubr.f32.mxu0 0.0
    %4642 = vmatmul.mubr.f32.gmra.mrb[0].mxu0 %v4391
    %v4643 = vpop.f32.mrb[0].mxu0
    %v4644 = vadd.f32 0.0, %v4643
    %v4645 = vpop.f32.mrb[0].mxu0
    %v4646 = vadd.f32 0.0, %v4645
    %4647 = vdwg.mxu0
    %v4648 = vadd.f32 %v4438, %v4573
    %v4649 = vadd.f32 %v4439, %v4575
    %v4650 = vadd.f32 %v4440, %v4644
    %v4651 = vadd.f32 %v4441, %v4646
    %v4652 = vxor.u32 %v4648, 2147483648
    %v4653 = vmul.f32 %v4652, 1.442695
    %v4654 = vpow.pop %v4653
    %v4655 = vadd.f32 %v4654, 1.0
    %v4656 = vrcp.pop %v4655
    %v4657 = vmul.f32 1.0, %v4656
    %v4658 = vxor.u32 %v4649, 2147483648
    %v4659 = vmul.f32 %v4658, 1.442695
    %v4660 = vpow.pop %v4659
    %v4661 = vadd.f32 %v4660, 1.0
    %v4662 = vrcp.pop %v4661
    %v4663 = vmul.f32 1.0, %v4662
    %v4664 = vtanh.pop %v4650
    %v4665 = vxor.u32 %v4651, 2147483648
    %v4666 = vmul.f32 %v4665, 1.442695
    %v4667 = vpow.pop %v4666
    %v4668 = vadd.f32 %v4667, 1.0
    %v4669 = vrcp.pop %v4668
    %v4670 = vmul.f32 1.0, %v4669
    %v4671 = vmul.f32 %v4663, %v4389
    %v4672 = vmul.f32 %v4657, %v4664
    %v4673 = vadd.f32 %v4671, %v4672
    %v4674 = vtanh.pop %v4673
    %v4675 = vmul.f32 %v4670, %v4674
    %4676 = vst.msk [vmem:[#allocation5 + $0x7] sm:$0x1] %vm57, %v4675
    %4677 = vst.msk [vmem:[#allocation5] sm:$0x1] %vm405, %v4675
    %v4678 = vld [vmem:[#allocation5] sm:$0xff]
    %v4679 = vld [vmem:[#allocation11 + $0x740] sm:$0xff]
    %v4680 = vld [vmem:[#allocation11 + $0x748] sm:$0xff]
    %v4681 = vld [vmem:[#allocation11 + $0x760] sm:$0xff]
    %v4682 = vld [vmem:[#allocation11 + $0x768] sm:$0xff]
    %v4683 = vld [vmem:[#allocation11 + $0x780] sm:$0xff]
    %v4684 = vld [vmem:[#allocation11 + $0x788] sm:$0xff]
    %v4685 = vld [vmem:[#allocation11 + $0x7a0] sm:$0xff]
    %v4686 = vld [vmem:[#allocation11 + $0x7a8] sm:$0xff]
    %v4687 = vld [vmem:[#allocation11 + $0x7c0] sm:$0xff]
    %v4688 = vld [vmem:[#allocation11 + $0x7c8] sm:$0xff]
    %v4689 = vld [vmem:[#allocation11 + $0x7e0] sm:$0xff]
    %v4690 = vld [vmem:[#allocation11 + $0x7e8] sm:$0xff]
    %v4691 = vld [vmem:[#allocation11 + $0x800] sm:$0xff]
    %v4692 = vld [vmem:[#allocation11 + $0x808] sm:$0xff]
    %v4693 = vld [vmem:[#allocation11 + $0x820] sm:$0xff]
    %v4694 = vld [vmem:[#allocation11 + $0x828] sm:$0xff]
    %v4695 = vld [vmem:[#allocation11 + $0x840] sm:$0xff]
    %v4696 = vld [vmem:[#allocation11 + $0x848] sm:$0xff]
    %v4697 = vld [vmem:[#allocation11 + $0x860] sm:$0xff]
    %v4698 = vld [vmem:[#allocation11 + $0x868] sm:$0xff]
    %v4699 = vld [vmem:[#allocation11 + $0x880] sm:$0xff]
    %v4700 = vld [vmem:[#allocation11 + $0x888] sm:$0xff]
    %v4701 = vld [vmem:[#allocation11 + $0x8a0] sm:$0xff]
    %v4702 = vld [vmem:[#allocation11 + $0x8a8] sm:$0xff]
    %v4703 = vld [vmem:[#allocation11 + $0x8c0] sm:$0xff]
    %v4704 = vld [vmem:[#allocation11 + $0x8c8] sm:$0xff]
    %v4705 = vld [vmem:[#allocation11 + $0x8e0] sm:$0xff]
    %v4706 = vld [vmem:[#allocation11 + $0x8e8] sm:$0xff]
    %v4707 = vld [vmem:[#allocation11 + $0x900] sm:$0xff]
    %v4708 = vld [vmem:[#allocation11 + $0x908] sm:$0xff]
    %v4709 = vld [vmem:[#allocation11 + $0x920] sm:$0xff]
    %v4710 = vld [vmem:[#allocation11 + $0x928] sm:$0xff]
    %s4711 = scalar_lea.vmem [#allocation11], 2368
    %v4712 = vld [vmem:[%s4711] ss:$8 sm:$0xf]
    %v4714 = vlaneseq
    %v4715 = vshrl.u32 %v4714, 7
    %v4716 = vsub.s32 0, %v4715
    %v4717 = vrot.slane %v4712, %v4716
    %4719 = vmatprep.subr.mxu0 %v4680
    %4720 = vmatpush1.msra.mxu0 %v4679
    %4721 = vmatprep.subr.mxu0 %v4682
    %4722 = vmatpush1.msra.mxu0 %v4681
    %4723 = vmatprep.subr.mxu0 %v4684
    %4724 = vmatpush1.msra.mxu0 %v4683
    %4725 = vmatprep.subr.mxu0 %v4686
    %4726 = vmatpush1.msra.mxu0 %v4685
    %4727 = vmatprep.subr.mxu0 %v4688
    %4728 = vmatpush1.msra.mxu0 %v4687
    %4729 = vmatprep.subr.mxu0 %v4690
    %4730 = vmatpush1.msra.mxu0 %v4689
    %4731 = vmatprep.subr.mxu0 %v4692
    %4732 = vmatpush1.msra.mxu0 %v4691
    %4733 = vmatprep.subr.mxu0 %v4694
    %4734 = vmatpush1.msra.mxu0 %v4693
    %4735 = vmatprep.subr.mxu0 %v4696
    %4736 = vmatpush1.msra.mxu0 %v4695
    %4737 = vmatprep.subr.mxu0 %v4698
    %4738 = vmatpush1.msra.mxu0 %v4697
    %4739 = vmatprep.subr.mxu0 %v4700
    %4740 = vmatpush1.msra.mxu0 %v4699
    %4741 = vmatprep.subr.mxu0 %v4702
    %4742 = vmatpush1.msra.mxu0 %v4701
    %4743 = vmatprep.subr.mxu0 %v4704
    %4744 = vmatpush1.msra.mxu0 %v4703
    %4745 = vmatprep.subr.mxu0 %v4706
    %4746 = vmatpush1.msra.mxu0 %v4705
    %4747 = vmatprep.subr.mxu0 %v4708
    %4748 = vmatpush1.msra.mxu0 %v4707
    %4749 = vmatprep.subr.mxu0 %v4710
    %4750 = vmatpush1.msra.mxu0 %v4709
    %4751 = vmatprep.subr.mxu0 0.0
    %4752 = vmatpush1.msra.mxu0 0.0
    %4753 = vmatprep.subr.mxu0 0.0
    %4754 = vmatpush1.msra.mxu0 0.0
    %4755 = vmatprep.subr.mxu0 0.0
    %4756 = vmatpush1.msra.mxu0 0.0
    %4757 = vmatprep.subr.mxu0 0.0
    %4758 = vmatpush1.msra.mxu0 0.0
    %4759 = vmatprep.subr.mxu0 0.0
    %4760 = vmatpush1.msra.mxu0 0.0
    %4761 = vmatprep.subr.mxu0 0.0
    %4762 = vmatpush1.msra.mxu0 0.0
    %4763 = vmatprep.subr.mxu0 0.0
    %4764 = vmatpush1.msra.mxu0 0.0
    %4765 = vmatprep.subr.mxu0 0.0
    %4766 = vmatpush1.msra.mxu0 0.0
    %4767 = vmatprep.subr.mxu0 0.0
    %4768 = vmatpush1.msra.mxu0 0.0
    %4769 = vmatprep.subr.mxu0 0.0
    %4770 = vmatpush1.msra.mxu0 0.0
    %4771 = vmatprep.subr.mxu0 0.0
    %4772 = vmatpush1.msra.mxu0 0.0
    %4773 = vmatprep.subr.mxu0 0.0
    %4774 = vmatpush1.msra.mxu0 0.0
    %4775 = vmatprep.subr.mxu0 0.0
    %4776 = vmatpush1.msra.mxu0 0.0
    %4777 = vmatprep.subr.mxu0 0.0
    %4778 = vmatpush1.msra.mxu0 0.0
    %4779 = vmatprep.subr.mxu0 0.0
    %4780 = vmatpush1.msra.mxu0 0.0
    %4781 = vmatprep.subr.mxu0 0.0
    %4782 = vmatpush1.msra.mxu0 0.0
    %4783 = vmatprep.mubr.f32.mxu0 0.0
    %4784 = vmatmul.mubr.f32.gmra.mrb[0].mxu0 %v4678
    %v4785 = vpop.f32.mrb[0].mxu0
    %v4786 = vadd.f32 %v4717, %v4785
    %v4787 = vpop.f32.mrb[0].mxu0
    %4788 = vdwg.mxu0
    %vm4789 = vcmask 130048
    %v4790 = vsel %vm4789, %v4786, -inf
    %4791 = vmax.xlane.f32.xlu0 %v4790
    %v4792 = vpop.xlane.xlu0 %4791
    %v4793 = vsub.f32 %v4786, %v4792
    %v4794 = vmul.f32 %v4793, 1.442695
    %v4795 = vpow.pop %v4794
    %v4796 = vsel %vm4789, %v4795, 0.0
    %4797 = vadd.xlane.f32.xlu0 %v4796
    %v4798 = vpop.xlane.xlu0 %4797
    %v4799 = vlog2.pop %v4798
    %v4800 = vmul.f32 %v4799, 0.6931472
    %v4801 = vsub.f32 %v4793, %v4800
    %4802 = vst.msk [vmem:[#allocation13] sm:$0xff] %vm4789, %v4801
    // Predicated region
    $region26: #{dnn_pos_tagger_forward.1} parent=1 // pred_check
      _
    $region27: #{dnn_pos_tagger_forward.1} parent=1 // pred_check_branch
      %4804 = sbr.rel (0) target = $region29
    $region28: #{dnn_pos_tagger_forward.1} parent=1 // pred_region
      %s4806 = ssub.s32 128, 128
      %4807 = vsyncadd [#allocation8], %s4806
      %s4809 = sshll.u32 [#allocation13], 4
      %s4810 = int_to_ptr.vmem [resolvable:$true] %s4809
      %4812 = dma.vmem_to_hbm [thread:$0]  %s4810, 128, %s3, [#allocation8]
    $region29: #{dnn_pos_tagger_forward.1} parent=1 // pred_fallthru
      _
    // Predicated region
    $region30: #{dnn_pos_tagger_forward.1} parent=1 // pred_check
      _
    $region31: #{dnn_pos_tagger_forward.1} parent=1 // pred_check_branch
      %4814 = sbr.rel (0) target = $region33
    $region32: #{dnn_pos_tagger_forward.1} parent=1 // pred_region
      %4815 = dma.done [#allocation8], 128
    $region33: #{dnn_pos_tagger_forward.1} parent=1 // pred_fallthru
      _
    %4816 = vsyncpa [#allocation7], 1
    %4817 = vsyncpa [#allocation12], 1
    %4818 = vsyncpa [#allocation8], 1
    %4819 = vsyncpa [#allocation9], 1

</llo_original>
